<compile_context>
chip_gen: v5e
topology: v5e:2x2
jax: 0.10.0
libtpu: 0.0.40
codegen_flags: <defaults>
</compile_context>

<pallas_src>
import jax
import jax.numpy as jnp
from jax.experimental import pallas as pl
from jax.experimental.pallas import tpu as pltpu

IN_DIM = 3 * 32 * 32   # 3072
H0_DIM = 32 * 32       # 1024
H1_DIM = 512
OUT_DIM = 100
OUT_PAD = 128          # lane-dense padded output width
NEG_SLOPE = 0.01       # nn.LeakyReLU() default


def _round_up(x, m):
    return ((x + m - 1) // m) * m


def _leaky_relu(x):
    return jnp.where(x > 0, x, NEG_SLOPE * x)


def mlp_kernel(x_ref, w0_ref, b0_ref, w1_ref, b1_ref, w2_ref, b2_ref, o_ref):
    # fc: (TM, 3072)bf16 @ (3072, 1024)bf16 -> f32 acc, bias + LeakyReLU in f32
    h = jnp.dot(x_ref[...], w0_ref[...], preferred_element_type=jnp.float32)
    h = _leaky_relu(h + b0_ref[...])
    # dropout (eval) -> identity

    # fc1: (TM, 1024) @ (1024, 512)
    h = jnp.dot(h.astype(jnp.bfloat16), w1_ref[...], preferred_element_type=jnp.float32)
    h = _leaky_relu(h + b1_ref[...])
    # dropout (eval) -> identity

    # fc2: (TM, 512) @ (512, 128)  (columns 100..127 are zero padding)
    out = jnp.dot(h.astype(jnp.bfloat16), w2_ref[...], preferred_element_type=jnp.float32)
    o_ref[...] = (out + b2_ref[...]).astype(o_ref.dtype)


def mlp_forward(x_nchw, params, *, tm=None):
    B = x_nchw.shape[0]
    w0, b0, w1, b1, w2, b2 = params

    # Flatten exactly like torch's x.view(B, -1); stream activations as bf16.
    x_flat = x_nchw.reshape(B, -1).astype(jnp.bfloat16)

    # bf16 weight streaming; biases stay f32 (added post-accumulation).
    w0b = w0.astype(jnp.bfloat16)
    w1b = w1.astype(jnp.bfloat16)
    # Pad the last layer to 128 lanes (zero columns contribute nothing).
    w2b = jnp.pad(w2, ((0, 0), (0, OUT_PAD - OUT_DIM))).astype(jnp.bfloat16)
    b2p = jnp.pad(b2, ((0, 0), (0, OUT_PAD - OUT_DIM)))

    # Batch tile: 256 rows for large B (matches v6e/v7x 256-wide MXU),
    # otherwise pad the tiny batch up to a sublane multiple and use one tile.
    if tm is None:
        tm = 256 if B >= 256 else _round_up(max(B, 1), 8)
    B_pad = _round_up(B, tm)
    if B_pad != B:
        x_flat = jnp.pad(x_flat, ((0, B_pad - B), (0, 0)))

    grid = (B_pad // tm,)

    # Weights/biases: block index never changes -> DMA'd once, VMEM-resident.
    resident = lambda shape: pl.BlockSpec(shape, lambda i: (0,) * len(shape))

    out_padded = pl.pallas_call(
        mlp_kernel,
        out_shape=jax.ShapeDtypeStruct((B_pad, OUT_PAD), jnp.float32),
        grid=grid,
        in_specs=[
            pl.BlockSpec((tm, IN_DIM), lambda i: (i, 0)),   # x: tiled over batch
            resident((IN_DIM, H0_DIM)),
            resident((1, H0_DIM)),
            resident((H0_DIM, H1_DIM)),
            resident((1, H1_DIM)),
            resident((H1_DIM, OUT_PAD)),
            resident((1, OUT_PAD)),
        ],
        out_specs=pl.BlockSpec((tm, OUT_PAD), lambda i: (i, 0)),
        compiler_params=pltpu.CompilerParams(
            dimension_semantics=("parallel",),      # batch tiles across cores (v7x)
            vmem_limit_bytes=32 * 1024 * 1024,      # fits v7x 64 MiB physical VMEM
        ),
    )(x_flat, w0b, b0, w1b, b1, w2b, b2p)

    return out_padded[:B, :OUT_DIM]


def init_params(key):
    """Deterministic init mimicking nn.Linear's U(-1/sqrt(fan_in), +1/sqrt(fan_in))."""
    ks = jax.random.split(key, 6)

    def linear(kw, kb, fan_in, fan_out):
        bound = 1.0 / jnp.sqrt(fan_in)
        # stored as (in, out) so the kernel does x @ W
        w = jax.random.uniform(kw, (fan_in, fan_out), jnp.float32, -bound, bound)
        b = jax.random.uniform(kb, (1, fan_out), jnp.float32, -bound, bound)
        return w, b

    w0, b0 = linear(ks[0], ks[1], IN_DIM, H0_DIM)
    w1, b1 = linear(ks[2], ks[3], H0_DIM, H1_DIM)
    w2, b2 = linear(ks[4], ks[5], H1_DIM, OUT_DIM)
    return (w0, b0, w1, b1, w2, b2)


def mlp_reference(x_nchw, params):
    """Pure-JAX reference mirroring the kernel's bf16-in / f32-accumulate math."""
    w0, b0, w1, b1, w2, b2 = params
    B = x_nchw.shape[0]
    x = x_nchw.reshape(B, -1).astype(jnp.bfloat16)
    h = jnp.dot(x, w0.astype(jnp.bfloat16), preferred_element_type=jnp.float32) + b0
    h = jnp.where(h > 0, h, NEG_SLOPE * h)
    h = jnp.dot(h.astype(jnp.bfloat16), w1.astype(jnp.bfloat16),
                preferred_element_type=jnp.float32) + b1
    h = jnp.where(h > 0, h, NEG_SLOPE * h)
    return jnp.dot(h.astype(jnp.bfloat16), w2.astype(jnp.bfloat16),
                   preferred_element_type=jnp.float32) + b2


if __name__ == "__main__":
    key = jax.random.PRNGKey(0)
    k_params, k_x = jax.random.split(key)

    params = init_params(k_params)
    x = jax.random.normal(k_x, (2, 3, 32, 32), jnp.float32)  # B=2, NCHW

    out = mlp_forward(x, params)
    out = jax.block_until_ready(out)

    ref = mlp_reference(x, params)
    assert out.shape == (2, OUT_DIM), out.shape
    assert jnp.allclose(out, ref, atol=1e-2, rtol=1e-2), float(
        jnp.max(jnp.abs(out - ref))
    )

    print("KERNEL_OK")
</pallas_src>

<mosaic_0001>
module attributes {stable_mosaic.version = 11 : i64} {
  func.func @mlp_kernel(%arg0: i32, %arg1: memref<8x3072xbf16, #tpu.memory_space<vmem>>, %arg2: memref<3072x1024xbf16, #tpu.memory_space<vmem>>, %arg3: memref<1x1024xf32, #tpu.memory_space<vmem>>, %arg4: memref<1024x512xbf16, #tpu.memory_space<vmem>>, %arg5: memref<1x512xf32, #tpu.memory_space<vmem>>, %arg6: memref<512x128xbf16, #tpu.memory_space<vmem>>, %arg7: memref<1x128xf32, #tpu.memory_space<vmem>>, %arg8: memref<8x128xf32, #tpu.memory_space<vmem>>) attributes {dimension_semantics = [#tpu.dimension_semantics<parallel>], iteration_bounds = array<i64: 1>, scalar_prefetch = 0 : i64, scratch_operands = 0 : i64, tpu.core_type = #tpu.core_type<tc>, window_params = [{transform_indices = @transform_0, window_bounds = array<i64: 8, 3072>}, {pipeline_mode = #tpu.pipeline_mode<synchronous>, transform_indices = @transform_1, window_bounds = array<i64: 3072, 1024>}, {pipeline_mode = #tpu.pipeline_mode<synchronous>, transform_indices = @transform_2, window_bounds = array<i64: 1, 1024>}, {pipeline_mode = #tpu.pipeline_mode<synchronous>, transform_indices = @transform_3, window_bounds = array<i64: 1024, 512>}, {pipeline_mode = #tpu.pipeline_mode<synchronous>, transform_indices = @transform_4, window_bounds = array<i64: 1, 512>}, {pipeline_mode = #tpu.pipeline_mode<synchronous>, transform_indices = @transform_5, window_bounds = array<i64: 512, 128>}, {pipeline_mode = #tpu.pipeline_mode<synchronous>, transform_indices = @transform_6, window_bounds = array<i64: 1, 128>}, {transform_indices = @transform_7, window_bounds = array<i64: 8, 128>}]} {
    %c0 = arith.constant 0 : index
    %c0_0 = arith.constant 0 : index
    %0 = vector.load %arg1[%c0, %c0_0] : memref<8x3072xbf16, #tpu.memory_space<vmem>>, vector<8x3072xbf16>
    %c0_1 = arith.constant 0 : index
    %c0_2 = arith.constant 0 : index
    %1 = vector.load %arg2[%c0_1, %c0_2] : memref<3072x1024xbf16, #tpu.memory_space<vmem>>, vector<3072x1024xbf16>
    %cst = arith.constant dense<0.000000e+00> : vector<8x1024xf32>
    %2 = tpu.matmul %0, %1, %cst {dimension_numbers = #tpu.dot_dimension_numbers<[1], [0], [0], [1], [0, 0, 1, 1], [], []>} : vector<8x3072xbf16>, vector<3072x1024xbf16>, vector<8x1024xf32> -> vector<8x1024xf32>
    %c0_3 = arith.constant 0 : index
    %c0_4 = arith.constant 0 : index
    %3 = vector.load %arg3[%c0_3, %c0_4] : memref<1x1024xf32, #tpu.memory_space<vmem>>, vector<1x1024xf32>
    %4 = vector.broadcast %3 : vector<1x1024xf32> to vector<8x1024xf32>
    %5 = arith.addf %2, %4 : vector<8x1024xf32>
    %cst_5 = arith.constant 0.000000e+00 : f32
    %6 = vector.broadcast %cst_5 : f32 to vector<8x1024xf32>
    %7 = arith.cmpf ogt, %5, %6 : vector<8x1024xf32>
    %cst_6 = arith.constant 0.00999999977 : f32
    %8 = vector.broadcast %cst_6 : f32 to vector<8x1024xf32>
    %9 = arith.mulf %8, %5 : vector<8x1024xf32>
    %10 = arith.select %7, %5, %9 : vector<8x1024xi1>, vector<8x1024xf32>
    %11 = arith.truncf %10 : vector<8x1024xf32> to vector<8x1024xbf16>
    %c0_7 = arith.constant 0 : index
    %c0_8 = arith.constant 0 : index
    %12 = vector.load %arg4[%c0_7, %c0_8] : memref<1024x512xbf16, #tpu.memory_space<vmem>>, vector<1024x512xbf16>
    %cst_9 = arith.constant dense<0.000000e+00> : vector<8x512xf32>
    %13 = tpu.matmul %11, %12, %cst_9 {dimension_numbers = #tpu.dot_dimension_numbers<[1], [0], [0], [1], [0, 0, 1, 1], [], []>} : vector<8x1024xbf16>, vector<1024x512xbf16>, vector<8x512xf32> -> vector<8x512xf32>
    %c0_10 = arith.constant 0 : index
    %c0_11 = arith.constant 0 : index
    %14 = vector.load %arg5[%c0_10, %c0_11] : memref<1x512xf32, #tpu.memory_space<vmem>>, vector<1x512xf32>
    %15 = vector.broadcast %14 : vector<1x512xf32> to vector<8x512xf32>
    %16 = arith.addf %13, %15 : vector<8x512xf32>
    %cst_12 = arith.constant 0.000000e+00 : f32
    %17 = vector.broadcast %cst_12 : f32 to vector<8x512xf32>
    %18 = arith.cmpf ogt, %16, %17 : vector<8x512xf32>
    %cst_13 = arith.constant 0.00999999977 : f32
    %19 = vector.broadcast %cst_13 : f32 to vector<8x512xf32>
    %20 = arith.mulf %19, %16 : vector<8x512xf32>
    %21 = arith.select %18, %16, %20 : vector<8x512xi1>, vector<8x512xf32>
    %22 = arith.truncf %21 : vector<8x512xf32> to vector<8x512xbf16>
    %c0_14 = arith.constant 0 : index
    %c0_15 = arith.constant 0 : index
    %23 = vector.load %arg6[%c0_14, %c0_15] : memref<512x128xbf16, #tpu.memory_space<vmem>>, vector<512x128xbf16>
    %cst_16 = arith.constant dense<0.000000e+00> : vector<8x128xf32>
    %24 = tpu.matmul %22, %23, %cst_16 {dimension_numbers = #tpu.dot_dimension_numbers<[1], [0], [0], [1], [0, 0, 1, 1], [], []>} : vector<8x512xbf16>, vector<512x128xbf16>, vector<8x128xf32> -> vector<8x128xf32>
    %c0_17 = arith.constant 0 : index
    %c0_18 = arith.constant 0 : index
    %25 = vector.load %arg7[%c0_17, %c0_18] : memref<1x128xf32, #tpu.memory_space<vmem>>, vector<1x128xf32>
    %26 = vector.broadcast %25 : vector<1x128xf32> to vector<8x128xf32>
    %27 = arith.addf %24, %26 : vector<8x128xf32>
    %c0_19 = arith.constant 0 : index
    %c0_20 = arith.constant 0 : index
    %28 = vector.load %arg8[%c0_19, %c0_20] : memref<8x128xf32, #tpu.memory_space<vmem>>, vector<8x128xf32>
    tpu.vector_store %arg8[%c0_19, %c0_20], %27 {strides = array<i32>} : memref<8x128xf32, #tpu.memory_space<vmem>>, vector<8x128xf32>,
    return
  }
  func.func @transform_0(%arg0: i32) -> (i32, i32) {
    %c0_i32 = arith.constant 0 : i32
    %c0_i32_0 = arith.constant 0 : i32
    return %arg0, %c0_i32 : i32, i32
  }
  func.func @transform_1(%arg0: i32) -> (i32, i32) {
    %c0_i32 = arith.constant 0 : i32
    %c0_i32_0 = arith.constant 0 : i32
    %c0_i32_1 = arith.constant 0 : i32
    return %c0_i32, %c0_i32_0 : i32, i32
  }
  func.func @transform_2(%arg0: i32) -> (i32, i32) {
    %c0_i32 = arith.constant 0 : i32
    %c0_i32_0 = arith.constant 0 : i32
    %c0_i32_1 = arith.constant 0 : i32
    return %c0_i32, %c0_i32_0 : i32, i32
  }
  func.func @transform_3(%arg0: i32) -> (i32, i32) {
    %c0_i32 = arith.constant 0 : i32
    %c0_i32_0 = arith.constant 0 : i32
    %c0_i32_1 = arith.constant 0 : i32
    return %c0_i32, %c0_i32_0 : i32, i32
  }
  func.func @transform_4(%arg0: i32) -> (i32, i32) {
    %c0_i32 = arith.constant 0 : i32
    %c0_i32_0 = arith.constant 0 : i32
    %c0_i32_1 = arith.constant 0 : i32
    return %c0_i32, %c0_i32_0 : i32, i32
  }
  func.func @transform_5(%arg0: i32) -> (i32, i32) {
    %c0_i32 = arith.constant 0 : i32
    %c0_i32_0 = arith.constant 0 : i32
    %c0_i32_1 = arith.constant 0 : i32
    return %c0_i32, %c0_i32_0 : i32, i32
  }
  func.func @transform_6(%arg0: i32) -> (i32, i32) {
    %c0_i32 = arith.constant 0 : i32
    %c0_i32_0 = arith.constant 0 : i32
    %c0_i32_1 = arith.constant 0 : i32
    return %c0_i32, %c0_i32_0 : i32, i32
  }
  func.func @transform_7(%arg0: i32) -> (i32, i32) {
    %c0_i32 = arith.constant 0 : i32
    %c0_i32_0 = arith.constant 0 : i32
    return %arg0, %c0_i32 : i32, i32
  }
}

</mosaic_0001>

<llo_original>
// kernel: tpu_custom_call.1
$region0: #{tpu_custom_call.1}
  #allocation0 [shape = 'u32[]', space=smem, size = 0x4, offset = 0x4, fixed_abs, tag = 'smem constant byte address 0x4 - core index']
  #allocation1 [shape = 'u32[72,128]{1,0:T(1,128)}', space=vmem, size = 0x9000, scoped, tag = 'internal scratch']
  %s0 = inlined_call_operand.hbm [shape: bf16[8,3072], index: 0, kind: input, shape index: {}]
  %s1 = inlined_call_operand.hbm [shape: bf16[3072,1024], index: 1, kind: input, shape index: {}]
  %s2 = inlined_call_operand.hbm [shape: f32[1,1024], index: 2, kind: input, shape index: {}]
  %s3 = inlined_call_operand.hbm [shape: bf16[1024,512], index: 3, kind: input, shape index: {}]
  %s4 = inlined_call_operand.hbm [shape: f32[1,512], index: 4, kind: input, shape index: {}]
  %s5 = inlined_call_operand.hbm [shape: bf16[512,128], index: 5, kind: input, shape index: {}]
  %s6 = inlined_call_operand.hbm [shape: f32[1,128], index: 6, kind: input, shape index: {}]
  %s7 = inlined_call_operand.hbm [shape: f32[8,128], index: 7, kind: output, shape index: {}]
  %s8 = sld [smem:[#allocation0]]
  $region66: #{tpu_custom_call.1} parent=0
    _
  %s10 = ssub.s32 1, %s8
  %s11 = scalar_select 0, %s10, %s8
  $region1: #{tpu_custom_call.1} parent=0
    #allocation2 [shape = 'u8[49152]{0}', space=vmem, size = 0xc000, scoped, tag = 'input window, operand 0, single buffered']
    #allocation3 [shape = 's32[1]{0}', space=sflag, size = 0x4, scoped, tag = 'scoped memory for tpu_custom_call.1']
    #allocation4 [shape = 's32[1]{0}', space=sflag, size = 0x4, scoped, tag = 'scoped memory for tpu_custom_call.1']
    #allocation5 [shape = 'u8[6291456]{0}', space=vmem, size = 0x600000, scoped, tag = 'input window, operand 1, single buffered']
    #allocation6 [shape = 's32[1]{0}', space=sflag, size = 0x4, scoped, tag = 'scoped memory for tpu_custom_call.1']
    #allocation7 [shape = 'u8[4096]{0}', space=vmem, size = 0x1000, scoped, tag = 'input window, operand 2, single buffered']
    #allocation8 [shape = 'u8[1048576]{0}', space=vmem, size = 0x100000, scoped, tag = 'input window, operand 3, single buffered']
    #allocation9 [shape = 's32[1]{0}', space=sflag, size = 0x4, scoped, tag = 'scoped memory for tpu_custom_call.1']
    #allocation10 [shape = 'u8[2048]{0}', space=vmem, size = 0x800, scoped, tag = 'input window, operand 4, single buffered']
    #allocation11 [shape = 'u8[131072]{0}', space=vmem, size = 0x20000, scoped, tag = 'input window, operand 5, single buffered']
    #allocation12 [shape = 's32[1]{0}', space=sflag, size = 0x4, scoped, tag = 'scoped memory for tpu_custom_call.1']
    #allocation13 [shape = 'u8[512]{0}', space=vmem, size = 0x400, scoped, tag = 'input window, operand 6, single buffered']
    #allocation14 [shape = 'u8[4096]{0}', space=vmem, size = 0x1000, scoped, tag = 'output window, operand 0, single buffered']
    %12 = vsyncpa [#allocation3], 0
    %13 = vsyncpa [#allocation6], 0
    %14 = vsyncpa [#allocation9], 0
    %15 = vsyncpa [#allocation12], 0
    %16 = vsyncpa [#allocation4], 0
    // Predicated region
    $region2: #{tpu_custom_call.1} parent=1 // pred_check
      _
    $region3: #{tpu_custom_call.1} parent=1 // pred_check_branch
      %18 = sbr.rel (0) target = $region5
    $region4: #{tpu_custom_call.1} parent=1 // pred_region
      %20 = vsyncadd [#allocation3], 0
      %s22 = sshll.u32 %s0, 4
      %s23 = int_to_ptr.hbm [resolvable:$true] %s22
      %s24 = sshll.u32 [#allocation2], 4
      %s25 = int_to_ptr.vmem [resolvable:$true] %s24
      %27 = dma.hbm_to_vmem [thread:$0]  %s23, 1536, %s25, [#allocation3]
    $region5: #{tpu_custom_call.1} parent=1 // pred_fallthru
      _
    // Predicated region
    $region6: #{tpu_custom_call.1} parent=1 // pred_check
      _
    $region7: #{tpu_custom_call.1} parent=1 // pred_check_branch
      %29 = sbr.rel (0) target = $region9
    $region8: #{tpu_custom_call.1} parent=1 // pred_region
      %31 = vsyncadd [#allocation6], 0
      %s32 = sshll.u32 %s1, 4
      %s33 = int_to_ptr.hbm [resolvable:$true] %s32
      %s34 = sshll.u32 [#allocation5], 4
      %s35 = int_to_ptr.vmem [resolvable:$true] %s34
      %40 = dma.hbm_to_vmem [thread:$0]  %s33, 196608, %s35, [#allocation6], 512, 512, 32
    $region9: #{tpu_custom_call.1} parent=1 // pred_fallthru
      _
    // Predicated region
    $region10: #{tpu_custom_call.1} parent=1 // pred_check
      _
    $region11: #{tpu_custom_call.1} parent=1 // pred_check_branch
      %42 = sbr.rel (0) target = $region13
    $region12: #{tpu_custom_call.1} parent=1 // pred_region
      %44 = vsyncadd [#allocation6], 0
      %s46 = sshll.u32 %s2, 4
      %s47 = int_to_ptr.hbm [resolvable:$true] %s46
      %s48 = sshll.u32 [#allocation7], 4
      %s49 = int_to_ptr.vmem [resolvable:$true] %s48
      %51 = dma.hbm_to_vmem [thread:$0]  %s47, 128, %s49, [#allocation6]
    $region13: #{tpu_custom_call.1} parent=1 // pred_fallthru
      _
    // Predicated region
    $region14: #{tpu_custom_call.1} parent=1 // pred_check
      _
    $region15: #{tpu_custom_call.1} parent=1 // pred_check_branch
      %53 = sbr.rel (0) target = $region17
    $region16: #{tpu_custom_call.1} parent=1 // pred_region
      %55 = vsyncadd [#allocation9], 0
      %s56 = sshll.u32 %s3, 4
      %s57 = int_to_ptr.hbm [resolvable:$true] %s56
      %s58 = sshll.u32 [#allocation8], 4
      %s59 = int_to_ptr.vmem [resolvable:$true] %s58
      %64 = dma.hbm_to_vmem [thread:$0]  %s57, 32768, %s59, [#allocation9], 256, 256, 16
    $region17: #{tpu_custom_call.1} parent=1 // pred_fallthru
      _
    // Predicated region
    $region18: #{tpu_custom_call.1} parent=1 // pred_check
      _
    $region19: #{tpu_custom_call.1} parent=1 // pred_check_branch
      %66 = sbr.rel (0) target = $region21
    $region20: #{tpu_custom_call.1} parent=1 // pred_region
      %68 = vsyncadd [#allocation9], 0
      %s70 = sshll.u32 %s4, 4
      %s71 = int_to_ptr.hbm [resolvable:$true] %s70
      %s72 = sshll.u32 [#allocation10], 4
      %s73 = int_to_ptr.vmem [resolvable:$true] %s72
      %75 = dma.hbm_to_vmem [thread:$0]  %s71, 64, %s73, [#allocation9]
    $region21: #{tpu_custom_call.1} parent=1 // pred_fallthru
      _
    // Predicated region
    $region22: #{tpu_custom_call.1} parent=1 // pred_check
      _
    $region23: #{tpu_custom_call.1} parent=1 // pred_check_branch
      %77 = sbr.rel (0) target = $region25
    $region24: #{tpu_custom_call.1} parent=1 // pred_region
      %79 = vsyncadd [#allocation12], 0
      %s80 = sshll.u32 %s5, 4
      %s81 = int_to_ptr.hbm [resolvable:$true] %s80
      %s82 = sshll.u32 [#allocation11], 4
      %s83 = int_to_ptr.vmem [resolvable:$true] %s82
      %88 = dma.hbm_to_vmem [thread:$0]  %s81, 4096, %s83, [#allocation12], 64, 64, 4
    $region25: #{tpu_custom_call.1} parent=1 // pred_fallthru
      _
    // Predicated region
    $region26: #{tpu_custom_call.1} parent=1 // pred_check
      _
    $region27: #{tpu_custom_call.1} parent=1 // pred_check_branch
      %90 = sbr.rel (0) target = $region29
    $region28: #{tpu_custom_call.1} parent=1 // pred_region
      %92 = vsyncadd [#allocation12], 0
      %s94 = sshll.u32 %s6, 4
      %s95 = int_to_ptr.hbm [resolvable:$true] %s94
      %s96 = sshll.u32 [#allocation13], 4
      %s97 = int_to_ptr.vmem [resolvable:$true] %s96
      %99 = dma.hbm_to_vmem [thread:$0]  %s95, 16, %s97, [#allocation12]
    $region29: #{tpu_custom_call.1} parent=1 // pred_fallthru
      _
    // Predicated region
    $region30: #{tpu_custom_call.1} parent=1 // pred_check
      _
    $region31: #{tpu_custom_call.1} parent=1 // pred_check_branch
      %101 = sbr.rel (0) target = $region33
    $region32: #{tpu_custom_call.1} parent=1 // pred_region
      %103 = dma.done [#allocation3], 1536
    $region33: #{tpu_custom_call.1} parent=1 // pred_fallthru
      _
    // Predicated region
    $region34: #{tpu_custom_call.1} parent=1 // pred_check
      _
    $region35: #{tpu_custom_call.1} parent=1 // pred_check_branch
      %105 = sbr.rel (0) target = $region37
    $region36: #{tpu_custom_call.1} parent=1 // pred_region
      %107 = dma.done [#allocation6], 196608
    $region37: #{tpu_custom_call.1} parent=1 // pred_fallthru
      _
    // Predicated region
    $region38: #{tpu_custom_call.1} parent=1 // pred_check
      _
    $region39: #{tpu_custom_call.1} parent=1 // pred_check_branch
      %109 = sbr.rel (0) target = $region41
    $region40: #{tpu_custom_call.1} parent=1 // pred_region
      %111 = dma.done [#allocation6], 128
    $region41: #{tpu_custom_call.1} parent=1 // pred_fallthru
      _
    // Predicated region
    $region42: #{tpu_custom_call.1} parent=1 // pred_check
      _
    $region43: #{tpu_custom_call.1} parent=1 // pred_check_branch
      %113 = sbr.rel (0) target = $region45
    $region44: #{tpu_custom_call.1} parent=1 // pred_region
      %115 = dma.done [#allocation9], 32768
    $region45: #{tpu_custom_call.1} parent=1 // pred_fallthru
      _
    // Predicated region
    $region46: #{tpu_custom_call.1} parent=1 // pred_check
      _
    $region47: #{tpu_custom_call.1} parent=1 // pred_check_branch
      %117 = sbr.rel (0) target = $region49
    $region48: #{tpu_custom_call.1} parent=1 // pred_region
      %119 = dma.done [#allocation9], 64
    $region49: #{tpu_custom_call.1} parent=1 // pred_fallthru
      _
    // Predicated region
    $region50: #{tpu_custom_call.1} parent=1 // pred_check
      _
    $region51: #{tpu_custom_call.1} parent=1 // pred_check_branch
      %121 = sbr.rel (0) target = $region53
    $region52: #{tpu_custom_call.1} parent=1 // pred_region
      %123 = dma.done [#allocation12], 4096
    $region53: #{tpu_custom_call.1} parent=1 // pred_fallthru
      _
    // Predicated region
    $region54: #{tpu_custom_call.1} parent=1 // pred_check
      _
    $region55: #{tpu_custom_call.1} parent=1 // pred_check_branch
      %125 = sbr.rel (0) target = $region57
    $region56: #{tpu_custom_call.1} parent=1 // pred_region
      %127 = dma.done [#allocation12], 16
    $region57: #{tpu_custom_call.1} parent=1 // pred_fallthru
      _
    %v128 = vld [vmem:[#allocation2] sm:$0xff]
    %v129 = vld [vmem:[#allocation2 + $0x8] sm:$0xff]
    %v130 = vld [vmem:[#allocation2 + $0x10] sm:$0xff]
    %v131 = vld [vmem:[#allocation2 + $0x18] sm:$0xff]
    %v132 = vld [vmem:[#allocation2 + $0x20] sm:$0xff]
    %v133 = vld [vmem:[#allocation2 + $0x28] sm:$0xff]
    %v134 = vld [vmem:[#allocation2 + $0x30] sm:$0xff]
    %v135 = vld [vmem:[#allocation2 + $0x38] sm:$0xff]
    %v136 = vld [vmem:[#allocation2 + $0x40] sm:$0xff]
    %v137 = vld [vmem:[#allocation2 + $0x48] sm:$0xff]
    %v138 = vld [vmem:[#allocation2 + $0x50] sm:$0xff]
    %v139 = vld [vmem:[#allocation2 + $0x58] sm:$0xff]
    %v140 = vld [vmem:[#allocation5] sm:$0xff]
    %v141 = vld [vmem:[#allocation5 + $0x8] sm:$0xff]
    %v142 = vld [vmem:[#allocation5 + $0x10] sm:$0xff]
    %v143 = vld [vmem:[#allocation5 + $0x18] sm:$0xff]
    %v144 = vld [vmem:[#allocation5 + $0x20] sm:$0xff]
    %v145 = vld [vmem:[#allocation5 + $0x28] sm:$0xff]
    %v146 = vld [vmem:[#allocation5 + $0x30] sm:$0xff]
    %v147 = vld [vmem:[#allocation5 + $0x38] sm:$0xff]
    %v148 = vld [vmem:[#allocation5 + $0x40] sm:$0xff]
    %v149 = vld [vmem:[#allocation5 + $0x48] sm:$0xff]
    %v150 = vld [vmem:[#allocation5 + $0x50] sm:$0xff]
    %v151 = vld [vmem:[#allocation5 + $0x58] sm:$0xff]
    %v152 = vld [vmem:[#allocation5 + $0x60] sm:$0xff]
    %v153 = vld [vmem:[#allocation5 + $0x68] sm:$0xff]
    %v154 = vld [vmem:[#allocation5 + $0x70] sm:$0xff]
    %v155 = vld [vmem:[#allocation5 + $0x78] sm:$0xff]
    %v156 = vld [vmem:[#allocation5 + $0x80] sm:$0xff]
    %v157 = vld [vmem:[#allocation5 + $0x88] sm:$0xff]
    %v158 = vld [vmem:[#allocation5 + $0x90] sm:$0xff]
    %v159 = vld [vmem:[#allocation5 + $0x98] sm:$0xff]
    %v160 = vld [vmem:[#allocation5 + $0xa0] sm:$0xff]
    %v161 = vld [vmem:[#allocation5 + $0xa8] sm:$0xff]
    %v162 = vld [vmem:[#allocation5 + $0xb0] sm:$0xff]
    %v163 = vld [vmem:[#allocation5 + $0xb8] sm:$0xff]
    %v164 = vld [vmem:[#allocation5 + $0xc0] sm:$0xff]
    %v165 = vld [vmem:[#allocation5 + $0xc8] sm:$0xff]
    %v166 = vld [vmem:[#allocation5 + $0xd0] sm:$0xff]
    %v167 = vld [vmem:[#allocation5 + $0xd8] sm:$0xff]
    %v168 = vld [vmem:[#allocation5 + $0xe0] sm:$0xff]
    %v169 = vld [vmem:[#allocation5 + $0xe8] sm:$0xff]
    %v170 = vld [vmem:[#allocation5 + $0xf0] sm:$0xff]
    %v171 = vld [vmem:[#allocation5 + $0xf8] sm:$0xff]
    %v172 = vld [vmem:[#allocation5 + $0x100] sm:$0xff]
    %v173 = vld [vmem:[#allocation5 + $0x108] sm:$0xff]
    %v174 = vld [vmem:[#allocation5 + $0x110] sm:$0xff]
    %v175 = vld [vmem:[#allocation5 + $0x118] sm:$0xff]
    %v176 = vld [vmem:[#allocation5 + $0x120] sm:$0xff]
    %v177 = vld [vmem:[#allocation5 + $0x128] sm:$0xff]
    %v178 = vld [vmem:[#allocation5 + $0x130] sm:$0xff]
    %v179 = vld [vmem:[#allocation5 + $0x138] sm:$0xff]
    %v180 = vld [vmem:[#allocation5 + $0x140] sm:$0xff]
    %v181 = vld [vmem:[#allocation5 + $0x148] sm:$0xff]
    %v182 = vld [vmem:[#allocation5 + $0x150] sm:$0xff]
    %v183 = vld [vmem:[#allocation5 + $0x158] sm:$0xff]
    %v184 = vld [vmem:[#allocation5 + $0x160] sm:$0xff]
    %v185 = vld [vmem:[#allocation5 + $0x168] sm:$0xff]
    %v186 = vld [vmem:[#allocation5 + $0x170] sm:$0xff]
    %v187 = vld [vmem:[#allocation5 + $0x178] sm:$0xff]
    %v188 = vld [vmem:[#allocation5 + $0x180] sm:$0xff]
    %v189 = vld [vmem:[#allocation5 + $0x188] sm:$0xff]
    %v190 = vld [vmem:[#allocation5 + $0x190] sm:$0xff]
    %v191 = vld [vmem:[#allocation5 + $0x198] sm:$0xff]
    %v192 = vld [vmem:[#allocation5 + $0x1a0] sm:$0xff]
    %v193 = vld [vmem:[#allocation5 + $0x1a8] sm:$0xff]
    %v194 = vld [vmem:[#allocation5 + $0x1b0] sm:$0xff]
    %v195 = vld [vmem:[#allocation5 + $0x1b8] sm:$0xff]
    %v196 = vld [vmem:[#allocation5 + $0x1c0] sm:$0xff]
    %v197 = vld [vmem:[#allocation5 + $0x1c8] sm:$0xff]
    %v198 = vld [vmem:[#allocation5 + $0x1d0] sm:$0xff]
    %v199 = vld [vmem:[#allocation5 + $0x1d8] sm:$0xff]
    %v200 = vld [vmem:[#allocation5 + $0x1e0] sm:$0xff]
    %v201 = vld [vmem:[#allocation5 + $0x1e8] sm:$0xff]
    %v202 = vld [vmem:[#allocation5 + $0x1f0] sm:$0xff]
    %v203 = vld [vmem:[#allocation5 + $0x1f8] sm:$0xff]
    %v204 = vld [vmem:[#allocation5 + $0x200] sm:$0xff]
    %v205 = vld [vmem:[#allocation5 + $0x208] sm:$0xff]
    %v206 = vld [vmem:[#allocation5 + $0x210] sm:$0xff]
    %v207 = vld [vmem:[#allocation5 + $0x218] sm:$0xff]
    %v208 = vld [vmem:[#allocation5 + $0x220] sm:$0xff]
    %v209 = vld [vmem:[#allocation5 + $0x228] sm:$0xff]
    %v210 = vld [vmem:[#allocation5 + $0x230] sm:$0xff]
    %v211 = vld [vmem:[#allocation5 + $0x238] sm:$0xff]
    %v212 = vld [vmem:[#allocation5 + $0x240] sm:$0xff]
    %v213 = vld [vmem:[#allocation5 + $0x248] sm:$0xff]
    %v214 = vld [vmem:[#allocation5 + $0x250] sm:$0xff]
    %v215 = vld [vmem:[#allocation5 + $0x258] sm:$0xff]
    %v216 = vld [vmem:[#allocation5 + $0x260] sm:$0xff]
    %v217 = vld [vmem:[#allocation5 + $0x268] sm:$0xff]
    %v218 = vld [vmem:[#allocation5 + $0x270] sm:$0xff]
    %v219 = vld [vmem:[#allocation5 + $0x278] sm:$0xff]
    %v220 = vld [vmem:[#allocation5 + $0x280] sm:$0xff]
    %v221 = vld [vmem:[#allocation5 + $0x288] sm:$0xff]
    %v222 = vld [vmem:[#allocation5 + $0x290] sm:$0xff]
    %v223 = vld [vmem:[#allocation5 + $0x298] sm:$0xff]
    %v224 = vld [vmem:[#allocation5 + $0x2a0] sm:$0xff]
    %v225 = vld [vmem:[#allocation5 + $0x2a8] sm:$0xff]
    %v226 = vld [vmem:[#allocation5 + $0x2b0] sm:$0xff]
    %v227 = vld [vmem:[#allocation5 + $0x2b8] sm:$0xff]
    %v228 = vld [vmem:[#allocation5 + $0x2c0] sm:$0xff]
    %v229 = vld [vmem:[#allocation5 + $0x2c8] sm:$0xff]
    %v230 = vld [vmem:[#allocation5 + $0x2d0] sm:$0xff]
    %v231 = vld [vmem:[#allocation5 + $0x2d8] sm:$0xff]
    %v232 = vld [vmem:[#allocation5 + $0x2e0] sm:$0xff]
    %v233 = vld [vmem:[#allocation5 + $0x2e8] sm:$0xff]
    %v234 = vld [vmem:[#allocation5 + $0x2f0] sm:$0xff]
    %v235 = vld [vmem:[#allocation5 + $0x2f8] sm:$0xff]
    %v236 = vld [vmem:[#allocation5 + $0x300] sm:$0xff]
    %v237 = vld [vmem:[#allocation5 + $0x308] sm:$0xff]
    %v238 = vld [vmem:[#allocation5 + $0x310] sm:$0xff]
    %v239 = vld [vmem:[#allocation5 + $0x318] sm:$0xff]
    %v240 = vld [vmem:[#allocation5 + $0x320] sm:$0xff]
    %v241 = vld [vmem:[#allocation5 + $0x328] sm:$0xff]
    %v242 = vld [vmem:[#allocation5 + $0x330] sm:$0xff]
    %v243 = vld [vmem:[#allocation5 + $0x338] sm:$0xff]
    %v244 = vld [vmem:[#allocation5 + $0x340] sm:$0xff]
    %v245 = vld [vmem:[#allocation5 + $0x348] sm:$0xff]
    %v246 = vld [vmem:[#allocation5 + $0x350] sm:$0xff]
    %v247 = vld [vmem:[#allocation5 + $0x358] sm:$0xff]
    %v248 = vld [vmem:[#allocation5 + $0x360] sm:$0xff]
    %v249 = vld [vmem:[#allocation5 + $0x368] sm:$0xff]
    %v250 = vld [vmem:[#allocation5 + $0x370] sm:$0xff]
    %v251 = vld [vmem:[#allocation5 + $0x378] sm:$0xff]
    %v252 = vld [vmem:[#allocation5 + $0x380] sm:$0xff]
    %v253 = vld [vmem:[#allocation5 + $0x388] sm:$0xff]
    %v254 = vld [vmem:[#allocation5 + $0x390] sm:$0xff]
    %v255 = vld [vmem:[#allocation5 + $0x398] sm:$0xff]
    %v256 = vld [vmem:[#allocation5 + $0x3a0] sm:$0xff]
    %v257 = vld [vmem:[#allocation5 + $0x3a8] sm:$0xff]
    %v258 = vld [vmem:[#allocation5 + $0x3b0] sm:$0xff]
    %v259 = vld [vmem:[#allocation5 + $0x3b8] sm:$0xff]
    %v260 = vld [vmem:[#allocation5 + $0x3c0] sm:$0xff]
    %v261 = vld [vmem:[#allocation5 + $0x3c8] sm:$0xff]
    %v262 = vld [vmem:[#allocation5 + $0x3d0] sm:$0xff]
    %v263 = vld [vmem:[#allocation5 + $0x3d8] sm:$0xff]
    %v264 = vld [vmem:[#allocation5 + $0x3e0] sm:$0xff]
    %v265 = vld [vmem:[#allocation5 + $0x3e8] sm:$0xff]
    %v266 = vld [vmem:[#allocation5 + $0x3f0] sm:$0xff]
    %v267 = vld [vmem:[#allocation5 + $0x3f8] sm:$0xff]
    %v268 = vld [vmem:[#allocation5 + $0x400] sm:$0xff]
    %v269 = vld [vmem:[#allocation5 + $0x408] sm:$0xff]
    %v270 = vld [vmem:[#allocation5 + $0x410] sm:$0xff]
    %v271 = vld [vmem:[#allocation5 + $0x418] sm:$0xff]
    %v272 = vld [vmem:[#allocation5 + $0x420] sm:$0xff]
    %v273 = vld [vmem:[#allocation5 + $0x428] sm:$0xff]
    %v274 = vld [vmem:[#allocation5 + $0x430] sm:$0xff]
    %v275 = vld [vmem:[#allocation5 + $0x438] sm:$0xff]
    %v276 = vld [vmem:[#allocation5 + $0x440] sm:$0xff]
    %v277 = vld [vmem:[#allocation5 + $0x448] sm:$0xff]
    %v278 = vld [vmem:[#allocation5 + $0x450] sm:$0xff]
    %v279 = vld [vmem:[#allocation5 + $0x458] sm:$0xff]
    %v280 = vld [vmem:[#allocation5 + $0x460] sm:$0xff]
    %v281 = vld [vmem:[#allocation5 + $0x468] sm:$0xff]
    %v282 = vld [vmem:[#allocation5 + $0x470] sm:$0xff]
    %v283 = vld [vmem:[#allocation5 + $0x478] sm:$0xff]
    %v284 = vld [vmem:[#allocation5 + $0x480] sm:$0xff]
    %v285 = vld [vmem:[#allocation5 + $0x488] sm:$0xff]
    %v286 = vld [vmem:[#allocation5 + $0x490] sm:$0xff]
    %v287 = vld [vmem:[#allocation5 + $0x498] sm:$0xff]
    %v288 = vld [vmem:[#allocation5 + $0x4a0] sm:$0xff]
    %v289 = vld [vmem:[#allocation5 + $0x4a8] sm:$0xff]
    %v290 = vld [vmem:[#allocation5 + $0x4b0] sm:$0xff]
    %v291 = vld [vmem:[#allocation5 + $0x4b8] sm:$0xff]
    %v292 = vld [vmem:[#allocation5 + $0x4c0] sm:$0xff]
    %v293 = vld [vmem:[#allocation5 + $0x4c8] sm:$0xff]
    %v294 = vld [vmem:[#allocation5 + $0x4d0] sm:$0xff]
    %v295 = vld [vmem:[#allocation5 + $0x4d8] sm:$0xff]
    %v296 = vld [vmem:[#allocation5 + $0x4e0] sm:$0xff]
    %v297 = vld [vmem:[#allocation5 + $0x4e8] sm:$0xff]
    %v298 = vld [vmem:[#allocation5 + $0x4f0] sm:$0xff]
    %v299 = vld [vmem:[#allocation5 + $0x4f8] sm:$0xff]
    %v300 = vld [vmem:[#allocation5 + $0x500] sm:$0xff]
    %v301 = vld [vmem:[#allocation5 + $0x508] sm:$0xff]
    %v302 = vld [vmem:[#allocation5 + $0x510] sm:$0xff]
    %v303 = vld [vmem:[#allocation5 + $0x518] sm:$0xff]
    %v304 = vld [vmem:[#allocation5 + $0x520] sm:$0xff]
    %v305 = vld [vmem:[#allocation5 + $0x528] sm:$0xff]
    %v306 = vld [vmem:[#allocation5 + $0x530] sm:$0xff]
    %v307 = vld [vmem:[#allocation5 + $0x538] sm:$0xff]
    %v308 = vld [vmem:[#allocation5 + $0x540] sm:$0xff]
    %v309 = vld [vmem:[#allocation5 + $0x548] sm:$0xff]
    %v310 = vld [vmem:[#allocation5 + $0x550] sm:$0xff]
    %v311 = vld [vmem:[#allocation5 + $0x558] sm:$0xff]
    %v312 = vld [vmem:[#allocation5 + $0x560] sm:$0xff]
    %v313 = vld [vmem:[#allocation5 + $0x568] sm:$0xff]
    %v314 = vld [vmem:[#allocation5 + $0x570] sm:$0xff]
    %v315 = vld [vmem:[#allocation5 + $0x578] sm:$0xff]
    %v316 = vld [vmem:[#allocation5 + $0x580] sm:$0xff]
    %v317 = vld [vmem:[#allocation5 + $0x588] sm:$0xff]
    %v318 = vld [vmem:[#allocation5 + $0x590] sm:$0xff]
    %v319 = vld [vmem:[#allocation5 + $0x598] sm:$0xff]
    %v320 = vld [vmem:[#allocation5 + $0x5a0] sm:$0xff]
    %v321 = vld [vmem:[#allocation5 + $0x5a8] sm:$0xff]
    %v322 = vld [vmem:[#allocation5 + $0x5b0] sm:$0xff]
    %v323 = vld [vmem:[#allocation5 + $0x5b8] sm:$0xff]
    %v324 = vld [vmem:[#allocation5 + $0x5c0] sm:$0xff]
    %v325 = vld [vmem:[#allocation5 + $0x5c8] sm:$0xff]
    %v326 = vld [vmem:[#allocation5 + $0x5d0] sm:$0xff]
    %v327 = vld [vmem:[#allocation5 + $0x5d8] sm:$0xff]
    %v328 = vld [vmem:[#allocation5 + $0x5e0] sm:$0xff]
    %v329 = vld [vmem:[#allocation5 + $0x5e8] sm:$0xff]
    %v330 = vld [vmem:[#allocation5 + $0x5f0] sm:$0xff]
    %v331 = vld [vmem:[#allocation5 + $0x5f8] sm:$0xff]
    %v332 = vld [vmem:[#allocation5 + $0x600] sm:$0xff]
    %v333 = vld [vmem:[#allocation5 + $0x608] sm:$0xff]
    %v334 = vld [vmem:[#allocation5 + $0x610] sm:$0xff]
    %v335 = vld [vmem:[#allocation5 + $0x618] sm:$0xff]
    %v336 = vld [vmem:[#allocation5 + $0x620] sm:$0xff]
    %v337 = vld [vmem:[#allocation5 + $0x628] sm:$0xff]
    %v338 = vld [vmem:[#allocation5 + $0x630] sm:$0xff]
    %v339 = vld [vmem:[#allocation5 + $0x638] sm:$0xff]
    %v340 = vld [vmem:[#allocation5 + $0x640] sm:$0xff]
    %v341 = vld [vmem:[#allocation5 + $0x648] sm:$0xff]
    %v342 = vld [vmem:[#allocation5 + $0x650] sm:$0xff]
    %v343 = vld [vmem:[#allocation5 + $0x658] sm:$0xff]
    %v344 = vld [vmem:[#allocation5 + $0x660] sm:$0xff]
    %v345 = vld [vmem:[#allocation5 + $0x668] sm:$0xff]
    %v346 = vld [vmem:[#allocation5 + $0x670] sm:$0xff]
    %v347 = vld [vmem:[#allocation5 + $0x678] sm:$0xff]
    %v348 = vld [vmem:[#allocation5 + $0x680] sm:$0xff]
    %v349 = vld [vmem:[#allocation5 + $0x688] sm:$0xff]
    %v350 = vld [vmem:[#allocation5 + $0x690] sm:$0xff]
    %v351 = vld [vmem:[#allocation5 + $0x698] sm:$0xff]
    %v352 = vld [vmem:[#allocation5 + $0x6a0] sm:$0xff]
    %v353 = vld [vmem:[#allocation5 + $0x6a8] sm:$0xff]
    %v354 = vld [vmem:[#allocation5 + $0x6b0] sm:$0xff]
    %v355 = vld [vmem:[#allocation5 + $0x6b8] sm:$0xff]
    %v356 = vld [vmem:[#allocation5 + $0x6c0] sm:$0xff]
    %v357 = vld [vmem:[#allocation5 + $0x6c8] sm:$0xff]
    %v358 = vld [vmem:[#allocation5 + $0x6d0] sm:$0xff]
    %v359 = vld [vmem:[#allocation5 + $0x6d8] sm:$0xff]
    %v360 = vld [vmem:[#allocation5 + $0x6e0] sm:$0xff]
    %v361 = vld [vmem:[#allocation5 + $0x6e8] sm:$0xff]
    %v362 = vld [vmem:[#allocation5 + $0x6f0] sm:$0xff]
    %v363 = vld [vmem:[#allocation5 + $0x6f8] sm:$0xff]
    %v364 = vld [vmem:[#allocation5 + $0x700] sm:$0xff]
    %v365 = vld [vmem:[#allocation5 + $0x708] sm:$0xff]
    %v366 = vld [vmem:[#allocation5 + $0x710] sm:$0xff]
    %v367 = vld [vmem:[#allocation5 + $0x718] sm:$0xff]
    %v368 = vld [vmem:[#allocation5 + $0x720] sm:$0xff]
    %v369 = vld [vmem:[#allocation5 + $0x728] sm:$0xff]
    %v370 = vld [vmem:[#allocation5 + $0x730] sm:$0xff]
    %v371 = vld [vmem:[#allocation5 + $0x738] sm:$0xff]
    %v372 = vld [vmem:[#allocation5 + $0x740] sm:$0xff]
    %v373 = vld [vmem:[#allocation5 + $0x748] sm:$0xff]
    %v374 = vld [vmem:[#allocation5 + $0x750] sm:$0xff]
    %v375 = vld [vmem:[#allocation5 + $0x758] sm:$0xff]
    %v376 = vld [vmem:[#allocation5 + $0x760] sm:$0xff]
    %v377 = vld [vmem:[#allocation5 + $0x768] sm:$0xff]
    %v378 = vld [vmem:[#allocation5 + $0x770] sm:$0xff]
    %v379 = vld [vmem:[#allocation5 + $0x778] sm:$0xff]
    %v380 = vld [vmem:[#allocation5 + $0x780] sm:$0xff]
    %v381 = vld [vmem:[#allocation5 + $0x788] sm:$0xff]
    %v382 = vld [vmem:[#allocation5 + $0x790] sm:$0xff]
    %v383 = vld [vmem:[#allocation5 + $0x798] sm:$0xff]
    %v384 = vld [vmem:[#allocation5 + $0x7a0] sm:$0xff]
    %v385 = vld [vmem:[#allocation5 + $0x7a8] sm:$0xff]
    %v386 = vld [vmem:[#allocation5 + $0x7b0] sm:$0xff]
    %v387 = vld [vmem:[#allocation5 + $0x7b8] sm:$0xff]
    %v388 = vld [vmem:[#allocation5 + $0x7c0] sm:$0xff]
    %v389 = vld [vmem:[#allocation5 + $0x7c8] sm:$0xff]
    %v390 = vld [vmem:[#allocation5 + $0x7d0] sm:$0xff]
    %v391 = vld [vmem:[#allocation5 + $0x7d8] sm:$0xff]
    %v392 = vld [vmem:[#allocation5 + $0x7e0] sm:$0xff]
    %v393 = vld [vmem:[#allocation5 + $0x7e8] sm:$0xff]
    %v394 = vld [vmem:[#allocation5 + $0x7f0] sm:$0xff]
    %v395 = vld [vmem:[#allocation5 + $0x7f8] sm:$0xff]
    %v396 = vld [vmem:[#allocation5 + $0x800] sm:$0xff]
    %v397 = vld [vmem:[#allocation5 + $0x808] sm:$0xff]
    %v398 = vld [vmem:[#allocation5 + $0x810] sm:$0xff]
    %v399 = vld [vmem:[#allocation5 + $0x818] sm:$0xff]
    %v400 = vld [vmem:[#allocation5 + $0x820] sm:$0xff]
    %v401 = vld [vmem:[#allocation5 + $0x828] sm:$0xff]
    %v402 = vld [vmem:[#allocation5 + $0x830] sm:$0xff]
    %v403 = vld [vmem:[#allocation5 + $0x838] sm:$0xff]
    %v404 = vld [vmem:[#allocation5 + $0x840] sm:$0xff]
    %v405 = vld [vmem:[#allocation5 + $0x848] sm:$0xff]
    %v406 = vld [vmem:[#allocation5 + $0x850] sm:$0xff]
    %v407 = vld [vmem:[#allocation5 + $0x858] sm:$0xff]
    %v408 = vld [vmem:[#allocation5 + $0x860] sm:$0xff]
    %v409 = vld [vmem:[#allocation5 + $0x868] sm:$0xff]
    %v410 = vld [vmem:[#allocation5 + $0x870] sm:$0xff]
    %v411 = vld [vmem:[#allocation5 + $0x878] sm:$0xff]
    %v412 = vld [vmem:[#allocation5 + $0x880] sm:$0xff]
    %v413 = vld [vmem:[#allocation5 + $0x888] sm:$0xff]
    %v414 = vld [vmem:[#allocation5 + $0x890] sm:$0xff]
    %v415 = vld [vmem:[#allocation5 + $0x898] sm:$0xff]
    %v416 = vld [vmem:[#allocation5 + $0x8a0] sm:$0xff]
    %v417 = vld [vmem:[#allocation5 + $0x8a8] sm:$0xff]
    %v418 = vld [vmem:[#allocation5 + $0x8b0] sm:$0xff]
    %v419 = vld [vmem:[#allocation5 + $0x8b8] sm:$0xff]
    %v420 = vld [vmem:[#allocation5 + $0x8c0] sm:$0xff]
    %v421 = vld [vmem:[#allocation5 + $0x8c8] sm:$0xff]
    %v422 = vld [vmem:[#allocation5 + $0x8d0] sm:$0xff]
    %v423 = vld [vmem:[#allocation5 + $0x8d8] sm:$0xff]
    %v424 = vld [vmem:[#allocation5 + $0x8e0] sm:$0xff]
    %v425 = vld [vmem:[#allocation5 + $0x8e8] sm:$0xff]
    %v426 = vld [vmem:[#allocation5 + $0x8f0] sm:$0xff]
    %v427 = vld [vmem:[#allocation5 + $0x8f8] sm:$0xff]
    %v428 = vld [vmem:[#allocation5 + $0x900] sm:$0xff]
    %v429 = vld [vmem:[#allocation5 + $0x908] sm:$0xff]
    %v430 = vld [vmem:[#allocation5 + $0x910] sm:$0xff]
    %v431 = vld [vmem:[#allocation5 + $0x918] sm:$0xff]
    %v432 = vld [vmem:[#allocation5 + $0x920] sm:$0xff]
    %v433 = vld [vmem:[#allocation5 + $0x928] sm:$0xff]
    %v434 = vld [vmem:[#allocation5 + $0x930] sm:$0xff]
    %v435 = vld [vmem:[#allocation5 + $0x938] sm:$0xff]
    %v436 = vld [vmem:[#allocation5 + $0x940] sm:$0xff]
    %v437 = vld [vmem:[#allocation5 + $0x948] sm:$0xff]
    %v438 = vld [vmem:[#allocation5 + $0x950] sm:$0xff]
    %v439 = vld [vmem:[#allocation5 + $0x958] sm:$0xff]
    %v440 = vld [vmem:[#allocation5 + $0x960] sm:$0xff]
    %v441 = vld [vmem:[#allocation5 + $0x968] sm:$0xff]
    %v442 = vld [vmem:[#allocation5 + $0x970] sm:$0xff]
    %v443 = vld [vmem:[#allocation5 + $0x978] sm:$0xff]
    %v444 = vld [vmem:[#allocation5 + $0x980] sm:$0xff]
    %v445 = vld [vmem:[#allocation5 + $0x988] sm:$0xff]
    %v446 = vld [vmem:[#allocation5 + $0x990] sm:$0xff]
    %v447 = vld [vmem:[#allocation5 + $0x998] sm:$0xff]
    %v448 = vld [vmem:[#allocation5 + $0x9a0] sm:$0xff]
    %v449 = vld [vmem:[#allocation5 + $0x9a8] sm:$0xff]
    %v450 = vld [vmem:[#allocation5 + $0x9b0] sm:$0xff]
    %v451 = vld [vmem:[#allocation5 + $0x9b8] sm:$0xff]
    %v452 = vld [vmem:[#allocation5 + $0x9c0] sm:$0xff]
    %v453 = vld [vmem:[#allocation5 + $0x9c8] sm:$0xff]
    %v454 = vld [vmem:[#allocation5 + $0x9d0] sm:$0xff]
    %v455 = vld [vmem:[#allocation5 + $0x9d8] sm:$0xff]
    %v456 = vld [vmem:[#allocation5 + $0x9e0] sm:$0xff]
    %v457 = vld [vmem:[#allocation5 + $0x9e8] sm:$0xff]
    %v458 = vld [vmem:[#allocation5 + $0x9f0] sm:$0xff]
    %v459 = vld [vmem:[#allocation5 + $0x9f8] sm:$0xff]
    %v460 = vld [vmem:[#allocation5 + $0xa00] sm:$0xff]
    %v461 = vld [vmem:[#allocation5 + $0xa08] sm:$0xff]
    %v462 = vld [vmem:[#allocation5 + $0xa10] sm:$0xff]
    %v463 = vld [vmem:[#allocation5 + $0xa18] sm:$0xff]
    %v464 = vld [vmem:[#allocation5 + $0xa20] sm:$0xff]
    %v465 = vld [vmem:[#allocation5 + $0xa28] sm:$0xff]
    %v466 = vld [vmem:[#allocation5 + $0xa30] sm:$0xff]
    %v467 = vld [vmem:[#allocation5 + $0xa38] sm:$0xff]
    %v468 = vld [vmem:[#allocation5 + $0xa40] sm:$0xff]
    %v469 = vld [vmem:[#allocation5 + $0xa48] sm:$0xff]
    %v470 = vld [vmem:[#allocation5 + $0xa50] sm:$0xff]
    %v471 = vld [vmem:[#allocation5 + $0xa58] sm:$0xff]
    %v472 = vld [vmem:[#allocation5 + $0xa60] sm:$0xff]
    %v473 = vld [vmem:[#allocation5 + $0xa68] sm:$0xff]
    %v474 = vld [vmem:[#allocation5 + $0xa70] sm:$0xff]
    %v475 = vld [vmem:[#allocation5 + $0xa78] sm:$0xff]
    %v476 = vld [vmem:[#allocation5 + $0xa80] sm:$0xff]
    %v477 = vld [vmem:[#allocation5 + $0xa88] sm:$0xff]
    %v478 = vld [vmem:[#allocation5 + $0xa90] sm:$0xff]
    %v479 = vld [vmem:[#allocation5 + $0xa98] sm:$0xff]
    %v480 = vld [vmem:[#allocation5 + $0xaa0] sm:$0xff]
    %v481 = vld [vmem:[#allocation5 + $0xaa8] sm:$0xff]
    %v482 = vld [vmem:[#allocation5 + $0xab0] sm:$0xff]
    %v483 = vld [vmem:[#allocation5 + $0xab8] sm:$0xff]
    %v484 = vld [vmem:[#allocation5 + $0xac0] sm:$0xff]
    %v485 = vld [vmem:[#allocation5 + $0xac8] sm:$0xff]
    %v486 = vld [vmem:[#allocation5 + $0xad0] sm:$0xff]
    %v487 = vld [vmem:[#allocation5 + $0xad8] sm:$0xff]
    %v488 = vld [vmem:[#allocation5 + $0xae0] sm:$0xff]
    %v489 = vld [vmem:[#allocation5 + $0xae8] sm:$0xff]
    %v490 = vld [vmem:[#allocation5 + $0xaf0] sm:$0xff]
    %v491 = vld [vmem:[#allocation5 + $0xaf8] sm:$0xff]
    %v492 = vld [vmem:[#allocation5 + $0xb00] sm:$0xff]
    %v493 = vld [vmem:[#allocation5 + $0xb08] sm:$0xff]
    %v494 = vld [vmem:[#allocation5 + $0xb10] sm:$0xff]
    %v495 = vld [vmem:[#allocation5 + $0xb18] sm:$0xff]
    %v496 = vld [vmem:[#allocation5 + $0xb20] sm:$0xff]
    %v497 = vld [vmem:[#allocation5 + $0xb28] sm:$0xff]
    %v498 = vld [vmem:[#allocation5 + $0xb30] sm:$0xff]
    %v499 = vld [vmem:[#allocation5 + $0xb38] sm:$0xff]
    %v500 = vld [vmem:[#allocation5 + $0xb40] sm:$0xff]
    %v501 = vld [vmem:[#allocation5 + $0xb48] sm:$0xff]
    %v502 = vld [vmem:[#allocation5 + $0xb50] sm:$0xff]
    %v503 = vld [vmem:[#allocation5 + $0xb58] sm:$0xff]
    %v504 = vld [vmem:[#allocation5 + $0xb60] sm:$0xff]
    %v505 = vld [vmem:[#allocation5 + $0xb68] sm:$0xff]
    %v506 = vld [vmem:[#allocation5 + $0xb70] sm:$0xff]
    %v507 = vld [vmem:[#allocation5 + $0xb78] sm:$0xff]
    %v508 = vld [vmem:[#allocation5 + $0xb80] sm:$0xff]
    %v509 = vld [vmem:[#allocation5 + $0xb88] sm:$0xff]
    %v510 = vld [vmem:[#allocation5 + $0xb90] sm:$0xff]
    %v511 = vld [vmem:[#allocation5 + $0xb98] sm:$0xff]
    %v512 = vld [vmem:[#allocation5 + $0xba0] sm:$0xff]
    %v513 = vld [vmem:[#allocation5 + $0xba8] sm:$0xff]
    %v514 = vld [vmem:[#allocation5 + $0xbb0] sm:$0xff]
    %v515 = vld [vmem:[#allocation5 + $0xbb8] sm:$0xff]
    %v516 = vld [vmem:[#allocation5 + $0xbc0] sm:$0xff]
    %v517 = vld [vmem:[#allocation5 + $0xbc8] sm:$0xff]
    %v518 = vld [vmem:[#allocation5 + $0xbd0] sm:$0xff]
    %v519 = vld [vmem:[#allocation5 + $0xbd8] sm:$0xff]
    %v520 = vld [vmem:[#allocation5 + $0xbe0] sm:$0xff]
    %v521 = vld [vmem:[#allocation5 + $0xbe8] sm:$0xff]
    %v522 = vld [vmem:[#allocation5 + $0xbf0] sm:$0xff]
    %v523 = vld [vmem:[#allocation5 + $0xbf8] sm:$0xff]
    %v524 = vld [vmem:[#allocation5 + $0xc00] sm:$0xff]
    %v525 = vld [vmem:[#allocation5 + $0xc08] sm:$0xff]
    %v526 = vld [vmem:[#allocation5 + $0xc10] sm:$0xff]
    %v527 = vld [vmem:[#allocation5 + $0xc18] sm:$0xff]
    %v528 = vld [vmem:[#allocation5 + $0xc20] sm:$0xff]
    %v529 = vld [vmem:[#allocation5 + $0xc28] sm:$0xff]
    %v530 = vld [vmem:[#allocation5 + $0xc30] sm:$0xff]
    %v531 = vld [vmem:[#allocation5 + $0xc38] sm:$0xff]
    %v532 = vld [vmem:[#allocation5 + $0xc40] sm:$0xff]
    %v533 = vld [vmem:[#allocation5 + $0xc48] sm:$0xff]
    %v534 = vld [vmem:[#allocation5 + $0xc50] sm:$0xff]
    %v535 = vld [vmem:[#allocation5 + $0xc58] sm:$0xff]
    %v536 = vld [vmem:[#allocation5 + $0xc60] sm:$0xff]
    %v537 = vld [vmem:[#allocation5 + $0xc68] sm:$0xff]
    %v538 = vld [vmem:[#allocation5 + $0xc70] sm:$0xff]
    %v539 = vld [vmem:[#allocation5 + $0xc78] sm:$0xff]
    %v540 = vld [vmem:[#allocation5 + $0xc80] sm:$0xff]
    %v541 = vld [vmem:[#allocation5 + $0xc88] sm:$0xff]
    %v542 = vld [vmem:[#allocation5 + $0xc90] sm:$0xff]
    %v543 = vld [vmem:[#allocation5 + $0xc98] sm:$0xff]
    %v544 = vld [vmem:[#allocation5 + $0xca0] sm:$0xff]
    %v545 = vld [vmem:[#allocation5 + $0xca8] sm:$0xff]
    %v546 = vld [vmem:[#allocation5 + $0xcb0] sm:$0xff]
    %v547 = vld [vmem:[#allocation5 + $0xcb8] sm:$0xff]
    %v548 = vld [vmem:[#allocation5 + $0xcc0] sm:$0xff]
    %v549 = vld [vmem:[#allocation5 + $0xcc8] sm:$0xff]
    %v550 = vld [vmem:[#allocation5 + $0xcd0] sm:$0xff]
    %v551 = vld [vmem:[#allocation5 + $0xcd8] sm:$0xff]
    %v552 = vld [vmem:[#allocation5 + $0xce0] sm:$0xff]
    %v553 = vld [vmem:[#allocation5 + $0xce8] sm:$0xff]
    %v554 = vld [vmem:[#allocation5 + $0xcf0] sm:$0xff]
    %v555 = vld [vmem:[#allocation5 + $0xcf8] sm:$0xff]
    %v556 = vld [vmem:[#allocation5 + $0xd00] sm:$0xff]
    %v557 = vld [vmem:[#allocation5 + $0xd08] sm:$0xff]
    %v558 = vld [vmem:[#allocation5 + $0xd10] sm:$0xff]
    %v559 = vld [vmem:[#allocation5 + $0xd18] sm:$0xff]
    %v560 = vld [vmem:[#allocation5 + $0xd20] sm:$0xff]
    %v561 = vld [vmem:[#allocation5 + $0xd28] sm:$0xff]
    %v562 = vld [vmem:[#allocation5 + $0xd30] sm:$0xff]
    %v563 = vld [vmem:[#allocation5 + $0xd38] sm:$0xff]
    %v564 = vld [vmem:[#allocation5 + $0xd40] sm:$0xff]
    %v565 = vld [vmem:[#allocation5 + $0xd48] sm:$0xff]
    %v566 = vld [vmem:[#allocation5 + $0xd50] sm:$0xff]
    %v567 = vld [vmem:[#allocation5 + $0xd58] sm:$0xff]
    %v568 = vld [vmem:[#allocation5 + $0xd60] sm:$0xff]
    %v569 = vld [vmem:[#allocation5 + $0xd68] sm:$0xff]
    %v570 = vld [vmem:[#allocation5 + $0xd70] sm:$0xff]
    %v571 = vld [vmem:[#allocation5 + $0xd78] sm:$0xff]
    %v572 = vld [vmem:[#allocation5 + $0xd80] sm:$0xff]
    %v573 = vld [vmem:[#allocation5 + $0xd88] sm:$0xff]
    %v574 = vld [vmem:[#allocation5 + $0xd90] sm:$0xff]
    %v575 = vld [vmem:[#allocation5 + $0xd98] sm:$0xff]
    %v576 = vld [vmem:[#allocation5 + $0xda0] sm:$0xff]
    %v577 = vld [vmem:[#allocation5 + $0xda8] sm:$0xff]
    %v578 = vld [vmem:[#allocation5 + $0xdb0] sm:$0xff]
    %v579 = vld [vmem:[#allocation5 + $0xdb8] sm:$0xff]
    %v580 = vld [vmem:[#allocation5 + $0xdc0] sm:$0xff]
    %v581 = vld [vmem:[#allocation5 + $0xdc8] sm:$0xff]
    %v582 = vld [vmem:[#allocation5 + $0xdd0] sm:$0xff]
    %v583 = vld [vmem:[#allocation5 + $0xdd8] sm:$0xff]
    %v584 = vld [vmem:[#allocation5 + $0xde0] sm:$0xff]
    %v585 = vld [vmem:[#allocation5 + $0xde8] sm:$0xff]
    %v586 = vld [vmem:[#allocation5 + $0xdf0] sm:$0xff]
    %v587 = vld [vmem:[#allocation5 + $0xdf8] sm:$0xff]
    %v588 = vld [vmem:[#allocation5 + $0xe00] sm:$0xff]
    %v589 = vld [vmem:[#allocation5 + $0xe08] sm:$0xff]
    %v590 = vld [vmem:[#allocation5 + $0xe10] sm:$0xff]
    %v591 = vld [vmem:[#allocation5 + $0xe18] sm:$0xff]
    %v592 = vld [vmem:[#allocation5 + $0xe20] sm:$0xff]
    %v593 = vld [vmem:[#allocation5 + $0xe28] sm:$0xff]
    %v594 = vld [vmem:[#allocation5 + $0xe30] sm:$0xff]
    %v595 = vld [vmem:[#allocation5 + $0xe38] sm:$0xff]
    %v596 = vld [vmem:[#allocation5 + $0xe40] sm:$0xff]
    %v597 = vld [vmem:[#allocation5 + $0xe48] sm:$0xff]
    %v598 = vld [vmem:[#allocation5 + $0xe50] sm:$0xff]
    %v599 = vld [vmem:[#allocation5 + $0xe58] sm:$0xff]
    %v600 = vld [vmem:[#allocation5 + $0xe60] sm:$0xff]
    %v601 = vld [vmem:[#allocation5 + $0xe68] sm:$0xff]
    %v602 = vld [vmem:[#allocation5 + $0xe70] sm:$0xff]
    %v603 = vld [vmem:[#allocation5 + $0xe78] sm:$0xff]
    %v604 = vld [vmem:[#allocation5 + $0xe80] sm:$0xff]
    %v605 = vld [vmem:[#allocation5 + $0xe88] sm:$0xff]
    %v606 = vld [vmem:[#allocation5 + $0xe90] sm:$0xff]
    %v607 = vld [vmem:[#allocation5 + $0xe98] sm:$0xff]
    %v608 = vld [vmem:[#allocation5 + $0xea0] sm:$0xff]
    %v609 = vld [vmem:[#allocation5 + $0xea8] sm:$0xff]
    %v610 = vld [vmem:[#allocation5 + $0xeb0] sm:$0xff]
    %v611 = vld [vmem:[#allocation5 + $0xeb8] sm:$0xff]
    %v612 = vld [vmem:[#allocation5 + $0xec0] sm:$0xff]
    %v613 = vld [vmem:[#allocation5 + $0xec8] sm:$0xff]
    %v614 = vld [vmem:[#allocation5 + $0xed0] sm:$0xff]
    %v615 = vld [vmem:[#allocation5 + $0xed8] sm:$0xff]
    %v616 = vld [vmem:[#allocation5 + $0xee0] sm:$0xff]
    %v617 = vld [vmem:[#allocation5 + $0xee8] sm:$0xff]
    %v618 = vld [vmem:[#allocation5 + $0xef0] sm:$0xff]
    %v619 = vld [vmem:[#allocation5 + $0xef8] sm:$0xff]
    %v620 = vld [vmem:[#allocation5 + $0xf00] sm:$0xff]
    %v621 = vld [vmem:[#allocation5 + $0xf08] sm:$0xff]
    %v622 = vld [vmem:[#allocation5 + $0xf10] sm:$0xff]
    %v623 = vld [vmem:[#allocation5 + $0xf18] sm:$0xff]
    %v624 = vld [vmem:[#allocation5 + $0xf20] sm:$0xff]
    %v625 = vld [vmem:[#allocation5 + $0xf28] sm:$0xff]
    %v626 = vld [vmem:[#allocation5 + $0xf30] sm:$0xff]
    %v627 = vld [vmem:[#allocation5 + $0xf38] sm:$0xff]
    %v628 = vld [vmem:[#allocation5 + $0xf40] sm:$0xff]
    %v629 = vld [vmem:[#allocation5 + $0xf48] sm:$0xff]
    %v630 = vld [vmem:[#allocation5 + $0xf50] sm:$0xff]
    %v631 = vld [vmem:[#allocation5 + $0xf58] sm:$0xff]
    %v632 = vld [vmem:[#allocation5 + $0xf60] sm:$0xff]
    %v633 = vld [vmem:[#allocation5 + $0xf68] sm:$0xff]
    %v634 = vld [vmem:[#allocation5 + $0xf70] sm:$0xff]
    %v635 = vld [vmem:[#allocation5 + $0xf78] sm:$0xff]
    %v636 = vld [vmem:[#allocation5 + $0xf80] sm:$0xff]
    %v637 = vld [vmem:[#allocation5 + $0xf88] sm:$0xff]
    %v638 = vld [vmem:[#allocation5 + $0xf90] sm:$0xff]
    %v639 = vld [vmem:[#allocation5 + $0xf98] sm:$0xff]
    %v640 = vld [vmem:[#allocation5 + $0xfa0] sm:$0xff]
    %v641 = vld [vmem:[#allocation5 + $0xfa8] sm:$0xff]
    %v642 = vld [vmem:[#allocation5 + $0xfb0] sm:$0xff]
    %v643 = vld [vmem:[#allocation5 + $0xfb8] sm:$0xff]
    %v644 = vld [vmem:[#allocation5 + $0xfc0] sm:$0xff]
    %v645 = vld [vmem:[#allocation5 + $0xfc8] sm:$0xff]
    %v646 = vld [vmem:[#allocation5 + $0xfd0] sm:$0xff]
    %v647 = vld [vmem:[#allocation5 + $0xfd8] sm:$0xff]
    %v648 = vld [vmem:[#allocation5 + $0xfe0] sm:$0xff]
    %v649 = vld [vmem:[#allocation5 + $0xfe8] sm:$0xff]
    %v650 = vld [vmem:[#allocation5 + $0xff0] sm:$0xff]
    %v651 = vld [vmem:[#allocation5 + $0xff8] sm:$0xff]
    %v652 = vld [vmem:[#allocation5 + $0x1000] sm:$0xff]
    %v653 = vld [vmem:[#allocation5 + $0x1008] sm:$0xff]
    %v654 = vld [vmem:[#allocation5 + $0x1010] sm:$0xff]
    %v655 = vld [vmem:[#allocation5 + $0x1018] sm:$0xff]
    %v656 = vld [vmem:[#allocation5 + $0x1020] sm:$0xff]
    %v657 = vld [vmem:[#allocation5 + $0x1028] sm:$0xff]
    %v658 = vld [vmem:[#allocation5 + $0x1030] sm:$0xff]
    %v659 = vld [vmem:[#allocation5 + $0x1038] sm:$0xff]
    %v660 = vld [vmem:[#allocation5 + $0x1040] sm:$0xff]
    %v661 = vld [vmem:[#allocation5 + $0x1048] sm:$0xff]
    %v662 = vld [vmem:[#allocation5 + $0x1050] sm:$0xff]
    %v663 = vld [vmem:[#allocation5 + $0x1058] sm:$0xff]
    %v664 = vld [vmem:[#allocation5 + $0x1060] sm:$0xff]
    %v665 = vld [vmem:[#allocation5 + $0x1068] sm:$0xff]
    %v666 = vld [vmem:[#allocation5 + $0x1070] sm:$0xff]
    %v667 = vld [vmem:[#allocation5 + $0x1078] sm:$0xff]
    %v668 = vld [vmem:[#allocation5 + $0x1080] sm:$0xff]
    %v669 = vld [vmem:[#allocation5 + $0x1088] sm:$0xff]
    %v670 = vld [vmem:[#allocation5 + $0x1090] sm:$0xff]
    %v671 = vld [vmem:[#allocation5 + $0x1098] sm:$0xff]
    %v672 = vld [vmem:[#allocation5 + $0x10a0] sm:$0xff]
    %v673 = vld [vmem:[#allocation5 + $0x10a8] sm:$0xff]
    %v674 = vld [vmem:[#allocation5 + $0x10b0] sm:$0xff]
    %v675 = vld [vmem:[#allocation5 + $0x10b8] sm:$0xff]
    %v676 = vld [vmem:[#allocation5 + $0x10c0] sm:$0xff]
    %v677 = vld [vmem:[#allocation5 + $0x10c8] sm:$0xff]
    %v678 = vld [vmem:[#allocation5 + $0x10d0] sm:$0xff]
    %v679 = vld [vmem:[#allocation5 + $0x10d8] sm:$0xff]
    %v680 = vld [vmem:[#allocation5 + $0x10e0] sm:$0xff]
    %v681 = vld [vmem:[#allocation5 + $0x10e8] sm:$0xff]
    %v682 = vld [vmem:[#allocation5 + $0x10f0] sm:$0xff]
    %v683 = vld [vmem:[#allocation5 + $0x10f8] sm:$0xff]
    %v684 = vld [vmem:[#allocation5 + $0x1100] sm:$0xff]
    %v685 = vld [vmem:[#allocation5 + $0x1108] sm:$0xff]
    %v686 = vld [vmem:[#allocation5 + $0x1110] sm:$0xff]
    %v687 = vld [vmem:[#allocation5 + $0x1118] sm:$0xff]
    %v688 = vld [vmem:[#allocation5 + $0x1120] sm:$0xff]
    %v689 = vld [vmem:[#allocation5 + $0x1128] sm:$0xff]
    %v690 = vld [vmem:[#allocation5 + $0x1130] sm:$0xff]
    %v691 = vld [vmem:[#allocation5 + $0x1138] sm:$0xff]
    %v692 = vld [vmem:[#allocation5 + $0x1140] sm:$0xff]
    %v693 = vld [vmem:[#allocation5 + $0x1148] sm:$0xff]
    %v694 = vld [vmem:[#allocation5 + $0x1150] sm:$0xff]
    %v695 = vld [vmem:[#allocation5 + $0x1158] sm:$0xff]
    %v696 = vld [vmem:[#allocation5 + $0x1160] sm:$0xff]
    %v697 = vld [vmem:[#allocation5 + $0x1168] sm:$0xff]
    %v698 = vld [vmem:[#allocation5 + $0x1170] sm:$0xff]
    %v699 = vld [vmem:[#allocation5 + $0x1178] sm:$0xff]
    %v700 = vld [vmem:[#allocation5 + $0x1180] sm:$0xff]
    %v701 = vld [vmem:[#allocation5 + $0x1188] sm:$0xff]
    %v702 = vld [vmem:[#allocation5 + $0x1190] sm:$0xff]
    %v703 = vld [vmem:[#allocation5 + $0x1198] sm:$0xff]
    %v704 = vld [vmem:[#allocation5 + $0x11a0] sm:$0xff]
    %v705 = vld [vmem:[#allocation5 + $0x11a8] sm:$0xff]
    %v706 = vld [vmem:[#allocation5 + $0x11b0] sm:$0xff]
    %v707 = vld [vmem:[#allocation5 + $0x11b8] sm:$0xff]
    %v708 = vld [vmem:[#allocation5 + $0x11c0] sm:$0xff]
    %v709 = vld [vmem:[#allocation5 + $0x11c8] sm:$0xff]
    %v710 = vld [vmem:[#allocation5 + $0x11d0] sm:$0xff]
    %v711 = vld [vmem:[#allocation5 + $0x11d8] sm:$0xff]
    %v712 = vld [vmem:[#allocation5 + $0x11e0] sm:$0xff]
    %v713 = vld [vmem:[#allocation5 + $0x11e8] sm:$0xff]
    %v714 = vld [vmem:[#allocation5 + $0x11f0] sm:$0xff]
    %v715 = vld [vmem:[#allocation5 + $0x11f8] sm:$0xff]
    %v716 = vld [vmem:[#allocation5 + $0x1200] sm:$0xff]
    %v717 = vld [vmem:[#allocation5 + $0x1208] sm:$0xff]
    %v718 = vld [vmem:[#allocation5 + $0x1210] sm:$0xff]
    %v719 = vld [vmem:[#allocation5 + $0x1218] sm:$0xff]
    %v720 = vld [vmem:[#allocation5 + $0x1220] sm:$0xff]
    %v721 = vld [vmem:[#allocation5 + $0x1228] sm:$0xff]
    %v722 = vld [vmem:[#allocation5 + $0x1230] sm:$0xff]
    %v723 = vld [vmem:[#allocation5 + $0x1238] sm:$0xff]
    %v724 = vld [vmem:[#allocation5 + $0x1240] sm:$0xff]
    %v725 = vld [vmem:[#allocation5 + $0x1248] sm:$0xff]
    %v726 = vld [vmem:[#allocation5 + $0x1250] sm:$0xff]
    %v727 = vld [vmem:[#allocation5 + $0x1258] sm:$0xff]
    %v728 = vld [vmem:[#allocation5 + $0x1260] sm:$0xff]
    %v729 = vld [vmem:[#allocation5 + $0x1268] sm:$0xff]
    %v730 = vld [vmem:[#allocation5 + $0x1270] sm:$0xff]
    %v731 = vld [vmem:[#allocation5 + $0x1278] sm:$0xff]
    %v732 = vld [vmem:[#allocation5 + $0x1280] sm:$0xff]
    %v733 = vld [vmem:[#allocation5 + $0x1288] sm:$0xff]
    %v734 = vld [vmem:[#allocation5 + $0x1290] sm:$0xff]
    %v735 = vld [vmem:[#allocation5 + $0x1298] sm:$0xff]
    %v736 = vld [vmem:[#allocation5 + $0x12a0] sm:$0xff]
    %v737 = vld [vmem:[#allocation5 + $0x12a8] sm:$0xff]
    %v738 = vld [vmem:[#allocation5 + $0x12b0] sm:$0xff]
    %v739 = vld [vmem:[#allocation5 + $0x12b8] sm:$0xff]
    %v740 = vld [vmem:[#allocation5 + $0x12c0] sm:$0xff]
    %v741 = vld [vmem:[#allocation5 + $0x12c8] sm:$0xff]
    %v742 = vld [vmem:[#allocation5 + $0x12d0] sm:$0xff]
    %v743 = vld [vmem:[#allocation5 + $0x12d8] sm:$0xff]
    %v744 = vld [vmem:[#allocation5 + $0x12e0] sm:$0xff]
    %v745 = vld [vmem:[#allocation5 + $0x12e8] sm:$0xff]
    %v746 = vld [vmem:[#allocation5 + $0x12f0] sm:$0xff]
    %v747 = vld [vmem:[#allocation5 + $0x12f8] sm:$0xff]
    %v748 = vld [vmem:[#allocation5 + $0x1300] sm:$0xff]
    %v749 = vld [vmem:[#allocation5 + $0x1308] sm:$0xff]
    %v750 = vld [vmem:[#allocation5 + $0x1310] sm:$0xff]
    %v751 = vld [vmem:[#allocation5 + $0x1318] sm:$0xff]
    %v752 = vld [vmem:[#allocation5 + $0x1320] sm:$0xff]
    %v753 = vld [vmem:[#allocation5 + $0x1328] sm:$0xff]
    %v754 = vld [vmem:[#allocation5 + $0x1330] sm:$0xff]
    %v755 = vld [vmem:[#allocation5 + $0x1338] sm:$0xff]
    %v756 = vld [vmem:[#allocation5 + $0x1340] sm:$0xff]
    %v757 = vld [vmem:[#allocation5 + $0x1348] sm:$0xff]
    %v758 = vld [vmem:[#allocation5 + $0x1350] sm:$0xff]
    %v759 = vld [vmem:[#allocation5 + $0x1358] sm:$0xff]
    %v760 = vld [vmem:[#allocation5 + $0x1360] sm:$0xff]
    %v761 = vld [vmem:[#allocation5 + $0x1368] sm:$0xff]
    %v762 = vld [vmem:[#allocation5 + $0x1370] sm:$0xff]
    %v763 = vld [vmem:[#allocation5 + $0x1378] sm:$0xff]
    %v764 = vld [vmem:[#allocation5 + $0x1380] sm:$0xff]
    %v765 = vld [vmem:[#allocation5 + $0x1388] sm:$0xff]
    %v766 = vld [vmem:[#allocation5 + $0x1390] sm:$0xff]
    %v767 = vld [vmem:[#allocation5 + $0x1398] sm:$0xff]
    %v768 = vld [vmem:[#allocation5 + $0x13a0] sm:$0xff]
    %v769 = vld [vmem:[#allocation5 + $0x13a8] sm:$0xff]
    %v770 = vld [vmem:[#allocation5 + $0x13b0] sm:$0xff]
    %v771 = vld [vmem:[#allocation5 + $0x13b8] sm:$0xff]
    %v772 = vld [vmem:[#allocation5 + $0x13c0] sm:$0xff]
    %v773 = vld [vmem:[#allocation5 + $0x13c8] sm:$0xff]
    %v774 = vld [vmem:[#allocation5 + $0x13d0] sm:$0xff]
    %v775 = vld [vmem:[#allocation5 + $0x13d8] sm:$0xff]
    %v776 = vld [vmem:[#allocation5 + $0x13e0] sm:$0xff]
    %v777 = vld [vmem:[#allocation5 + $0x13e8] sm:$0xff]
    %v778 = vld [vmem:[#allocation5 + $0x13f0] sm:$0xff]
    %v779 = vld [vmem:[#allocation5 + $0x13f8] sm:$0xff]
    %v780 = vld [vmem:[#allocation5 + $0x1400] sm:$0xff]
    %v781 = vld [vmem:[#allocation5 + $0x1408] sm:$0xff]
    %v782 = vld [vmem:[#allocation5 + $0x1410] sm:$0xff]
    %v783 = vld [vmem:[#allocation5 + $0x1418] sm:$0xff]
    %v784 = vld [vmem:[#allocation5 + $0x1420] sm:$0xff]
    %v785 = vld [vmem:[#allocation5 + $0x1428] sm:$0xff]
    %v786 = vld [vmem:[#allocation5 + $0x1430] sm:$0xff]
    %v787 = vld [vmem:[#allocation5 + $0x1438] sm:$0xff]
    %v788 = vld [vmem:[#allocation5 + $0x1440] sm:$0xff]
    %v789 = vld [vmem:[#allocation5 + $0x1448] sm:$0xff]
    %v790 = vld [vmem:[#allocation5 + $0x1450] sm:$0xff]
    %v791 = vld [vmem:[#allocation5 + $0x1458] sm:$0xff]
    %v792 = vld [vmem:[#allocation5 + $0x1460] sm:$0xff]
    %v793 = vld [vmem:[#allocation5 + $0x1468] sm:$0xff]
    %v794 = vld [vmem:[#allocation5 + $0x1470] sm:$0xff]
    %v795 = vld [vmem:[#allocation5 + $0x1478] sm:$0xff]
    %v796 = vld [vmem:[#allocation5 + $0x1480] sm:$0xff]
    %v797 = vld [vmem:[#allocation5 + $0x1488] sm:$0xff]
    %v798 = vld [vmem:[#allocation5 + $0x1490] sm:$0xff]
    %v799 = vld [vmem:[#allocation5 + $0x1498] sm:$0xff]
    %v800 = vld [vmem:[#allocation5 + $0x14a0] sm:$0xff]
    %v801 = vld [vmem:[#allocation5 + $0x14a8] sm:$0xff]
    %v802 = vld [vmem:[#allocation5 + $0x14b0] sm:$0xff]
    %v803 = vld [vmem:[#allocation5 + $0x14b8] sm:$0xff]
    %v804 = vld [vmem:[#allocation5 + $0x14c0] sm:$0xff]
    %v805 = vld [vmem:[#allocation5 + $0x14c8] sm:$0xff]
    %v806 = vld [vmem:[#allocation5 + $0x14d0] sm:$0xff]
    %v807 = vld [vmem:[#allocation5 + $0x14d8] sm:$0xff]
    %v808 = vld [vmem:[#allocation5 + $0x14e0] sm:$0xff]
    %v809 = vld [vmem:[#allocation5 + $0x14e8] sm:$0xff]
    %v810 = vld [vmem:[#allocation5 + $0x14f0] sm:$0xff]
    %v811 = vld [vmem:[#allocation5 + $0x14f8] sm:$0xff]
    %v812 = vld [vmem:[#allocation5 + $0x1500] sm:$0xff]
    %v813 = vld [vmem:[#allocation5 + $0x1508] sm:$0xff]
    %v814 = vld [vmem:[#allocation5 + $0x1510] sm:$0xff]
    %v815 = vld [vmem:[#allocation5 + $0x1518] sm:$0xff]
    %v816 = vld [vmem:[#allocation5 + $0x1520] sm:$0xff]
    %v817 = vld [vmem:[#allocation5 + $0x1528] sm:$0xff]
    %v818 = vld [vmem:[#allocation5 + $0x1530] sm:$0xff]
    %v819 = vld [vmem:[#allocation5 + $0x1538] sm:$0xff]
    %v820 = vld [vmem:[#allocation5 + $0x1540] sm:$0xff]
    %v821 = vld [vmem:[#allocation5 + $0x1548] sm:$0xff]
    %v822 = vld [vmem:[#allocation5 + $0x1550] sm:$0xff]
    %v823 = vld [vmem:[#allocation5 + $0x1558] sm:$0xff]
    %v824 = vld [vmem:[#allocation5 + $0x1560] sm:$0xff]
    %v825 = vld [vmem:[#allocation5 + $0x1568] sm:$0xff]
    %v826 = vld [vmem:[#allocation5 + $0x1570] sm:$0xff]
    %v827 = vld [vmem:[#allocation5 + $0x1578] sm:$0xff]
    %v828 = vld [vmem:[#allocation5 + $0x1580] sm:$0xff]
    %v829 = vld [vmem:[#allocation5 + $0x1588] sm:$0xff]
    %v830 = vld [vmem:[#allocation5 + $0x1590] sm:$0xff]
    %v831 = vld [vmem:[#allocation5 + $0x1598] sm:$0xff]
    %v832 = vld [vmem:[#allocation5 + $0x15a0] sm:$0xff]
    %v833 = vld [vmem:[#allocation5 + $0x15a8] sm:$0xff]
    %v834 = vld [vmem:[#allocation5 + $0x15b0] sm:$0xff]
    %v835 = vld [vmem:[#allocation5 + $0x15b8] sm:$0xff]
    %v836 = vld [vmem:[#allocation5 + $0x15c0] sm:$0xff]
    %v837 = vld [vmem:[#allocation5 + $0x15c8] sm:$0xff]
    %v838 = vld [vmem:[#allocation5 + $0x15d0] sm:$0xff]
    %v839 = vld [vmem:[#allocation5 + $0x15d8] sm:$0xff]
    %v840 = vld [vmem:[#allocation5 + $0x15e0] sm:$0xff]
    %v841 = vld [vmem:[#allocation5 + $0x15e8] sm:$0xff]
    %v842 = vld [vmem:[#allocation5 + $0x15f0] sm:$0xff]
    %v843 = vld [vmem:[#allocation5 + $0x15f8] sm:$0xff]
    %v844 = vld [vmem:[#allocation5 + $0x1600] sm:$0xff]
    %v845 = vld [vmem:[#allocation5 + $0x1608] sm:$0xff]
    %v846 = vld [vmem:[#allocation5 + $0x1610] sm:$0xff]
    %v847 = vld [vmem:[#allocation5 + $0x1618] sm:$0xff]
    %v848 = vld [vmem:[#allocation5 + $0x1620] sm:$0xff]
    %v849 = vld [vmem:[#allocation5 + $0x1628] sm:$0xff]
    %v850 = vld [vmem:[#allocation5 + $0x1630] sm:$0xff]
    %v851 = vld [vmem:[#allocation5 + $0x1638] sm:$0xff]
    %v852 = vld [vmem:[#allocation5 + $0x1640] sm:$0xff]
    %v853 = vld [vmem:[#allocation5 + $0x1648] sm:$0xff]
    %v854 = vld [vmem:[#allocation5 + $0x1650] sm:$0xff]
    %v855 = vld [vmem:[#allocation5 + $0x1658] sm:$0xff]
    %v856 = vld [vmem:[#allocation5 + $0x1660] sm:$0xff]
    %v857 = vld [vmem:[#allocation5 + $0x1668] sm:$0xff]
    %v858 = vld [vmem:[#allocation5 + $0x1670] sm:$0xff]
    %v859 = vld [vmem:[#allocation5 + $0x1678] sm:$0xff]
    %v860 = vld [vmem:[#allocation5 + $0x1680] sm:$0xff]
    %v861 = vld [vmem:[#allocation5 + $0x1688] sm:$0xff]
    %v862 = vld [vmem:[#allocation5 + $0x1690] sm:$0xff]
    %v863 = vld [vmem:[#allocation5 + $0x1698] sm:$0xff]
    %v864 = vld [vmem:[#allocation5 + $0x16a0] sm:$0xff]
    %v865 = vld [vmem:[#allocation5 + $0x16a8] sm:$0xff]
    %v866 = vld [vmem:[#allocation5 + $0x16b0] sm:$0xff]
    %v867 = vld [vmem:[#allocation5 + $0x16b8] sm:$0xff]
    %v868 = vld [vmem:[#allocation5 + $0x16c0] sm:$0xff]
    %v869 = vld [vmem:[#allocation5 + $0x16c8] sm:$0xff]
    %v870 = vld [vmem:[#allocation5 + $0x16d0] sm:$0xff]
    %v871 = vld [vmem:[#allocation5 + $0x16d8] sm:$0xff]
    %v872 = vld [vmem:[#allocation5 + $0x16e0] sm:$0xff]
    %v873 = vld [vmem:[#allocation5 + $0x16e8] sm:$0xff]
    %v874 = vld [vmem:[#allocation5 + $0x16f0] sm:$0xff]
    %v875 = vld [vmem:[#allocation5 + $0x16f8] sm:$0xff]
    %v876 = vld [vmem:[#allocation5 + $0x1700] sm:$0xff]
    %v877 = vld [vmem:[#allocation5 + $0x1708] sm:$0xff]
    %v878 = vld [vmem:[#allocation5 + $0x1710] sm:$0xff]
    %v879 = vld [vmem:[#allocation5 + $0x1718] sm:$0xff]
    %v880 = vld [vmem:[#allocation5 + $0x1720] sm:$0xff]
    %v881 = vld [vmem:[#allocation5 + $0x1728] sm:$0xff]
    %v882 = vld [vmem:[#allocation5 + $0x1730] sm:$0xff]
    %v883 = vld [vmem:[#allocation5 + $0x1738] sm:$0xff]
    %v884 = vld [vmem:[#allocation5 + $0x1740] sm:$0xff]
    %v885 = vld [vmem:[#allocation5 + $0x1748] sm:$0xff]
    %v886 = vld [vmem:[#allocation5 + $0x1750] sm:$0xff]
    %v887 = vld [vmem:[#allocation5 + $0x1758] sm:$0xff]
    %v888 = vld [vmem:[#allocation5 + $0x1760] sm:$0xff]
    %v889 = vld [vmem:[#allocation5 + $0x1768] sm:$0xff]
    %v890 = vld [vmem:[#allocation5 + $0x1770] sm:$0xff]
    %v891 = vld [vmem:[#allocation5 + $0x1778] sm:$0xff]
    %v892 = vld [vmem:[#allocation5 + $0x1780] sm:$0xff]
    %v893 = vld [vmem:[#allocation5 + $0x1788] sm:$0xff]
    %v894 = vld [vmem:[#allocation5 + $0x1790] sm:$0xff]
    %v895 = vld [vmem:[#allocation5 + $0x1798] sm:$0xff]
    %v896 = vld [vmem:[#allocation5 + $0x17a0] sm:$0xff]
    %v897 = vld [vmem:[#allocation5 + $0x17a8] sm:$0xff]
    %v898 = vld [vmem:[#allocation5 + $0x17b0] sm:$0xff]
    %v899 = vld [vmem:[#allocation5 + $0x17b8] sm:$0xff]
    %v900 = vld [vmem:[#allocation5 + $0x17c0] sm:$0xff]
    %v901 = vld [vmem:[#allocation5 + $0x17c8] sm:$0xff]
    %v902 = vld [vmem:[#allocation5 + $0x17d0] sm:$0xff]
    %v903 = vld [vmem:[#allocation5 + $0x17d8] sm:$0xff]
    %v904 = vld [vmem:[#allocation5 + $0x17e0] sm:$0xff]
    %v905 = vld [vmem:[#allocation5 + $0x17e8] sm:$0xff]
    %v906 = vld [vmem:[#allocation5 + $0x17f0] sm:$0xff]
    %v907 = vld [vmem:[#allocation5 + $0x17f8] sm:$0xff]
    %v908 = vld [vmem:[#allocation5 + $0x1800] sm:$0xff]
    %v909 = vld [vmem:[#allocation5 + $0x1808] sm:$0xff]
    %v910 = vld [vmem:[#allocation5 + $0x1810] sm:$0xff]
    %v911 = vld [vmem:[#allocation5 + $0x1818] sm:$0xff]
    %v912 = vld [vmem:[#allocation5 + $0x1820] sm:$0xff]
    %v913 = vld [vmem:[#allocation5 + $0x1828] sm:$0xff]
    %v914 = vld [vmem:[#allocation5 + $0x1830] sm:$0xff]
    %v915 = vld [vmem:[#allocation5 + $0x1838] sm:$0xff]
    %v916 = vld [vmem:[#allocation5 + $0x1840] sm:$0xff]
    %v917 = vld [vmem:[#allocation5 + $0x1848] sm:$0xff]
    %v918 = vld [vmem:[#allocation5 + $0x1850] sm:$0xff]
    %v919 = vld [vmem:[#allocation5 + $0x1858] sm:$0xff]
    %v920 = vld [vmem:[#allocation5 + $0x1860] sm:$0xff]
    %v921 = vld [vmem:[#allocation5 + $0x1868] sm:$0xff]
    %v922 = vld [vmem:[#allocation5 + $0x1870] sm:$0xff]
    %v923 = vld [vmem:[#allocation5 + $0x1878] sm:$0xff]
    %v924 = vld [vmem:[#allocation5 + $0x1880] sm:$0xff]
    %v925 = vld [vmem:[#allocation5 + $0x1888] sm:$0xff]
    %v926 = vld [vmem:[#allocation5 + $0x1890] sm:$0xff]
    %v927 = vld [vmem:[#allocation5 + $0x1898] sm:$0xff]
    %v928 = vld [vmem:[#allocation5 + $0x18a0] sm:$0xff]
    %v929 = vld [vmem:[#allocation5 + $0x18a8] sm:$0xff]
    %v930 = vld [vmem:[#allocation5 + $0x18b0] sm:$0xff]
    %v931 = vld [vmem:[#allocation5 + $0x18b8] sm:$0xff]
    %v932 = vld [vmem:[#allocation5 + $0x18c0] sm:$0xff]
    %v933 = vld [vmem:[#allocation5 + $0x18c8] sm:$0xff]
    %v934 = vld [vmem:[#allocation5 + $0x18d0] sm:$0xff]
    %v935 = vld [vmem:[#allocation5 + $0x18d8] sm:$0xff]
    %v936 = vld [vmem:[#allocation5 + $0x18e0] sm:$0xff]
    %v937 = vld [vmem:[#allocation5 + $0x18e8] sm:$0xff]
    %v938 = vld [vmem:[#allocation5 + $0x18f0] sm:$0xff]
    %v939 = vld [vmem:[#allocation5 + $0x18f8] sm:$0xff]
    %v940 = vld [vmem:[#allocation5 + $0x1900] sm:$0xff]
    %v941 = vld [vmem:[#allocation5 + $0x1908] sm:$0xff]
    %v942 = vld [vmem:[#allocation5 + $0x1910] sm:$0xff]
    %v943 = vld [vmem:[#allocation5 + $0x1918] sm:$0xff]
    %v944 = vld [vmem:[#allocation5 + $0x1920] sm:$0xff]
    %v945 = vld [vmem:[#allocation5 + $0x1928] sm:$0xff]
    %v946 = vld [vmem:[#allocation5 + $0x1930] sm:$0xff]
    %v947 = vld [vmem:[#allocation5 + $0x1938] sm:$0xff]
    %v948 = vld [vmem:[#allocation5 + $0x1940] sm:$0xff]
    %v949 = vld [vmem:[#allocation5 + $0x1948] sm:$0xff]
    %v950 = vld [vmem:[#allocation5 + $0x1950] sm:$0xff]
    %v951 = vld [vmem:[#allocation5 + $0x1958] sm:$0xff]
    %v952 = vld [vmem:[#allocation5 + $0x1960] sm:$0xff]
    %v953 = vld [vmem:[#allocation5 + $0x1968] sm:$0xff]
    %v954 = vld [vmem:[#allocation5 + $0x1970] sm:$0xff]
    %v955 = vld [vmem:[#allocation5 + $0x1978] sm:$0xff]
    %v956 = vld [vmem:[#allocation5 + $0x1980] sm:$0xff]
    %v957 = vld [vmem:[#allocation5 + $0x1988] sm:$0xff]
    %v958 = vld [vmem:[#allocation5 + $0x1990] sm:$0xff]
    %v959 = vld [vmem:[#allocation5 + $0x1998] sm:$0xff]
    %v960 = vld [vmem:[#allocation5 + $0x19a0] sm:$0xff]
    %v961 = vld [vmem:[#allocation5 + $0x19a8] sm:$0xff]
    %v962 = vld [vmem:[#allocation5 + $0x19b0] sm:$0xff]
    %v963 = vld [vmem:[#allocation5 + $0x19b8] sm:$0xff]
    %v964 = vld [vmem:[#allocation5 + $0x19c0] sm:$0xff]
    %v965 = vld [vmem:[#allocation5 + $0x19c8] sm:$0xff]
    %v966 = vld [vmem:[#allocation5 + $0x19d0] sm:$0xff]
    %v967 = vld [vmem:[#allocation5 + $0x19d8] sm:$0xff]
    %v968 = vld [vmem:[#allocation5 + $0x19e0] sm:$0xff]
    %v969 = vld [vmem:[#allocation5 + $0x19e8] sm:$0xff]
    %v970 = vld [vmem:[#allocation5 + $0x19f0] sm:$0xff]
    %v971 = vld [vmem:[#allocation5 + $0x19f8] sm:$0xff]
    %v972 = vld [vmem:[#allocation5 + $0x1a00] sm:$0xff]
    %v973 = vld [vmem:[#allocation5 + $0x1a08] sm:$0xff]
    %v974 = vld [vmem:[#allocation5 + $0x1a10] sm:$0xff]
    %v975 = vld [vmem:[#allocation5 + $0x1a18] sm:$0xff]
    %v976 = vld [vmem:[#allocation5 + $0x1a20] sm:$0xff]
    %v977 = vld [vmem:[#allocation5 + $0x1a28] sm:$0xff]
    %v978 = vld [vmem:[#allocation5 + $0x1a30] sm:$0xff]
    %v979 = vld [vmem:[#allocation5 + $0x1a38] sm:$0xff]
    %v980 = vld [vmem:[#allocation5 + $0x1a40] sm:$0xff]
    %v981 = vld [vmem:[#allocation5 + $0x1a48] sm:$0xff]
    %v982 = vld [vmem:[#allocation5 + $0x1a50] sm:$0xff]
    %v983 = vld [vmem:[#allocation5 + $0x1a58] sm:$0xff]
    %v984 = vld [vmem:[#allocation5 + $0x1a60] sm:$0xff]
    %v985 = vld [vmem:[#allocation5 + $0x1a68] sm:$0xff]
    %v986 = vld [vmem:[#allocation5 + $0x1a70] sm:$0xff]
    %v987 = vld [vmem:[#allocation5 + $0x1a78] sm:$0xff]
    %v988 = vld [vmem:[#allocation5 + $0x1a80] sm:$0xff]
    %v989 = vld [vmem:[#allocation5 + $0x1a88] sm:$0xff]
    %v990 = vld [vmem:[#allocation5 + $0x1a90] sm:$0xff]
    %v991 = vld [vmem:[#allocation5 + $0x1a98] sm:$0xff]
    %v992 = vld [vmem:[#allocation5 + $0x1aa0] sm:$0xff]
    %v993 = vld [vmem:[#allocation5 + $0x1aa8] sm:$0xff]
    %v994 = vld [vmem:[#allocation5 + $0x1ab0] sm:$0xff]
    %v995 = vld [vmem:[#allocation5 + $0x1ab8] sm:$0xff]
    %v996 = vld [vmem:[#allocation5 + $0x1ac0] sm:$0xff]
    %v997 = vld [vmem:[#allocation5 + $0x1ac8] sm:$0xff]
    %v998 = vld [vmem:[#allocation5 + $0x1ad0] sm:$0xff]
    %v999 = vld [vmem:[#allocation5 + $0x1ad8] sm:$0xff]
    %v1000 = vld [vmem:[#allocation5 + $0x1ae0] sm:$0xff]
    %v1001 = vld [vmem:[#allocation5 + $0x1ae8] sm:$0xff]
    %v1002 = vld [vmem:[#allocation5 + $0x1af0] sm:$0xff]
    %v1003 = vld [vmem:[#allocation5 + $0x1af8] sm:$0xff]
    %v1004 = vld [vmem:[#allocation5 + $0x1b00] sm:$0xff]
    %v1005 = vld [vmem:[#allocation5 + $0x1b08] sm:$0xff]
    %v1006 = vld [vmem:[#allocation5 + $0x1b10] sm:$0xff]
    %v1007 = vld [vmem:[#allocation5 + $0x1b18] sm:$0xff]
    %v1008 = vld [vmem:[#allocation5 + $0x1b20] sm:$0xff]
    %v1009 = vld [vmem:[#allocation5 + $0x1b28] sm:$0xff]
    %v1010 = vld [vmem:[#allocation5 + $0x1b30] sm:$0xff]
    %v1011 = vld [vmem:[#allocation5 + $0x1b38] sm:$0xff]
    %v1012 = vld [vmem:[#allocation5 + $0x1b40] sm:$0xff]
    %v1013 = vld [vmem:[#allocation5 + $0x1b48] sm:$0xff]
    %v1014 = vld [vmem:[#allocation5 + $0x1b50] sm:$0xff]
    %v1015 = vld [vmem:[#allocation5 + $0x1b58] sm:$0xff]
    %v1016 = vld [vmem:[#allocation5 + $0x1b60] sm:$0xff]
    %v1017 = vld [vmem:[#allocation5 + $0x1b68] sm:$0xff]
    %v1018 = vld [vmem:[#allocation5 + $0x1b70] sm:$0xff]
    %v1019 = vld [vmem:[#allocation5 + $0x1b78] sm:$0xff]
    %v1020 = vld [vmem:[#allocation5 + $0x1b80] sm:$0xff]
    %v1021 = vld [vmem:[#allocation5 + $0x1b88] sm:$0xff]
    %v1022 = vld [vmem:[#allocation5 + $0x1b90] sm:$0xff]
    %v1023 = vld [vmem:[#allocation5 + $0x1b98] sm:$0xff]
    %v1024 = vld [vmem:[#allocation5 + $0x1ba0] sm:$0xff]
    %v1025 = vld [vmem:[#allocation5 + $0x1ba8] sm:$0xff]
    %v1026 = vld [vmem:[#allocation5 + $0x1bb0] sm:$0xff]
    %v1027 = vld [vmem:[#allocation5 + $0x1bb8] sm:$0xff]
    %v1028 = vld [vmem:[#allocation5 + $0x1bc0] sm:$0xff]
    %v1029 = vld [vmem:[#allocation5 + $0x1bc8] sm:$0xff]
    %v1030 = vld [vmem:[#allocation5 + $0x1bd0] sm:$0xff]
    %v1031 = vld [vmem:[#allocation5 + $0x1bd8] sm:$0xff]
    %v1032 = vld [vmem:[#allocation5 + $0x1be0] sm:$0xff]
    %v1033 = vld [vmem:[#allocation5 + $0x1be8] sm:$0xff]
    %v1034 = vld [vmem:[#allocation5 + $0x1bf0] sm:$0xff]
    %v1035 = vld [vmem:[#allocation5 + $0x1bf8] sm:$0xff]
    %v1036 = vld [vmem:[#allocation5 + $0x1c00] sm:$0xff]
    %v1037 = vld [vmem:[#allocation5 + $0x1c08] sm:$0xff]
    %v1038 = vld [vmem:[#allocation5 + $0x1c10] sm:$0xff]
    %v1039 = vld [vmem:[#allocation5 + $0x1c18] sm:$0xff]
    %v1040 = vld [vmem:[#allocation5 + $0x1c20] sm:$0xff]
    %v1041 = vld [vmem:[#allocation5 + $0x1c28] sm:$0xff]
    %v1042 = vld [vmem:[#allocation5 + $0x1c30] sm:$0xff]
    %v1043 = vld [vmem:[#allocation5 + $0x1c38] sm:$0xff]
    %v1044 = vld [vmem:[#allocation5 + $0x1c40] sm:$0xff]
    %v1045 = vld [vmem:[#allocation5 + $0x1c48] sm:$0xff]
    %v1046 = vld [vmem:[#allocation5 + $0x1c50] sm:$0xff]
    %v1047 = vld [vmem:[#allocation5 + $0x1c58] sm:$0xff]
    %v1048 = vld [vmem:[#allocation5 + $0x1c60] sm:$0xff]
    %v1049 = vld [vmem:[#allocation5 + $0x1c68] sm:$0xff]
    %v1050 = vld [vmem:[#allocation5 + $0x1c70] sm:$0xff]
    %v1051 = vld [vmem:[#allocation5 + $0x1c78] sm:$0xff]
    %v1052 = vld [vmem:[#allocation5 + $0x1c80] sm:$0xff]
    %v1053 = vld [vmem:[#allocation5 + $0x1c88] sm:$0xff]
    %v1054 = vld [vmem:[#allocation5 + $0x1c90] sm:$0xff]
    %v1055 = vld [vmem:[#allocation5 + $0x1c98] sm:$0xff]
    %v1056 = vld [vmem:[#allocation5 + $0x1ca0] sm:$0xff]
    %v1057 = vld [vmem:[#allocation5 + $0x1ca8] sm:$0xff]
    %v1058 = vld [vmem:[#allocation5 + $0x1cb0] sm:$0xff]
    %v1059 = vld [vmem:[#allocation5 + $0x1cb8] sm:$0xff]
    %v1060 = vld [vmem:[#allocation5 + $0x1cc0] sm:$0xff]
    %v1061 = vld [vmem:[#allocation5 + $0x1cc8] sm:$0xff]
    %v1062 = vld [vmem:[#allocation5 + $0x1cd0] sm:$0xff]
    %v1063 = vld [vmem:[#allocation5 + $0x1cd8] sm:$0xff]
    %v1064 = vld [vmem:[#allocation5 + $0x1ce0] sm:$0xff]
    %v1065 = vld [vmem:[#allocation5 + $0x1ce8] sm:$0xff]
    %v1066 = vld [vmem:[#allocation5 + $0x1cf0] sm:$0xff]
    %v1067 = vld [vmem:[#allocation5 + $0x1cf8] sm:$0xff]
    %v1068 = vld [vmem:[#allocation5 + $0x1d00] sm:$0xff]
    %v1069 = vld [vmem:[#allocation5 + $0x1d08] sm:$0xff]
    %v1070 = vld [vmem:[#allocation5 + $0x1d10] sm:$0xff]
    %v1071 = vld [vmem:[#allocation5 + $0x1d18] sm:$0xff]
    %v1072 = vld [vmem:[#allocation5 + $0x1d20] sm:$0xff]
    %v1073 = vld [vmem:[#allocation5 + $0x1d28] sm:$0xff]
    %v1074 = vld [vmem:[#allocation5 + $0x1d30] sm:$0xff]
    %v1075 = vld [vmem:[#allocation5 + $0x1d38] sm:$0xff]
    %v1076 = vld [vmem:[#allocation5 + $0x1d40] sm:$0xff]
    %v1077 = vld [vmem:[#allocation5 + $0x1d48] sm:$0xff]
    %v1078 = vld [vmem:[#allocation5 + $0x1d50] sm:$0xff]
    %v1079 = vld [vmem:[#allocation5 + $0x1d58] sm:$0xff]
    %v1080 = vld [vmem:[#allocation5 + $0x1d60] sm:$0xff]
    %v1081 = vld [vmem:[#allocation5 + $0x1d68] sm:$0xff]
    %v1082 = vld [vmem:[#allocation5 + $0x1d70] sm:$0xff]
    %v1083 = vld [vmem:[#allocation5 + $0x1d78] sm:$0xff]
    %v1084 = vld [vmem:[#allocation5 + $0x1d80] sm:$0xff]
    %v1085 = vld [vmem:[#allocation5 + $0x1d88] sm:$0xff]
    %v1086 = vld [vmem:[#allocation5 + $0x1d90] sm:$0xff]
    %v1087 = vld [vmem:[#allocation5 + $0x1d98] sm:$0xff]
    %v1088 = vld [vmem:[#allocation5 + $0x1da0] sm:$0xff]
    %v1089 = vld [vmem:[#allocation5 + $0x1da8] sm:$0xff]
    %v1090 = vld [vmem:[#allocation5 + $0x1db0] sm:$0xff]
    %v1091 = vld [vmem:[#allocation5 + $0x1db8] sm:$0xff]
    %v1092 = vld [vmem:[#allocation5 + $0x1dc0] sm:$0xff]
    %v1093 = vld [vmem:[#allocation5 + $0x1dc8] sm:$0xff]
    %v1094 = vld [vmem:[#allocation5 + $0x1dd0] sm:$0xff]
    %v1095 = vld [vmem:[#allocation5 + $0x1dd8] sm:$0xff]
    %v1096 = vld [vmem:[#allocation5 + $0x1de0] sm:$0xff]
    %v1097 = vld [vmem:[#allocation5 + $0x1de8] sm:$0xff]
    %v1098 = vld [vmem:[#allocation5 + $0x1df0] sm:$0xff]
    %v1099 = vld [vmem:[#allocation5 + $0x1df8] sm:$0xff]
    %v1100 = vld [vmem:[#allocation5 + $0x1e00] sm:$0xff]
    %v1101 = vld [vmem:[#allocation5 + $0x1e08] sm:$0xff]
    %v1102 = vld [vmem:[#allocation5 + $0x1e10] sm:$0xff]
    %v1103 = vld [vmem:[#allocation5 + $0x1e18] sm:$0xff]
    %v1104 = vld [vmem:[#allocation5 + $0x1e20] sm:$0xff]
    %v1105 = vld [vmem:[#allocation5 + $0x1e28] sm:$0xff]
    %v1106 = vld [vmem:[#allocation5 + $0x1e30] sm:$0xff]
    %v1107 = vld [vmem:[#allocation5 + $0x1e38] sm:$0xff]
    %v1108 = vld [vmem:[#allocation5 + $0x1e40] sm:$0xff]
    %v1109 = vld [vmem:[#allocation5 + $0x1e48] sm:$0xff]
    %v1110 = vld [vmem:[#allocation5 + $0x1e50] sm:$0xff]
    %v1111 = vld [vmem:[#allocation5 + $0x1e58] sm:$0xff]
    %v1112 = vld [vmem:[#allocation5 + $0x1e60] sm:$0xff]
    %v1113 = vld [vmem:[#allocation5 + $0x1e68] sm:$0xff]
    %v1114 = vld [vmem:[#allocation5 + $0x1e70] sm:$0xff]
    %v1115 = vld [vmem:[#allocation5 + $0x1e78] sm:$0xff]
    %v1116 = vld [vmem:[#allocation5 + $0x1e80] sm:$0xff]
    %v1117 = vld [vmem:[#allocation5 + $0x1e88] sm:$0xff]
    %v1118 = vld [vmem:[#allocation5 + $0x1e90] sm:$0xff]
    %v1119 = vld [vmem:[#allocation5 + $0x1e98] sm:$0xff]
    %v1120 = vld [vmem:[#allocation5 + $0x1ea0] sm:$0xff]
    %v1121 = vld [vmem:[#allocation5 + $0x1ea8] sm:$0xff]
    %v1122 = vld [vmem:[#allocation5 + $0x1eb0] sm:$0xff]
    %v1123 = vld [vmem:[#allocation5 + $0x1eb8] sm:$0xff]
    %v1124 = vld [vmem:[#allocation5 + $0x1ec0] sm:$0xff]
    %v1125 = vld [vmem:[#allocation5 + $0x1ec8] sm:$0xff]
    %v1126 = vld [vmem:[#allocation5 + $0x1ed0] sm:$0xff]
    %v1127 = vld [vmem:[#allocation5 + $0x1ed8] sm:$0xff]
    %v1128 = vld [vmem:[#allocation5 + $0x1ee0] sm:$0xff]
    %v1129 = vld [vmem:[#allocation5 + $0x1ee8] sm:$0xff]
    %v1130 = vld [vmem:[#allocation5 + $0x1ef0] sm:$0xff]
    %v1131 = vld [vmem:[#allocation5 + $0x1ef8] sm:$0xff]
    %v1132 = vld [vmem:[#allocation5 + $0x1f00] sm:$0xff]
    %v1133 = vld [vmem:[#allocation5 + $0x1f08] sm:$0xff]
    %v1134 = vld [vmem:[#allocation5 + $0x1f10] sm:$0xff]
    %v1135 = vld [vmem:[#allocation5 + $0x1f18] sm:$0xff]
    %v1136 = vld [vmem:[#allocation5 + $0x1f20] sm:$0xff]
    %v1137 = vld [vmem:[#allocation5 + $0x1f28] sm:$0xff]
    %v1138 = vld [vmem:[#allocation5 + $0x1f30] sm:$0xff]
    %v1139 = vld [vmem:[#allocation5 + $0x1f38] sm:$0xff]
    %v1140 = vld [vmem:[#allocation5 + $0x1f40] sm:$0xff]
    %v1141 = vld [vmem:[#allocation5 + $0x1f48] sm:$0xff]
    %v1142 = vld [vmem:[#allocation5 + $0x1f50] sm:$0xff]
    %v1143 = vld [vmem:[#allocation5 + $0x1f58] sm:$0xff]
    %v1144 = vld [vmem:[#allocation5 + $0x1f60] sm:$0xff]
    %v1145 = vld [vmem:[#allocation5 + $0x1f68] sm:$0xff]
    %v1146 = vld [vmem:[#allocation5 + $0x1f70] sm:$0xff]
    %v1147 = vld [vmem:[#allocation5 + $0x1f78] sm:$0xff]
    %v1148 = vld [vmem:[#allocation5 + $0x1f80] sm:$0xff]
    %v1149 = vld [vmem:[#allocation5 + $0x1f88] sm:$0xff]
    %v1150 = vld [vmem:[#allocation5 + $0x1f90] sm:$0xff]
    %v1151 = vld [vmem:[#allocation5 + $0x1f98] sm:$0xff]
    %v1152 = vld [vmem:[#allocation5 + $0x1fa0] sm:$0xff]
    %v1153 = vld [vmem:[#allocation5 + $0x1fa8] sm:$0xff]
    %v1154 = vld [vmem:[#allocation5 + $0x1fb0] sm:$0xff]
    %v1155 = vld [vmem:[#allocation5 + $0x1fb8] sm:$0xff]
    %v1156 = vld [vmem:[#allocation5 + $0x1fc0] sm:$0xff]
    %v1157 = vld [vmem:[#allocation5 + $0x1fc8] sm:$0xff]
    %v1158 = vld [vmem:[#allocation5 + $0x1fd0] sm:$0xff]
    %v1159 = vld [vmem:[#allocation5 + $0x1fd8] sm:$0xff]
    %v1160 = vld [vmem:[#allocation5 + $0x1fe0] sm:$0xff]
    %v1161 = vld [vmem:[#allocation5 + $0x1fe8] sm:$0xff]
    %v1162 = vld [vmem:[#allocation5 + $0x1ff0] sm:$0xff]
    %v1163 = vld [vmem:[#allocation5 + $0x1ff8] sm:$0xff]
    %v1164 = vld [vmem:[#allocation5 + $0x2000] sm:$0xff]
    %v1165 = vld [vmem:[#allocation5 + $0x2008] sm:$0xff]
    %v1166 = vld [vmem:[#allocation5 + $0x2010] sm:$0xff]
    %v1167 = vld [vmem:[#allocation5 + $0x2018] sm:$0xff]
    %v1168 = vld [vmem:[#allocation5 + $0x2020] sm:$0xff]
    %v1169 = vld [vmem:[#allocation5 + $0x2028] sm:$0xff]
    %v1170 = vld [vmem:[#allocation5 + $0x2030] sm:$0xff]
    %v1171 = vld [vmem:[#allocation5 + $0x2038] sm:$0xff]
    %v1172 = vld [vmem:[#allocation5 + $0x2040] sm:$0xff]
    %v1173 = vld [vmem:[#allocation5 + $0x2048] sm:$0xff]
    %v1174 = vld [vmem:[#allocation5 + $0x2050] sm:$0xff]
    %v1175 = vld [vmem:[#allocation5 + $0x2058] sm:$0xff]
    %v1176 = vld [vmem:[#allocation5 + $0x2060] sm:$0xff]
    %v1177 = vld [vmem:[#allocation5 + $0x2068] sm:$0xff]
    %v1178 = vld [vmem:[#allocation5 + $0x2070] sm:$0xff]
    %v1179 = vld [vmem:[#allocation5 + $0x2078] sm:$0xff]
    %v1180 = vld [vmem:[#allocation5 + $0x2080] sm:$0xff]
    %v1181 = vld [vmem:[#allocation5 + $0x2088] sm:$0xff]
    %v1182 = vld [vmem:[#allocation5 + $0x2090] sm:$0xff]
    %v1183 = vld [vmem:[#allocation5 + $0x2098] sm:$0xff]
    %v1184 = vld [vmem:[#allocation5 + $0x20a0] sm:$0xff]
    %v1185 = vld [vmem:[#allocation5 + $0x20a8] sm:$0xff]
    %v1186 = vld [vmem:[#allocation5 + $0x20b0] sm:$0xff]
    %v1187 = vld [vmem:[#allocation5 + $0x20b8] sm:$0xff]
    %v1188 = vld [vmem:[#allocation5 + $0x20c0] sm:$0xff]
    %v1189 = vld [vmem:[#allocation5 + $0x20c8] sm:$0xff]
    %v1190 = vld [vmem:[#allocation5 + $0x20d0] sm:$0xff]
    %v1191 = vld [vmem:[#allocation5 + $0x20d8] sm:$0xff]
    %v1192 = vld [vmem:[#allocation5 + $0x20e0] sm:$0xff]
    %v1193 = vld [vmem:[#allocation5 + $0x20e8] sm:$0xff]
    %v1194 = vld [vmem:[#allocation5 + $0x20f0] sm:$0xff]
    %v1195 = vld [vmem:[#allocation5 + $0x20f8] sm:$0xff]
    %v1196 = vld [vmem:[#allocation5 + $0x2100] sm:$0xff]
    %v1197 = vld [vmem:[#allocation5 + $0x2108] sm:$0xff]
    %v1198 = vld [vmem:[#allocation5 + $0x2110] sm:$0xff]
    %v1199 = vld [vmem:[#allocation5 + $0x2118] sm:$0xff]
    %v1200 = vld [vmem:[#allocation5 + $0x2120] sm:$0xff]
    %v1201 = vld [vmem:[#allocation5 + $0x2128] sm:$0xff]
    %v1202 = vld [vmem:[#allocation5 + $0x2130] sm:$0xff]
    %v1203 = vld [vmem:[#allocation5 + $0x2138] sm:$0xff]
    %v1204 = vld [vmem:[#allocation5 + $0x2140] sm:$0xff]
    %v1205 = vld [vmem:[#allocation5 + $0x2148] sm:$0xff]
    %v1206 = vld [vmem:[#allocation5 + $0x2150] sm:$0xff]
    %v1207 = vld [vmem:[#allocation5 + $0x2158] sm:$0xff]
    %v1208 = vld [vmem:[#allocation5 + $0x2160] sm:$0xff]
    %v1209 = vld [vmem:[#allocation5 + $0x2168] sm:$0xff]
    %v1210 = vld [vmem:[#allocation5 + $0x2170] sm:$0xff]
    %v1211 = vld [vmem:[#allocation5 + $0x2178] sm:$0xff]
    %v1212 = vld [vmem:[#allocation5 + $0x2180] sm:$0xff]
    %v1213 = vld [vmem:[#allocation5 + $0x2188] sm:$0xff]
    %v1214 = vld [vmem:[#allocation5 + $0x2190] sm:$0xff]
    %v1215 = vld [vmem:[#allocation5 + $0x2198] sm:$0xff]
    %v1216 = vld [vmem:[#allocation5 + $0x21a0] sm:$0xff]
    %v1217 = vld [vmem:[#allocation5 + $0x21a8] sm:$0xff]
    %v1218 = vld [vmem:[#allocation5 + $0x21b0] sm:$0xff]
    %v1219 = vld [vmem:[#allocation5 + $0x21b8] sm:$0xff]
    %v1220 = vld [vmem:[#allocation5 + $0x21c0] sm:$0xff]
    %v1221 = vld [vmem:[#allocation5 + $0x21c8] sm:$0xff]
    %v1222 = vld [vmem:[#allocation5 + $0x21d0] sm:$0xff]
    %v1223 = vld [vmem:[#allocation5 + $0x21d8] sm:$0xff]
    %v1224 = vld [vmem:[#allocation5 + $0x21e0] sm:$0xff]
    %v1225 = vld [vmem:[#allocation5 + $0x21e8] sm:$0xff]
    %v1226 = vld [vmem:[#allocation5 + $0x21f0] sm:$0xff]
    %v1227 = vld [vmem:[#allocation5 + $0x21f8] sm:$0xff]
    %v1228 = vld [vmem:[#allocation5 + $0x2200] sm:$0xff]
    %v1229 = vld [vmem:[#allocation5 + $0x2208] sm:$0xff]
    %v1230 = vld [vmem:[#allocation5 + $0x2210] sm:$0xff]
    %v1231 = vld [vmem:[#allocation5 + $0x2218] sm:$0xff]
    %v1232 = vld [vmem:[#allocation5 + $0x2220] sm:$0xff]
    %v1233 = vld [vmem:[#allocation5 + $0x2228] sm:$0xff]
    %v1234 = vld [vmem:[#allocation5 + $0x2230] sm:$0xff]
    %v1235 = vld [vmem:[#allocation5 + $0x2238] sm:$0xff]
    %v1236 = vld [vmem:[#allocation5 + $0x2240] sm:$0xff]
    %v1237 = vld [vmem:[#allocation5 + $0x2248] sm:$0xff]
    %v1238 = vld [vmem:[#allocation5 + $0x2250] sm:$0xff]
    %v1239 = vld [vmem:[#allocation5 + $0x2258] sm:$0xff]
    %v1240 = vld [vmem:[#allocation5 + $0x2260] sm:$0xff]
    %v1241 = vld [vmem:[#allocation5 + $0x2268] sm:$0xff]
    %v1242 = vld [vmem:[#allocation5 + $0x2270] sm:$0xff]
    %v1243 = vld [vmem:[#allocation5 + $0x2278] sm:$0xff]
    %v1244 = vld [vmem:[#allocation5 + $0x2280] sm:$0xff]
    %v1245 = vld [vmem:[#allocation5 + $0x2288] sm:$0xff]
    %v1246 = vld [vmem:[#allocation5 + $0x2290] sm:$0xff]
    %v1247 = vld [vmem:[#allocation5 + $0x2298] sm:$0xff]
    %v1248 = vld [vmem:[#allocation5 + $0x22a0] sm:$0xff]
    %v1249 = vld [vmem:[#allocation5 + $0x22a8] sm:$0xff]
    %v1250 = vld [vmem:[#allocation5 + $0x22b0] sm:$0xff]
    %v1251 = vld [vmem:[#allocation5 + $0x22b8] sm:$0xff]
    %v1252 = vld [vmem:[#allocation5 + $0x22c0] sm:$0xff]
    %v1253 = vld [vmem:[#allocation5 + $0x22c8] sm:$0xff]
    %v1254 = vld [vmem:[#allocation5 + $0x22d0] sm:$0xff]
    %v1255 = vld [vmem:[#allocation5 + $0x22d8] sm:$0xff]
    %v1256 = vld [vmem:[#allocation5 + $0x22e0] sm:$0xff]
    %v1257 = vld [vmem:[#allocation5 + $0x22e8] sm:$0xff]
    %v1258 = vld [vmem:[#allocation5 + $0x22f0] sm:$0xff]
    %v1259 = vld [vmem:[#allocation5 + $0x22f8] sm:$0xff]
    %v1260 = vld [vmem:[#allocation5 + $0x2300] sm:$0xff]
    %v1261 = vld [vmem:[#allocation5 + $0x2308] sm:$0xff]
    %v1262 = vld [vmem:[#allocation5 + $0x2310] sm:$0xff]
    %v1263 = vld [vmem:[#allocation5 + $0x2318] sm:$0xff]
    %v1264 = vld [vmem:[#allocation5 + $0x2320] sm:$0xff]
    %v1265 = vld [vmem:[#allocation5 + $0x2328] sm:$0xff]
    %v1266 = vld [vmem:[#allocation5 + $0x2330] sm:$0xff]
    %v1267 = vld [vmem:[#allocation5 + $0x2338] sm:$0xff]
    %v1268 = vld [vmem:[#allocation5 + $0x2340] sm:$0xff]
    %v1269 = vld [vmem:[#allocation5 + $0x2348] sm:$0xff]
    %v1270 = vld [vmem:[#allocation5 + $0x2350] sm:$0xff]
    %v1271 = vld [vmem:[#allocation5 + $0x2358] sm:$0xff]
    %v1272 = vld [vmem:[#allocation5 + $0x2360] sm:$0xff]
    %v1273 = vld [vmem:[#allocation5 + $0x2368] sm:$0xff]
    %v1274 = vld [vmem:[#allocation5 + $0x2370] sm:$0xff]
    %v1275 = vld [vmem:[#allocation5 + $0x2378] sm:$0xff]
    %v1276 = vld [vmem:[#allocation5 + $0x2380] sm:$0xff]
    %v1277 = vld [vmem:[#allocation5 + $0x2388] sm:$0xff]
    %v1278 = vld [vmem:[#allocation5 + $0x2390] sm:$0xff]
    %v1279 = vld [vmem:[#allocation5 + $0x2398] sm:$0xff]
    %v1280 = vld [vmem:[#allocation5 + $0x23a0] sm:$0xff]
    %v1281 = vld [vmem:[#allocation5 + $0x23a8] sm:$0xff]
    %v1282 = vld [vmem:[#allocation5 + $0x23b0] sm:$0xff]
    %v1283 = vld [vmem:[#allocation5 + $0x23b8] sm:$0xff]
    %v1284 = vld [vmem:[#allocation5 + $0x23c0] sm:$0xff]
    %v1285 = vld [vmem:[#allocation5 + $0x23c8] sm:$0xff]
    %v1286 = vld [vmem:[#allocation5 + $0x23d0] sm:$0xff]
    %v1287 = vld [vmem:[#allocation5 + $0x23d8] sm:$0xff]
    %v1288 = vld [vmem:[#allocation5 + $0x23e0] sm:$0xff]
    %v1289 = vld [vmem:[#allocation5 + $0x23e8] sm:$0xff]
    %v1290 = vld [vmem:[#allocation5 + $0x23f0] sm:$0xff]
    %v1291 = vld [vmem:[#allocation5 + $0x23f8] sm:$0xff]
    %v1292 = vld [vmem:[#allocation5 + $0x2400] sm:$0xff]
    %v1293 = vld [vmem:[#allocation5 + $0x2408] sm:$0xff]
    %v1294 = vld [vmem:[#allocation5 + $0x2410] sm:$0xff]
    %v1295 = vld [vmem:[#allocation5 + $0x2418] sm:$0xff]
    %v1296 = vld [vmem:[#allocation5 + $0x2420] sm:$0xff]
    %v1297 = vld [vmem:[#allocation5 + $0x2428] sm:$0xff]
    %v1298 = vld [vmem:[#allocation5 + $0x2430] sm:$0xff]
    %v1299 = vld [vmem:[#allocation5 + $0x2438] sm:$0xff]
    %v1300 = vld [vmem:[#allocation5 + $0x2440] sm:$0xff]
    %v1301 = vld [vmem:[#allocation5 + $0x2448] sm:$0xff]
    %v1302 = vld [vmem:[#allocation5 + $0x2450] sm:$0xff]
    %v1303 = vld [vmem:[#allocation5 + $0x2458] sm:$0xff]
    %v1304 = vld [vmem:[#allocation5 + $0x2460] sm:$0xff]
    %v1305 = vld [vmem:[#allocation5 + $0x2468] sm:$0xff]
    %v1306 = vld [vmem:[#allocation5 + $0x2470] sm:$0xff]
    %v1307 = vld [vmem:[#allocation5 + $0x2478] sm:$0xff]
    %v1308 = vld [vmem:[#allocation5 + $0x2480] sm:$0xff]
    %v1309 = vld [vmem:[#allocation5 + $0x2488] sm:$0xff]
    %v1310 = vld [vmem:[#allocation5 + $0x2490] sm:$0xff]
    %v1311 = vld [vmem:[#allocation5 + $0x2498] sm:$0xff]
    %v1312 = vld [vmem:[#allocation5 + $0x24a0] sm:$0xff]
    %v1313 = vld [vmem:[#allocation5 + $0x24a8] sm:$0xff]
    %v1314 = vld [vmem:[#allocation5 + $0x24b0] sm:$0xff]
    %v1315 = vld [vmem:[#allocation5 + $0x24b8] sm:$0xff]
    %v1316 = vld [vmem:[#allocation5 + $0x24c0] sm:$0xff]
    %v1317 = vld [vmem:[#allocation5 + $0x24c8] sm:$0xff]
    %v1318 = vld [vmem:[#allocation5 + $0x24d0] sm:$0xff]
    %v1319 = vld [vmem:[#allocation5 + $0x24d8] sm:$0xff]
    %v1320 = vld [vmem:[#allocation5 + $0x24e0] sm:$0xff]
    %v1321 = vld [vmem:[#allocation5 + $0x24e8] sm:$0xff]
    %v1322 = vld [vmem:[#allocation5 + $0x24f0] sm:$0xff]
    %v1323 = vld [vmem:[#allocation5 + $0x24f8] sm:$0xff]
    %v1324 = vld [vmem:[#allocation5 + $0x2500] sm:$0xff]
    %v1325 = vld [vmem:[#allocation5 + $0x2508] sm:$0xff]
    %v1326 = vld [vmem:[#allocation5 + $0x2510] sm:$0xff]
    %v1327 = vld [vmem:[#allocation5 + $0x2518] sm:$0xff]
    %v1328 = vld [vmem:[#allocation5 + $0x2520] sm:$0xff]
    %v1329 = vld [vmem:[#allocation5 + $0x2528] sm:$0xff]
    %v1330 = vld [vmem:[#allocation5 + $0x2530] sm:$0xff]
    %v1331 = vld [vmem:[#allocation5 + $0x2538] sm:$0xff]
    %v1332 = vld [vmem:[#allocation5 + $0x2540] sm:$0xff]
    %v1333 = vld [vmem:[#allocation5 + $0x2548] sm:$0xff]
    %v1334 = vld [vmem:[#allocation5 + $0x2550] sm:$0xff]
    %v1335 = vld [vmem:[#allocation5 + $0x2558] sm:$0xff]
    %v1336 = vld [vmem:[#allocation5 + $0x2560] sm:$0xff]
    %v1337 = vld [vmem:[#allocation5 + $0x2568] sm:$0xff]
    %v1338 = vld [vmem:[#allocation5 + $0x2570] sm:$0xff]
    %v1339 = vld [vmem:[#allocation5 + $0x2578] sm:$0xff]
    %v1340 = vld [vmem:[#allocation5 + $0x2580] sm:$0xff]
    %v1341 = vld [vmem:[#allocation5 + $0x2588] sm:$0xff]
    %v1342 = vld [vmem:[#allocation5 + $0x2590] sm:$0xff]
    %v1343 = vld [vmem:[#allocation5 + $0x2598] sm:$0xff]
    %v1344 = vld [vmem:[#allocation5 + $0x25a0] sm:$0xff]
    %v1345 = vld [vmem:[#allocation5 + $0x25a8] sm:$0xff]
    %v1346 = vld [vmem:[#allocation5 + $0x25b0] sm:$0xff]
    %v1347 = vld [vmem:[#allocation5 + $0x25b8] sm:$0xff]
    %v1348 = vld [vmem:[#allocation5 + $0x25c0] sm:$0xff]
    %v1349 = vld [vmem:[#allocation5 + $0x25c8] sm:$0xff]
    %v1350 = vld [vmem:[#allocation5 + $0x25d0] sm:$0xff]
    %v1351 = vld [vmem:[#allocation5 + $0x25d8] sm:$0xff]
    %v1352 = vld [vmem:[#allocation5 + $0x25e0] sm:$0xff]
    %v1353 = vld [vmem:[#allocation5 + $0x25e8] sm:$0xff]
    %v1354 = vld [vmem:[#allocation5 + $0x25f0] sm:$0xff]
    %v1355 = vld [vmem:[#allocation5 + $0x25f8] sm:$0xff]
    %v1356 = vld [vmem:[#allocation5 + $0x2600] sm:$0xff]
    %v1357 = vld [vmem:[#allocation5 + $0x2608] sm:$0xff]
    %v1358 = vld [vmem:[#allocation5 + $0x2610] sm:$0xff]
    %v1359 = vld [vmem:[#allocation5 + $0x2618] sm:$0xff]
    %v1360 = vld [vmem:[#allocation5 + $0x2620] sm:$0xff]
    %v1361 = vld [vmem:[#allocation5 + $0x2628] sm:$0xff]
    %v1362 = vld [vmem:[#allocation5 + $0x2630] sm:$0xff]
    %v1363 = vld [vmem:[#allocation5 + $0x2638] sm:$0xff]
    %v1364 = vld [vmem:[#allocation5 + $0x2640] sm:$0xff]
    %v1365 = vld [vmem:[#allocation5 + $0x2648] sm:$0xff]
    %v1366 = vld [vmem:[#allocation5 + $0x2650] sm:$0xff]
    %v1367 = vld [vmem:[#allocation5 + $0x2658] sm:$0xff]
    %v1368 = vld [vmem:[#allocation5 + $0x2660] sm:$0xff]
    %v1369 = vld [vmem:[#allocation5 + $0x2668] sm:$0xff]
    %v1370 = vld [vmem:[#allocation5 + $0x2670] sm:$0xff]
    %v1371 = vld [vmem:[#allocation5 + $0x2678] sm:$0xff]
    %v1372 = vld [vmem:[#allocation5 + $0x2680] sm:$0xff]
    %v1373 = vld [vmem:[#allocation5 + $0x2688] sm:$0xff]
    %v1374 = vld [vmem:[#allocation5 + $0x2690] sm:$0xff]
    %v1375 = vld [vmem:[#allocation5 + $0x2698] sm:$0xff]
    %v1376 = vld [vmem:[#allocation5 + $0x26a0] sm:$0xff]
    %v1377 = vld [vmem:[#allocation5 + $0x26a8] sm:$0xff]
    %v1378 = vld [vmem:[#allocation5 + $0x26b0] sm:$0xff]
    %v1379 = vld [vmem:[#allocation5 + $0x26b8] sm:$0xff]
    %v1380 = vld [vmem:[#allocation5 + $0x26c0] sm:$0xff]
    %v1381 = vld [vmem:[#allocation5 + $0x26c8] sm:$0xff]
    %v1382 = vld [vmem:[#allocation5 + $0x26d0] sm:$0xff]
    %v1383 = vld [vmem:[#allocation5 + $0x26d8] sm:$0xff]
    %v1384 = vld [vmem:[#allocation5 + $0x26e0] sm:$0xff]
    %v1385 = vld [vmem:[#allocation5 + $0x26e8] sm:$0xff]
    %v1386 = vld [vmem:[#allocation5 + $0x26f0] sm:$0xff]
    %v1387 = vld [vmem:[#allocation5 + $0x26f8] sm:$0xff]
    %v1388 = vld [vmem:[#allocation5 + $0x2700] sm:$0xff]
    %v1389 = vld [vmem:[#allocation5 + $0x2708] sm:$0xff]
    %v1390 = vld [vmem:[#allocation5 + $0x2710] sm:$0xff]
    %v1391 = vld [vmem:[#allocation5 + $0x2718] sm:$0xff]
    %v1392 = vld [vmem:[#allocation5 + $0x2720] sm:$0xff]
    %v1393 = vld [vmem:[#allocation5 + $0x2728] sm:$0xff]
    %v1394 = vld [vmem:[#allocation5 + $0x2730] sm:$0xff]
    %v1395 = vld [vmem:[#allocation5 + $0x2738] sm:$0xff]
    %v1396 = vld [vmem:[#allocation5 + $0x2740] sm:$0xff]
    %v1397 = vld [vmem:[#allocation5 + $0x2748] sm:$0xff]
    %v1398 = vld [vmem:[#allocation5 + $0x2750] sm:$0xff]
    %v1399 = vld [vmem:[#allocation5 + $0x2758] sm:$0xff]
    %v1400 = vld [vmem:[#allocation5 + $0x2760] sm:$0xff]
    %v1401 = vld [vmem:[#allocation5 + $0x2768] sm:$0xff]
    %v1402 = vld [vmem:[#allocation5 + $0x2770] sm:$0xff]
    %v1403 = vld [vmem:[#allocation5 + $0x2778] sm:$0xff]
    %v1404 = vld [vmem:[#allocation5 + $0x2780] sm:$0xff]
    %v1405 = vld [vmem:[#allocation5 + $0x2788] sm:$0xff]
    %v1406 = vld [vmem:[#allocation5 + $0x2790] sm:$0xff]
    %v1407 = vld [vmem:[#allocation5 + $0x2798] sm:$0xff]
    %v1408 = vld [vmem:[#allocation5 + $0x27a0] sm:$0xff]
    %v1409 = vld [vmem:[#allocation5 + $0x27a8] sm:$0xff]
    %v1410 = vld [vmem:[#allocation5 + $0x27b0] sm:$0xff]
    %v1411 = vld [vmem:[#allocation5 + $0x27b8] sm:$0xff]
    %v1412 = vld [vmem:[#allocation5 + $0x27c0] sm:$0xff]
    %v1413 = vld [vmem:[#allocation5 + $0x27c8] sm:$0xff]
    %v1414 = vld [vmem:[#allocation5 + $0x27d0] sm:$0xff]
    %v1415 = vld [vmem:[#allocation5 + $0x27d8] sm:$0xff]
    %v1416 = vld [vmem:[#allocation5 + $0x27e0] sm:$0xff]
    %v1417 = vld [vmem:[#allocation5 + $0x27e8] sm:$0xff]
    %v1418 = vld [vmem:[#allocation5 + $0x27f0] sm:$0xff]
    %v1419 = vld [vmem:[#allocation5 + $0x27f8] sm:$0xff]
    %v1420 = vld [vmem:[#allocation5 + $0x2800] sm:$0xff]
    %v1421 = vld [vmem:[#allocation5 + $0x2808] sm:$0xff]
    %v1422 = vld [vmem:[#allocation5 + $0x2810] sm:$0xff]
    %v1423 = vld [vmem:[#allocation5 + $0x2818] sm:$0xff]
    %v1424 = vld [vmem:[#allocation5 + $0x2820] sm:$0xff]
    %v1425 = vld [vmem:[#allocation5 + $0x2828] sm:$0xff]
    %v1426 = vld [vmem:[#allocation5 + $0x2830] sm:$0xff]
    %v1427 = vld [vmem:[#allocation5 + $0x2838] sm:$0xff]
    %v1428 = vld [vmem:[#allocation5 + $0x2840] sm:$0xff]
    %v1429 = vld [vmem:[#allocation5 + $0x2848] sm:$0xff]
    %v1430 = vld [vmem:[#allocation5 + $0x2850] sm:$0xff]
    %v1431 = vld [vmem:[#allocation5 + $0x2858] sm:$0xff]
    %v1432 = vld [vmem:[#allocation5 + $0x2860] sm:$0xff]
    %v1433 = vld [vmem:[#allocation5 + $0x2868] sm:$0xff]
    %v1434 = vld [vmem:[#allocation5 + $0x2870] sm:$0xff]
    %v1435 = vld [vmem:[#allocation5 + $0x2878] sm:$0xff]
    %v1436 = vld [vmem:[#allocation5 + $0x2880] sm:$0xff]
    %v1437 = vld [vmem:[#allocation5 + $0x2888] sm:$0xff]
    %v1438 = vld [vmem:[#allocation5 + $0x2890] sm:$0xff]
    %v1439 = vld [vmem:[#allocation5 + $0x2898] sm:$0xff]
    %v1440 = vld [vmem:[#allocation5 + $0x28a0] sm:$0xff]
    %v1441 = vld [vmem:[#allocation5 + $0x28a8] sm:$0xff]
    %v1442 = vld [vmem:[#allocation5 + $0x28b0] sm:$0xff]
    %v1443 = vld [vmem:[#allocation5 + $0x28b8] sm:$0xff]
    %v1444 = vld [vmem:[#allocation5 + $0x28c0] sm:$0xff]
    %v1445 = vld [vmem:[#allocation5 + $0x28c8] sm:$0xff]
    %v1446 = vld [vmem:[#allocation5 + $0x28d0] sm:$0xff]
    %v1447 = vld [vmem:[#allocation5 + $0x28d8] sm:$0xff]
    %v1448 = vld [vmem:[#allocation5 + $0x28e0] sm:$0xff]
    %v1449 = vld [vmem:[#allocation5 + $0x28e8] sm:$0xff]
    %v1450 = vld [vmem:[#allocation5 + $0x28f0] sm:$0xff]
    %v1451 = vld [vmem:[#allocation5 + $0x28f8] sm:$0xff]
    %v1452 = vld [vmem:[#allocation5 + $0x2900] sm:$0xff]
    %v1453 = vld [vmem:[#allocation5 + $0x2908] sm:$0xff]
    %v1454 = vld [vmem:[#allocation5 + $0x2910] sm:$0xff]
    %v1455 = vld [vmem:[#allocation5 + $0x2918] sm:$0xff]
    %v1456 = vld [vmem:[#allocation5 + $0x2920] sm:$0xff]
    %v1457 = vld [vmem:[#allocation5 + $0x2928] sm:$0xff]
    %v1458 = vld [vmem:[#allocation5 + $0x2930] sm:$0xff]
    %v1459 = vld [vmem:[#allocation5 + $0x2938] sm:$0xff]
    %v1460 = vld [vmem:[#allocation5 + $0x2940] sm:$0xff]
    %v1461 = vld [vmem:[#allocation5 + $0x2948] sm:$0xff]
    %v1462 = vld [vmem:[#allocation5 + $0x2950] sm:$0xff]
    %v1463 = vld [vmem:[#allocation5 + $0x2958] sm:$0xff]
    %v1464 = vld [vmem:[#allocation5 + $0x2960] sm:$0xff]
    %v1465 = vld [vmem:[#allocation5 + $0x2968] sm:$0xff]
    %v1466 = vld [vmem:[#allocation5 + $0x2970] sm:$0xff]
    %v1467 = vld [vmem:[#allocation5 + $0x2978] sm:$0xff]
    %v1468 = vld [vmem:[#allocation5 + $0x2980] sm:$0xff]
    %v1469 = vld [vmem:[#allocation5 + $0x2988] sm:$0xff]
    %v1470 = vld [vmem:[#allocation5 + $0x2990] sm:$0xff]
    %v1471 = vld [vmem:[#allocation5 + $0x2998] sm:$0xff]
    %v1472 = vld [vmem:[#allocation5 + $0x29a0] sm:$0xff]
    %v1473 = vld [vmem:[#allocation5 + $0x29a8] sm:$0xff]
    %v1474 = vld [vmem:[#allocation5 + $0x29b0] sm:$0xff]
    %v1475 = vld [vmem:[#allocation5 + $0x29b8] sm:$0xff]
    %v1476 = vld [vmem:[#allocation5 + $0x29c0] sm:$0xff]
    %v1477 = vld [vmem:[#allocation5 + $0x29c8] sm:$0xff]
    %v1478 = vld [vmem:[#allocation5 + $0x29d0] sm:$0xff]
    %v1479 = vld [vmem:[#allocation5 + $0x29d8] sm:$0xff]
    %v1480 = vld [vmem:[#allocation5 + $0x29e0] sm:$0xff]
    %v1481 = vld [vmem:[#allocation5 + $0x29e8] sm:$0xff]
    %v1482 = vld [vmem:[#allocation5 + $0x29f0] sm:$0xff]
    %v1483 = vld [vmem:[#allocation5 + $0x29f8] sm:$0xff]
    %v1484 = vld [vmem:[#allocation5 + $0x2a00] sm:$0xff]
    %v1485 = vld [vmem:[#allocation5 + $0x2a08] sm:$0xff]
    %v1486 = vld [vmem:[#allocation5 + $0x2a10] sm:$0xff]
    %v1487 = vld [vmem:[#allocation5 + $0x2a18] sm:$0xff]
    %v1488 = vld [vmem:[#allocation5 + $0x2a20] sm:$0xff]
    %v1489 = vld [vmem:[#allocation5 + $0x2a28] sm:$0xff]
    %v1490 = vld [vmem:[#allocation5 + $0x2a30] sm:$0xff]
    %v1491 = vld [vmem:[#allocation5 + $0x2a38] sm:$0xff]
    %v1492 = vld [vmem:[#allocation5 + $0x2a40] sm:$0xff]
    %v1493 = vld [vmem:[#allocation5 + $0x2a48] sm:$0xff]
    %v1494 = vld [vmem:[#allocation5 + $0x2a50] sm:$0xff]
    %v1495 = vld [vmem:[#allocation5 + $0x2a58] sm:$0xff]
    %v1496 = vld [vmem:[#allocation5 + $0x2a60] sm:$0xff]
    %v1497 = vld [vmem:[#allocation5 + $0x2a68] sm:$0xff]
    %v1498 = vld [vmem:[#allocation5 + $0x2a70] sm:$0xff]
    %v1499 = vld [vmem:[#allocation5 + $0x2a78] sm:$0xff]
    %v1500 = vld [vmem:[#allocation5 + $0x2a80] sm:$0xff]
    %v1501 = vld [vmem:[#allocation5 + $0x2a88] sm:$0xff]
    %v1502 = vld [vmem:[#allocation5 + $0x2a90] sm:$0xff]
    %v1503 = vld [vmem:[#allocation5 + $0x2a98] sm:$0xff]
    %v1504 = vld [vmem:[#allocation5 + $0x2aa0] sm:$0xff]
    %v1505 = vld [vmem:[#allocation5 + $0x2aa8] sm:$0xff]
    %v1506 = vld [vmem:[#allocation5 + $0x2ab0] sm:$0xff]
    %v1507 = vld [vmem:[#allocation5 + $0x2ab8] sm:$0xff]
    %v1508 = vld [vmem:[#allocation5 + $0x2ac0] sm:$0xff]
    %v1509 = vld [vmem:[#allocation5 + $0x2ac8] sm:$0xff]
    %v1510 = vld [vmem:[#allocation5 + $0x2ad0] sm:$0xff]
    %v1511 = vld [vmem:[#allocation5 + $0x2ad8] sm:$0xff]
    %v1512 = vld [vmem:[#allocation5 + $0x2ae0] sm:$0xff]
    %v1513 = vld [vmem:[#allocation5 + $0x2ae8] sm:$0xff]
    %v1514 = vld [vmem:[#allocation5 + $0x2af0] sm:$0xff]
    %v1515 = vld [vmem:[#allocation5 + $0x2af8] sm:$0xff]
    %v1516 = vld [vmem:[#allocation5 + $0x2b00] sm:$0xff]
    %v1517 = vld [vmem:[#allocation5 + $0x2b08] sm:$0xff]
    %v1518 = vld [vmem:[#allocation5 + $0x2b10] sm:$0xff]
    %v1519 = vld [vmem:[#allocation5 + $0x2b18] sm:$0xff]
    %v1520 = vld [vmem:[#allocation5 + $0x2b20] sm:$0xff]
    %v1521 = vld [vmem:[#allocation5 + $0x2b28] sm:$0xff]
    %v1522 = vld [vmem:[#allocation5 + $0x2b30] sm:$0xff]
    %v1523 = vld [vmem:[#allocation5 + $0x2b38] sm:$0xff]
    %v1524 = vld [vmem:[#allocation5 + $0x2b40] sm:$0xff]
    %v1525 = vld [vmem:[#allocation5 + $0x2b48] sm:$0xff]
    %v1526 = vld [vmem:[#allocation5 + $0x2b50] sm:$0xff]
    %v1527 = vld [vmem:[#allocation5 + $0x2b58] sm:$0xff]
    %v1528 = vld [vmem:[#allocation5 + $0x2b60] sm:$0xff]
    %v1529 = vld [vmem:[#allocation5 + $0x2b68] sm:$0xff]
    %v1530 = vld [vmem:[#allocation5 + $0x2b70] sm:$0xff]
    %v1531 = vld [vmem:[#allocation5 + $0x2b78] sm:$0xff]
    %v1532 = vld [vmem:[#allocation5 + $0x2b80] sm:$0xff]
    %v1533 = vld [vmem:[#allocation5 + $0x2b88] sm:$0xff]
    %v1534 = vld [vmem:[#allocation5 + $0x2b90] sm:$0xff]
    %v1535 = vld [vmem:[#allocation5 + $0x2b98] sm:$0xff]
    %v1536 = vld [vmem:[#allocation5 + $0x2ba0] sm:$0xff]
    %v1537 = vld [vmem:[#allocation5 + $0x2ba8] sm:$0xff]
    %v1538 = vld [vmem:[#allocation5 + $0x2bb0] sm:$0xff]
    %v1539 = vld [vmem:[#allocation5 + $0x2bb8] sm:$0xff]
    %v1540 = vld [vmem:[#allocation5 + $0x2bc0] sm:$0xff]
    %v1541 = vld [vmem:[#allocation5 + $0x2bc8] sm:$0xff]
    %v1542 = vld [vmem:[#allocation5 + $0x2bd0] sm:$0xff]
    %v1543 = vld [vmem:[#allocation5 + $0x2bd8] sm:$0xff]
    %v1544 = vld [vmem:[#allocation5 + $0x2be0] sm:$0xff]
    %v1545 = vld [vmem:[#allocation5 + $0x2be8] sm:$0xff]
    %v1546 = vld [vmem:[#allocation5 + $0x2bf0] sm:$0xff]
    %v1547 = vld [vmem:[#allocation5 + $0x2bf8] sm:$0xff]
    %v1548 = vld [vmem:[#allocation5 + $0x2c00] sm:$0xff]
    %v1549 = vld [vmem:[#allocation5 + $0x2c08] sm:$0xff]
    %v1550 = vld [vmem:[#allocation5 + $0x2c10] sm:$0xff]
    %v1551 = vld [vmem:[#allocation5 + $0x2c18] sm:$0xff]
    %v1552 = vld [vmem:[#allocation5 + $0x2c20] sm:$0xff]
    %v1553 = vld [vmem:[#allocation5 + $0x2c28] sm:$0xff]
    %v1554 = vld [vmem:[#allocation5 + $0x2c30] sm:$0xff]
    %v1555 = vld [vmem:[#allocation5 + $0x2c38] sm:$0xff]
    %v1556 = vld [vmem:[#allocation5 + $0x2c40] sm:$0xff]
    %v1557 = vld [vmem:[#allocation5 + $0x2c48] sm:$0xff]
    %v1558 = vld [vmem:[#allocation5 + $0x2c50] sm:$0xff]
    %v1559 = vld [vmem:[#allocation5 + $0x2c58] sm:$0xff]
    %v1560 = vld [vmem:[#allocation5 + $0x2c60] sm:$0xff]
    %v1561 = vld [vmem:[#allocation5 + $0x2c68] sm:$0xff]
    %v1562 = vld [vmem:[#allocation5 + $0x2c70] sm:$0xff]
    %v1563 = vld [vmem:[#allocation5 + $0x2c78] sm:$0xff]
    %v1564 = vld [vmem:[#allocation5 + $0x2c80] sm:$0xff]
    %v1565 = vld [vmem:[#allocation5 + $0x2c88] sm:$0xff]
    %v1566 = vld [vmem:[#allocation5 + $0x2c90] sm:$0xff]
    %v1567 = vld [vmem:[#allocation5 + $0x2c98] sm:$0xff]
    %v1568 = vld [vmem:[#allocation5 + $0x2ca0] sm:$0xff]
    %v1569 = vld [vmem:[#allocation5 + $0x2ca8] sm:$0xff]
    %v1570 = vld [vmem:[#allocation5 + $0x2cb0] sm:$0xff]
    %v1571 = vld [vmem:[#allocation5 + $0x2cb8] sm:$0xff]
    %v1572 = vld [vmem:[#allocation5 + $0x2cc0] sm:$0xff]
    %v1573 = vld [vmem:[#allocation5 + $0x2cc8] sm:$0xff]
    %v1574 = vld [vmem:[#allocation5 + $0x2cd0] sm:$0xff]
    %v1575 = vld [vmem:[#allocation5 + $0x2cd8] sm:$0xff]
    %v1576 = vld [vmem:[#allocation5 + $0x2ce0] sm:$0xff]
    %v1577 = vld [vmem:[#allocation5 + $0x2ce8] sm:$0xff]
    %v1578 = vld [vmem:[#allocation5 + $0x2cf0] sm:$0xff]
    %v1579 = vld [vmem:[#allocation5 + $0x2cf8] sm:$0xff]
    %v1580 = vld [vmem:[#allocation5 + $0x2d00] sm:$0xff]
    %v1581 = vld [vmem:[#allocation5 + $0x2d08] sm:$0xff]
    %v1582 = vld [vmem:[#allocation5 + $0x2d10] sm:$0xff]
    %v1583 = vld [vmem:[#allocation5 + $0x2d18] sm:$0xff]
    %v1584 = vld [vmem:[#allocation5 + $0x2d20] sm:$0xff]
    %v1585 = vld [vmem:[#allocation5 + $0x2d28] sm:$0xff]
    %v1586 = vld [vmem:[#allocation5 + $0x2d30] sm:$0xff]
    %v1587 = vld [vmem:[#allocation5 + $0x2d38] sm:$0xff]
    %v1588 = vld [vmem:[#allocation5 + $0x2d40] sm:$0xff]
    %v1589 = vld [vmem:[#allocation5 + $0x2d48] sm:$0xff]
    %v1590 = vld [vmem:[#allocation5 + $0x2d50] sm:$0xff]
    %v1591 = vld [vmem:[#allocation5 + $0x2d58] sm:$0xff]
    %v1592 = vld [vmem:[#allocation5 + $0x2d60] sm:$0xff]
    %v1593 = vld [vmem:[#allocation5 + $0x2d68] sm:$0xff]
    %v1594 = vld [vmem:[#allocation5 + $0x2d70] sm:$0xff]
    %v1595 = vld [vmem:[#allocation5 + $0x2d78] sm:$0xff]
    %v1596 = vld [vmem:[#allocation5 + $0x2d80] sm:$0xff]
    %v1597 = vld [vmem:[#allocation5 + $0x2d88] sm:$0xff]
    %v1598 = vld [vmem:[#allocation5 + $0x2d90] sm:$0xff]
    %v1599 = vld [vmem:[#allocation5 + $0x2d98] sm:$0xff]
    %v1600 = vld [vmem:[#allocation5 + $0x2da0] sm:$0xff]
    %v1601 = vld [vmem:[#allocation5 + $0x2da8] sm:$0xff]
    %v1602 = vld [vmem:[#allocation5 + $0x2db0] sm:$0xff]
    %v1603 = vld [vmem:[#allocation5 + $0x2db8] sm:$0xff]
    %v1604 = vld [vmem:[#allocation5 + $0x2dc0] sm:$0xff]
    %v1605 = vld [vmem:[#allocation5 + $0x2dc8] sm:$0xff]
    %v1606 = vld [vmem:[#allocation5 + $0x2dd0] sm:$0xff]
    %v1607 = vld [vmem:[#allocation5 + $0x2dd8] sm:$0xff]
    %v1608 = vld [vmem:[#allocation5 + $0x2de0] sm:$0xff]
    %v1609 = vld [vmem:[#allocation5 + $0x2de8] sm:$0xff]
    %v1610 = vld [vmem:[#allocation5 + $0x2df0] sm:$0xff]
    %v1611 = vld [vmem:[#allocation5 + $0x2df8] sm:$0xff]
    %v1612 = vld [vmem:[#allocation5 + $0x2e00] sm:$0xff]
    %v1613 = vld [vmem:[#allocation5 + $0x2e08] sm:$0xff]
    %v1614 = vld [vmem:[#allocation5 + $0x2e10] sm:$0xff]
    %v1615 = vld [vmem:[#allocation5 + $0x2e18] sm:$0xff]
    %v1616 = vld [vmem:[#allocation5 + $0x2e20] sm:$0xff]
    %v1617 = vld [vmem:[#allocation5 + $0x2e28] sm:$0xff]
    %v1618 = vld [vmem:[#allocation5 + $0x2e30] sm:$0xff]
    %v1619 = vld [vmem:[#allocation5 + $0x2e38] sm:$0xff]
    %v1620 = vld [vmem:[#allocation5 + $0x2e40] sm:$0xff]
    %v1621 = vld [vmem:[#allocation5 + $0x2e48] sm:$0xff]
    %v1622 = vld [vmem:[#allocation5 + $0x2e50] sm:$0xff]
    %v1623 = vld [vmem:[#allocation5 + $0x2e58] sm:$0xff]
    %v1624 = vld [vmem:[#allocation5 + $0x2e60] sm:$0xff]
    %v1625 = vld [vmem:[#allocation5 + $0x2e68] sm:$0xff]
    %v1626 = vld [vmem:[#allocation5 + $0x2e70] sm:$0xff]
    %v1627 = vld [vmem:[#allocation5 + $0x2e78] sm:$0xff]
    %v1628 = vld [vmem:[#allocation5 + $0x2e80] sm:$0xff]
    %v1629 = vld [vmem:[#allocation5 + $0x2e88] sm:$0xff]
    %v1630 = vld [vmem:[#allocation5 + $0x2e90] sm:$0xff]
    %v1631 = vld [vmem:[#allocation5 + $0x2e98] sm:$0xff]
    %v1632 = vld [vmem:[#allocation5 + $0x2ea0] sm:$0xff]
    %v1633 = vld [vmem:[#allocation5 + $0x2ea8] sm:$0xff]
    %v1634 = vld [vmem:[#allocation5 + $0x2eb0] sm:$0xff]
    %v1635 = vld [vmem:[#allocation5 + $0x2eb8] sm:$0xff]
    %v1636 = vld [vmem:[#allocation5 + $0x2ec0] sm:$0xff]
    %v1637 = vld [vmem:[#allocation5 + $0x2ec8] sm:$0xff]
    %v1638 = vld [vmem:[#allocation5 + $0x2ed0] sm:$0xff]
    %v1639 = vld [vmem:[#allocation5 + $0x2ed8] sm:$0xff]
    %v1640 = vld [vmem:[#allocation5 + $0x2ee0] sm:$0xff]
    %v1641 = vld [vmem:[#allocation5 + $0x2ee8] sm:$0xff]
    %v1642 = vld [vmem:[#allocation5 + $0x2ef0] sm:$0xff]
    %v1643 = vld [vmem:[#allocation5 + $0x2ef8] sm:$0xff]
    %v1644 = vld [vmem:[#allocation5 + $0x2f00] sm:$0xff]
    %v1645 = vld [vmem:[#allocation5 + $0x2f08] sm:$0xff]
    %v1646 = vld [vmem:[#allocation5 + $0x2f10] sm:$0xff]
    %v1647 = vld [vmem:[#allocation5 + $0x2f18] sm:$0xff]
    %v1648 = vld [vmem:[#allocation5 + $0x2f20] sm:$0xff]
    %v1649 = vld [vmem:[#allocation5 + $0x2f28] sm:$0xff]
    %v1650 = vld [vmem:[#allocation5 + $0x2f30] sm:$0xff]
    %v1651 = vld [vmem:[#allocation5 + $0x2f38] sm:$0xff]
    %v1652 = vld [vmem:[#allocation5 + $0x2f40] sm:$0xff]
    %v1653 = vld [vmem:[#allocation5 + $0x2f48] sm:$0xff]
    %v1654 = vld [vmem:[#allocation5 + $0x2f50] sm:$0xff]
    %v1655 = vld [vmem:[#allocation5 + $0x2f58] sm:$0xff]
    %v1656 = vld [vmem:[#allocation5 + $0x2f60] sm:$0xff]
    %v1657 = vld [vmem:[#allocation5 + $0x2f68] sm:$0xff]
    %v1658 = vld [vmem:[#allocation5 + $0x2f70] sm:$0xff]
    %v1659 = vld [vmem:[#allocation5 + $0x2f78] sm:$0xff]
    %v1660 = vld [vmem:[#allocation5 + $0x2f80] sm:$0xff]
    %v1661 = vld [vmem:[#allocation5 + $0x2f88] sm:$0xff]
    %v1662 = vld [vmem:[#allocation5 + $0x2f90] sm:$0xff]
    %v1663 = vld [vmem:[#allocation5 + $0x2f98] sm:$0xff]
    %v1664 = vld [vmem:[#allocation5 + $0x2fa0] sm:$0xff]
    %v1665 = vld [vmem:[#allocation5 + $0x2fa8] sm:$0xff]
    %v1666 = vld [vmem:[#allocation5 + $0x2fb0] sm:$0xff]
    %v1667 = vld [vmem:[#allocation5 + $0x2fb8] sm:$0xff]
    %v1668 = vld [vmem:[#allocation5 + $0x2fc0] sm:$0xff]
    %v1669 = vld [vmem:[#allocation5 + $0x2fc8] sm:$0xff]
    %v1670 = vld [vmem:[#allocation5 + $0x2fd0] sm:$0xff]
    %v1671 = vld [vmem:[#allocation5 + $0x2fd8] sm:$0xff]
    %v1672 = vld [vmem:[#allocation5 + $0x2fe0] sm:$0xff]
    %v1673 = vld [vmem:[#allocation5 + $0x2fe8] sm:$0xff]
    %v1674 = vld [vmem:[#allocation5 + $0x2ff0] sm:$0xff]
    %v1675 = vld [vmem:[#allocation5 + $0x2ff8] sm:$0xff]
    %v1676 = vld [vmem:[#allocation7] sm:$0xff]
    %v1678 = vperm.slane %v1676, 0
    %v1679 = vperm.slane %v1676, 1
    %v1680 = vperm.slane %v1676, 2
    %v1681 = vperm.slane %v1676, 3
    %v1682 = vperm.slane %v1676, 4
    %v1683 = vperm.slane %v1676, 5
    %v1684 = vperm.slane %v1676, 6
    %v1685 = vperm.slane %v1676, 7
    %v1706 = vunpack.c.l.b16 %v128
    %v1707 = vunpack.c.h.b16 %v128
    %v1708 = vunpack.c.l.b16 %v129
    %v1709 = vunpack.c.h.b16 %v129
    %v1710 = vunpack.c.l.b16 %v130
    %v1711 = vunpack.c.h.b16 %v130
    %v1712 = vunpack.c.l.b16 %v131
    %v1713 = vunpack.c.h.b16 %v131
    %v1714 = vunpack.c.l.b16 %v132
    %v1715 = vunpack.c.h.b16 %v132
    %v1716 = vunpack.c.l.b16 %v133
    %v1717 = vunpack.c.h.b16 %v133
    %v1718 = vunpack.c.l.b16 %v134
    %v1719 = vunpack.c.h.b16 %v134
    %v1720 = vunpack.c.l.b16 %v135
    %v1721 = vunpack.c.h.b16 %v135
    %v1722 = vunpack.c.l.b16 %v136
    %v1723 = vunpack.c.h.b16 %v136
    %v1724 = vunpack.c.l.b16 %v137
    %v1725 = vunpack.c.h.b16 %v137
    %v1726 = vunpack.c.l.b16 %v138
    %v1727 = vunpack.c.h.b16 %v138
    %v1728 = vunpack.c.l.b16 %v139
    %v1729 = vunpack.c.h.b16 %v139
    %v1730 = vpack.c.b16 %v1706, %v1706
    %v1731 = vpack.c.b16 %v1707, %v1707
    %v1732 = vpack.c.b16 %v1708, %v1708
    %v1733 = vpack.c.b16 %v1709, %v1709
    %v1734 = vpack.c.b16 %v1710, %v1710
    %v1735 = vpack.c.b16 %v1711, %v1711
    %v1736 = vpack.c.b16 %v1712, %v1712
    %v1737 = vpack.c.b16 %v1713, %v1713
    %v1738 = vpack.c.b16 %v1714, %v1714
    %v1739 = vpack.c.b16 %v1715, %v1715
    %v1740 = vpack.c.b16 %v1716, %v1716
    %v1741 = vpack.c.b16 %v1717, %v1717
    %v1742 = vpack.c.b16 %v1718, %v1718
    %v1743 = vpack.c.b16 %v1719, %v1719
    %v1744 = vpack.c.b16 %v1720, %v1720
    %v1745 = vpack.c.b16 %v1721, %v1721
    %v1746 = vpack.c.b16 %v1722, %v1722
    %v1747 = vpack.c.b16 %v1723, %v1723
    %v1748 = vpack.c.b16 %v1724, %v1724
    %v1749 = vpack.c.b16 %v1725, %v1725
    %v1750 = vpack.c.b16 %v1726, %v1726
    %v1751 = vpack.c.b16 %v1727, %v1727
    %v1752 = vpack.c.b16 %v1728, %v1728
    %v1753 = vpack.c.b16 %v1729, %v1729
    %v3314 = vunpack.c.l.b16 %v140
    %v3315 = vunpack.c.h.b16 %v140
    %v3316 = vunpack.c.l.b16 %v141
    %v3317 = vunpack.c.h.b16 %v141
    %v3318 = vunpack.c.l.b16 %v142
    %v3319 = vunpack.c.h.b16 %v142
    %v3320 = vunpack.c.l.b16 %v143
    %v3321 = vunpack.c.h.b16 %v143
    %v3322 = vunpack.c.l.b16 %v144
    %v3323 = vunpack.c.h.b16 %v144
    %v3324 = vunpack.c.l.b16 %v145
    %v3325 = vunpack.c.h.b16 %v145
    %v3326 = vunpack.c.l.b16 %v146
    %v3327 = vunpack.c.h.b16 %v146
    %v3328 = vunpack.c.l.b16 %v147
    %v3329 = vunpack.c.h.b16 %v147
    %v3330 = vunpack.c.l.b16 %v148
    %v3331 = vunpack.c.h.b16 %v148
    %v3332 = vunpack.c.l.b16 %v149
    %v3333 = vunpack.c.h.b16 %v149
    %v3334 = vunpack.c.l.b16 %v150
    %v3335 = vunpack.c.h.b16 %v150
    %v3336 = vunpack.c.l.b16 %v151
    %v3337 = vunpack.c.h.b16 %v151
    %v3338 = vunpack.c.l.b16 %v152
    %v3339 = vunpack.c.h.b16 %v152
    %v3340 = vunpack.c.l.b16 %v153
    %v3341 = vunpack.c.h.b16 %v153
    %v3342 = vunpack.c.l.b16 %v154
    %v3343 = vunpack.c.h.b16 %v154
    %v3344 = vunpack.c.l.b16 %v155
    %v3345 = vunpack.c.h.b16 %v155
    %v3346 = vunpack.c.l.b16 %v156
    %v3347 = vunpack.c.h.b16 %v156
    %v3348 = vunpack.c.l.b16 %v157
    %v3349 = vunpack.c.h.b16 %v157
    %v3350 = vunpack.c.l.b16 %v158
    %v3351 = vunpack.c.h.b16 %v158
    %v3352 = vunpack.c.l.b16 %v159
    %v3353 = vunpack.c.h.b16 %v159
    %v3354 = vunpack.c.l.b16 %v160
    %v3355 = vunpack.c.h.b16 %v160
    %v3356 = vunpack.c.l.b16 %v161
    %v3357 = vunpack.c.h.b16 %v161
    %v3358 = vunpack.c.l.b16 %v162
    %v3359 = vunpack.c.h.b16 %v162
    %v3360 = vunpack.c.l.b16 %v163
    %v3361 = vunpack.c.h.b16 %v163
    %v3362 = vunpack.c.l.b16 %v164
    %v3363 = vunpack.c.h.b16 %v164
    %v3364 = vunpack.c.l.b16 %v165
    %v3365 = vunpack.c.h.b16 %v165
    %v3366 = vunpack.c.l.b16 %v166
    %v3367 = vunpack.c.h.b16 %v166
    %v3368 = vunpack.c.l.b16 %v167
    %v3369 = vunpack.c.h.b16 %v167
    %v3370 = vunpack.c.l.b16 %v168
    %v3371 = vunpack.c.h.b16 %v168
    %v3372 = vunpack.c.l.b16 %v169
    %v3373 = vunpack.c.h.b16 %v169
    %v3374 = vunpack.c.l.b16 %v170
    %v3375 = vunpack.c.h.b16 %v170
    %v3376 = vunpack.c.l.b16 %v171
    %v3377 = vunpack.c.h.b16 %v171
    %v3378 = vunpack.c.l.b16 %v172
    %v3379 = vunpack.c.h.b16 %v172
    %v3380 = vunpack.c.l.b16 %v173
    %v3381 = vunpack.c.h.b16 %v173
    %v3382 = vunpack.c.l.b16 %v174
    %v3383 = vunpack.c.h.b16 %v174
    %v3384 = vunpack.c.l.b16 %v175
    %v3385 = vunpack.c.h.b16 %v175
    %v3386 = vunpack.c.l.b16 %v176
    %v3387 = vunpack.c.h.b16 %v176
    %v3388 = vunpack.c.l.b16 %v177
    %v3389 = vunpack.c.h.b16 %v177
    %v3390 = vunpack.c.l.b16 %v178
    %v3391 = vunpack.c.h.b16 %v178
    %v3392 = vunpack.c.l.b16 %v179
    %v3393 = vunpack.c.h.b16 %v179
    %v3394 = vunpack.c.l.b16 %v180
    %v3395 = vunpack.c.h.b16 %v180
    %v3396 = vunpack.c.l.b16 %v181
    %v3397 = vunpack.c.h.b16 %v181
    %v3398 = vunpack.c.l.b16 %v182
    %v3399 = vunpack.c.h.b16 %v182
    %v3400 = vunpack.c.l.b16 %v183
    %v3401 = vunpack.c.h.b16 %v183
    %v3402 = vunpack.c.l.b16 %v184
    %v3403 = vunpack.c.h.b16 %v184
    %v3404 = vunpack.c.l.b16 %v185
    %v3405 = vunpack.c.h.b16 %v185
    %v3406 = vunpack.c.l.b16 %v186
    %v3407 = vunpack.c.h.b16 %v186
    %v3408 = vunpack.c.l.b16 %v187
    %v3409 = vunpack.c.h.b16 %v187
    %v3410 = vunpack.c.l.b16 %v188
    %v3411 = vunpack.c.h.b16 %v188
    %v3412 = vunpack.c.l.b16 %v189
    %v3413 = vunpack.c.h.b16 %v189
    %v3414 = vunpack.c.l.b16 %v190
    %v3415 = vunpack.c.h.b16 %v190
    %v3416 = vunpack.c.l.b16 %v191
    %v3417 = vunpack.c.h.b16 %v191
    %v3418 = vunpack.c.l.b16 %v192
    %v3419 = vunpack.c.h.b16 %v192
    %v3420 = vunpack.c.l.b16 %v193
    %v3421 = vunpack.c.h.b16 %v193
    %v3422 = vunpack.c.l.b16 %v194
    %v3423 = vunpack.c.h.b16 %v194
    %v3424 = vunpack.c.l.b16 %v195
    %v3425 = vunpack.c.h.b16 %v195
    %v3426 = vunpack.c.l.b16 %v196
    %v3427 = vunpack.c.h.b16 %v196
    %v3428 = vunpack.c.l.b16 %v197
    %v3429 = vunpack.c.h.b16 %v197
    %v3430 = vunpack.c.l.b16 %v198
    %v3431 = vunpack.c.h.b16 %v198
    %v3432 = vunpack.c.l.b16 %v199
    %v3433 = vunpack.c.h.b16 %v199
    %v3434 = vunpack.c.l.b16 %v200
    %v3435 = vunpack.c.h.b16 %v200
    %v3436 = vunpack.c.l.b16 %v201
    %v3437 = vunpack.c.h.b16 %v201
    %v3438 = vunpack.c.l.b16 %v202
    %v3439 = vunpack.c.h.b16 %v202
    %v3440 = vunpack.c.l.b16 %v203
    %v3441 = vunpack.c.h.b16 %v203
    %v3442 = vunpack.c.l.b16 %v204
    %v3443 = vunpack.c.h.b16 %v204
    %v3444 = vunpack.c.l.b16 %v205
    %v3445 = vunpack.c.h.b16 %v205
    %v3446 = vunpack.c.l.b16 %v206
    %v3447 = vunpack.c.h.b16 %v206
    %v3448 = vunpack.c.l.b16 %v207
    %v3449 = vunpack.c.h.b16 %v207
    %v3450 = vunpack.c.l.b16 %v208
    %v3451 = vunpack.c.h.b16 %v208
    %v3452 = vunpack.c.l.b16 %v209
    %v3453 = vunpack.c.h.b16 %v209
    %v3454 = vunpack.c.l.b16 %v210
    %v3455 = vunpack.c.h.b16 %v210
    %v3456 = vunpack.c.l.b16 %v211
    %v3457 = vunpack.c.h.b16 %v211
    %v3458 = vunpack.c.l.b16 %v212
    %v3459 = vunpack.c.h.b16 %v212
    %v3460 = vunpack.c.l.b16 %v213
    %v3461 = vunpack.c.h.b16 %v213
    %v3462 = vunpack.c.l.b16 %v214
    %v3463 = vunpack.c.h.b16 %v214
    %v3464 = vunpack.c.l.b16 %v215
    %v3465 = vunpack.c.h.b16 %v215
    %v3466 = vunpack.c.l.b16 %v216
    %v3467 = vunpack.c.h.b16 %v216
    %v3468 = vunpack.c.l.b16 %v217
    %v3469 = vunpack.c.h.b16 %v217
    %v3470 = vunpack.c.l.b16 %v218
    %v3471 = vunpack.c.h.b16 %v218
    %v3472 = vunpack.c.l.b16 %v219
    %v3473 = vunpack.c.h.b16 %v219
    %v3474 = vunpack.c.l.b16 %v220
    %v3475 = vunpack.c.h.b16 %v220
    %v3476 = vunpack.c.l.b16 %v221
    %v3477 = vunpack.c.h.b16 %v221
    %v3478 = vunpack.c.l.b16 %v222
    %v3479 = vunpack.c.h.b16 %v222
    %v3480 = vunpack.c.l.b16 %v223
    %v3481 = vunpack.c.h.b16 %v223
    %v3482 = vunpack.c.l.b16 %v224
    %v3483 = vunpack.c.h.b16 %v224
    %v3484 = vunpack.c.l.b16 %v225
    %v3485 = vunpack.c.h.b16 %v225
    %v3486 = vunpack.c.l.b16 %v226
    %v3487 = vunpack.c.h.b16 %v226
    %v3488 = vunpack.c.l.b16 %v227
    %v3489 = vunpack.c.h.b16 %v227
    %v3490 = vunpack.c.l.b16 %v228
    %v3491 = vunpack.c.h.b16 %v228
    %v3492 = vunpack.c.l.b16 %v229
    %v3493 = vunpack.c.h.b16 %v229
    %v3494 = vunpack.c.l.b16 %v230
    %v3495 = vunpack.c.h.b16 %v230
    %v3496 = vunpack.c.l.b16 %v231
    %v3497 = vunpack.c.h.b16 %v231
    %v3498 = vunpack.c.l.b16 %v232
    %v3499 = vunpack.c.h.b16 %v232
    %v3500 = vunpack.c.l.b16 %v233
    %v3501 = vunpack.c.h.b16 %v233
    %v3502 = vunpack.c.l.b16 %v234
    %v3503 = vunpack.c.h.b16 %v234
    %v3504 = vunpack.c.l.b16 %v235
    %v3505 = vunpack.c.h.b16 %v235
    %v3506 = vunpack.c.l.b16 %v236
    %v3507 = vunpack.c.h.b16 %v236
    %v3508 = vunpack.c.l.b16 %v237
    %v3509 = vunpack.c.h.b16 %v237
    %v3510 = vunpack.c.l.b16 %v238
    %v3511 = vunpack.c.h.b16 %v238
    %v3512 = vunpack.c.l.b16 %v239
    %v3513 = vunpack.c.h.b16 %v239
    %v3514 = vunpack.c.l.b16 %v240
    %v3515 = vunpack.c.h.b16 %v240
    %v3516 = vunpack.c.l.b16 %v241
    %v3517 = vunpack.c.h.b16 %v241
    %v3518 = vunpack.c.l.b16 %v242
    %v3519 = vunpack.c.h.b16 %v242
    %v3520 = vunpack.c.l.b16 %v243
    %v3521 = vunpack.c.h.b16 %v243
    %v3522 = vunpack.c.l.b16 %v244
    %v3523 = vunpack.c.h.b16 %v244
    %v3524 = vunpack.c.l.b16 %v245
    %v3525 = vunpack.c.h.b16 %v245
    %v3526 = vunpack.c.l.b16 %v246
    %v3527 = vunpack.c.h.b16 %v246
    %v3528 = vunpack.c.l.b16 %v247
    %v3529 = vunpack.c.h.b16 %v247
    %v3530 = vunpack.c.l.b16 %v248
    %v3531 = vunpack.c.h.b16 %v248
    %v3532 = vunpack.c.l.b16 %v249
    %v3533 = vunpack.c.h.b16 %v249
    %v3534 = vunpack.c.l.b16 %v250
    %v3535 = vunpack.c.h.b16 %v250
    %v3536 = vunpack.c.l.b16 %v251
    %v3537 = vunpack.c.h.b16 %v251
    %v3538 = vunpack.c.l.b16 %v252
    %v3539 = vunpack.c.h.b16 %v252
    %v3540 = vunpack.c.l.b16 %v253
    %v3541 = vunpack.c.h.b16 %v253
    %v3542 = vunpack.c.l.b16 %v254
    %v3543 = vunpack.c.h.b16 %v254
    %v3544 = vunpack.c.l.b16 %v255
    %v3545 = vunpack.c.h.b16 %v255
    %v3546 = vunpack.c.l.b16 %v256
    %v3547 = vunpack.c.h.b16 %v256
    %v3548 = vunpack.c.l.b16 %v257
    %v3549 = vunpack.c.h.b16 %v257
    %v3550 = vunpack.c.l.b16 %v258
    %v3551 = vunpack.c.h.b16 %v258
    %v3552 = vunpack.c.l.b16 %v259
    %v3553 = vunpack.c.h.b16 %v259
    %v3554 = vunpack.c.l.b16 %v260
    %v3555 = vunpack.c.h.b16 %v260
    %v3556 = vunpack.c.l.b16 %v261
    %v3557 = vunpack.c.h.b16 %v261
    %v3558 = vunpack.c.l.b16 %v262
    %v3559 = vunpack.c.h.b16 %v262
    %v3560 = vunpack.c.l.b16 %v263
    %v3561 = vunpack.c.h.b16 %v263
    %v3562 = vunpack.c.l.b16 %v264
    %v3563 = vunpack.c.h.b16 %v264
    %v3564 = vunpack.c.l.b16 %v265
    %v3565 = vunpack.c.h.b16 %v265
    %v3566 = vunpack.c.l.b16 %v266
    %v3567 = vunpack.c.h.b16 %v266
    %v3568 = vunpack.c.l.b16 %v267
    %v3569 = vunpack.c.h.b16 %v267
    %v3570 = vunpack.c.l.b16 %v268
    %v3571 = vunpack.c.h.b16 %v268
    %v3572 = vunpack.c.l.b16 %v269
    %v3573 = vunpack.c.h.b16 %v269
    %v3574 = vunpack.c.l.b16 %v270
    %v3575 = vunpack.c.h.b16 %v270
    %v3576 = vunpack.c.l.b16 %v271
    %v3577 = vunpack.c.h.b16 %v271
    %v3578 = vunpack.c.l.b16 %v272
    %v3579 = vunpack.c.h.b16 %v272
    %v3580 = vunpack.c.l.b16 %v273
    %v3581 = vunpack.c.h.b16 %v273
    %v3582 = vunpack.c.l.b16 %v274
    %v3583 = vunpack.c.h.b16 %v274
    %v3584 = vunpack.c.l.b16 %v275
    %v3585 = vunpack.c.h.b16 %v275
    %v3586 = vunpack.c.l.b16 %v276
    %v3587 = vunpack.c.h.b16 %v276
    %v3588 = vunpack.c.l.b16 %v277
    %v3589 = vunpack.c.h.b16 %v277
    %v3590 = vunpack.c.l.b16 %v278
    %v3591 = vunpack.c.h.b16 %v278
    %v3592 = vunpack.c.l.b16 %v279
    %v3593 = vunpack.c.h.b16 %v279
    %v3594 = vunpack.c.l.b16 %v280
    %v3595 = vunpack.c.h.b16 %v280
    %v3596 = vunpack.c.l.b16 %v281
    %v3597 = vunpack.c.h.b16 %v281
    %v3598 = vunpack.c.l.b16 %v282
    %v3599 = vunpack.c.h.b16 %v282
    %v3600 = vunpack.c.l.b16 %v283
    %v3601 = vunpack.c.h.b16 %v283
    %v3602 = vunpack.c.l.b16 %v284
    %v3603 = vunpack.c.h.b16 %v284
    %v3604 = vunpack.c.l.b16 %v285
    %v3605 = vunpack.c.h.b16 %v285
    %v3606 = vunpack.c.l.b16 %v286
    %v3607 = vunpack.c.h.b16 %v286
    %v3608 = vunpack.c.l.b16 %v287
    %v3609 = vunpack.c.h.b16 %v287
    %v3610 = vunpack.c.l.b16 %v288
    %v3611 = vunpack.c.h.b16 %v288
    %v3612 = vunpack.c.l.b16 %v289
    %v3613 = vunpack.c.h.b16 %v289
    %v3614 = vunpack.c.l.b16 %v290
    %v3615 = vunpack.c.h.b16 %v290
    %v3616 = vunpack.c.l.b16 %v291
    %v3617 = vunpack.c.h.b16 %v291
    %v3618 = vunpack.c.l.b16 %v292
    %v3619 = vunpack.c.h.b16 %v292
    %v3620 = vunpack.c.l.b16 %v293
    %v3621 = vunpack.c.h.b16 %v293
    %v3622 = vunpack.c.l.b16 %v294
    %v3623 = vunpack.c.h.b16 %v294
    %v3624 = vunpack.c.l.b16 %v295
    %v3625 = vunpack.c.h.b16 %v295
    %v3626 = vunpack.c.l.b16 %v296
    %v3627 = vunpack.c.h.b16 %v296
    %v3628 = vunpack.c.l.b16 %v297
    %v3629 = vunpack.c.h.b16 %v297
    %v3630 = vunpack.c.l.b16 %v298
    %v3631 = vunpack.c.h.b16 %v298
    %v3632 = vunpack.c.l.b16 %v299
    %v3633 = vunpack.c.h.b16 %v299
    %v3634 = vunpack.c.l.b16 %v300
    %v3635 = vunpack.c.h.b16 %v300
    %v3636 = vunpack.c.l.b16 %v301
    %v3637 = vunpack.c.h.b16 %v301
    %v3638 = vunpack.c.l.b16 %v302
    %v3639 = vunpack.c.h.b16 %v302
    %v3640 = vunpack.c.l.b16 %v303
    %v3641 = vunpack.c.h.b16 %v303
    %v3642 = vunpack.c.l.b16 %v304
    %v3643 = vunpack.c.h.b16 %v304
    %v3644 = vunpack.c.l.b16 %v305
    %v3645 = vunpack.c.h.b16 %v305
    %v3646 = vunpack.c.l.b16 %v306
    %v3647 = vunpack.c.h.b16 %v306
    %v3648 = vunpack.c.l.b16 %v307
    %v3649 = vunpack.c.h.b16 %v307
    %v3650 = vunpack.c.l.b16 %v308
    %v3651 = vunpack.c.h.b16 %v308
    %v3652 = vunpack.c.l.b16 %v309
    %v3653 = vunpack.c.h.b16 %v309
    %v3654 = vunpack.c.l.b16 %v310
    %v3655 = vunpack.c.h.b16 %v310
    %v3656 = vunpack.c.l.b16 %v311
    %v3657 = vunpack.c.h.b16 %v311
    %v3658 = vunpack.c.l.b16 %v312
    %v3659 = vunpack.c.h.b16 %v312
    %v3660 = vunpack.c.l.b16 %v313
    %v3661 = vunpack.c.h.b16 %v313
    %v3662 = vunpack.c.l.b16 %v314
    %v3663 = vunpack.c.h.b16 %v314
    %v3664 = vunpack.c.l.b16 %v315
    %v3665 = vunpack.c.h.b16 %v315
    %v3666 = vunpack.c.l.b16 %v316
    %v3667 = vunpack.c.h.b16 %v316
    %v3668 = vunpack.c.l.b16 %v317
    %v3669 = vunpack.c.h.b16 %v317
    %v3670 = vunpack.c.l.b16 %v318
    %v3671 = vunpack.c.h.b16 %v318
    %v3672 = vunpack.c.l.b16 %v319
    %v3673 = vunpack.c.h.b16 %v319
    %v3674 = vunpack.c.l.b16 %v320
    %v3675 = vunpack.c.h.b16 %v320
    %v3676 = vunpack.c.l.b16 %v321
    %v3677 = vunpack.c.h.b16 %v321
    %v3678 = vunpack.c.l.b16 %v322
    %v3679 = vunpack.c.h.b16 %v322
    %v3680 = vunpack.c.l.b16 %v323
    %v3681 = vunpack.c.h.b16 %v323
    %v3682 = vunpack.c.l.b16 %v324
    %v3683 = vunpack.c.h.b16 %v324
    %v3684 = vunpack.c.l.b16 %v325
    %v3685 = vunpack.c.h.b16 %v325
    %v3686 = vunpack.c.l.b16 %v326
    %v3687 = vunpack.c.h.b16 %v326
    %v3688 = vunpack.c.l.b16 %v327
    %v3689 = vunpack.c.h.b16 %v327
    %v3690 = vunpack.c.l.b16 %v328
    %v3691 = vunpack.c.h.b16 %v328
    %v3692 = vunpack.c.l.b16 %v329
    %v3693 = vunpack.c.h.b16 %v329
    %v3694 = vunpack.c.l.b16 %v330
    %v3695 = vunpack.c.h.b16 %v330
    %v3696 = vunpack.c.l.b16 %v331
    %v3697 = vunpack.c.h.b16 %v331
    %v3698 = vunpack.c.l.b16 %v332
    %v3699 = vunpack.c.h.b16 %v332
    %v3700 = vunpack.c.l.b16 %v333
    %v3701 = vunpack.c.h.b16 %v333
    %v3702 = vunpack.c.l.b16 %v334
    %v3703 = vunpack.c.h.b16 %v334
    %v3704 = vunpack.c.l.b16 %v335
    %v3705 = vunpack.c.h.b16 %v335
    %v3706 = vunpack.c.l.b16 %v336
    %v3707 = vunpack.c.h.b16 %v336
    %v3708 = vunpack.c.l.b16 %v337
    %v3709 = vunpack.c.h.b16 %v337
    %v3710 = vunpack.c.l.b16 %v338
    %v3711 = vunpack.c.h.b16 %v338
    %v3712 = vunpack.c.l.b16 %v339
    %v3713 = vunpack.c.h.b16 %v339
    %v3714 = vunpack.c.l.b16 %v340
    %v3715 = vunpack.c.h.b16 %v340
    %v3716 = vunpack.c.l.b16 %v341
    %v3717 = vunpack.c.h.b16 %v341
    %v3718 = vunpack.c.l.b16 %v342
    %v3719 = vunpack.c.h.b16 %v342
    %v3720 = vunpack.c.l.b16 %v343
    %v3721 = vunpack.c.h.b16 %v343
    %v3722 = vunpack.c.l.b16 %v344
    %v3723 = vunpack.c.h.b16 %v344
    %v3724 = vunpack.c.l.b16 %v345
    %v3725 = vunpack.c.h.b16 %v345
    %v3726 = vunpack.c.l.b16 %v346
    %v3727 = vunpack.c.h.b16 %v346
    %v3728 = vunpack.c.l.b16 %v347
    %v3729 = vunpack.c.h.b16 %v347
    %v3730 = vunpack.c.l.b16 %v348
    %v3731 = vunpack.c.h.b16 %v348
    %v3732 = vunpack.c.l.b16 %v349
    %v3733 = vunpack.c.h.b16 %v349
    %v3734 = vunpack.c.l.b16 %v350
    %v3735 = vunpack.c.h.b16 %v350
    %v3736 = vunpack.c.l.b16 %v351
    %v3737 = vunpack.c.h.b16 %v351
    %v3738 = vunpack.c.l.b16 %v352
    %v3739 = vunpack.c.h.b16 %v352
    %v3740 = vunpack.c.l.b16 %v353
    %v3741 = vunpack.c.h.b16 %v353
    %v3742 = vunpack.c.l.b16 %v354
    %v3743 = vunpack.c.h.b16 %v354
    %v3744 = vunpack.c.l.b16 %v355
    %v3745 = vunpack.c.h.b16 %v355
    %v3746 = vunpack.c.l.b16 %v356
    %v3747 = vunpack.c.h.b16 %v356
    %v3748 = vunpack.c.l.b16 %v357
    %v3749 = vunpack.c.h.b16 %v357
    %v3750 = vunpack.c.l.b16 %v358
    %v3751 = vunpack.c.h.b16 %v358
    %v3752 = vunpack.c.l.b16 %v359
    %v3753 = vunpack.c.h.b16 %v359
    %v3754 = vunpack.c.l.b16 %v360
    %v3755 = vunpack.c.h.b16 %v360
    %v3756 = vunpack.c.l.b16 %v361
    %v3757 = vunpack.c.h.b16 %v361
    %v3758 = vunpack.c.l.b16 %v362
    %v3759 = vunpack.c.h.b16 %v362
    %v3760 = vunpack.c.l.b16 %v363
    %v3761 = vunpack.c.h.b16 %v363
    %v3762 = vunpack.c.l.b16 %v364
    %v3763 = vunpack.c.h.b16 %v364
    %v3764 = vunpack.c.l.b16 %v365
    %v3765 = vunpack.c.h.b16 %v365
    %v3766 = vunpack.c.l.b16 %v366
    %v3767 = vunpack.c.h.b16 %v366
    %v3768 = vunpack.c.l.b16 %v367
    %v3769 = vunpack.c.h.b16 %v367
    %v3770 = vunpack.c.l.b16 %v368
    %v3771 = vunpack.c.h.b16 %v368
    %v3772 = vunpack.c.l.b16 %v369
    %v3773 = vunpack.c.h.b16 %v369
    %v3774 = vunpack.c.l.b16 %v370
    %v3775 = vunpack.c.h.b16 %v370
    %v3776 = vunpack.c.l.b16 %v371
    %v3777 = vunpack.c.h.b16 %v371
    %v3778 = vunpack.c.l.b16 %v372
    %v3779 = vunpack.c.h.b16 %v372
    %v3780 = vunpack.c.l.b16 %v373
    %v3781 = vunpack.c.h.b16 %v373
    %v3782 = vunpack.c.l.b16 %v374
    %v3783 = vunpack.c.h.b16 %v374
    %v3784 = vunpack.c.l.b16 %v375
    %v3785 = vunpack.c.h.b16 %v375
    %v3786 = vunpack.c.l.b16 %v376
    %v3787 = vunpack.c.h.b16 %v376
    %v3788 = vunpack.c.l.b16 %v377
    %v3789 = vunpack.c.h.b16 %v377
    %v3790 = vunpack.c.l.b16 %v378
    %v3791 = vunpack.c.h.b16 %v378
    %v3792 = vunpack.c.l.b16 %v379
    %v3793 = vunpack.c.h.b16 %v379
    %v3794 = vunpack.c.l.b16 %v380
    %v3795 = vunpack.c.h.b16 %v380
    %v3796 = vunpack.c.l.b16 %v381
    %v3797 = vunpack.c.h.b16 %v381
    %v3798 = vunpack.c.l.b16 %v382
    %v3799 = vunpack.c.h.b16 %v382
    %v3800 = vunpack.c.l.b16 %v383
    %v3801 = vunpack.c.h.b16 %v383
    %v3802 = vunpack.c.l.b16 %v384
    %v3803 = vunpack.c.h.b16 %v384
    %v3804 = vunpack.c.l.b16 %v385
    %v3805 = vunpack.c.h.b16 %v385
    %v3806 = vunpack.c.l.b16 %v386
    %v3807 = vunpack.c.h.b16 %v386
    %v3808 = vunpack.c.l.b16 %v387
    %v3809 = vunpack.c.h.b16 %v387
    %v3810 = vunpack.c.l.b16 %v388
    %v3811 = vunpack.c.h.b16 %v388
    %v3812 = vunpack.c.l.b16 %v389
    %v3813 = vunpack.c.h.b16 %v389
    %v3814 = vunpack.c.l.b16 %v390
    %v3815 = vunpack.c.h.b16 %v390
    %v3816 = vunpack.c.l.b16 %v391
    %v3817 = vunpack.c.h.b16 %v391
    %v3818 = vunpack.c.l.b16 %v392
    %v3819 = vunpack.c.h.b16 %v392
    %v3820 = vunpack.c.l.b16 %v393
    %v3821 = vunpack.c.h.b16 %v393
    %v3822 = vunpack.c.l.b16 %v394
    %v3823 = vunpack.c.h.b16 %v394
    %v3824 = vunpack.c.l.b16 %v395
    %v3825 = vunpack.c.h.b16 %v395
    %v3826 = vunpack.c.l.b16 %v396
    %v3827 = vunpack.c.h.b16 %v396
    %v3828 = vunpack.c.l.b16 %v397
    %v3829 = vunpack.c.h.b16 %v397
    %v3830 = vunpack.c.l.b16 %v398
    %v3831 = vunpack.c.h.b16 %v398
    %v3832 = vunpack.c.l.b16 %v399
    %v3833 = vunpack.c.h.b16 %v399
    %v3834 = vunpack.c.l.b16 %v400
    %v3835 = vunpack.c.h.b16 %v400
    %v3836 = vunpack.c.l.b16 %v401
    %v3837 = vunpack.c.h.b16 %v401
    %v3838 = vunpack.c.l.b16 %v402
    %v3839 = vunpack.c.h.b16 %v402
    %v3840 = vunpack.c.l.b16 %v403
    %v3841 = vunpack.c.h.b16 %v403
    %v3842 = vunpack.c.l.b16 %v404
    %v3843 = vunpack.c.h.b16 %v404
    %v3844 = vunpack.c.l.b16 %v405
    %v3845 = vunpack.c.h.b16 %v405
    %v3846 = vunpack.c.l.b16 %v406
    %v3847 = vunpack.c.h.b16 %v406
    %v3848 = vunpack.c.l.b16 %v407
    %v3849 = vunpack.c.h.b16 %v407
    %v3850 = vunpack.c.l.b16 %v408
    %v3851 = vunpack.c.h.b16 %v408
    %v3852 = vunpack.c.l.b16 %v409
    %v3853 = vunpack.c.h.b16 %v409
    %v3854 = vunpack.c.l.b16 %v410
    %v3855 = vunpack.c.h.b16 %v410
    %v3856 = vunpack.c.l.b16 %v411
    %v3857 = vunpack.c.h.b16 %v411
    %v3858 = vunpack.c.l.b16 %v412
    %v3859 = vunpack.c.h.b16 %v412
    %v3860 = vunpack.c.l.b16 %v413
    %v3861 = vunpack.c.h.b16 %v413
    %v3862 = vunpack.c.l.b16 %v414
    %v3863 = vunpack.c.h.b16 %v414
    %v3864 = vunpack.c.l.b16 %v415
    %v3865 = vunpack.c.h.b16 %v415
    %v3866 = vunpack.c.l.b16 %v416
    %v3867 = vunpack.c.h.b16 %v416
    %v3868 = vunpack.c.l.b16 %v417
    %v3869 = vunpack.c.h.b16 %v417
    %v3870 = vunpack.c.l.b16 %v418
    %v3871 = vunpack.c.h.b16 %v418
    %v3872 = vunpack.c.l.b16 %v419
    %v3873 = vunpack.c.h.b16 %v419
    %v3874 = vunpack.c.l.b16 %v420
    %v3875 = vunpack.c.h.b16 %v420
    %v3876 = vunpack.c.l.b16 %v421
    %v3877 = vunpack.c.h.b16 %v421
    %v3878 = vunpack.c.l.b16 %v422
    %v3879 = vunpack.c.h.b16 %v422
    %v3880 = vunpack.c.l.b16 %v423
    %v3881 = vunpack.c.h.b16 %v423
    %v3882 = vunpack.c.l.b16 %v424
    %v3883 = vunpack.c.h.b16 %v424
    %v3884 = vunpack.c.l.b16 %v425
    %v3885 = vunpack.c.h.b16 %v425
    %v3886 = vunpack.c.l.b16 %v426
    %v3887 = vunpack.c.h.b16 %v426
    %v3888 = vunpack.c.l.b16 %v427
    %v3889 = vunpack.c.h.b16 %v427
    %v3890 = vunpack.c.l.b16 %v428
    %v3891 = vunpack.c.h.b16 %v428
    %v3892 = vunpack.c.l.b16 %v429
    %v3893 = vunpack.c.h.b16 %v429
    %v3894 = vunpack.c.l.b16 %v430
    %v3895 = vunpack.c.h.b16 %v430
    %v3896 = vunpack.c.l.b16 %v431
    %v3897 = vunpack.c.h.b16 %v431
    %v3898 = vunpack.c.l.b16 %v432
    %v3899 = vunpack.c.h.b16 %v432
    %v3900 = vunpack.c.l.b16 %v433
    %v3901 = vunpack.c.h.b16 %v433
    %v3902 = vunpack.c.l.b16 %v434
    %v3903 = vunpack.c.h.b16 %v434
    %v3904 = vunpack.c.l.b16 %v435
    %v3905 = vunpack.c.h.b16 %v435
    %v3906 = vunpack.c.l.b16 %v436
    %v3907 = vunpack.c.h.b16 %v436
    %v3908 = vunpack.c.l.b16 %v437
    %v3909 = vunpack.c.h.b16 %v437
    %v3910 = vunpack.c.l.b16 %v438
    %v3911 = vunpack.c.h.b16 %v438
    %v3912 = vunpack.c.l.b16 %v439
    %v3913 = vunpack.c.h.b16 %v439
    %v3914 = vunpack.c.l.b16 %v440
    %v3915 = vunpack.c.h.b16 %v440
    %v3916 = vunpack.c.l.b16 %v441
    %v3917 = vunpack.c.h.b16 %v441
    %v3918 = vunpack.c.l.b16 %v442
    %v3919 = vunpack.c.h.b16 %v442
    %v3920 = vunpack.c.l.b16 %v443
    %v3921 = vunpack.c.h.b16 %v443
    %v3922 = vunpack.c.l.b16 %v444
    %v3923 = vunpack.c.h.b16 %v444
    %v3924 = vunpack.c.l.b16 %v445
    %v3925 = vunpack.c.h.b16 %v445
    %v3926 = vunpack.c.l.b16 %v446
    %v3927 = vunpack.c.h.b16 %v446
    %v3928 = vunpack.c.l.b16 %v447
    %v3929 = vunpack.c.h.b16 %v447
    %v3930 = vunpack.c.l.b16 %v448
    %v3931 = vunpack.c.h.b16 %v448
    %v3932 = vunpack.c.l.b16 %v449
    %v3933 = vunpack.c.h.b16 %v449
    %v3934 = vunpack.c.l.b16 %v450
    %v3935 = vunpack.c.h.b16 %v450
    %v3936 = vunpack.c.l.b16 %v451
    %v3937 = vunpack.c.h.b16 %v451
    %v3938 = vunpack.c.l.b16 %v452
    %v3939 = vunpack.c.h.b16 %v452
    %v3940 = vunpack.c.l.b16 %v453
    %v3941 = vunpack.c.h.b16 %v453
    %v3942 = vunpack.c.l.b16 %v454
    %v3943 = vunpack.c.h.b16 %v454
    %v3944 = vunpack.c.l.b16 %v455
    %v3945 = vunpack.c.h.b16 %v455
    %v3946 = vunpack.c.l.b16 %v456
    %v3947 = vunpack.c.h.b16 %v456
    %v3948 = vunpack.c.l.b16 %v457
    %v3949 = vunpack.c.h.b16 %v457
    %v3950 = vunpack.c.l.b16 %v458
    %v3951 = vunpack.c.h.b16 %v458
    %v3952 = vunpack.c.l.b16 %v459
    %v3953 = vunpack.c.h.b16 %v459
    %v3954 = vunpack.c.l.b16 %v460
    %v3955 = vunpack.c.h.b16 %v460
    %v3956 = vunpack.c.l.b16 %v461
    %v3957 = vunpack.c.h.b16 %v461
    %v3958 = vunpack.c.l.b16 %v462
    %v3959 = vunpack.c.h.b16 %v462
    %v3960 = vunpack.c.l.b16 %v463
    %v3961 = vunpack.c.h.b16 %v463
    %v3962 = vunpack.c.l.b16 %v464
    %v3963 = vunpack.c.h.b16 %v464
    %v3964 = vunpack.c.l.b16 %v465
    %v3965 = vunpack.c.h.b16 %v465
    %v3966 = vunpack.c.l.b16 %v466
    %v3967 = vunpack.c.h.b16 %v466
    %v3968 = vunpack.c.l.b16 %v467
    %v3969 = vunpack.c.h.b16 %v467
    %v3970 = vunpack.c.l.b16 %v468
    %v3971 = vunpack.c.h.b16 %v468
    %v3972 = vunpack.c.l.b16 %v469
    %v3973 = vunpack.c.h.b16 %v469
    %v3974 = vunpack.c.l.b16 %v470
    %v3975 = vunpack.c.h.b16 %v470
    %v3976 = vunpack.c.l.b16 %v471
    %v3977 = vunpack.c.h.b16 %v471
    %v3978 = vunpack.c.l.b16 %v472
    %v3979 = vunpack.c.h.b16 %v472
    %v3980 = vunpack.c.l.b16 %v473
    %v3981 = vunpack.c.h.b16 %v473
    %v3982 = vunpack.c.l.b16 %v474
    %v3983 = vunpack.c.h.b16 %v474
    %v3984 = vunpack.c.l.b16 %v475
    %v3985 = vunpack.c.h.b16 %v475
    %v3986 = vunpack.c.l.b16 %v476
    %v3987 = vunpack.c.h.b16 %v476
    %v3988 = vunpack.c.l.b16 %v477
    %v3989 = vunpack.c.h.b16 %v477
    %v3990 = vunpack.c.l.b16 %v478
    %v3991 = vunpack.c.h.b16 %v478
    %v3992 = vunpack.c.l.b16 %v479
    %v3993 = vunpack.c.h.b16 %v479
    %v3994 = vunpack.c.l.b16 %v480
    %v3995 = vunpack.c.h.b16 %v480
    %v3996 = vunpack.c.l.b16 %v481
    %v3997 = vunpack.c.h.b16 %v481
    %v3998 = vunpack.c.l.b16 %v482
    %v3999 = vunpack.c.h.b16 %v482
    %v4000 = vunpack.c.l.b16 %v483
    %v4001 = vunpack.c.h.b16 %v483
    %v4002 = vunpack.c.l.b16 %v484
    %v4003 = vunpack.c.h.b16 %v484
    %v4004 = vunpack.c.l.b16 %v485
    %v4005 = vunpack.c.h.b16 %v485
    %v4006 = vunpack.c.l.b16 %v486
    %v4007 = vunpack.c.h.b16 %v486
    %v4008 = vunpack.c.l.b16 %v487
    %v4009 = vunpack.c.h.b16 %v487
    %v4010 = vunpack.c.l.b16 %v488
    %v4011 = vunpack.c.h.b16 %v488
    %v4012 = vunpack.c.l.b16 %v489
    %v4013 = vunpack.c.h.b16 %v489
    %v4014 = vunpack.c.l.b16 %v490
    %v4015 = vunpack.c.h.b16 %v490
    %v4016 = vunpack.c.l.b16 %v491
    %v4017 = vunpack.c.h.b16 %v491
    %v4018 = vunpack.c.l.b16 %v492
    %v4019 = vunpack.c.h.b16 %v492
    %v4020 = vunpack.c.l.b16 %v493
    %v4021 = vunpack.c.h.b16 %v493
    %v4022 = vunpack.c.l.b16 %v494
    %v4023 = vunpack.c.h.b16 %v494
    %v4024 = vunpack.c.l.b16 %v495
    %v4025 = vunpack.c.h.b16 %v495
    %v4026 = vunpack.c.l.b16 %v496
    %v4027 = vunpack.c.h.b16 %v496
    %v4028 = vunpack.c.l.b16 %v497
    %v4029 = vunpack.c.h.b16 %v497
    %v4030 = vunpack.c.l.b16 %v498
    %v4031 = vunpack.c.h.b16 %v498
    %v4032 = vunpack.c.l.b16 %v499
    %v4033 = vunpack.c.h.b16 %v499
    %v4034 = vunpack.c.l.b16 %v500
    %v4035 = vunpack.c.h.b16 %v500
    %v4036 = vunpack.c.l.b16 %v501
    %v4037 = vunpack.c.h.b16 %v501
    %v4038 = vunpack.c.l.b16 %v502
    %v4039 = vunpack.c.h.b16 %v502
    %v4040 = vunpack.c.l.b16 %v503
    %v4041 = vunpack.c.h.b16 %v503
    %v4042 = vunpack.c.l.b16 %v504
    %v4043 = vunpack.c.h.b16 %v504
    %v4044 = vunpack.c.l.b16 %v505
    %v4045 = vunpack.c.h.b16 %v505
    %v4046 = vunpack.c.l.b16 %v506
    %v4047 = vunpack.c.h.b16 %v506
    %v4048 = vunpack.c.l.b16 %v507
    %v4049 = vunpack.c.h.b16 %v507
    %v4050 = vunpack.c.l.b16 %v508
    %v4051 = vunpack.c.h.b16 %v508
    %v4052 = vunpack.c.l.b16 %v509
    %v4053 = vunpack.c.h.b16 %v509
    %v4054 = vunpack.c.l.b16 %v510
    %v4055 = vunpack.c.h.b16 %v510
    %v4056 = vunpack.c.l.b16 %v511
    %v4057 = vunpack.c.h.b16 %v511
    %v4058 = vunpack.c.l.b16 %v512
    %v4059 = vunpack.c.h.b16 %v512
    %v4060 = vunpack.c.l.b16 %v513
    %v4061 = vunpack.c.h.b16 %v513
    %v4062 = vunpack.c.l.b16 %v514
    %v4063 = vunpack.c.h.b16 %v514
    %v4064 = vunpack.c.l.b16 %v515
    %v4065 = vunpack.c.h.b16 %v515
    %v4066 = vunpack.c.l.b16 %v516
    %v4067 = vunpack.c.h.b16 %v516
    %v4068 = vunpack.c.l.b16 %v517
    %v4069 = vunpack.c.h.b16 %v517
    %v4070 = vunpack.c.l.b16 %v518
    %v4071 = vunpack.c.h.b16 %v518
    %v4072 = vunpack.c.l.b16 %v519
    %v4073 = vunpack.c.h.b16 %v519
    %v4074 = vunpack.c.l.b16 %v520
    %v4075 = vunpack.c.h.b16 %v520
    %v4076 = vunpack.c.l.b16 %v521
    %v4077 = vunpack.c.h.b16 %v521
    %v4078 = vunpack.c.l.b16 %v522
    %v4079 = vunpack.c.h.b16 %v522
    %v4080 = vunpack.c.l.b16 %v523
    %v4081 = vunpack.c.h.b16 %v523
    %v4082 = vunpack.c.l.b16 %v524
    %v4083 = vunpack.c.h.b16 %v524
    %v4084 = vunpack.c.l.b16 %v525
    %v4085 = vunpack.c.h.b16 %v525
    %v4086 = vunpack.c.l.b16 %v526
    %v4087 = vunpack.c.h.b16 %v526
    %v4088 = vunpack.c.l.b16 %v527
    %v4089 = vunpack.c.h.b16 %v527
    %v4090 = vunpack.c.l.b16 %v528
    %v4091 = vunpack.c.h.b16 %v528
    %v4092 = vunpack.c.l.b16 %v529
    %v4093 = vunpack.c.h.b16 %v529
    %v4094 = vunpack.c.l.b16 %v530
    %v4095 = vunpack.c.h.b16 %v530
    %v4096 = vunpack.c.l.b16 %v531
    %v4097 = vunpack.c.h.b16 %v531
    %v4098 = vunpack.c.l.b16 %v532
    %v4099 = vunpack.c.h.b16 %v532
    %v4100 = vunpack.c.l.b16 %v533
    %v4101 = vunpack.c.h.b16 %v533
    %v4102 = vunpack.c.l.b16 %v534
    %v4103 = vunpack.c.h.b16 %v534
    %v4104 = vunpack.c.l.b16 %v535
    %v4105 = vunpack.c.h.b16 %v535
    %v4106 = vunpack.c.l.b16 %v536
    %v4107 = vunpack.c.h.b16 %v536
    %v4108 = vunpack.c.l.b16 %v537
    %v4109 = vunpack.c.h.b16 %v537
    %v4110 = vunpack.c.l.b16 %v538
    %v4111 = vunpack.c.h.b16 %v538
    %v4112 = vunpack.c.l.b16 %v539
    %v4113 = vunpack.c.h.b16 %v539
    %v4114 = vunpack.c.l.b16 %v540
    %v4115 = vunpack.c.h.b16 %v540
    %v4116 = vunpack.c.l.b16 %v541
    %v4117 = vunpack.c.h.b16 %v541
    %v4118 = vunpack.c.l.b16 %v542
    %v4119 = vunpack.c.h.b16 %v542
    %v4120 = vunpack.c.l.b16 %v543
    %v4121 = vunpack.c.h.b16 %v543
    %v4122 = vunpack.c.l.b16 %v544
    %v4123 = vunpack.c.h.b16 %v544
    %v4124 = vunpack.c.l.b16 %v545
    %v4125 = vunpack.c.h.b16 %v545
    %v4126 = vunpack.c.l.b16 %v546
    %v4127 = vunpack.c.h.b16 %v546
    %v4128 = vunpack.c.l.b16 %v547
    %v4129 = vunpack.c.h.b16 %v547
    %v4130 = vunpack.c.l.b16 %v548
    %v4131 = vunpack.c.h.b16 %v548
    %v4132 = vunpack.c.l.b16 %v549
    %v4133 = vunpack.c.h.b16 %v549
    %v4134 = vunpack.c.l.b16 %v550
    %v4135 = vunpack.c.h.b16 %v550
    %v4136 = vunpack.c.l.b16 %v551
    %v4137 = vunpack.c.h.b16 %v551
    %v4138 = vunpack.c.l.b16 %v552
    %v4139 = vunpack.c.h.b16 %v552
    %v4140 = vunpack.c.l.b16 %v553
    %v4141 = vunpack.c.h.b16 %v553
    %v4142 = vunpack.c.l.b16 %v554
    %v4143 = vunpack.c.h.b16 %v554
    %v4144 = vunpack.c.l.b16 %v555
    %v4145 = vunpack.c.h.b16 %v555
    %v4146 = vunpack.c.l.b16 %v556
    %v4147 = vunpack.c.h.b16 %v556
    %v4148 = vunpack.c.l.b16 %v557
    %v4149 = vunpack.c.h.b16 %v557
    %v4150 = vunpack.c.l.b16 %v558
    %v4151 = vunpack.c.h.b16 %v558
    %v4152 = vunpack.c.l.b16 %v559
    %v4153 = vunpack.c.h.b16 %v559
    %v4154 = vunpack.c.l.b16 %v560
    %v4155 = vunpack.c.h.b16 %v560
    %v4156 = vunpack.c.l.b16 %v561
    %v4157 = vunpack.c.h.b16 %v561
    %v4158 = vunpack.c.l.b16 %v562
    %v4159 = vunpack.c.h.b16 %v562
    %v4160 = vunpack.c.l.b16 %v563
    %v4161 = vunpack.c.h.b16 %v563
    %v4162 = vunpack.c.l.b16 %v564
    %v4163 = vunpack.c.h.b16 %v564
    %v4164 = vunpack.c.l.b16 %v565
    %v4165 = vunpack.c.h.b16 %v565
    %v4166 = vunpack.c.l.b16 %v566
    %v4167 = vunpack.c.h.b16 %v566
    %v4168 = vunpack.c.l.b16 %v567
    %v4169 = vunpack.c.h.b16 %v567
    %v4170 = vunpack.c.l.b16 %v568
    %v4171 = vunpack.c.h.b16 %v568
    %v4172 = vunpack.c.l.b16 %v569
    %v4173 = vunpack.c.h.b16 %v569
    %v4174 = vunpack.c.l.b16 %v570
    %v4175 = vunpack.c.h.b16 %v570
    %v4176 = vunpack.c.l.b16 %v571
    %v4177 = vunpack.c.h.b16 %v571
    %v4178 = vunpack.c.l.b16 %v572
    %v4179 = vunpack.c.h.b16 %v572
    %v4180 = vunpack.c.l.b16 %v573
    %v4181 = vunpack.c.h.b16 %v573
    %v4182 = vunpack.c.l.b16 %v574
    %v4183 = vunpack.c.h.b16 %v574
    %v4184 = vunpack.c.l.b16 %v575
    %v4185 = vunpack.c.h.b16 %v575
    %v4186 = vunpack.c.l.b16 %v576
    %v4187 = vunpack.c.h.b16 %v576
    %v4188 = vunpack.c.l.b16 %v577
    %v4189 = vunpack.c.h.b16 %v577
    %v4190 = vunpack.c.l.b16 %v578
    %v4191 = vunpack.c.h.b16 %v578
    %v4192 = vunpack.c.l.b16 %v579
    %v4193 = vunpack.c.h.b16 %v579
    %v4194 = vunpack.c.l.b16 %v580
    %v4195 = vunpack.c.h.b16 %v580
    %v4196 = vunpack.c.l.b16 %v581
    %v4197 = vunpack.c.h.b16 %v581
    %v4198 = vunpack.c.l.b16 %v582
    %v4199 = vunpack.c.h.b16 %v582
    %v4200 = vunpack.c.l.b16 %v583
    %v4201 = vunpack.c.h.b16 %v583
    %v4202 = vunpack.c.l.b16 %v584
    %v4203 = vunpack.c.h.b16 %v584
    %v4204 = vunpack.c.l.b16 %v585
    %v4205 = vunpack.c.h.b16 %v585
    %v4206 = vunpack.c.l.b16 %v586
    %v4207 = vunpack.c.h.b16 %v586
    %v4208 = vunpack.c.l.b16 %v587
    %v4209 = vunpack.c.h.b16 %v587
    %v4210 = vunpack.c.l.b16 %v588
    %v4211 = vunpack.c.h.b16 %v588
    %v4212 = vunpack.c.l.b16 %v589
    %v4213 = vunpack.c.h.b16 %v589
    %v4214 = vunpack.c.l.b16 %v590
    %v4215 = vunpack.c.h.b16 %v590
    %v4216 = vunpack.c.l.b16 %v591
    %v4217 = vunpack.c.h.b16 %v591
    %v4218 = vunpack.c.l.b16 %v592
    %v4219 = vunpack.c.h.b16 %v592
    %v4220 = vunpack.c.l.b16 %v593
    %v4221 = vunpack.c.h.b16 %v593
    %v4222 = vunpack.c.l.b16 %v594
    %v4223 = vunpack.c.h.b16 %v594
    %v4224 = vunpack.c.l.b16 %v595
    %v4225 = vunpack.c.h.b16 %v595
    %v4226 = vunpack.c.l.b16 %v596
    %v4227 = vunpack.c.h.b16 %v596
    %v4228 = vunpack.c.l.b16 %v597
    %v4229 = vunpack.c.h.b16 %v597
    %v4230 = vunpack.c.l.b16 %v598
    %v4231 = vunpack.c.h.b16 %v598
    %v4232 = vunpack.c.l.b16 %v599
    %v4233 = vunpack.c.h.b16 %v599
    %v4234 = vunpack.c.l.b16 %v600
    %v4235 = vunpack.c.h.b16 %v600
    %v4236 = vunpack.c.l.b16 %v601
    %v4237 = vunpack.c.h.b16 %v601
    %v4238 = vunpack.c.l.b16 %v602
    %v4239 = vunpack.c.h.b16 %v602
    %v4240 = vunpack.c.l.b16 %v603
    %v4241 = vunpack.c.h.b16 %v603
    %v4242 = vunpack.c.l.b16 %v604
    %v4243 = vunpack.c.h.b16 %v604
    %v4244 = vunpack.c.l.b16 %v605
    %v4245 = vunpack.c.h.b16 %v605
    %v4246 = vunpack.c.l.b16 %v606
    %v4247 = vunpack.c.h.b16 %v606
    %v4248 = vunpack.c.l.b16 %v607
    %v4249 = vunpack.c.h.b16 %v607
    %v4250 = vunpack.c.l.b16 %v608
    %v4251 = vunpack.c.h.b16 %v608
    %v4252 = vunpack.c.l.b16 %v609
    %v4253 = vunpack.c.h.b16 %v609
    %v4254 = vunpack.c.l.b16 %v610
    %v4255 = vunpack.c.h.b16 %v610
    %v4256 = vunpack.c.l.b16 %v611
    %v4257 = vunpack.c.h.b16 %v611
    %v4258 = vunpack.c.l.b16 %v612
    %v4259 = vunpack.c.h.b16 %v612
    %v4260 = vunpack.c.l.b16 %v613
    %v4261 = vunpack.c.h.b16 %v613
    %v4262 = vunpack.c.l.b16 %v614
    %v4263 = vunpack.c.h.b16 %v614
    %v4264 = vunpack.c.l.b16 %v615
    %v4265 = vunpack.c.h.b16 %v615
    %v4266 = vunpack.c.l.b16 %v616
    %v4267 = vunpack.c.h.b16 %v616
    %v4268 = vunpack.c.l.b16 %v617
    %v4269 = vunpack.c.h.b16 %v617
    %v4270 = vunpack.c.l.b16 %v618
    %v4271 = vunpack.c.h.b16 %v618
    %v4272 = vunpack.c.l.b16 %v619
    %v4273 = vunpack.c.h.b16 %v619
    %v4274 = vunpack.c.l.b16 %v620
    %v4275 = vunpack.c.h.b16 %v620
    %v4276 = vunpack.c.l.b16 %v621
    %v4277 = vunpack.c.h.b16 %v621
    %v4278 = vunpack.c.l.b16 %v622
    %v4279 = vunpack.c.h.b16 %v622
    %v4280 = vunpack.c.l.b16 %v623
    %v4281 = vunpack.c.h.b16 %v623
    %v4282 = vunpack.c.l.b16 %v624
    %v4283 = vunpack.c.h.b16 %v624
    %v4284 = vunpack.c.l.b16 %v625
    %v4285 = vunpack.c.h.b16 %v625
    %v4286 = vunpack.c.l.b16 %v626
    %v4287 = vunpack.c.h.b16 %v626
    %v4288 = vunpack.c.l.b16 %v627
    %v4289 = vunpack.c.h.b16 %v627
    %v4290 = vunpack.c.l.b16 %v628
    %v4291 = vunpack.c.h.b16 %v628
    %v4292 = vunpack.c.l.b16 %v629
    %v4293 = vunpack.c.h.b16 %v629
    %v4294 = vunpack.c.l.b16 %v630
    %v4295 = vunpack.c.h.b16 %v630
    %v4296 = vunpack.c.l.b16 %v631
    %v4297 = vunpack.c.h.b16 %v631
    %v4298 = vunpack.c.l.b16 %v632
    %v4299 = vunpack.c.h.b16 %v632
    %v4300 = vunpack.c.l.b16 %v633
    %v4301 = vunpack.c.h.b16 %v633
    %v4302 = vunpack.c.l.b16 %v634
    %v4303 = vunpack.c.h.b16 %v634
    %v4304 = vunpack.c.l.b16 %v635
    %v4305 = vunpack.c.h.b16 %v635
    %v4306 = vunpack.c.l.b16 %v636
    %v4307 = vunpack.c.h.b16 %v636
    %v4308 = vunpack.c.l.b16 %v637
    %v4309 = vunpack.c.h.b16 %v637
    %v4310 = vunpack.c.l.b16 %v638
    %v4311 = vunpack.c.h.b16 %v638
    %v4312 = vunpack.c.l.b16 %v639
    %v4313 = vunpack.c.h.b16 %v639
    %v4314 = vunpack.c.l.b16 %v640
    %v4315 = vunpack.c.h.b16 %v640
    %v4316 = vunpack.c.l.b16 %v641
    %v4317 = vunpack.c.h.b16 %v641
    %v4318 = vunpack.c.l.b16 %v642
    %v4319 = vunpack.c.h.b16 %v642
    %v4320 = vunpack.c.l.b16 %v643
    %v4321 = vunpack.c.h.b16 %v643
    %v4322 = vunpack.c.l.b16 %v644
    %v4323 = vunpack.c.h.b16 %v644
    %v4324 = vunpack.c.l.b16 %v645
    %v4325 = vunpack.c.h.b16 %v645
    %v4326 = vunpack.c.l.b16 %v646
    %v4327 = vunpack.c.h.b16 %v646
    %v4328 = vunpack.c.l.b16 %v647
    %v4329 = vunpack.c.h.b16 %v647
    %v4330 = vunpack.c.l.b16 %v648
    %v4331 = vunpack.c.h.b16 %v648
    %v4332 = vunpack.c.l.b16 %v649
    %v4333 = vunpack.c.h.b16 %v649
    %v4334 = vunpack.c.l.b16 %v650
    %v4335 = vunpack.c.h.b16 %v650
    %v4336 = vunpack.c.l.b16 %v651
    %v4337 = vunpack.c.h.b16 %v651
    %v4338 = vunpack.c.l.b16 %v652
    %v4339 = vunpack.c.h.b16 %v652
    %v4340 = vunpack.c.l.b16 %v653
    %v4341 = vunpack.c.h.b16 %v653
    %v4342 = vunpack.c.l.b16 %v654
    %v4343 = vunpack.c.h.b16 %v654
    %v4344 = vunpack.c.l.b16 %v655
    %v4345 = vunpack.c.h.b16 %v655
    %v4346 = vunpack.c.l.b16 %v656
    %v4347 = vunpack.c.h.b16 %v656
    %v4348 = vunpack.c.l.b16 %v657
    %v4349 = vunpack.c.h.b16 %v657
    %v4350 = vunpack.c.l.b16 %v658
    %v4351 = vunpack.c.h.b16 %v658
    %v4352 = vunpack.c.l.b16 %v659
    %v4353 = vunpack.c.h.b16 %v659
    %v4354 = vunpack.c.l.b16 %v660
    %v4355 = vunpack.c.h.b16 %v660
    %v4356 = vunpack.c.l.b16 %v661
    %v4357 = vunpack.c.h.b16 %v661
    %v4358 = vunpack.c.l.b16 %v662
    %v4359 = vunpack.c.h.b16 %v662
    %v4360 = vunpack.c.l.b16 %v663
    %v4361 = vunpack.c.h.b16 %v663
    %v4362 = vunpack.c.l.b16 %v664
    %v4363 = vunpack.c.h.b16 %v664
    %v4364 = vunpack.c.l.b16 %v665
    %v4365 = vunpack.c.h.b16 %v665
    %v4366 = vunpack.c.l.b16 %v666
    %v4367 = vunpack.c.h.b16 %v666
    %v4368 = vunpack.c.l.b16 %v667
    %v4369 = vunpack.c.h.b16 %v667
    %v4370 = vunpack.c.l.b16 %v668
    %v4371 = vunpack.c.h.b16 %v668
    %v4372 = vunpack.c.l.b16 %v669
    %v4373 = vunpack.c.h.b16 %v669
    %v4374 = vunpack.c.l.b16 %v670
    %v4375 = vunpack.c.h.b16 %v670
    %v4376 = vunpack.c.l.b16 %v671
    %v4377 = vunpack.c.h.b16 %v671
    %v4378 = vunpack.c.l.b16 %v672
    %v4379 = vunpack.c.h.b16 %v672
    %v4380 = vunpack.c.l.b16 %v673
    %v4381 = vunpack.c.h.b16 %v673
    %v4382 = vunpack.c.l.b16 %v674
    %v4383 = vunpack.c.h.b16 %v674
    %v4384 = vunpack.c.l.b16 %v675
    %v4385 = vunpack.c.h.b16 %v675
    %v4386 = vunpack.c.l.b16 %v676
    %v4387 = vunpack.c.h.b16 %v676
    %v4388 = vunpack.c.l.b16 %v677
    %v4389 = vunpack.c.h.b16 %v677
    %v4390 = vunpack.c.l.b16 %v678
    %v4391 = vunpack.c.h.b16 %v678
    %v4392 = vunpack.c.l.b16 %v679
    %v4393 = vunpack.c.h.b16 %v679
    %v4394 = vunpack.c.l.b16 %v680
    %v4395 = vunpack.c.h.b16 %v680
    %v4396 = vunpack.c.l.b16 %v681
    %v4397 = vunpack.c.h.b16 %v681
    %v4398 = vunpack.c.l.b16 %v682
    %v4399 = vunpack.c.h.b16 %v682
    %v4400 = vunpack.c.l.b16 %v683
    %v4401 = vunpack.c.h.b16 %v683
    %v4402 = vunpack.c.l.b16 %v684
    %v4403 = vunpack.c.h.b16 %v684
    %v4404 = vunpack.c.l.b16 %v685
    %v4405 = vunpack.c.h.b16 %v685
    %v4406 = vunpack.c.l.b16 %v686
    %v4407 = vunpack.c.h.b16 %v686
    %v4408 = vunpack.c.l.b16 %v687
    %v4409 = vunpack.c.h.b16 %v687
    %v4410 = vunpack.c.l.b16 %v688
    %v4411 = vunpack.c.h.b16 %v688
    %v4412 = vunpack.c.l.b16 %v689
    %v4413 = vunpack.c.h.b16 %v689
    %v4414 = vunpack.c.l.b16 %v690
    %v4415 = vunpack.c.h.b16 %v690
    %v4416 = vunpack.c.l.b16 %v691
    %v4417 = vunpack.c.h.b16 %v691
    %v4418 = vunpack.c.l.b16 %v692
    %v4419 = vunpack.c.h.b16 %v692
    %v4420 = vunpack.c.l.b16 %v693
    %v4421 = vunpack.c.h.b16 %v693
    %v4422 = vunpack.c.l.b16 %v694
    %v4423 = vunpack.c.h.b16 %v694
    %v4424 = vunpack.c.l.b16 %v695
    %v4425 = vunpack.c.h.b16 %v695
    %v4426 = vunpack.c.l.b16 %v696
    %v4427 = vunpack.c.h.b16 %v696
    %v4428 = vunpack.c.l.b16 %v697
    %v4429 = vunpack.c.h.b16 %v697
    %v4430 = vunpack.c.l.b16 %v698
    %v4431 = vunpack.c.h.b16 %v698
    %v4432 = vunpack.c.l.b16 %v699
    %v4433 = vunpack.c.h.b16 %v699
    %v4434 = vunpack.c.l.b16 %v700
    %v4435 = vunpack.c.h.b16 %v700
    %v4436 = vunpack.c.l.b16 %v701
    %v4437 = vunpack.c.h.b16 %v701
    %v4438 = vunpack.c.l.b16 %v702
    %v4439 = vunpack.c.h.b16 %v702
    %v4440 = vunpack.c.l.b16 %v703
    %v4441 = vunpack.c.h.b16 %v703
    %v4442 = vunpack.c.l.b16 %v704
    %v4443 = vunpack.c.h.b16 %v704
    %v4444 = vunpack.c.l.b16 %v705
    %v4445 = vunpack.c.h.b16 %v705
    %v4446 = vunpack.c.l.b16 %v706
    %v4447 = vunpack.c.h.b16 %v706
    %v4448 = vunpack.c.l.b16 %v707
    %v4449 = vunpack.c.h.b16 %v707
    %v4450 = vunpack.c.l.b16 %v708
    %v4451 = vunpack.c.h.b16 %v708
    %v4452 = vunpack.c.l.b16 %v709
    %v4453 = vunpack.c.h.b16 %v709
    %v4454 = vunpack.c.l.b16 %v710
    %v4455 = vunpack.c.h.b16 %v710
    %v4456 = vunpack.c.l.b16 %v711
    %v4457 = vunpack.c.h.b16 %v711
    %v4458 = vunpack.c.l.b16 %v712
    %v4459 = vunpack.c.h.b16 %v712
    %v4460 = vunpack.c.l.b16 %v713
    %v4461 = vunpack.c.h.b16 %v713
    %v4462 = vunpack.c.l.b16 %v714
    %v4463 = vunpack.c.h.b16 %v714
    %v4464 = vunpack.c.l.b16 %v715
    %v4465 = vunpack.c.h.b16 %v715
    %v4466 = vunpack.c.l.b16 %v716
    %v4467 = vunpack.c.h.b16 %v716
    %v4468 = vunpack.c.l.b16 %v717
    %v4469 = vunpack.c.h.b16 %v717
    %v4470 = vunpack.c.l.b16 %v718
    %v4471 = vunpack.c.h.b16 %v718
    %v4472 = vunpack.c.l.b16 %v719
    %v4473 = vunpack.c.h.b16 %v719
    %v4474 = vunpack.c.l.b16 %v720
    %v4475 = vunpack.c.h.b16 %v720
    %v4476 = vunpack.c.l.b16 %v721
    %v4477 = vunpack.c.h.b16 %v721
    %v4478 = vunpack.c.l.b16 %v722
    %v4479 = vunpack.c.h.b16 %v722
    %v4480 = vunpack.c.l.b16 %v723
    %v4481 = vunpack.c.h.b16 %v723
    %v4482 = vunpack.c.l.b16 %v724
    %v4483 = vunpack.c.h.b16 %v724
    %v4484 = vunpack.c.l.b16 %v725
    %v4485 = vunpack.c.h.b16 %v725
    %v4486 = vunpack.c.l.b16 %v726
    %v4487 = vunpack.c.h.b16 %v726
    %v4488 = vunpack.c.l.b16 %v727
    %v4489 = vunpack.c.h.b16 %v727
    %v4490 = vunpack.c.l.b16 %v728
    %v4491 = vunpack.c.h.b16 %v728
    %v4492 = vunpack.c.l.b16 %v729
    %v4493 = vunpack.c.h.b16 %v729
    %v4494 = vunpack.c.l.b16 %v730
    %v4495 = vunpack.c.h.b16 %v730
    %v4496 = vunpack.c.l.b16 %v731
    %v4497 = vunpack.c.h.b16 %v731
    %v4498 = vunpack.c.l.b16 %v732
    %v4499 = vunpack.c.h.b16 %v732
    %v4500 = vunpack.c.l.b16 %v733
    %v4501 = vunpack.c.h.b16 %v733
    %v4502 = vunpack.c.l.b16 %v734
    %v4503 = vunpack.c.h.b16 %v734
    %v4504 = vunpack.c.l.b16 %v735
    %v4505 = vunpack.c.h.b16 %v735
    %v4506 = vunpack.c.l.b16 %v736
    %v4507 = vunpack.c.h.b16 %v736
    %v4508 = vunpack.c.l.b16 %v737
    %v4509 = vunpack.c.h.b16 %v737
    %v4510 = vunpack.c.l.b16 %v738
    %v4511 = vunpack.c.h.b16 %v738
    %v4512 = vunpack.c.l.b16 %v739
    %v4513 = vunpack.c.h.b16 %v739
    %v4514 = vunpack.c.l.b16 %v740
    %v4515 = vunpack.c.h.b16 %v740
    %v4516 = vunpack.c.l.b16 %v741
    %v4517 = vunpack.c.h.b16 %v741
    %v4518 = vunpack.c.l.b16 %v742
    %v4519 = vunpack.c.h.b16 %v742
    %v4520 = vunpack.c.l.b16 %v743
    %v4521 = vunpack.c.h.b16 %v743
    %v4522 = vunpack.c.l.b16 %v744
    %v4523 = vunpack.c.h.b16 %v744
    %v4524 = vunpack.c.l.b16 %v745
    %v4525 = vunpack.c.h.b16 %v745
    %v4526 = vunpack.c.l.b16 %v746
    %v4527 = vunpack.c.h.b16 %v746
    %v4528 = vunpack.c.l.b16 %v747
    %v4529 = vunpack.c.h.b16 %v747
    %v4530 = vunpack.c.l.b16 %v748
    %v4531 = vunpack.c.h.b16 %v748
    %v4532 = vunpack.c.l.b16 %v749
    %v4533 = vunpack.c.h.b16 %v749
    %v4534 = vunpack.c.l.b16 %v750
    %v4535 = vunpack.c.h.b16 %v750
    %v4536 = vunpack.c.l.b16 %v751
    %v4537 = vunpack.c.h.b16 %v751
    %v4538 = vunpack.c.l.b16 %v752
    %v4539 = vunpack.c.h.b16 %v752
    %v4540 = vunpack.c.l.b16 %v753
    %v4541 = vunpack.c.h.b16 %v753
    %v4542 = vunpack.c.l.b16 %v754
    %v4543 = vunpack.c.h.b16 %v754
    %v4544 = vunpack.c.l.b16 %v755
    %v4545 = vunpack.c.h.b16 %v755
    %v4546 = vunpack.c.l.b16 %v756
    %v4547 = vunpack.c.h.b16 %v756
    %v4548 = vunpack.c.l.b16 %v757
    %v4549 = vunpack.c.h.b16 %v757
    %v4550 = vunpack.c.l.b16 %v758
    %v4551 = vunpack.c.h.b16 %v758
    %v4552 = vunpack.c.l.b16 %v759
    %v4553 = vunpack.c.h.b16 %v759
    %v4554 = vunpack.c.l.b16 %v760
    %v4555 = vunpack.c.h.b16 %v760
    %v4556 = vunpack.c.l.b16 %v761
    %v4557 = vunpack.c.h.b16 %v761
    %v4558 = vunpack.c.l.b16 %v762
    %v4559 = vunpack.c.h.b16 %v762
    %v4560 = vunpack.c.l.b16 %v763
    %v4561 = vunpack.c.h.b16 %v763
    %v4562 = vunpack.c.l.b16 %v764
    %v4563 = vunpack.c.h.b16 %v764
    %v4564 = vunpack.c.l.b16 %v765
    %v4565 = vunpack.c.h.b16 %v765
    %v4566 = vunpack.c.l.b16 %v766
    %v4567 = vunpack.c.h.b16 %v766
    %v4568 = vunpack.c.l.b16 %v767
    %v4569 = vunpack.c.h.b16 %v767
    %v4570 = vunpack.c.l.b16 %v768
    %v4571 = vunpack.c.h.b16 %v768
    %v4572 = vunpack.c.l.b16 %v769
    %v4573 = vunpack.c.h.b16 %v769
    %v4574 = vunpack.c.l.b16 %v770
    %v4575 = vunpack.c.h.b16 %v770
    %v4576 = vunpack.c.l.b16 %v771
    %v4577 = vunpack.c.h.b16 %v771
    %v4578 = vunpack.c.l.b16 %v772
    %v4579 = vunpack.c.h.b16 %v772
    %v4580 = vunpack.c.l.b16 %v773
    %v4581 = vunpack.c.h.b16 %v773
    %v4582 = vunpack.c.l.b16 %v774
    %v4583 = vunpack.c.h.b16 %v774
    %v4584 = vunpack.c.l.b16 %v775
    %v4585 = vunpack.c.h.b16 %v775
    %v4586 = vunpack.c.l.b16 %v776
    %v4587 = vunpack.c.h.b16 %v776
    %v4588 = vunpack.c.l.b16 %v777
    %v4589 = vunpack.c.h.b16 %v777
    %v4590 = vunpack.c.l.b16 %v778
    %v4591 = vunpack.c.h.b16 %v778
    %v4592 = vunpack.c.l.b16 %v779
    %v4593 = vunpack.c.h.b16 %v779
    %v4594 = vunpack.c.l.b16 %v780
    %v4595 = vunpack.c.h.b16 %v780
    %v4596 = vunpack.c.l.b16 %v781
    %v4597 = vunpack.c.h.b16 %v781
    %v4598 = vunpack.c.l.b16 %v782
    %v4599 = vunpack.c.h.b16 %v782
    %v4600 = vunpack.c.l.b16 %v783
    %v4601 = vunpack.c.h.b16 %v783
    %v4602 = vunpack.c.l.b16 %v784
    %v4603 = vunpack.c.h.b16 %v784
    %v4604 = vunpack.c.l.b16 %v785
    %v4605 = vunpack.c.h.b16 %v785
    %v4606 = vunpack.c.l.b16 %v786
    %v4607 = vunpack.c.h.b16 %v786
    %v4608 = vunpack.c.l.b16 %v787
    %v4609 = vunpack.c.h.b16 %v787
    %v4610 = vunpack.c.l.b16 %v788
    %v4611 = vunpack.c.h.b16 %v788
    %v4612 = vunpack.c.l.b16 %v789
    %v4613 = vunpack.c.h.b16 %v789
    %v4614 = vunpack.c.l.b16 %v790
    %v4615 = vunpack.c.h.b16 %v790
    %v4616 = vunpack.c.l.b16 %v791
    %v4617 = vunpack.c.h.b16 %v791
    %v4618 = vunpack.c.l.b16 %v792
    %v4619 = vunpack.c.h.b16 %v792
    %v4620 = vunpack.c.l.b16 %v793
    %v4621 = vunpack.c.h.b16 %v793
    %v4622 = vunpack.c.l.b16 %v794
    %v4623 = vunpack.c.h.b16 %v794
    %v4624 = vunpack.c.l.b16 %v795
    %v4625 = vunpack.c.h.b16 %v795
    %v4626 = vunpack.c.l.b16 %v796
    %v4627 = vunpack.c.h.b16 %v796
    %v4628 = vunpack.c.l.b16 %v797
    %v4629 = vunpack.c.h.b16 %v797
    %v4630 = vunpack.c.l.b16 %v798
    %v4631 = vunpack.c.h.b16 %v798
    %v4632 = vunpack.c.l.b16 %v799
    %v4633 = vunpack.c.h.b16 %v799
    %v4634 = vunpack.c.l.b16 %v800
    %v4635 = vunpack.c.h.b16 %v800
    %v4636 = vunpack.c.l.b16 %v801
    %v4637 = vunpack.c.h.b16 %v801
    %v4638 = vunpack.c.l.b16 %v802
    %v4639 = vunpack.c.h.b16 %v802
    %v4640 = vunpack.c.l.b16 %v803
    %v4641 = vunpack.c.h.b16 %v803
    %v4642 = vunpack.c.l.b16 %v804
    %v4643 = vunpack.c.h.b16 %v804
    %v4644 = vunpack.c.l.b16 %v805
    %v4645 = vunpack.c.h.b16 %v805
    %v4646 = vunpack.c.l.b16 %v806
    %v4647 = vunpack.c.h.b16 %v806
    %v4648 = vunpack.c.l.b16 %v807
    %v4649 = vunpack.c.h.b16 %v807
    %v4650 = vunpack.c.l.b16 %v808
    %v4651 = vunpack.c.h.b16 %v808
    %v4652 = vunpack.c.l.b16 %v809
    %v4653 = vunpack.c.h.b16 %v809
    %v4654 = vunpack.c.l.b16 %v810
    %v4655 = vunpack.c.h.b16 %v810
    %v4656 = vunpack.c.l.b16 %v811
    %v4657 = vunpack.c.h.b16 %v811
    %v4658 = vunpack.c.l.b16 %v812
    %v4659 = vunpack.c.h.b16 %v812
    %v4660 = vunpack.c.l.b16 %v813
    %v4661 = vunpack.c.h.b16 %v813
    %v4662 = vunpack.c.l.b16 %v814
    %v4663 = vunpack.c.h.b16 %v814
    %v4664 = vunpack.c.l.b16 %v815
    %v4665 = vunpack.c.h.b16 %v815
    %v4666 = vunpack.c.l.b16 %v816
    %v4667 = vunpack.c.h.b16 %v816
    %v4668 = vunpack.c.l.b16 %v817
    %v4669 = vunpack.c.h.b16 %v817
    %v4670 = vunpack.c.l.b16 %v818
    %v4671 = vunpack.c.h.b16 %v818
    %v4672 = vunpack.c.l.b16 %v819
    %v4673 = vunpack.c.h.b16 %v819
    %v4674 = vunpack.c.l.b16 %v820
    %v4675 = vunpack.c.h.b16 %v820
    %v4676 = vunpack.c.l.b16 %v821
    %v4677 = vunpack.c.h.b16 %v821
    %v4678 = vunpack.c.l.b16 %v822
    %v4679 = vunpack.c.h.b16 %v822
    %v4680 = vunpack.c.l.b16 %v823
    %v4681 = vunpack.c.h.b16 %v823
    %v4682 = vunpack.c.l.b16 %v824
    %v4683 = vunpack.c.h.b16 %v824
    %v4684 = vunpack.c.l.b16 %v825
    %v4685 = vunpack.c.h.b16 %v825
    %v4686 = vunpack.c.l.b16 %v826
    %v4687 = vunpack.c.h.b16 %v826
    %v4688 = vunpack.c.l.b16 %v827
    %v4689 = vunpack.c.h.b16 %v827
    %v4690 = vunpack.c.l.b16 %v828
    %v4691 = vunpack.c.h.b16 %v828
    %v4692 = vunpack.c.l.b16 %v829
    %v4693 = vunpack.c.h.b16 %v829
    %v4694 = vunpack.c.l.b16 %v830
    %v4695 = vunpack.c.h.b16 %v830
    %v4696 = vunpack.c.l.b16 %v831
    %v4697 = vunpack.c.h.b16 %v831
    %v4698 = vunpack.c.l.b16 %v832
    %v4699 = vunpack.c.h.b16 %v832
    %v4700 = vunpack.c.l.b16 %v833
    %v4701 = vunpack.c.h.b16 %v833
    %v4702 = vunpack.c.l.b16 %v834
    %v4703 = vunpack.c.h.b16 %v834
    %v4704 = vunpack.c.l.b16 %v835
    %v4705 = vunpack.c.h.b16 %v835
    %v4706 = vunpack.c.l.b16 %v836
    %v4707 = vunpack.c.h.b16 %v836
    %v4708 = vunpack.c.l.b16 %v837
    %v4709 = vunpack.c.h.b16 %v837
    %v4710 = vunpack.c.l.b16 %v838
    %v4711 = vunpack.c.h.b16 %v838
    %v4712 = vunpack.c.l.b16 %v839
    %v4713 = vunpack.c.h.b16 %v839
    %v4714 = vunpack.c.l.b16 %v840
    %v4715 = vunpack.c.h.b16 %v840
    %v4716 = vunpack.c.l.b16 %v841
    %v4717 = vunpack.c.h.b16 %v841
    %v4718 = vunpack.c.l.b16 %v842
    %v4719 = vunpack.c.h.b16 %v842
    %v4720 = vunpack.c.l.b16 %v843
    %v4721 = vunpack.c.h.b16 %v843
    %v4722 = vunpack.c.l.b16 %v844
    %v4723 = vunpack.c.h.b16 %v844
    %v4724 = vunpack.c.l.b16 %v845
    %v4725 = vunpack.c.h.b16 %v845
    %v4726 = vunpack.c.l.b16 %v846
    %v4727 = vunpack.c.h.b16 %v846
    %v4728 = vunpack.c.l.b16 %v847
    %v4729 = vunpack.c.h.b16 %v847
    %v4730 = vunpack.c.l.b16 %v848
    %v4731 = vunpack.c.h.b16 %v848
    %v4732 = vunpack.c.l.b16 %v849
    %v4733 = vunpack.c.h.b16 %v849
    %v4734 = vunpack.c.l.b16 %v850
    %v4735 = vunpack.c.h.b16 %v850
    %v4736 = vunpack.c.l.b16 %v851
    %v4737 = vunpack.c.h.b16 %v851
    %v4738 = vunpack.c.l.b16 %v852
    %v4739 = vunpack.c.h.b16 %v852
    %v4740 = vunpack.c.l.b16 %v853
    %v4741 = vunpack.c.h.b16 %v853
    %v4742 = vunpack.c.l.b16 %v854
    %v4743 = vunpack.c.h.b16 %v854
    %v4744 = vunpack.c.l.b16 %v855
    %v4745 = vunpack.c.h.b16 %v855
    %v4746 = vunpack.c.l.b16 %v856
    %v4747 = vunpack.c.h.b16 %v856
    %v4748 = vunpack.c.l.b16 %v857
    %v4749 = vunpack.c.h.b16 %v857
    %v4750 = vunpack.c.l.b16 %v858
    %v4751 = vunpack.c.h.b16 %v858
    %v4752 = vunpack.c.l.b16 %v859
    %v4753 = vunpack.c.h.b16 %v859
    %v4754 = vunpack.c.l.b16 %v860
    %v4755 = vunpack.c.h.b16 %v860
    %v4756 = vunpack.c.l.b16 %v861
    %v4757 = vunpack.c.h.b16 %v861
    %v4758 = vunpack.c.l.b16 %v862
    %v4759 = vunpack.c.h.b16 %v862
    %v4760 = vunpack.c.l.b16 %v863
    %v4761 = vunpack.c.h.b16 %v863
    %v4762 = vunpack.c.l.b16 %v864
    %v4763 = vunpack.c.h.b16 %v864
    %v4764 = vunpack.c.l.b16 %v865
    %v4765 = vunpack.c.h.b16 %v865
    %v4766 = vunpack.c.l.b16 %v866
    %v4767 = vunpack.c.h.b16 %v866
    %v4768 = vunpack.c.l.b16 %v867
    %v4769 = vunpack.c.h.b16 %v867
    %v4770 = vunpack.c.l.b16 %v868
    %v4771 = vunpack.c.h.b16 %v868
    %v4772 = vunpack.c.l.b16 %v869
    %v4773 = vunpack.c.h.b16 %v869
    %v4774 = vunpack.c.l.b16 %v870
    %v4775 = vunpack.c.h.b16 %v870
    %v4776 = vunpack.c.l.b16 %v871
    %v4777 = vunpack.c.h.b16 %v871
    %v4778 = vunpack.c.l.b16 %v872
    %v4779 = vunpack.c.h.b16 %v872
    %v4780 = vunpack.c.l.b16 %v873
    %v4781 = vunpack.c.h.b16 %v873
    %v4782 = vunpack.c.l.b16 %v874
    %v4783 = vunpack.c.h.b16 %v874
    %v4784 = vunpack.c.l.b16 %v875
    %v4785 = vunpack.c.h.b16 %v875
    %v4786 = vunpack.c.l.b16 %v876
    %v4787 = vunpack.c.h.b16 %v876
    %v4788 = vunpack.c.l.b16 %v877
    %v4789 = vunpack.c.h.b16 %v877
    %v4790 = vunpack.c.l.b16 %v878
    %v4791 = vunpack.c.h.b16 %v878
    %v4792 = vunpack.c.l.b16 %v879
    %v4793 = vunpack.c.h.b16 %v879
    %v4794 = vunpack.c.l.b16 %v880
    %v4795 = vunpack.c.h.b16 %v880
    %v4796 = vunpack.c.l.b16 %v881
    %v4797 = vunpack.c.h.b16 %v881
    %v4798 = vunpack.c.l.b16 %v882
    %v4799 = vunpack.c.h.b16 %v882
    %v4800 = vunpack.c.l.b16 %v883
    %v4801 = vunpack.c.h.b16 %v883
    %v4802 = vunpack.c.l.b16 %v884
    %v4803 = vunpack.c.h.b16 %v884
    %v4804 = vunpack.c.l.b16 %v885
    %v4805 = vunpack.c.h.b16 %v885
    %v4806 = vunpack.c.l.b16 %v886
    %v4807 = vunpack.c.h.b16 %v886
    %v4808 = vunpack.c.l.b16 %v887
    %v4809 = vunpack.c.h.b16 %v887
    %v4810 = vunpack.c.l.b16 %v888
    %v4811 = vunpack.c.h.b16 %v888
    %v4812 = vunpack.c.l.b16 %v889
    %v4813 = vunpack.c.h.b16 %v889
    %v4814 = vunpack.c.l.b16 %v890
    %v4815 = vunpack.c.h.b16 %v890
    %v4816 = vunpack.c.l.b16 %v891
    %v4817 = vunpack.c.h.b16 %v891
    %v4818 = vunpack.c.l.b16 %v892
    %v4819 = vunpack.c.h.b16 %v892
    %v4820 = vunpack.c.l.b16 %v893
    %v4821 = vunpack.c.h.b16 %v893
    %v4822 = vunpack.c.l.b16 %v894
    %v4823 = vunpack.c.h.b16 %v894
    %v4824 = vunpack.c.l.b16 %v895
    %v4825 = vunpack.c.h.b16 %v895
    %v4826 = vunpack.c.l.b16 %v896
    %v4827 = vunpack.c.h.b16 %v896
    %v4828 = vunpack.c.l.b16 %v897
    %v4829 = vunpack.c.h.b16 %v897
    %v4830 = vunpack.c.l.b16 %v898
    %v4831 = vunpack.c.h.b16 %v898
    %v4832 = vunpack.c.l.b16 %v899
    %v4833 = vunpack.c.h.b16 %v899
    %v4834 = vunpack.c.l.b16 %v900
    %v4835 = vunpack.c.h.b16 %v900
    %v4836 = vunpack.c.l.b16 %v901
    %v4837 = vunpack.c.h.b16 %v901
    %v4838 = vunpack.c.l.b16 %v902
    %v4839 = vunpack.c.h.b16 %v902
    %v4840 = vunpack.c.l.b16 %v903
    %v4841 = vunpack.c.h.b16 %v903
    %v4842 = vunpack.c.l.b16 %v904
    %v4843 = vunpack.c.h.b16 %v904
    %v4844 = vunpack.c.l.b16 %v905
    %v4845 = vunpack.c.h.b16 %v905
    %v4846 = vunpack.c.l.b16 %v906
    %v4847 = vunpack.c.h.b16 %v906
    %v4848 = vunpack.c.l.b16 %v907
    %v4849 = vunpack.c.h.b16 %v907
    %v4850 = vunpack.c.l.b16 %v908
    %v4851 = vunpack.c.h.b16 %v908
    %v4852 = vunpack.c.l.b16 %v909
    %v4853 = vunpack.c.h.b16 %v909
    %v4854 = vunpack.c.l.b16 %v910
    %v4855 = vunpack.c.h.b16 %v910
    %v4856 = vunpack.c.l.b16 %v911
    %v4857 = vunpack.c.h.b16 %v911
    %v4858 = vunpack.c.l.b16 %v912
    %v4859 = vunpack.c.h.b16 %v912
    %v4860 = vunpack.c.l.b16 %v913
    %v4861 = vunpack.c.h.b16 %v913
    %v4862 = vunpack.c.l.b16 %v914
    %v4863 = vunpack.c.h.b16 %v914
    %v4864 = vunpack.c.l.b16 %v915
    %v4865 = vunpack.c.h.b16 %v915
    %v4866 = vunpack.c.l.b16 %v916
    %v4867 = vunpack.c.h.b16 %v916
    %v4868 = vunpack.c.l.b16 %v917
    %v4869 = vunpack.c.h.b16 %v917
    %v4870 = vunpack.c.l.b16 %v918
    %v4871 = vunpack.c.h.b16 %v918
    %v4872 = vunpack.c.l.b16 %v919
    %v4873 = vunpack.c.h.b16 %v919
    %v4874 = vunpack.c.l.b16 %v920
    %v4875 = vunpack.c.h.b16 %v920
    %v4876 = vunpack.c.l.b16 %v921
    %v4877 = vunpack.c.h.b16 %v921
    %v4878 = vunpack.c.l.b16 %v922
    %v4879 = vunpack.c.h.b16 %v922
    %v4880 = vunpack.c.l.b16 %v923
    %v4881 = vunpack.c.h.b16 %v923
    %v4882 = vunpack.c.l.b16 %v924
    %v4883 = vunpack.c.h.b16 %v924
    %v4884 = vunpack.c.l.b16 %v925
    %v4885 = vunpack.c.h.b16 %v925
    %v4886 = vunpack.c.l.b16 %v926
    %v4887 = vunpack.c.h.b16 %v926
    %v4888 = vunpack.c.l.b16 %v927
    %v4889 = vunpack.c.h.b16 %v927
    %v4890 = vunpack.c.l.b16 %v928
    %v4891 = vunpack.c.h.b16 %v928
    %v4892 = vunpack.c.l.b16 %v929
    %v4893 = vunpack.c.h.b16 %v929
    %v4894 = vunpack.c.l.b16 %v930
    %v4895 = vunpack.c.h.b16 %v930
    %v4896 = vunpack.c.l.b16 %v931
    %v4897 = vunpack.c.h.b16 %v931
    %v4898 = vunpack.c.l.b16 %v932
    %v4899 = vunpack.c.h.b16 %v932
    %v4900 = vunpack.c.l.b16 %v933
    %v4901 = vunpack.c.h.b16 %v933
    %v4902 = vunpack.c.l.b16 %v934
    %v4903 = vunpack.c.h.b16 %v934
    %v4904 = vunpack.c.l.b16 %v935
    %v4905 = vunpack.c.h.b16 %v935
    %v4906 = vunpack.c.l.b16 %v936
    %v4907 = vunpack.c.h.b16 %v936
    %v4908 = vunpack.c.l.b16 %v937
    %v4909 = vunpack.c.h.b16 %v937
    %v4910 = vunpack.c.l.b16 %v938
    %v4911 = vunpack.c.h.b16 %v938
    %v4912 = vunpack.c.l.b16 %v939
    %v4913 = vunpack.c.h.b16 %v939
    %v4914 = vunpack.c.l.b16 %v940
    %v4915 = vunpack.c.h.b16 %v940
    %v4916 = vunpack.c.l.b16 %v941
    %v4917 = vunpack.c.h.b16 %v941
    %v4918 = vunpack.c.l.b16 %v942
    %v4919 = vunpack.c.h.b16 %v942
    %v4920 = vunpack.c.l.b16 %v943
    %v4921 = vunpack.c.h.b16 %v943
    %v4922 = vunpack.c.l.b16 %v944
    %v4923 = vunpack.c.h.b16 %v944
    %v4924 = vunpack.c.l.b16 %v945
    %v4925 = vunpack.c.h.b16 %v945
    %v4926 = vunpack.c.l.b16 %v946
    %v4927 = vunpack.c.h.b16 %v946
    %v4928 = vunpack.c.l.b16 %v947
    %v4929 = vunpack.c.h.b16 %v947
    %v4930 = vunpack.c.l.b16 %v948
    %v4931 = vunpack.c.h.b16 %v948
    %v4932 = vunpack.c.l.b16 %v949
    %v4933 = vunpack.c.h.b16 %v949
    %v4934 = vunpack.c.l.b16 %v950
    %v4935 = vunpack.c.h.b16 %v950
    %v4936 = vunpack.c.l.b16 %v951
    %v4937 = vunpack.c.h.b16 %v951
    %v4938 = vunpack.c.l.b16 %v952
    %v4939 = vunpack.c.h.b16 %v952
    %v4940 = vunpack.c.l.b16 %v953
    %v4941 = vunpack.c.h.b16 %v953
    %v4942 = vunpack.c.l.b16 %v954
    %v4943 = vunpack.c.h.b16 %v954
    %v4944 = vunpack.c.l.b16 %v955
    %v4945 = vunpack.c.h.b16 %v955
    %v4946 = vunpack.c.l.b16 %v956
    %v4947 = vunpack.c.h.b16 %v956
    %v4948 = vunpack.c.l.b16 %v957
    %v4949 = vunpack.c.h.b16 %v957
    %v4950 = vunpack.c.l.b16 %v958
    %v4951 = vunpack.c.h.b16 %v958
    %v4952 = vunpack.c.l.b16 %v959
    %v4953 = vunpack.c.h.b16 %v959
    %v4954 = vunpack.c.l.b16 %v960
    %v4955 = vunpack.c.h.b16 %v960
    %v4956 = vunpack.c.l.b16 %v961
    %v4957 = vunpack.c.h.b16 %v961
    %v4958 = vunpack.c.l.b16 %v962
    %v4959 = vunpack.c.h.b16 %v962
    %v4960 = vunpack.c.l.b16 %v963
    %v4961 = vunpack.c.h.b16 %v963
    %v4962 = vunpack.c.l.b16 %v964
    %v4963 = vunpack.c.h.b16 %v964
    %v4964 = vunpack.c.l.b16 %v965
    %v4965 = vunpack.c.h.b16 %v965
    %v4966 = vunpack.c.l.b16 %v966
    %v4967 = vunpack.c.h.b16 %v966
    %v4968 = vunpack.c.l.b16 %v967
    %v4969 = vunpack.c.h.b16 %v967
    %v4970 = vunpack.c.l.b16 %v968
    %v4971 = vunpack.c.h.b16 %v968
    %v4972 = vunpack.c.l.b16 %v969
    %v4973 = vunpack.c.h.b16 %v969
    %v4974 = vunpack.c.l.b16 %v970
    %v4975 = vunpack.c.h.b16 %v970
    %v4976 = vunpack.c.l.b16 %v971
    %v4977 = vunpack.c.h.b16 %v971
    %v4978 = vunpack.c.l.b16 %v972
    %v4979 = vunpack.c.h.b16 %v972
    %v4980 = vunpack.c.l.b16 %v973
    %v4981 = vunpack.c.h.b16 %v973
    %v4982 = vunpack.c.l.b16 %v974
    %v4983 = vunpack.c.h.b16 %v974
    %v4984 = vunpack.c.l.b16 %v975
    %v4985 = vunpack.c.h.b16 %v975
    %v4986 = vunpack.c.l.b16 %v976
    %v4987 = vunpack.c.h.b16 %v976
    %v4988 = vunpack.c.l.b16 %v977
    %v4989 = vunpack.c.h.b16 %v977
    %v4990 = vunpack.c.l.b16 %v978
    %v4991 = vunpack.c.h.b16 %v978
    %v4992 = vunpack.c.l.b16 %v979
    %v4993 = vunpack.c.h.b16 %v979
    %v4994 = vunpack.c.l.b16 %v980
    %v4995 = vunpack.c.h.b16 %v980
    %v4996 = vunpack.c.l.b16 %v981
    %v4997 = vunpack.c.h.b16 %v981
    %v4998 = vunpack.c.l.b16 %v982
    %v4999 = vunpack.c.h.b16 %v982
    %v5000 = vunpack.c.l.b16 %v983
    %v5001 = vunpack.c.h.b16 %v983
    %v5002 = vunpack.c.l.b16 %v984
    %v5003 = vunpack.c.h.b16 %v984
    %v5004 = vunpack.c.l.b16 %v985
    %v5005 = vunpack.c.h.b16 %v985
    %v5006 = vunpack.c.l.b16 %v986
    %v5007 = vunpack.c.h.b16 %v986
    %v5008 = vunpack.c.l.b16 %v987
    %v5009 = vunpack.c.h.b16 %v987
    %v5010 = vunpack.c.l.b16 %v988
    %v5011 = vunpack.c.h.b16 %v988
    %v5012 = vunpack.c.l.b16 %v989
    %v5013 = vunpack.c.h.b16 %v989
    %v5014 = vunpack.c.l.b16 %v990
    %v5015 = vunpack.c.h.b16 %v990
    %v5016 = vunpack.c.l.b16 %v991
    %v5017 = vunpack.c.h.b16 %v991
    %v5018 = vunpack.c.l.b16 %v992
    %v5019 = vunpack.c.h.b16 %v992
    %v5020 = vunpack.c.l.b16 %v993
    %v5021 = vunpack.c.h.b16 %v993
    %v5022 = vunpack.c.l.b16 %v994
    %v5023 = vunpack.c.h.b16 %v994
    %v5024 = vunpack.c.l.b16 %v995
    %v5025 = vunpack.c.h.b16 %v995
    %v5026 = vunpack.c.l.b16 %v996
    %v5027 = vunpack.c.h.b16 %v996
    %v5028 = vunpack.c.l.b16 %v997
    %v5029 = vunpack.c.h.b16 %v997
    %v5030 = vunpack.c.l.b16 %v998
    %v5031 = vunpack.c.h.b16 %v998
    %v5032 = vunpack.c.l.b16 %v999
    %v5033 = vunpack.c.h.b16 %v999
    %v5034 = vunpack.c.l.b16 %v1000
    %v5035 = vunpack.c.h.b16 %v1000
    %v5036 = vunpack.c.l.b16 %v1001
    %v5037 = vunpack.c.h.b16 %v1001
    %v5038 = vunpack.c.l.b16 %v1002
    %v5039 = vunpack.c.h.b16 %v1002
    %v5040 = vunpack.c.l.b16 %v1003
    %v5041 = vunpack.c.h.b16 %v1003
    %v5042 = vunpack.c.l.b16 %v1004
    %v5043 = vunpack.c.h.b16 %v1004
    %v5044 = vunpack.c.l.b16 %v1005
    %v5045 = vunpack.c.h.b16 %v1005
    %v5046 = vunpack.c.l.b16 %v1006
    %v5047 = vunpack.c.h.b16 %v1006
    %v5048 = vunpack.c.l.b16 %v1007
    %v5049 = vunpack.c.h.b16 %v1007
    %v5050 = vunpack.c.l.b16 %v1008
    %v5051 = vunpack.c.h.b16 %v1008
    %v5052 = vunpack.c.l.b16 %v1009
    %v5053 = vunpack.c.h.b16 %v1009
    %v5054 = vunpack.c.l.b16 %v1010
    %v5055 = vunpack.c.h.b16 %v1010
    %v5056 = vunpack.c.l.b16 %v1011
    %v5057 = vunpack.c.h.b16 %v1011
    %v5058 = vunpack.c.l.b16 %v1012
    %v5059 = vunpack.c.h.b16 %v1012
    %v5060 = vunpack.c.l.b16 %v1013
    %v5061 = vunpack.c.h.b16 %v1013
    %v5062 = vunpack.c.l.b16 %v1014
    %v5063 = vunpack.c.h.b16 %v1014
    %v5064 = vunpack.c.l.b16 %v1015
    %v5065 = vunpack.c.h.b16 %v1015
    %v5066 = vunpack.c.l.b16 %v1016
    %v5067 = vunpack.c.h.b16 %v1016
    %v5068 = vunpack.c.l.b16 %v1017
    %v5069 = vunpack.c.h.b16 %v1017
    %v5070 = vunpack.c.l.b16 %v1018
    %v5071 = vunpack.c.h.b16 %v1018
    %v5072 = vunpack.c.l.b16 %v1019
    %v5073 = vunpack.c.h.b16 %v1019
    %v5074 = vunpack.c.l.b16 %v1020
    %v5075 = vunpack.c.h.b16 %v1020
    %v5076 = vunpack.c.l.b16 %v1021
    %v5077 = vunpack.c.h.b16 %v1021
    %v5078 = vunpack.c.l.b16 %v1022
    %v5079 = vunpack.c.h.b16 %v1022
    %v5080 = vunpack.c.l.b16 %v1023
    %v5081 = vunpack.c.h.b16 %v1023
    %v5082 = vunpack.c.l.b16 %v1024
    %v5083 = vunpack.c.h.b16 %v1024
    %v5084 = vunpack.c.l.b16 %v1025
    %v5085 = vunpack.c.h.b16 %v1025
    %v5086 = vunpack.c.l.b16 %v1026
    %v5087 = vunpack.c.h.b16 %v1026
    %v5088 = vunpack.c.l.b16 %v1027
    %v5089 = vunpack.c.h.b16 %v1027
    %v5090 = vunpack.c.l.b16 %v1028
    %v5091 = vunpack.c.h.b16 %v1028
    %v5092 = vunpack.c.l.b16 %v1029
    %v5093 = vunpack.c.h.b16 %v1029
    %v5094 = vunpack.c.l.b16 %v1030
    %v5095 = vunpack.c.h.b16 %v1030
    %v5096 = vunpack.c.l.b16 %v1031
    %v5097 = vunpack.c.h.b16 %v1031
    %v5098 = vunpack.c.l.b16 %v1032
    %v5099 = vunpack.c.h.b16 %v1032
    %v5100 = vunpack.c.l.b16 %v1033
    %v5101 = vunpack.c.h.b16 %v1033
    %v5102 = vunpack.c.l.b16 %v1034
    %v5103 = vunpack.c.h.b16 %v1034
    %v5104 = vunpack.c.l.b16 %v1035
    %v5105 = vunpack.c.h.b16 %v1035
    %v5106 = vunpack.c.l.b16 %v1036
    %v5107 = vunpack.c.h.b16 %v1036
    %v5108 = vunpack.c.l.b16 %v1037
    %v5109 = vunpack.c.h.b16 %v1037
    %v5110 = vunpack.c.l.b16 %v1038
    %v5111 = vunpack.c.h.b16 %v1038
    %v5112 = vunpack.c.l.b16 %v1039
    %v5113 = vunpack.c.h.b16 %v1039
    %v5114 = vunpack.c.l.b16 %v1040
    %v5115 = vunpack.c.h.b16 %v1040
    %v5116 = vunpack.c.l.b16 %v1041
    %v5117 = vunpack.c.h.b16 %v1041
    %v5118 = vunpack.c.l.b16 %v1042
    %v5119 = vunpack.c.h.b16 %v1042
    %v5120 = vunpack.c.l.b16 %v1043
    %v5121 = vunpack.c.h.b16 %v1043
    %v5122 = vunpack.c.l.b16 %v1044
    %v5123 = vunpack.c.h.b16 %v1044
    %v5124 = vunpack.c.l.b16 %v1045
    %v5125 = vunpack.c.h.b16 %v1045
    %v5126 = vunpack.c.l.b16 %v1046
    %v5127 = vunpack.c.h.b16 %v1046
    %v5128 = vunpack.c.l.b16 %v1047
    %v5129 = vunpack.c.h.b16 %v1047
    %v5130 = vunpack.c.l.b16 %v1048
    %v5131 = vunpack.c.h.b16 %v1048
    %v5132 = vunpack.c.l.b16 %v1049
    %v5133 = vunpack.c.h.b16 %v1049
    %v5134 = vunpack.c.l.b16 %v1050
    %v5135 = vunpack.c.h.b16 %v1050
    %v5136 = vunpack.c.l.b16 %v1051
    %v5137 = vunpack.c.h.b16 %v1051
    %v5138 = vunpack.c.l.b16 %v1052
    %v5139 = vunpack.c.h.b16 %v1052
    %v5140 = vunpack.c.l.b16 %v1053
    %v5141 = vunpack.c.h.b16 %v1053
    %v5142 = vunpack.c.l.b16 %v1054
    %v5143 = vunpack.c.h.b16 %v1054
    %v5144 = vunpack.c.l.b16 %v1055
    %v5145 = vunpack.c.h.b16 %v1055
    %v5146 = vunpack.c.l.b16 %v1056
    %v5147 = vunpack.c.h.b16 %v1056
    %v5148 = vunpack.c.l.b16 %v1057
    %v5149 = vunpack.c.h.b16 %v1057
    %v5150 = vunpack.c.l.b16 %v1058
    %v5151 = vunpack.c.h.b16 %v1058
    %v5152 = vunpack.c.l.b16 %v1059
    %v5153 = vunpack.c.h.b16 %v1059
    %v5154 = vunpack.c.l.b16 %v1060
    %v5155 = vunpack.c.h.b16 %v1060
    %v5156 = vunpack.c.l.b16 %v1061
    %v5157 = vunpack.c.h.b16 %v1061
    %v5158 = vunpack.c.l.b16 %v1062
    %v5159 = vunpack.c.h.b16 %v1062
    %v5160 = vunpack.c.l.b16 %v1063
    %v5161 = vunpack.c.h.b16 %v1063
    %v5162 = vunpack.c.l.b16 %v1064
    %v5163 = vunpack.c.h.b16 %v1064
    %v5164 = vunpack.c.l.b16 %v1065
    %v5165 = vunpack.c.h.b16 %v1065
    %v5166 = vunpack.c.l.b16 %v1066
    %v5167 = vunpack.c.h.b16 %v1066
    %v5168 = vunpack.c.l.b16 %v1067
    %v5169 = vunpack.c.h.b16 %v1067
    %v5170 = vunpack.c.l.b16 %v1068
    %v5171 = vunpack.c.h.b16 %v1068
    %v5172 = vunpack.c.l.b16 %v1069
    %v5173 = vunpack.c.h.b16 %v1069
    %v5174 = vunpack.c.l.b16 %v1070
    %v5175 = vunpack.c.h.b16 %v1070
    %v5176 = vunpack.c.l.b16 %v1071
    %v5177 = vunpack.c.h.b16 %v1071
    %v5178 = vunpack.c.l.b16 %v1072
    %v5179 = vunpack.c.h.b16 %v1072
    %v5180 = vunpack.c.l.b16 %v1073
    %v5181 = vunpack.c.h.b16 %v1073
    %v5182 = vunpack.c.l.b16 %v1074
    %v5183 = vunpack.c.h.b16 %v1074
    %v5184 = vunpack.c.l.b16 %v1075
    %v5185 = vunpack.c.h.b16 %v1075
    %v5186 = vunpack.c.l.b16 %v1076
    %v5187 = vunpack.c.h.b16 %v1076
    %v5188 = vunpack.c.l.b16 %v1077
    %v5189 = vunpack.c.h.b16 %v1077
    %v5190 = vunpack.c.l.b16 %v1078
    %v5191 = vunpack.c.h.b16 %v1078
    %v5192 = vunpack.c.l.b16 %v1079
    %v5193 = vunpack.c.h.b16 %v1079
    %v5194 = vunpack.c.l.b16 %v1080
    %v5195 = vunpack.c.h.b16 %v1080
    %v5196 = vunpack.c.l.b16 %v1081
    %v5197 = vunpack.c.h.b16 %v1081
    %v5198 = vunpack.c.l.b16 %v1082
    %v5199 = vunpack.c.h.b16 %v1082
    %v5200 = vunpack.c.l.b16 %v1083
    %v5201 = vunpack.c.h.b16 %v1083
    %v5202 = vunpack.c.l.b16 %v1084
    %v5203 = vunpack.c.h.b16 %v1084
    %v5204 = vunpack.c.l.b16 %v1085
    %v5205 = vunpack.c.h.b16 %v1085
    %v5206 = vunpack.c.l.b16 %v1086
    %v5207 = vunpack.c.h.b16 %v1086
    %v5208 = vunpack.c.l.b16 %v1087
    %v5209 = vunpack.c.h.b16 %v1087
    %v5210 = vunpack.c.l.b16 %v1088
    %v5211 = vunpack.c.h.b16 %v1088
    %v5212 = vunpack.c.l.b16 %v1089
    %v5213 = vunpack.c.h.b16 %v1089
    %v5214 = vunpack.c.l.b16 %v1090
    %v5215 = vunpack.c.h.b16 %v1090
    %v5216 = vunpack.c.l.b16 %v1091
    %v5217 = vunpack.c.h.b16 %v1091
    %v5218 = vunpack.c.l.b16 %v1092
    %v5219 = vunpack.c.h.b16 %v1092
    %v5220 = vunpack.c.l.b16 %v1093
    %v5221 = vunpack.c.h.b16 %v1093
    %v5222 = vunpack.c.l.b16 %v1094
    %v5223 = vunpack.c.h.b16 %v1094
    %v5224 = vunpack.c.l.b16 %v1095
    %v5225 = vunpack.c.h.b16 %v1095
    %v5226 = vunpack.c.l.b16 %v1096
    %v5227 = vunpack.c.h.b16 %v1096
    %v5228 = vunpack.c.l.b16 %v1097
    %v5229 = vunpack.c.h.b16 %v1097
    %v5230 = vunpack.c.l.b16 %v1098
    %v5231 = vunpack.c.h.b16 %v1098
    %v5232 = vunpack.c.l.b16 %v1099
    %v5233 = vunpack.c.h.b16 %v1099
    %v5234 = vunpack.c.l.b16 %v1100
    %v5235 = vunpack.c.h.b16 %v1100
    %v5236 = vunpack.c.l.b16 %v1101
    %v5237 = vunpack.c.h.b16 %v1101
    %v5238 = vunpack.c.l.b16 %v1102
    %v5239 = vunpack.c.h.b16 %v1102
    %v5240 = vunpack.c.l.b16 %v1103
    %v5241 = vunpack.c.h.b16 %v1103
    %v5242 = vunpack.c.l.b16 %v1104
    %v5243 = vunpack.c.h.b16 %v1104
    %v5244 = vunpack.c.l.b16 %v1105
    %v5245 = vunpack.c.h.b16 %v1105
    %v5246 = vunpack.c.l.b16 %v1106
    %v5247 = vunpack.c.h.b16 %v1106
    %v5248 = vunpack.c.l.b16 %v1107
    %v5249 = vunpack.c.h.b16 %v1107
    %v5250 = vunpack.c.l.b16 %v1108
    %v5251 = vunpack.c.h.b16 %v1108
    %v5252 = vunpack.c.l.b16 %v1109
    %v5253 = vunpack.c.h.b16 %v1109
    %v5254 = vunpack.c.l.b16 %v1110
    %v5255 = vunpack.c.h.b16 %v1110
    %v5256 = vunpack.c.l.b16 %v1111
    %v5257 = vunpack.c.h.b16 %v1111
    %v5258 = vunpack.c.l.b16 %v1112
    %v5259 = vunpack.c.h.b16 %v1112
    %v5260 = vunpack.c.l.b16 %v1113
    %v5261 = vunpack.c.h.b16 %v1113
    %v5262 = vunpack.c.l.b16 %v1114
    %v5263 = vunpack.c.h.b16 %v1114
    %v5264 = vunpack.c.l.b16 %v1115
    %v5265 = vunpack.c.h.b16 %v1115
    %v5266 = vunpack.c.l.b16 %v1116
    %v5267 = vunpack.c.h.b16 %v1116
    %v5268 = vunpack.c.l.b16 %v1117
    %v5269 = vunpack.c.h.b16 %v1117
    %v5270 = vunpack.c.l.b16 %v1118
    %v5271 = vunpack.c.h.b16 %v1118
    %v5272 = vunpack.c.l.b16 %v1119
    %v5273 = vunpack.c.h.b16 %v1119
    %v5274 = vunpack.c.l.b16 %v1120
    %v5275 = vunpack.c.h.b16 %v1120
    %v5276 = vunpack.c.l.b16 %v1121
    %v5277 = vunpack.c.h.b16 %v1121
    %v5278 = vunpack.c.l.b16 %v1122
    %v5279 = vunpack.c.h.b16 %v1122
    %v5280 = vunpack.c.l.b16 %v1123
    %v5281 = vunpack.c.h.b16 %v1123
    %v5282 = vunpack.c.l.b16 %v1124
    %v5283 = vunpack.c.h.b16 %v1124
    %v5284 = vunpack.c.l.b16 %v1125
    %v5285 = vunpack.c.h.b16 %v1125
    %v5286 = vunpack.c.l.b16 %v1126
    %v5287 = vunpack.c.h.b16 %v1126
    %v5288 = vunpack.c.l.b16 %v1127
    %v5289 = vunpack.c.h.b16 %v1127
    %v5290 = vunpack.c.l.b16 %v1128
    %v5291 = vunpack.c.h.b16 %v1128
    %v5292 = vunpack.c.l.b16 %v1129
    %v5293 = vunpack.c.h.b16 %v1129
    %v5294 = vunpack.c.l.b16 %v1130
    %v5295 = vunpack.c.h.b16 %v1130
    %v5296 = vunpack.c.l.b16 %v1131
    %v5297 = vunpack.c.h.b16 %v1131
    %v5298 = vunpack.c.l.b16 %v1132
    %v5299 = vunpack.c.h.b16 %v1132
    %v5300 = vunpack.c.l.b16 %v1133
    %v5301 = vunpack.c.h.b16 %v1133
    %v5302 = vunpack.c.l.b16 %v1134
    %v5303 = vunpack.c.h.b16 %v1134
    %v5304 = vunpack.c.l.b16 %v1135
    %v5305 = vunpack.c.h.b16 %v1135
    %v5306 = vunpack.c.l.b16 %v1136
    %v5307 = vunpack.c.h.b16 %v1136
    %v5308 = vunpack.c.l.b16 %v1137
    %v5309 = vunpack.c.h.b16 %v1137
    %v5310 = vunpack.c.l.b16 %v1138
    %v5311 = vunpack.c.h.b16 %v1138
    %v5312 = vunpack.c.l.b16 %v1139
    %v5313 = vunpack.c.h.b16 %v1139
    %v5314 = vunpack.c.l.b16 %v1140
    %v5315 = vunpack.c.h.b16 %v1140
    %v5316 = vunpack.c.l.b16 %v1141
    %v5317 = vunpack.c.h.b16 %v1141
    %v5318 = vunpack.c.l.b16 %v1142
    %v5319 = vunpack.c.h.b16 %v1142
    %v5320 = vunpack.c.l.b16 %v1143
    %v5321 = vunpack.c.h.b16 %v1143
    %v5322 = vunpack.c.l.b16 %v1144
    %v5323 = vunpack.c.h.b16 %v1144
    %v5324 = vunpack.c.l.b16 %v1145
    %v5325 = vunpack.c.h.b16 %v1145
    %v5326 = vunpack.c.l.b16 %v1146
    %v5327 = vunpack.c.h.b16 %v1146
    %v5328 = vunpack.c.l.b16 %v1147
    %v5329 = vunpack.c.h.b16 %v1147
    %v5330 = vunpack.c.l.b16 %v1148
    %v5331 = vunpack.c.h.b16 %v1148
    %v5332 = vunpack.c.l.b16 %v1149
    %v5333 = vunpack.c.h.b16 %v1149
    %v5334 = vunpack.c.l.b16 %v1150
    %v5335 = vunpack.c.h.b16 %v1150
    %v5336 = vunpack.c.l.b16 %v1151
    %v5337 = vunpack.c.h.b16 %v1151
    %v5338 = vunpack.c.l.b16 %v1152
    %v5339 = vunpack.c.h.b16 %v1152
    %v5340 = vunpack.c.l.b16 %v1153
    %v5341 = vunpack.c.h.b16 %v1153
    %v5342 = vunpack.c.l.b16 %v1154
    %v5343 = vunpack.c.h.b16 %v1154
    %v5344 = vunpack.c.l.b16 %v1155
    %v5345 = vunpack.c.h.b16 %v1155
    %v5346 = vunpack.c.l.b16 %v1156
    %v5347 = vunpack.c.h.b16 %v1156
    %v5348 = vunpack.c.l.b16 %v1157
    %v5349 = vunpack.c.h.b16 %v1157
    %v5350 = vunpack.c.l.b16 %v1158
    %v5351 = vunpack.c.h.b16 %v1158
    %v5352 = vunpack.c.l.b16 %v1159
    %v5353 = vunpack.c.h.b16 %v1159
    %v5354 = vunpack.c.l.b16 %v1160
    %v5355 = vunpack.c.h.b16 %v1160
    %v5356 = vunpack.c.l.b16 %v1161
    %v5357 = vunpack.c.h.b16 %v1161
    %v5358 = vunpack.c.l.b16 %v1162
    %v5359 = vunpack.c.h.b16 %v1162
    %v5360 = vunpack.c.l.b16 %v1163
    %v5361 = vunpack.c.h.b16 %v1163
    %v5362 = vunpack.c.l.b16 %v1164
    %v5363 = vunpack.c.h.b16 %v1164
    %v5364 = vunpack.c.l.b16 %v1165
    %v5365 = vunpack.c.h.b16 %v1165
    %v5366 = vunpack.c.l.b16 %v1166
    %v5367 = vunpack.c.h.b16 %v1166
    %v5368 = vunpack.c.l.b16 %v1167
    %v5369 = vunpack.c.h.b16 %v1167
    %v5370 = vunpack.c.l.b16 %v1168
    %v5371 = vunpack.c.h.b16 %v1168
    %v5372 = vunpack.c.l.b16 %v1169
    %v5373 = vunpack.c.h.b16 %v1169
    %v5374 = vunpack.c.l.b16 %v1170
    %v5375 = vunpack.c.h.b16 %v1170
    %v5376 = vunpack.c.l.b16 %v1171
    %v5377 = vunpack.c.h.b16 %v1171
    %v5378 = vunpack.c.l.b16 %v1172
    %v5379 = vunpack.c.h.b16 %v1172
    %v5380 = vunpack.c.l.b16 %v1173
    %v5381 = vunpack.c.h.b16 %v1173
    %v5382 = vunpack.c.l.b16 %v1174
    %v5383 = vunpack.c.h.b16 %v1174
    %v5384 = vunpack.c.l.b16 %v1175
    %v5385 = vunpack.c.h.b16 %v1175
    %v5386 = vunpack.c.l.b16 %v1176
    %v5387 = vunpack.c.h.b16 %v1176
    %v5388 = vunpack.c.l.b16 %v1177
    %v5389 = vunpack.c.h.b16 %v1177
    %v5390 = vunpack.c.l.b16 %v1178
    %v5391 = vunpack.c.h.b16 %v1178
    %v5392 = vunpack.c.l.b16 %v1179
    %v5393 = vunpack.c.h.b16 %v1179
    %v5394 = vunpack.c.l.b16 %v1180
    %v5395 = vunpack.c.h.b16 %v1180
    %v5396 = vunpack.c.l.b16 %v1181
    %v5397 = vunpack.c.h.b16 %v1181
    %v5398 = vunpack.c.l.b16 %v1182
    %v5399 = vunpack.c.h.b16 %v1182
    %v5400 = vunpack.c.l.b16 %v1183
    %v5401 = vunpack.c.h.b16 %v1183
    %v5402 = vunpack.c.l.b16 %v1184
    %v5403 = vunpack.c.h.b16 %v1184
    %v5404 = vunpack.c.l.b16 %v1185
    %v5405 = vunpack.c.h.b16 %v1185
    %v5406 = vunpack.c.l.b16 %v1186
    %v5407 = vunpack.c.h.b16 %v1186
    %v5408 = vunpack.c.l.b16 %v1187
    %v5409 = vunpack.c.h.b16 %v1187
    %v5410 = vunpack.c.l.b16 %v1188
    %v5411 = vunpack.c.h.b16 %v1188
    %v5412 = vunpack.c.l.b16 %v1189
    %v5413 = vunpack.c.h.b16 %v1189
    %v5414 = vunpack.c.l.b16 %v1190
    %v5415 = vunpack.c.h.b16 %v1190
    %v5416 = vunpack.c.l.b16 %v1191
    %v5417 = vunpack.c.h.b16 %v1191
    %v5418 = vunpack.c.l.b16 %v1192
    %v5419 = vunpack.c.h.b16 %v1192
    %v5420 = vunpack.c.l.b16 %v1193
    %v5421 = vunpack.c.h.b16 %v1193
    %v5422 = vunpack.c.l.b16 %v1194
    %v5423 = vunpack.c.h.b16 %v1194
    %v5424 = vunpack.c.l.b16 %v1195
    %v5425 = vunpack.c.h.b16 %v1195
    %v5426 = vunpack.c.l.b16 %v1196
    %v5427 = vunpack.c.h.b16 %v1196
    %v5428 = vunpack.c.l.b16 %v1197
    %v5429 = vunpack.c.h.b16 %v1197
    %v5430 = vunpack.c.l.b16 %v1198
    %v5431 = vunpack.c.h.b16 %v1198
    %v5432 = vunpack.c.l.b16 %v1199
    %v5433 = vunpack.c.h.b16 %v1199
    %v5434 = vunpack.c.l.b16 %v1200
    %v5435 = vunpack.c.h.b16 %v1200
    %v5436 = vunpack.c.l.b16 %v1201
    %v5437 = vunpack.c.h.b16 %v1201
    %v5438 = vunpack.c.l.b16 %v1202
    %v5439 = vunpack.c.h.b16 %v1202
    %v5440 = vunpack.c.l.b16 %v1203
    %v5441 = vunpack.c.h.b16 %v1203
    %v5442 = vunpack.c.l.b16 %v1204
    %v5443 = vunpack.c.h.b16 %v1204
    %v5444 = vunpack.c.l.b16 %v1205
    %v5445 = vunpack.c.h.b16 %v1205
    %v5446 = vunpack.c.l.b16 %v1206
    %v5447 = vunpack.c.h.b16 %v1206
    %v5448 = vunpack.c.l.b16 %v1207
    %v5449 = vunpack.c.h.b16 %v1207
    %v5450 = vunpack.c.l.b16 %v1208
    %v5451 = vunpack.c.h.b16 %v1208
    %v5452 = vunpack.c.l.b16 %v1209
    %v5453 = vunpack.c.h.b16 %v1209
    %v5454 = vunpack.c.l.b16 %v1210
    %v5455 = vunpack.c.h.b16 %v1210
    %v5456 = vunpack.c.l.b16 %v1211
    %v5457 = vunpack.c.h.b16 %v1211
    %v5458 = vunpack.c.l.b16 %v1212
    %v5459 = vunpack.c.h.b16 %v1212
    %v5460 = vunpack.c.l.b16 %v1213
    %v5461 = vunpack.c.h.b16 %v1213
    %v5462 = vunpack.c.l.b16 %v1214
    %v5463 = vunpack.c.h.b16 %v1214
    %v5464 = vunpack.c.l.b16 %v1215
    %v5465 = vunpack.c.h.b16 %v1215
    %v5466 = vunpack.c.l.b16 %v1216
    %v5467 = vunpack.c.h.b16 %v1216
    %v5468 = vunpack.c.l.b16 %v1217
    %v5469 = vunpack.c.h.b16 %v1217
    %v5470 = vunpack.c.l.b16 %v1218
    %v5471 = vunpack.c.h.b16 %v1218
    %v5472 = vunpack.c.l.b16 %v1219
    %v5473 = vunpack.c.h.b16 %v1219
    %v5474 = vunpack.c.l.b16 %v1220
    %v5475 = vunpack.c.h.b16 %v1220
    %v5476 = vunpack.c.l.b16 %v1221
    %v5477 = vunpack.c.h.b16 %v1221
    %v5478 = vunpack.c.l.b16 %v1222
    %v5479 = vunpack.c.h.b16 %v1222
    %v5480 = vunpack.c.l.b16 %v1223
    %v5481 = vunpack.c.h.b16 %v1223
    %v5482 = vunpack.c.l.b16 %v1224
    %v5483 = vunpack.c.h.b16 %v1224
    %v5484 = vunpack.c.l.b16 %v1225
    %v5485 = vunpack.c.h.b16 %v1225
    %v5486 = vunpack.c.l.b16 %v1226
    %v5487 = vunpack.c.h.b16 %v1226
    %v5488 = vunpack.c.l.b16 %v1227
    %v5489 = vunpack.c.h.b16 %v1227
    %v5490 = vunpack.c.l.b16 %v1228
    %v5491 = vunpack.c.h.b16 %v1228
    %v5492 = vunpack.c.l.b16 %v1229
    %v5493 = vunpack.c.h.b16 %v1229
    %v5494 = vunpack.c.l.b16 %v1230
    %v5495 = vunpack.c.h.b16 %v1230
    %v5496 = vunpack.c.l.b16 %v1231
    %v5497 = vunpack.c.h.b16 %v1231
    %v5498 = vunpack.c.l.b16 %v1232
    %v5499 = vunpack.c.h.b16 %v1232
    %v5500 = vunpack.c.l.b16 %v1233
    %v5501 = vunpack.c.h.b16 %v1233
    %v5502 = vunpack.c.l.b16 %v1234
    %v5503 = vunpack.c.h.b16 %v1234
    %v5504 = vunpack.c.l.b16 %v1235
    %v5505 = vunpack.c.h.b16 %v1235
    %v5506 = vunpack.c.l.b16 %v1236
    %v5507 = vunpack.c.h.b16 %v1236
    %v5508 = vunpack.c.l.b16 %v1237
    %v5509 = vunpack.c.h.b16 %v1237
    %v5510 = vunpack.c.l.b16 %v1238
    %v5511 = vunpack.c.h.b16 %v1238
    %v5512 = vunpack.c.l.b16 %v1239
    %v5513 = vunpack.c.h.b16 %v1239
    %v5514 = vunpack.c.l.b16 %v1240
    %v5515 = vunpack.c.h.b16 %v1240
    %v5516 = vunpack.c.l.b16 %v1241
    %v5517 = vunpack.c.h.b16 %v1241
    %v5518 = vunpack.c.l.b16 %v1242
    %v5519 = vunpack.c.h.b16 %v1242
    %v5520 = vunpack.c.l.b16 %v1243
    %v5521 = vunpack.c.h.b16 %v1243
    %v5522 = vunpack.c.l.b16 %v1244
    %v5523 = vunpack.c.h.b16 %v1244
    %v5524 = vunpack.c.l.b16 %v1245
    %v5525 = vunpack.c.h.b16 %v1245
    %v5526 = vunpack.c.l.b16 %v1246
    %v5527 = vunpack.c.h.b16 %v1246
    %v5528 = vunpack.c.l.b16 %v1247
    %v5529 = vunpack.c.h.b16 %v1247
    %v5530 = vunpack.c.l.b16 %v1248
    %v5531 = vunpack.c.h.b16 %v1248
    %v5532 = vunpack.c.l.b16 %v1249
    %v5533 = vunpack.c.h.b16 %v1249
    %v5534 = vunpack.c.l.b16 %v1250
    %v5535 = vunpack.c.h.b16 %v1250
    %v5536 = vunpack.c.l.b16 %v1251
    %v5537 = vunpack.c.h.b16 %v1251
    %v5538 = vunpack.c.l.b16 %v1252
    %v5539 = vunpack.c.h.b16 %v1252
    %v5540 = vunpack.c.l.b16 %v1253
    %v5541 = vunpack.c.h.b16 %v1253
    %v5542 = vunpack.c.l.b16 %v1254
    %v5543 = vunpack.c.h.b16 %v1254
    %v5544 = vunpack.c.l.b16 %v1255
    %v5545 = vunpack.c.h.b16 %v1255
    %v5546 = vunpack.c.l.b16 %v1256
    %v5547 = vunpack.c.h.b16 %v1256
    %v5548 = vunpack.c.l.b16 %v1257
    %v5549 = vunpack.c.h.b16 %v1257
    %v5550 = vunpack.c.l.b16 %v1258
    %v5551 = vunpack.c.h.b16 %v1258
    %v5552 = vunpack.c.l.b16 %v1259
    %v5553 = vunpack.c.h.b16 %v1259
    %v5554 = vunpack.c.l.b16 %v1260
    %v5555 = vunpack.c.h.b16 %v1260
    %v5556 = vunpack.c.l.b16 %v1261
    %v5557 = vunpack.c.h.b16 %v1261
    %v5558 = vunpack.c.l.b16 %v1262
    %v5559 = vunpack.c.h.b16 %v1262
    %v5560 = vunpack.c.l.b16 %v1263
    %v5561 = vunpack.c.h.b16 %v1263
    %v5562 = vunpack.c.l.b16 %v1264
    %v5563 = vunpack.c.h.b16 %v1264
    %v5564 = vunpack.c.l.b16 %v1265
    %v5565 = vunpack.c.h.b16 %v1265
    %v5566 = vunpack.c.l.b16 %v1266
    %v5567 = vunpack.c.h.b16 %v1266
    %v5568 = vunpack.c.l.b16 %v1267
    %v5569 = vunpack.c.h.b16 %v1267
    %v5570 = vunpack.c.l.b16 %v1268
    %v5571 = vunpack.c.h.b16 %v1268
    %v5572 = vunpack.c.l.b16 %v1269
    %v5573 = vunpack.c.h.b16 %v1269
    %v5574 = vunpack.c.l.b16 %v1270
    %v5575 = vunpack.c.h.b16 %v1270
    %v5576 = vunpack.c.l.b16 %v1271
    %v5577 = vunpack.c.h.b16 %v1271
    %v5578 = vunpack.c.l.b16 %v1272
    %v5579 = vunpack.c.h.b16 %v1272
    %v5580 = vunpack.c.l.b16 %v1273
    %v5581 = vunpack.c.h.b16 %v1273
    %v5582 = vunpack.c.l.b16 %v1274
    %v5583 = vunpack.c.h.b16 %v1274
    %v5584 = vunpack.c.l.b16 %v1275
    %v5585 = vunpack.c.h.b16 %v1275
    %v5586 = vunpack.c.l.b16 %v1276
    %v5587 = vunpack.c.h.b16 %v1276
    %v5588 = vunpack.c.l.b16 %v1277
    %v5589 = vunpack.c.h.b16 %v1277
    %v5590 = vunpack.c.l.b16 %v1278
    %v5591 = vunpack.c.h.b16 %v1278
    %v5592 = vunpack.c.l.b16 %v1279
    %v5593 = vunpack.c.h.b16 %v1279
    %v5594 = vunpack.c.l.b16 %v1280
    %v5595 = vunpack.c.h.b16 %v1280
    %v5596 = vunpack.c.l.b16 %v1281
    %v5597 = vunpack.c.h.b16 %v1281
    %v5598 = vunpack.c.l.b16 %v1282
    %v5599 = vunpack.c.h.b16 %v1282
    %v5600 = vunpack.c.l.b16 %v1283
    %v5601 = vunpack.c.h.b16 %v1283
    %v5602 = vunpack.c.l.b16 %v1284
    %v5603 = vunpack.c.h.b16 %v1284
    %v5604 = vunpack.c.l.b16 %v1285
    %v5605 = vunpack.c.h.b16 %v1285
    %v5606 = vunpack.c.l.b16 %v1286
    %v5607 = vunpack.c.h.b16 %v1286
    %v5608 = vunpack.c.l.b16 %v1287
    %v5609 = vunpack.c.h.b16 %v1287
    %v5610 = vunpack.c.l.b16 %v1288
    %v5611 = vunpack.c.h.b16 %v1288
    %v5612 = vunpack.c.l.b16 %v1289
    %v5613 = vunpack.c.h.b16 %v1289
    %v5614 = vunpack.c.l.b16 %v1290
    %v5615 = vunpack.c.h.b16 %v1290
    %v5616 = vunpack.c.l.b16 %v1291
    %v5617 = vunpack.c.h.b16 %v1291
    %v5618 = vunpack.c.l.b16 %v1292
    %v5619 = vunpack.c.h.b16 %v1292
    %v5620 = vunpack.c.l.b16 %v1293
    %v5621 = vunpack.c.h.b16 %v1293
    %v5622 = vunpack.c.l.b16 %v1294
    %v5623 = vunpack.c.h.b16 %v1294
    %v5624 = vunpack.c.l.b16 %v1295
    %v5625 = vunpack.c.h.b16 %v1295
    %v5626 = vunpack.c.l.b16 %v1296
    %v5627 = vunpack.c.h.b16 %v1296
    %v5628 = vunpack.c.l.b16 %v1297
    %v5629 = vunpack.c.h.b16 %v1297
    %v5630 = vunpack.c.l.b16 %v1298
    %v5631 = vunpack.c.h.b16 %v1298
    %v5632 = vunpack.c.l.b16 %v1299
    %v5633 = vunpack.c.h.b16 %v1299
    %v5634 = vunpack.c.l.b16 %v1300
    %v5635 = vunpack.c.h.b16 %v1300
    %v5636 = vunpack.c.l.b16 %v1301
    %v5637 = vunpack.c.h.b16 %v1301
    %v5638 = vunpack.c.l.b16 %v1302
    %v5639 = vunpack.c.h.b16 %v1302
    %v5640 = vunpack.c.l.b16 %v1303
    %v5641 = vunpack.c.h.b16 %v1303
    %v5642 = vunpack.c.l.b16 %v1304
    %v5643 = vunpack.c.h.b16 %v1304
    %v5644 = vunpack.c.l.b16 %v1305
    %v5645 = vunpack.c.h.b16 %v1305
    %v5646 = vunpack.c.l.b16 %v1306
    %v5647 = vunpack.c.h.b16 %v1306
    %v5648 = vunpack.c.l.b16 %v1307
    %v5649 = vunpack.c.h.b16 %v1307
    %v5650 = vunpack.c.l.b16 %v1308
    %v5651 = vunpack.c.h.b16 %v1308
    %v5652 = vunpack.c.l.b16 %v1309
    %v5653 = vunpack.c.h.b16 %v1309
    %v5654 = vunpack.c.l.b16 %v1310
    %v5655 = vunpack.c.h.b16 %v1310
    %v5656 = vunpack.c.l.b16 %v1311
    %v5657 = vunpack.c.h.b16 %v1311
    %v5658 = vunpack.c.l.b16 %v1312
    %v5659 = vunpack.c.h.b16 %v1312
    %v5660 = vunpack.c.l.b16 %v1313
    %v5661 = vunpack.c.h.b16 %v1313
    %v5662 = vunpack.c.l.b16 %v1314
    %v5663 = vunpack.c.h.b16 %v1314
    %v5664 = vunpack.c.l.b16 %v1315
    %v5665 = vunpack.c.h.b16 %v1315
    %v5666 = vunpack.c.l.b16 %v1316
    %v5667 = vunpack.c.h.b16 %v1316
    %v5668 = vunpack.c.l.b16 %v1317
    %v5669 = vunpack.c.h.b16 %v1317
    %v5670 = vunpack.c.l.b16 %v1318
    %v5671 = vunpack.c.h.b16 %v1318
    %v5672 = vunpack.c.l.b16 %v1319
    %v5673 = vunpack.c.h.b16 %v1319
    %v5674 = vunpack.c.l.b16 %v1320
    %v5675 = vunpack.c.h.b16 %v1320
    %v5676 = vunpack.c.l.b16 %v1321
    %v5677 = vunpack.c.h.b16 %v1321
    %v5678 = vunpack.c.l.b16 %v1322
    %v5679 = vunpack.c.h.b16 %v1322
    %v5680 = vunpack.c.l.b16 %v1323
    %v5681 = vunpack.c.h.b16 %v1323
    %v5682 = vunpack.c.l.b16 %v1324
    %v5683 = vunpack.c.h.b16 %v1324
    %v5684 = vunpack.c.l.b16 %v1325
    %v5685 = vunpack.c.h.b16 %v1325
    %v5686 = vunpack.c.l.b16 %v1326
    %v5687 = vunpack.c.h.b16 %v1326
    %v5688 = vunpack.c.l.b16 %v1327
    %v5689 = vunpack.c.h.b16 %v1327
    %v5690 = vunpack.c.l.b16 %v1328
    %v5691 = vunpack.c.h.b16 %v1328
    %v5692 = vunpack.c.l.b16 %v1329
    %v5693 = vunpack.c.h.b16 %v1329
    %v5694 = vunpack.c.l.b16 %v1330
    %v5695 = vunpack.c.h.b16 %v1330
    %v5696 = vunpack.c.l.b16 %v1331
    %v5697 = vunpack.c.h.b16 %v1331
    %v5698 = vunpack.c.l.b16 %v1332
    %v5699 = vunpack.c.h.b16 %v1332
    %v5700 = vunpack.c.l.b16 %v1333
    %v5701 = vunpack.c.h.b16 %v1333
    %v5702 = vunpack.c.l.b16 %v1334
    %v5703 = vunpack.c.h.b16 %v1334
    %v5704 = vunpack.c.l.b16 %v1335
    %v5705 = vunpack.c.h.b16 %v1335
    %v5706 = vunpack.c.l.b16 %v1336
    %v5707 = vunpack.c.h.b16 %v1336
    %v5708 = vunpack.c.l.b16 %v1337
    %v5709 = vunpack.c.h.b16 %v1337
    %v5710 = vunpack.c.l.b16 %v1338
    %v5711 = vunpack.c.h.b16 %v1338
    %v5712 = vunpack.c.l.b16 %v1339
    %v5713 = vunpack.c.h.b16 %v1339
    %v5714 = vunpack.c.l.b16 %v1340
    %v5715 = vunpack.c.h.b16 %v1340
    %v5716 = vunpack.c.l.b16 %v1341
    %v5717 = vunpack.c.h.b16 %v1341
    %v5718 = vunpack.c.l.b16 %v1342
    %v5719 = vunpack.c.h.b16 %v1342
    %v5720 = vunpack.c.l.b16 %v1343
    %v5721 = vunpack.c.h.b16 %v1343
    %v5722 = vunpack.c.l.b16 %v1344
    %v5723 = vunpack.c.h.b16 %v1344
    %v5724 = vunpack.c.l.b16 %v1345
    %v5725 = vunpack.c.h.b16 %v1345
    %v5726 = vunpack.c.l.b16 %v1346
    %v5727 = vunpack.c.h.b16 %v1346
    %v5728 = vunpack.c.l.b16 %v1347
    %v5729 = vunpack.c.h.b16 %v1347
    %v5730 = vunpack.c.l.b16 %v1348
    %v5731 = vunpack.c.h.b16 %v1348
    %v5732 = vunpack.c.l.b16 %v1349
    %v5733 = vunpack.c.h.b16 %v1349
    %v5734 = vunpack.c.l.b16 %v1350
    %v5735 = vunpack.c.h.b16 %v1350
    %v5736 = vunpack.c.l.b16 %v1351
    %v5737 = vunpack.c.h.b16 %v1351
    %v5738 = vunpack.c.l.b16 %v1352
    %v5739 = vunpack.c.h.b16 %v1352
    %v5740 = vunpack.c.l.b16 %v1353
    %v5741 = vunpack.c.h.b16 %v1353
    %v5742 = vunpack.c.l.b16 %v1354
    %v5743 = vunpack.c.h.b16 %v1354
    %v5744 = vunpack.c.l.b16 %v1355
    %v5745 = vunpack.c.h.b16 %v1355
    %v5746 = vunpack.c.l.b16 %v1356
    %v5747 = vunpack.c.h.b16 %v1356
    %v5748 = vunpack.c.l.b16 %v1357
    %v5749 = vunpack.c.h.b16 %v1357
    %v5750 = vunpack.c.l.b16 %v1358
    %v5751 = vunpack.c.h.b16 %v1358
    %v5752 = vunpack.c.l.b16 %v1359
    %v5753 = vunpack.c.h.b16 %v1359
    %v5754 = vunpack.c.l.b16 %v1360
    %v5755 = vunpack.c.h.b16 %v1360
    %v5756 = vunpack.c.l.b16 %v1361
    %v5757 = vunpack.c.h.b16 %v1361
    %v5758 = vunpack.c.l.b16 %v1362
    %v5759 = vunpack.c.h.b16 %v1362
    %v5760 = vunpack.c.l.b16 %v1363
    %v5761 = vunpack.c.h.b16 %v1363
    %v5762 = vunpack.c.l.b16 %v1364
    %v5763 = vunpack.c.h.b16 %v1364
    %v5764 = vunpack.c.l.b16 %v1365
    %v5765 = vunpack.c.h.b16 %v1365
    %v5766 = vunpack.c.l.b16 %v1366
    %v5767 = vunpack.c.h.b16 %v1366
    %v5768 = vunpack.c.l.b16 %v1367
    %v5769 = vunpack.c.h.b16 %v1367
    %v5770 = vunpack.c.l.b16 %v1368
    %v5771 = vunpack.c.h.b16 %v1368
    %v5772 = vunpack.c.l.b16 %v1369
    %v5773 = vunpack.c.h.b16 %v1369
    %v5774 = vunpack.c.l.b16 %v1370
    %v5775 = vunpack.c.h.b16 %v1370
    %v5776 = vunpack.c.l.b16 %v1371
    %v5777 = vunpack.c.h.b16 %v1371
    %v5778 = vunpack.c.l.b16 %v1372
    %v5779 = vunpack.c.h.b16 %v1372
    %v5780 = vunpack.c.l.b16 %v1373
    %v5781 = vunpack.c.h.b16 %v1373
    %v5782 = vunpack.c.l.b16 %v1374
    %v5783 = vunpack.c.h.b16 %v1374
    %v5784 = vunpack.c.l.b16 %v1375
    %v5785 = vunpack.c.h.b16 %v1375
    %v5786 = vunpack.c.l.b16 %v1376
    %v5787 = vunpack.c.h.b16 %v1376
    %v5788 = vunpack.c.l.b16 %v1377
    %v5789 = vunpack.c.h.b16 %v1377
    %v5790 = vunpack.c.l.b16 %v1378
    %v5791 = vunpack.c.h.b16 %v1378
    %v5792 = vunpack.c.l.b16 %v1379
    %v5793 = vunpack.c.h.b16 %v1379
    %v5794 = vunpack.c.l.b16 %v1380
    %v5795 = vunpack.c.h.b16 %v1380
    %v5796 = vunpack.c.l.b16 %v1381
    %v5797 = vunpack.c.h.b16 %v1381
    %v5798 = vunpack.c.l.b16 %v1382
    %v5799 = vunpack.c.h.b16 %v1382
    %v5800 = vunpack.c.l.b16 %v1383
    %v5801 = vunpack.c.h.b16 %v1383
    %v5802 = vunpack.c.l.b16 %v1384
    %v5803 = vunpack.c.h.b16 %v1384
    %v5804 = vunpack.c.l.b16 %v1385
    %v5805 = vunpack.c.h.b16 %v1385
    %v5806 = vunpack.c.l.b16 %v1386
    %v5807 = vunpack.c.h.b16 %v1386
    %v5808 = vunpack.c.l.b16 %v1387
    %v5809 = vunpack.c.h.b16 %v1387
    %v5810 = vunpack.c.l.b16 %v1388
    %v5811 = vunpack.c.h.b16 %v1388
    %v5812 = vunpack.c.l.b16 %v1389
    %v5813 = vunpack.c.h.b16 %v1389
    %v5814 = vunpack.c.l.b16 %v1390
    %v5815 = vunpack.c.h.b16 %v1390
    %v5816 = vunpack.c.l.b16 %v1391
    %v5817 = vunpack.c.h.b16 %v1391
    %v5818 = vunpack.c.l.b16 %v1392
    %v5819 = vunpack.c.h.b16 %v1392
    %v5820 = vunpack.c.l.b16 %v1393
    %v5821 = vunpack.c.h.b16 %v1393
    %v5822 = vunpack.c.l.b16 %v1394
    %v5823 = vunpack.c.h.b16 %v1394
    %v5824 = vunpack.c.l.b16 %v1395
    %v5825 = vunpack.c.h.b16 %v1395
    %v5826 = vunpack.c.l.b16 %v1396
    %v5827 = vunpack.c.h.b16 %v1396
    %v5828 = vunpack.c.l.b16 %v1397
    %v5829 = vunpack.c.h.b16 %v1397
    %v5830 = vunpack.c.l.b16 %v1398
    %v5831 = vunpack.c.h.b16 %v1398
    %v5832 = vunpack.c.l.b16 %v1399
    %v5833 = vunpack.c.h.b16 %v1399
    %v5834 = vunpack.c.l.b16 %v1400
    %v5835 = vunpack.c.h.b16 %v1400
    %v5836 = vunpack.c.l.b16 %v1401
    %v5837 = vunpack.c.h.b16 %v1401
    %v5838 = vunpack.c.l.b16 %v1402
    %v5839 = vunpack.c.h.b16 %v1402
    %v5840 = vunpack.c.l.b16 %v1403
    %v5841 = vunpack.c.h.b16 %v1403
    %v5842 = vunpack.c.l.b16 %v1404
    %v5843 = vunpack.c.h.b16 %v1404
    %v5844 = vunpack.c.l.b16 %v1405
    %v5845 = vunpack.c.h.b16 %v1405
    %v5846 = vunpack.c.l.b16 %v1406
    %v5847 = vunpack.c.h.b16 %v1406
    %v5848 = vunpack.c.l.b16 %v1407
    %v5849 = vunpack.c.h.b16 %v1407
    %v5850 = vunpack.c.l.b16 %v1408
    %v5851 = vunpack.c.h.b16 %v1408
    %v5852 = vunpack.c.l.b16 %v1409
    %v5853 = vunpack.c.h.b16 %v1409
    %v5854 = vunpack.c.l.b16 %v1410
    %v5855 = vunpack.c.h.b16 %v1410
    %v5856 = vunpack.c.l.b16 %v1411
    %v5857 = vunpack.c.h.b16 %v1411
    %v5858 = vunpack.c.l.b16 %v1412
    %v5859 = vunpack.c.h.b16 %v1412
    %v5860 = vunpack.c.l.b16 %v1413
    %v5861 = vunpack.c.h.b16 %v1413
    %v5862 = vunpack.c.l.b16 %v1414
    %v5863 = vunpack.c.h.b16 %v1414
    %v5864 = vunpack.c.l.b16 %v1415
    %v5865 = vunpack.c.h.b16 %v1415
    %v5866 = vunpack.c.l.b16 %v1416
    %v5867 = vunpack.c.h.b16 %v1416
    %v5868 = vunpack.c.l.b16 %v1417
    %v5869 = vunpack.c.h.b16 %v1417
    %v5870 = vunpack.c.l.b16 %v1418
    %v5871 = vunpack.c.h.b16 %v1418
    %v5872 = vunpack.c.l.b16 %v1419
    %v5873 = vunpack.c.h.b16 %v1419
    %v5874 = vunpack.c.l.b16 %v1420
    %v5875 = vunpack.c.h.b16 %v1420
    %v5876 = vunpack.c.l.b16 %v1421
    %v5877 = vunpack.c.h.b16 %v1421
    %v5878 = vunpack.c.l.b16 %v1422
    %v5879 = vunpack.c.h.b16 %v1422
    %v5880 = vunpack.c.l.b16 %v1423
    %v5881 = vunpack.c.h.b16 %v1423
    %v5882 = vunpack.c.l.b16 %v1424
    %v5883 = vunpack.c.h.b16 %v1424
    %v5884 = vunpack.c.l.b16 %v1425
    %v5885 = vunpack.c.h.b16 %v1425
    %v5886 = vunpack.c.l.b16 %v1426
    %v5887 = vunpack.c.h.b16 %v1426
    %v5888 = vunpack.c.l.b16 %v1427
    %v5889 = vunpack.c.h.b16 %v1427
    %v5890 = vunpack.c.l.b16 %v1428
    %v5891 = vunpack.c.h.b16 %v1428
    %v5892 = vunpack.c.l.b16 %v1429
    %v5893 = vunpack.c.h.b16 %v1429
    %v5894 = vunpack.c.l.b16 %v1430
    %v5895 = vunpack.c.h.b16 %v1430
    %v5896 = vunpack.c.l.b16 %v1431
    %v5897 = vunpack.c.h.b16 %v1431
    %v5898 = vunpack.c.l.b16 %v1432
    %v5899 = vunpack.c.h.b16 %v1432
    %v5900 = vunpack.c.l.b16 %v1433
    %v5901 = vunpack.c.h.b16 %v1433
    %v5902 = vunpack.c.l.b16 %v1434
    %v5903 = vunpack.c.h.b16 %v1434
    %v5904 = vunpack.c.l.b16 %v1435
    %v5905 = vunpack.c.h.b16 %v1435
    %v5906 = vunpack.c.l.b16 %v1436
    %v5907 = vunpack.c.h.b16 %v1436
    %v5908 = vunpack.c.l.b16 %v1437
    %v5909 = vunpack.c.h.b16 %v1437
    %v5910 = vunpack.c.l.b16 %v1438
    %v5911 = vunpack.c.h.b16 %v1438
    %v5912 = vunpack.c.l.b16 %v1439
    %v5913 = vunpack.c.h.b16 %v1439
    %v5914 = vunpack.c.l.b16 %v1440
    %v5915 = vunpack.c.h.b16 %v1440
    %v5916 = vunpack.c.l.b16 %v1441
    %v5917 = vunpack.c.h.b16 %v1441
    %v5918 = vunpack.c.l.b16 %v1442
    %v5919 = vunpack.c.h.b16 %v1442
    %v5920 = vunpack.c.l.b16 %v1443
    %v5921 = vunpack.c.h.b16 %v1443
    %v5922 = vunpack.c.l.b16 %v1444
    %v5923 = vunpack.c.h.b16 %v1444
    %v5924 = vunpack.c.l.b16 %v1445
    %v5925 = vunpack.c.h.b16 %v1445
    %v5926 = vunpack.c.l.b16 %v1446
    %v5927 = vunpack.c.h.b16 %v1446
    %v5928 = vunpack.c.l.b16 %v1447
    %v5929 = vunpack.c.h.b16 %v1447
    %v5930 = vunpack.c.l.b16 %v1448
    %v5931 = vunpack.c.h.b16 %v1448
    %v5932 = vunpack.c.l.b16 %v1449
    %v5933 = vunpack.c.h.b16 %v1449
    %v5934 = vunpack.c.l.b16 %v1450
    %v5935 = vunpack.c.h.b16 %v1450
    %v5936 = vunpack.c.l.b16 %v1451
    %v5937 = vunpack.c.h.b16 %v1451
    %v5938 = vunpack.c.l.b16 %v1452
    %v5939 = vunpack.c.h.b16 %v1452
    %v5940 = vunpack.c.l.b16 %v1453
    %v5941 = vunpack.c.h.b16 %v1453
    %v5942 = vunpack.c.l.b16 %v1454
    %v5943 = vunpack.c.h.b16 %v1454
    %v5944 = vunpack.c.l.b16 %v1455
    %v5945 = vunpack.c.h.b16 %v1455
    %v5946 = vunpack.c.l.b16 %v1456
    %v5947 = vunpack.c.h.b16 %v1456
    %v5948 = vunpack.c.l.b16 %v1457
    %v5949 = vunpack.c.h.b16 %v1457
    %v5950 = vunpack.c.l.b16 %v1458
    %v5951 = vunpack.c.h.b16 %v1458
    %v5952 = vunpack.c.l.b16 %v1459
    %v5953 = vunpack.c.h.b16 %v1459
    %v5954 = vunpack.c.l.b16 %v1460
    %v5955 = vunpack.c.h.b16 %v1460
    %v5956 = vunpack.c.l.b16 %v1461
    %v5957 = vunpack.c.h.b16 %v1461
    %v5958 = vunpack.c.l.b16 %v1462
    %v5959 = vunpack.c.h.b16 %v1462
    %v5960 = vunpack.c.l.b16 %v1463
    %v5961 = vunpack.c.h.b16 %v1463
    %v5962 = vunpack.c.l.b16 %v1464
    %v5963 = vunpack.c.h.b16 %v1464
    %v5964 = vunpack.c.l.b16 %v1465
    %v5965 = vunpack.c.h.b16 %v1465
    %v5966 = vunpack.c.l.b16 %v1466
    %v5967 = vunpack.c.h.b16 %v1466
    %v5968 = vunpack.c.l.b16 %v1467
    %v5969 = vunpack.c.h.b16 %v1467
    %v5970 = vunpack.c.l.b16 %v1468
    %v5971 = vunpack.c.h.b16 %v1468
    %v5972 = vunpack.c.l.b16 %v1469
    %v5973 = vunpack.c.h.b16 %v1469
    %v5974 = vunpack.c.l.b16 %v1470
    %v5975 = vunpack.c.h.b16 %v1470
    %v5976 = vunpack.c.l.b16 %v1471
    %v5977 = vunpack.c.h.b16 %v1471
    %v5978 = vunpack.c.l.b16 %v1472
    %v5979 = vunpack.c.h.b16 %v1472
    %v5980 = vunpack.c.l.b16 %v1473
    %v5981 = vunpack.c.h.b16 %v1473
    %v5982 = vunpack.c.l.b16 %v1474
    %v5983 = vunpack.c.h.b16 %v1474
    %v5984 = vunpack.c.l.b16 %v1475
    %v5985 = vunpack.c.h.b16 %v1475
    %v5986 = vunpack.c.l.b16 %v1476
    %v5987 = vunpack.c.h.b16 %v1476
    %v5988 = vunpack.c.l.b16 %v1477
    %v5989 = vunpack.c.h.b16 %v1477
    %v5990 = vunpack.c.l.b16 %v1478
    %v5991 = vunpack.c.h.b16 %v1478
    %v5992 = vunpack.c.l.b16 %v1479
    %v5993 = vunpack.c.h.b16 %v1479
    %v5994 = vunpack.c.l.b16 %v1480
    %v5995 = vunpack.c.h.b16 %v1480
    %v5996 = vunpack.c.l.b16 %v1481
    %v5997 = vunpack.c.h.b16 %v1481
    %v5998 = vunpack.c.l.b16 %v1482
    %v5999 = vunpack.c.h.b16 %v1482
    %v6000 = vunpack.c.l.b16 %v1483
    %v6001 = vunpack.c.h.b16 %v1483
    %v6002 = vunpack.c.l.b16 %v1484
    %v6003 = vunpack.c.h.b16 %v1484
    %v6004 = vunpack.c.l.b16 %v1485
    %v6005 = vunpack.c.h.b16 %v1485
    %v6006 = vunpack.c.l.b16 %v1486
    %v6007 = vunpack.c.h.b16 %v1486
    %v6008 = vunpack.c.l.b16 %v1487
    %v6009 = vunpack.c.h.b16 %v1487
    %v6010 = vunpack.c.l.b16 %v1488
    %v6011 = vunpack.c.h.b16 %v1488
    %v6012 = vunpack.c.l.b16 %v1489
    %v6013 = vunpack.c.h.b16 %v1489
    %v6014 = vunpack.c.l.b16 %v1490
    %v6015 = vunpack.c.h.b16 %v1490
    %v6016 = vunpack.c.l.b16 %v1491
    %v6017 = vunpack.c.h.b16 %v1491
    %v6018 = vunpack.c.l.b16 %v1492
    %v6019 = vunpack.c.h.b16 %v1492
    %v6020 = vunpack.c.l.b16 %v1493
    %v6021 = vunpack.c.h.b16 %v1493
    %v6022 = vunpack.c.l.b16 %v1494
    %v6023 = vunpack.c.h.b16 %v1494
    %v6024 = vunpack.c.l.b16 %v1495
    %v6025 = vunpack.c.h.b16 %v1495
    %v6026 = vunpack.c.l.b16 %v1496
    %v6027 = vunpack.c.h.b16 %v1496
    %v6028 = vunpack.c.l.b16 %v1497
    %v6029 = vunpack.c.h.b16 %v1497
    %v6030 = vunpack.c.l.b16 %v1498
    %v6031 = vunpack.c.h.b16 %v1498
    %v6032 = vunpack.c.l.b16 %v1499
    %v6033 = vunpack.c.h.b16 %v1499
    %v6034 = vunpack.c.l.b16 %v1500
    %v6035 = vunpack.c.h.b16 %v1500
    %v6036 = vunpack.c.l.b16 %v1501
    %v6037 = vunpack.c.h.b16 %v1501
    %v6038 = vunpack.c.l.b16 %v1502
    %v6039 = vunpack.c.h.b16 %v1502
    %v6040 = vunpack.c.l.b16 %v1503
    %v6041 = vunpack.c.h.b16 %v1503
    %v6042 = vunpack.c.l.b16 %v1504
    %v6043 = vunpack.c.h.b16 %v1504
    %v6044 = vunpack.c.l.b16 %v1505
    %v6045 = vunpack.c.h.b16 %v1505
    %v6046 = vunpack.c.l.b16 %v1506
    %v6047 = vunpack.c.h.b16 %v1506
    %v6048 = vunpack.c.l.b16 %v1507
    %v6049 = vunpack.c.h.b16 %v1507
    %v6050 = vunpack.c.l.b16 %v1508
    %v6051 = vunpack.c.h.b16 %v1508
    %v6052 = vunpack.c.l.b16 %v1509
    %v6053 = vunpack.c.h.b16 %v1509
    %v6054 = vunpack.c.l.b16 %v1510
    %v6055 = vunpack.c.h.b16 %v1510
    %v6056 = vunpack.c.l.b16 %v1511
    %v6057 = vunpack.c.h.b16 %v1511
    %v6058 = vunpack.c.l.b16 %v1512
    %v6059 = vunpack.c.h.b16 %v1512
    %v6060 = vunpack.c.l.b16 %v1513
    %v6061 = vunpack.c.h.b16 %v1513
    %v6062 = vunpack.c.l.b16 %v1514
    %v6063 = vunpack.c.h.b16 %v1514
    %v6064 = vunpack.c.l.b16 %v1515
    %v6065 = vunpack.c.h.b16 %v1515
    %v6066 = vunpack.c.l.b16 %v1516
    %v6067 = vunpack.c.h.b16 %v1516
    %v6068 = vunpack.c.l.b16 %v1517
    %v6069 = vunpack.c.h.b16 %v1517
    %v6070 = vunpack.c.l.b16 %v1518
    %v6071 = vunpack.c.h.b16 %v1518
    %v6072 = vunpack.c.l.b16 %v1519
    %v6073 = vunpack.c.h.b16 %v1519
    %v6074 = vunpack.c.l.b16 %v1520
    %v6075 = vunpack.c.h.b16 %v1520
    %v6076 = vunpack.c.l.b16 %v1521
    %v6077 = vunpack.c.h.b16 %v1521
    %v6078 = vunpack.c.l.b16 %v1522
    %v6079 = vunpack.c.h.b16 %v1522
    %v6080 = vunpack.c.l.b16 %v1523
    %v6081 = vunpack.c.h.b16 %v1523
    %v6082 = vunpack.c.l.b16 %v1524
    %v6083 = vunpack.c.h.b16 %v1524
    %v6084 = vunpack.c.l.b16 %v1525
    %v6085 = vunpack.c.h.b16 %v1525
    %v6086 = vunpack.c.l.b16 %v1526
    %v6087 = vunpack.c.h.b16 %v1526
    %v6088 = vunpack.c.l.b16 %v1527
    %v6089 = vunpack.c.h.b16 %v1527
    %v6090 = vunpack.c.l.b16 %v1528
    %v6091 = vunpack.c.h.b16 %v1528
    %v6092 = vunpack.c.l.b16 %v1529
    %v6093 = vunpack.c.h.b16 %v1529
    %v6094 = vunpack.c.l.b16 %v1530
    %v6095 = vunpack.c.h.b16 %v1530
    %v6096 = vunpack.c.l.b16 %v1531
    %v6097 = vunpack.c.h.b16 %v1531
    %v6098 = vunpack.c.l.b16 %v1532
    %v6099 = vunpack.c.h.b16 %v1532
    %v6100 = vunpack.c.l.b16 %v1533
    %v6101 = vunpack.c.h.b16 %v1533
    %v6102 = vunpack.c.l.b16 %v1534
    %v6103 = vunpack.c.h.b16 %v1534
    %v6104 = vunpack.c.l.b16 %v1535
    %v6105 = vunpack.c.h.b16 %v1535
    %v6106 = vunpack.c.l.b16 %v1536
    %v6107 = vunpack.c.h.b16 %v1536
    %v6108 = vunpack.c.l.b16 %v1537
    %v6109 = vunpack.c.h.b16 %v1537
    %v6110 = vunpack.c.l.b16 %v1538
    %v6111 = vunpack.c.h.b16 %v1538
    %v6112 = vunpack.c.l.b16 %v1539
    %v6113 = vunpack.c.h.b16 %v1539
    %v6114 = vunpack.c.l.b16 %v1540
    %v6115 = vunpack.c.h.b16 %v1540
    %v6116 = vunpack.c.l.b16 %v1541
    %v6117 = vunpack.c.h.b16 %v1541
    %v6118 = vunpack.c.l.b16 %v1542
    %v6119 = vunpack.c.h.b16 %v1542
    %v6120 = vunpack.c.l.b16 %v1543
    %v6121 = vunpack.c.h.b16 %v1543
    %v6122 = vunpack.c.l.b16 %v1544
    %v6123 = vunpack.c.h.b16 %v1544
    %v6124 = vunpack.c.l.b16 %v1545
    %v6125 = vunpack.c.h.b16 %v1545
    %v6126 = vunpack.c.l.b16 %v1546
    %v6127 = vunpack.c.h.b16 %v1546
    %v6128 = vunpack.c.l.b16 %v1547
    %v6129 = vunpack.c.h.b16 %v1547
    %v6130 = vunpack.c.l.b16 %v1548
    %v6131 = vunpack.c.h.b16 %v1548
    %v6132 = vunpack.c.l.b16 %v1549
    %v6133 = vunpack.c.h.b16 %v1549
    %v6134 = vunpack.c.l.b16 %v1550
    %v6135 = vunpack.c.h.b16 %v1550
    %v6136 = vunpack.c.l.b16 %v1551
    %v6137 = vunpack.c.h.b16 %v1551
    %v6138 = vunpack.c.l.b16 %v1552
    %v6139 = vunpack.c.h.b16 %v1552
    %v6140 = vunpack.c.l.b16 %v1553
    %v6141 = vunpack.c.h.b16 %v1553
    %v6142 = vunpack.c.l.b16 %v1554
    %v6143 = vunpack.c.h.b16 %v1554
    %v6144 = vunpack.c.l.b16 %v1555
    %v6145 = vunpack.c.h.b16 %v1555
    %v6146 = vunpack.c.l.b16 %v1556
    %v6147 = vunpack.c.h.b16 %v1556
    %v6148 = vunpack.c.l.b16 %v1557
    %v6149 = vunpack.c.h.b16 %v1557
    %v6150 = vunpack.c.l.b16 %v1558
    %v6151 = vunpack.c.h.b16 %v1558
    %v6152 = vunpack.c.l.b16 %v1559
    %v6153 = vunpack.c.h.b16 %v1559
    %v6154 = vunpack.c.l.b16 %v1560
    %v6155 = vunpack.c.h.b16 %v1560
    %v6156 = vunpack.c.l.b16 %v1561
    %v6157 = vunpack.c.h.b16 %v1561
    %v6158 = vunpack.c.l.b16 %v1562
    %v6159 = vunpack.c.h.b16 %v1562
    %v6160 = vunpack.c.l.b16 %v1563
    %v6161 = vunpack.c.h.b16 %v1563
    %v6162 = vunpack.c.l.b16 %v1564
    %v6163 = vunpack.c.h.b16 %v1564
    %v6164 = vunpack.c.l.b16 %v1565
    %v6165 = vunpack.c.h.b16 %v1565
    %v6166 = vunpack.c.l.b16 %v1566
    %v6167 = vunpack.c.h.b16 %v1566
    %v6168 = vunpack.c.l.b16 %v1567
    %v6169 = vunpack.c.h.b16 %v1567
    %v6170 = vunpack.c.l.b16 %v1568
    %v6171 = vunpack.c.h.b16 %v1568
    %v6172 = vunpack.c.l.b16 %v1569
    %v6173 = vunpack.c.h.b16 %v1569
    %v6174 = vunpack.c.l.b16 %v1570
    %v6175 = vunpack.c.h.b16 %v1570
    %v6176 = vunpack.c.l.b16 %v1571
    %v6177 = vunpack.c.h.b16 %v1571
    %v6178 = vunpack.c.l.b16 %v1572
    %v6179 = vunpack.c.h.b16 %v1572
    %v6180 = vunpack.c.l.b16 %v1573
    %v6181 = vunpack.c.h.b16 %v1573
    %v6182 = vunpack.c.l.b16 %v1574
    %v6183 = vunpack.c.h.b16 %v1574
    %v6184 = vunpack.c.l.b16 %v1575
    %v6185 = vunpack.c.h.b16 %v1575
    %v6186 = vunpack.c.l.b16 %v1576
    %v6187 = vunpack.c.h.b16 %v1576
    %v6188 = vunpack.c.l.b16 %v1577
    %v6189 = vunpack.c.h.b16 %v1577
    %v6190 = vunpack.c.l.b16 %v1578
    %v6191 = vunpack.c.h.b16 %v1578
    %v6192 = vunpack.c.l.b16 %v1579
    %v6193 = vunpack.c.h.b16 %v1579
    %v6194 = vunpack.c.l.b16 %v1580
    %v6195 = vunpack.c.h.b16 %v1580
    %v6196 = vunpack.c.l.b16 %v1581
    %v6197 = vunpack.c.h.b16 %v1581
    %v6198 = vunpack.c.l.b16 %v1582
    %v6199 = vunpack.c.h.b16 %v1582
    %v6200 = vunpack.c.l.b16 %v1583
    %v6201 = vunpack.c.h.b16 %v1583
    %v6202 = vunpack.c.l.b16 %v1584
    %v6203 = vunpack.c.h.b16 %v1584
    %v6204 = vunpack.c.l.b16 %v1585
    %v6205 = vunpack.c.h.b16 %v1585
    %v6206 = vunpack.c.l.b16 %v1586
    %v6207 = vunpack.c.h.b16 %v1586
    %v6208 = vunpack.c.l.b16 %v1587
    %v6209 = vunpack.c.h.b16 %v1587
    %v6210 = vunpack.c.l.b16 %v1588
    %v6211 = vunpack.c.h.b16 %v1588
    %v6212 = vunpack.c.l.b16 %v1589
    %v6213 = vunpack.c.h.b16 %v1589
    %v6214 = vunpack.c.l.b16 %v1590
    %v6215 = vunpack.c.h.b16 %v1590
    %v6216 = vunpack.c.l.b16 %v1591
    %v6217 = vunpack.c.h.b16 %v1591
    %v6218 = vunpack.c.l.b16 %v1592
    %v6219 = vunpack.c.h.b16 %v1592
    %v6220 = vunpack.c.l.b16 %v1593
    %v6221 = vunpack.c.h.b16 %v1593
    %v6222 = vunpack.c.l.b16 %v1594
    %v6223 = vunpack.c.h.b16 %v1594
    %v6224 = vunpack.c.l.b16 %v1595
    %v6225 = vunpack.c.h.b16 %v1595
    %v6226 = vunpack.c.l.b16 %v1596
    %v6227 = vunpack.c.h.b16 %v1596
    %v6228 = vunpack.c.l.b16 %v1597
    %v6229 = vunpack.c.h.b16 %v1597
    %v6230 = vunpack.c.l.b16 %v1598
    %v6231 = vunpack.c.h.b16 %v1598
    %v6232 = vunpack.c.l.b16 %v1599
    %v6233 = vunpack.c.h.b16 %v1599
    %v6234 = vunpack.c.l.b16 %v1600
    %v6235 = vunpack.c.h.b16 %v1600
    %v6236 = vunpack.c.l.b16 %v1601
    %v6237 = vunpack.c.h.b16 %v1601
    %v6238 = vunpack.c.l.b16 %v1602
    %v6239 = vunpack.c.h.b16 %v1602
    %v6240 = vunpack.c.l.b16 %v1603
    %v6241 = vunpack.c.h.b16 %v1603
    %v6242 = vunpack.c.l.b16 %v1604
    %v6243 = vunpack.c.h.b16 %v1604
    %v6244 = vunpack.c.l.b16 %v1605
    %v6245 = vunpack.c.h.b16 %v1605
    %v6246 = vunpack.c.l.b16 %v1606
    %v6247 = vunpack.c.h.b16 %v1606
    %v6248 = vunpack.c.l.b16 %v1607
    %v6249 = vunpack.c.h.b16 %v1607
    %v6250 = vunpack.c.l.b16 %v1608
    %v6251 = vunpack.c.h.b16 %v1608
    %v6252 = vunpack.c.l.b16 %v1609
    %v6253 = vunpack.c.h.b16 %v1609
    %v6254 = vunpack.c.l.b16 %v1610
    %v6255 = vunpack.c.h.b16 %v1610
    %v6256 = vunpack.c.l.b16 %v1611
    %v6257 = vunpack.c.h.b16 %v1611
    %v6258 = vunpack.c.l.b16 %v1612
    %v6259 = vunpack.c.h.b16 %v1612
    %v6260 = vunpack.c.l.b16 %v1613
    %v6261 = vunpack.c.h.b16 %v1613
    %v6262 = vunpack.c.l.b16 %v1614
    %v6263 = vunpack.c.h.b16 %v1614
    %v6264 = vunpack.c.l.b16 %v1615
    %v6265 = vunpack.c.h.b16 %v1615
    %v6266 = vunpack.c.l.b16 %v1616
    %v6267 = vunpack.c.h.b16 %v1616
    %v6268 = vunpack.c.l.b16 %v1617
    %v6269 = vunpack.c.h.b16 %v1617
    %v6270 = vunpack.c.l.b16 %v1618
    %v6271 = vunpack.c.h.b16 %v1618
    %v6272 = vunpack.c.l.b16 %v1619
    %v6273 = vunpack.c.h.b16 %v1619
    %v6274 = vunpack.c.l.b16 %v1620
    %v6275 = vunpack.c.h.b16 %v1620
    %v6276 = vunpack.c.l.b16 %v1621
    %v6277 = vunpack.c.h.b16 %v1621
    %v6278 = vunpack.c.l.b16 %v1622
    %v6279 = vunpack.c.h.b16 %v1622
    %v6280 = vunpack.c.l.b16 %v1623
    %v6281 = vunpack.c.h.b16 %v1623
    %v6282 = vunpack.c.l.b16 %v1624
    %v6283 = vunpack.c.h.b16 %v1624
    %v6284 = vunpack.c.l.b16 %v1625
    %v6285 = vunpack.c.h.b16 %v1625
    %v6286 = vunpack.c.l.b16 %v1626
    %v6287 = vunpack.c.h.b16 %v1626
    %v6288 = vunpack.c.l.b16 %v1627
    %v6289 = vunpack.c.h.b16 %v1627
    %v6290 = vunpack.c.l.b16 %v1628
    %v6291 = vunpack.c.h.b16 %v1628
    %v6292 = vunpack.c.l.b16 %v1629
    %v6293 = vunpack.c.h.b16 %v1629
    %v6294 = vunpack.c.l.b16 %v1630
    %v6295 = vunpack.c.h.b16 %v1630
    %v6296 = vunpack.c.l.b16 %v1631
    %v6297 = vunpack.c.h.b16 %v1631
    %v6298 = vunpack.c.l.b16 %v1632
    %v6299 = vunpack.c.h.b16 %v1632
    %v6300 = vunpack.c.l.b16 %v1633
    %v6301 = vunpack.c.h.b16 %v1633
    %v6302 = vunpack.c.l.b16 %v1634
    %v6303 = vunpack.c.h.b16 %v1634
    %v6304 = vunpack.c.l.b16 %v1635
    %v6305 = vunpack.c.h.b16 %v1635
    %v6306 = vunpack.c.l.b16 %v1636
    %v6307 = vunpack.c.h.b16 %v1636
    %v6308 = vunpack.c.l.b16 %v1637
    %v6309 = vunpack.c.h.b16 %v1637
    %v6310 = vunpack.c.l.b16 %v1638
    %v6311 = vunpack.c.h.b16 %v1638
    %v6312 = vunpack.c.l.b16 %v1639
    %v6313 = vunpack.c.h.b16 %v1639
    %v6314 = vunpack.c.l.b16 %v1640
    %v6315 = vunpack.c.h.b16 %v1640
    %v6316 = vunpack.c.l.b16 %v1641
    %v6317 = vunpack.c.h.b16 %v1641
    %v6318 = vunpack.c.l.b16 %v1642
    %v6319 = vunpack.c.h.b16 %v1642
    %v6320 = vunpack.c.l.b16 %v1643
    %v6321 = vunpack.c.h.b16 %v1643
    %v6322 = vunpack.c.l.b16 %v1644
    %v6323 = vunpack.c.h.b16 %v1644
    %v6324 = vunpack.c.l.b16 %v1645
    %v6325 = vunpack.c.h.b16 %v1645
    %v6326 = vunpack.c.l.b16 %v1646
    %v6327 = vunpack.c.h.b16 %v1646
    %v6328 = vunpack.c.l.b16 %v1647
    %v6329 = vunpack.c.h.b16 %v1647
    %v6330 = vunpack.c.l.b16 %v1648
    %v6331 = vunpack.c.h.b16 %v1648
    %v6332 = vunpack.c.l.b16 %v1649
    %v6333 = vunpack.c.h.b16 %v1649
    %v6334 = vunpack.c.l.b16 %v1650
    %v6335 = vunpack.c.h.b16 %v1650
    %v6336 = vunpack.c.l.b16 %v1651
    %v6337 = vunpack.c.h.b16 %v1651
    %v6338 = vunpack.c.l.b16 %v1652
    %v6339 = vunpack.c.h.b16 %v1652
    %v6340 = vunpack.c.l.b16 %v1653
    %v6341 = vunpack.c.h.b16 %v1653
    %v6342 = vunpack.c.l.b16 %v1654
    %v6343 = vunpack.c.h.b16 %v1654
    %v6344 = vunpack.c.l.b16 %v1655
    %v6345 = vunpack.c.h.b16 %v1655
    %v6346 = vunpack.c.l.b16 %v1656
    %v6347 = vunpack.c.h.b16 %v1656
    %v6348 = vunpack.c.l.b16 %v1657
    %v6349 = vunpack.c.h.b16 %v1657
    %v6350 = vunpack.c.l.b16 %v1658
    %v6351 = vunpack.c.h.b16 %v1658
    %v6352 = vunpack.c.l.b16 %v1659
    %v6353 = vunpack.c.h.b16 %v1659
    %v6354 = vunpack.c.l.b16 %v1660
    %v6355 = vunpack.c.h.b16 %v1660
    %v6356 = vunpack.c.l.b16 %v1661
    %v6357 = vunpack.c.h.b16 %v1661
    %v6358 = vunpack.c.l.b16 %v1662
    %v6359 = vunpack.c.h.b16 %v1662
    %v6360 = vunpack.c.l.b16 %v1663
    %v6361 = vunpack.c.h.b16 %v1663
    %v6362 = vunpack.c.l.b16 %v1664
    %v6363 = vunpack.c.h.b16 %v1664
    %v6364 = vunpack.c.l.b16 %v1665
    %v6365 = vunpack.c.h.b16 %v1665
    %v6366 = vunpack.c.l.b16 %v1666
    %v6367 = vunpack.c.h.b16 %v1666
    %v6368 = vunpack.c.l.b16 %v1667
    %v6369 = vunpack.c.h.b16 %v1667
    %v6370 = vunpack.c.l.b16 %v1668
    %v6371 = vunpack.c.h.b16 %v1668
    %v6372 = vunpack.c.l.b16 %v1669
    %v6373 = vunpack.c.h.b16 %v1669
    %v6374 = vunpack.c.l.b16 %v1670
    %v6375 = vunpack.c.h.b16 %v1670
    %v6376 = vunpack.c.l.b16 %v1671
    %v6377 = vunpack.c.h.b16 %v1671
    %v6378 = vunpack.c.l.b16 %v1672
    %v6379 = vunpack.c.h.b16 %v1672
    %v6380 = vunpack.c.l.b16 %v1673
    %v6381 = vunpack.c.h.b16 %v1673
    %v6382 = vunpack.c.l.b16 %v1674
    %v6383 = vunpack.c.h.b16 %v1674
    %v6384 = vunpack.c.l.b16 %v1675
    %v6385 = vunpack.c.h.b16 %v1675
    %v6386 = vpack.c.b16 %v3322, %v3314
    %v6387 = vpack.c.b16 %v3323, %v3315
    %v6388 = vpack.c.b16 %v3324, %v3316
    %v6389 = vpack.c.b16 %v3325, %v3317
    %v6390 = vpack.c.b16 %v3326, %v3318
    %v6391 = vpack.c.b16 %v3327, %v3319
    %v6392 = vpack.c.b16 %v3328, %v3320
    %v6393 = vpack.c.b16 %v3329, %v3321
    %v6394 = vpack.c.b16 %v3338, %v3330
    %v6395 = vpack.c.b16 %v3339, %v3331
    %v6396 = vpack.c.b16 %v3340, %v3332
    %v6397 = vpack.c.b16 %v3341, %v3333
    %v6398 = vpack.c.b16 %v3342, %v3334
    %v6399 = vpack.c.b16 %v3343, %v3335
    %v6400 = vpack.c.b16 %v3344, %v3336
    %v6401 = vpack.c.b16 %v3345, %v3337
    %v6402 = vpack.c.b16 %v3354, %v3346
    %v6403 = vpack.c.b16 %v3355, %v3347
    %v6404 = vpack.c.b16 %v3356, %v3348
    %v6405 = vpack.c.b16 %v3357, %v3349
    %v6406 = vpack.c.b16 %v3358, %v3350
    %v6407 = vpack.c.b16 %v3359, %v3351
    %v6408 = vpack.c.b16 %v3360, %v3352
    %v6409 = vpack.c.b16 %v3361, %v3353
    %v6410 = vpack.c.b16 %v3370, %v3362
    %v6411 = vpack.c.b16 %v3371, %v3363
    %v6412 = vpack.c.b16 %v3372, %v3364
    %v6413 = vpack.c.b16 %v3373, %v3365
    %v6414 = vpack.c.b16 %v3374, %v3366
    %v6415 = vpack.c.b16 %v3375, %v3367
    %v6416 = vpack.c.b16 %v3376, %v3368
    %v6417 = vpack.c.b16 %v3377, %v3369
    %v6418 = vpack.c.b16 %v3386, %v3378
    %v6419 = vpack.c.b16 %v3387, %v3379
    %v6420 = vpack.c.b16 %v3388, %v3380
    %v6421 = vpack.c.b16 %v3389, %v3381
    %v6422 = vpack.c.b16 %v3390, %v3382
    %v6423 = vpack.c.b16 %v3391, %v3383
    %v6424 = vpack.c.b16 %v3392, %v3384
    %v6425 = vpack.c.b16 %v3393, %v3385
    %v6426 = vpack.c.b16 %v3402, %v3394
    %v6427 = vpack.c.b16 %v3403, %v3395
    %v6428 = vpack.c.b16 %v3404, %v3396
    %v6429 = vpack.c.b16 %v3405, %v3397
    %v6430 = vpack.c.b16 %v3406, %v3398
    %v6431 = vpack.c.b16 %v3407, %v3399
    %v6432 = vpack.c.b16 %v3408, %v3400
    %v6433 = vpack.c.b16 %v3409, %v3401
    %v6434 = vpack.c.b16 %v3418, %v3410
    %v6435 = vpack.c.b16 %v3419, %v3411
    %v6436 = vpack.c.b16 %v3420, %v3412
    %v6437 = vpack.c.b16 %v3421, %v3413
    %v6438 = vpack.c.b16 %v3422, %v3414
    %v6439 = vpack.c.b16 %v3423, %v3415
    %v6440 = vpack.c.b16 %v3424, %v3416
    %v6441 = vpack.c.b16 %v3425, %v3417
    %v6442 = vpack.c.b16 %v3434, %v3426
    %v6443 = vpack.c.b16 %v3435, %v3427
    %v6444 = vpack.c.b16 %v3436, %v3428
    %v6445 = vpack.c.b16 %v3437, %v3429
    %v6446 = vpack.c.b16 %v3438, %v3430
    %v6447 = vpack.c.b16 %v3439, %v3431
    %v6448 = vpack.c.b16 %v3440, %v3432
    %v6449 = vpack.c.b16 %v3441, %v3433
    %v6450 = vpack.c.b16 %v3450, %v3442
    %v6451 = vpack.c.b16 %v3451, %v3443
    %v6452 = vpack.c.b16 %v3452, %v3444
    %v6453 = vpack.c.b16 %v3453, %v3445
    %v6454 = vpack.c.b16 %v3454, %v3446
    %v6455 = vpack.c.b16 %v3455, %v3447
    %v6456 = vpack.c.b16 %v3456, %v3448
    %v6457 = vpack.c.b16 %v3457, %v3449
    %v6458 = vpack.c.b16 %v3466, %v3458
    %v6459 = vpack.c.b16 %v3467, %v3459
    %v6460 = vpack.c.b16 %v3468, %v3460
    %v6461 = vpack.c.b16 %v3469, %v3461
    %v6462 = vpack.c.b16 %v3470, %v3462
    %v6463 = vpack.c.b16 %v3471, %v3463
    %v6464 = vpack.c.b16 %v3472, %v3464
    %v6465 = vpack.c.b16 %v3473, %v3465
    %v6466 = vpack.c.b16 %v3482, %v3474
    %v6467 = vpack.c.b16 %v3483, %v3475
    %v6468 = vpack.c.b16 %v3484, %v3476
    %v6469 = vpack.c.b16 %v3485, %v3477
    %v6470 = vpack.c.b16 %v3486, %v3478
    %v6471 = vpack.c.b16 %v3487, %v3479
    %v6472 = vpack.c.b16 %v3488, %v3480
    %v6473 = vpack.c.b16 %v3489, %v3481
    %v6474 = vpack.c.b16 %v3498, %v3490
    %v6475 = vpack.c.b16 %v3499, %v3491
    %v6476 = vpack.c.b16 %v3500, %v3492
    %v6477 = vpack.c.b16 %v3501, %v3493
    %v6478 = vpack.c.b16 %v3502, %v3494
    %v6479 = vpack.c.b16 %v3503, %v3495
    %v6480 = vpack.c.b16 %v3504, %v3496
    %v6481 = vpack.c.b16 %v3505, %v3497
    %v6482 = vpack.c.b16 %v3514, %v3506
    %v6483 = vpack.c.b16 %v3515, %v3507
    %v6484 = vpack.c.b16 %v3516, %v3508
    %v6485 = vpack.c.b16 %v3517, %v3509
    %v6486 = vpack.c.b16 %v3518, %v3510
    %v6487 = vpack.c.b16 %v3519, %v3511
    %v6488 = vpack.c.b16 %v3520, %v3512
    %v6489 = vpack.c.b16 %v3521, %v3513
    %v6490 = vpack.c.b16 %v3530, %v3522
    %v6491 = vpack.c.b16 %v3531, %v3523
    %v6492 = vpack.c.b16 %v3532, %v3524
    %v6493 = vpack.c.b16 %v3533, %v3525
    %v6494 = vpack.c.b16 %v3534, %v3526
    %v6495 = vpack.c.b16 %v3535, %v3527
    %v6496 = vpack.c.b16 %v3536, %v3528
    %v6497 = vpack.c.b16 %v3537, %v3529
    %v6498 = vpack.c.b16 %v3546, %v3538
    %v6499 = vpack.c.b16 %v3547, %v3539
    %v6500 = vpack.c.b16 %v3548, %v3540
    %v6501 = vpack.c.b16 %v3549, %v3541
    %v6502 = vpack.c.b16 %v3550, %v3542
    %v6503 = vpack.c.b16 %v3551, %v3543
    %v6504 = vpack.c.b16 %v3552, %v3544
    %v6505 = vpack.c.b16 %v3553, %v3545
    %v6506 = vpack.c.b16 %v3562, %v3554
    %v6507 = vpack.c.b16 %v3563, %v3555
    %v6508 = vpack.c.b16 %v3564, %v3556
    %v6509 = vpack.c.b16 %v3565, %v3557
    %v6510 = vpack.c.b16 %v3566, %v3558
    %v6511 = vpack.c.b16 %v3567, %v3559
    %v6512 = vpack.c.b16 %v3568, %v3560
    %v6513 = vpack.c.b16 %v3569, %v3561
    %v6514 = vpack.c.b16 %v3578, %v3570
    %v6515 = vpack.c.b16 %v3579, %v3571
    %v6516 = vpack.c.b16 %v3580, %v3572
    %v6517 = vpack.c.b16 %v3581, %v3573
    %v6518 = vpack.c.b16 %v3582, %v3574
    %v6519 = vpack.c.b16 %v3583, %v3575
    %v6520 = vpack.c.b16 %v3584, %v3576
    %v6521 = vpack.c.b16 %v3585, %v3577
    %v6522 = vpack.c.b16 %v3594, %v3586
    %v6523 = vpack.c.b16 %v3595, %v3587
    %v6524 = vpack.c.b16 %v3596, %v3588
    %v6525 = vpack.c.b16 %v3597, %v3589
    %v6526 = vpack.c.b16 %v3598, %v3590
    %v6527 = vpack.c.b16 %v3599, %v3591
    %v6528 = vpack.c.b16 %v3600, %v3592
    %v6529 = vpack.c.b16 %v3601, %v3593
    %v6530 = vpack.c.b16 %v3610, %v3602
    %v6531 = vpack.c.b16 %v3611, %v3603
    %v6532 = vpack.c.b16 %v3612, %v3604
    %v6533 = vpack.c.b16 %v3613, %v3605
    %v6534 = vpack.c.b16 %v3614, %v3606
    %v6535 = vpack.c.b16 %v3615, %v3607
    %v6536 = vpack.c.b16 %v3616, %v3608
    %v6537 = vpack.c.b16 %v3617, %v3609
    %v6538 = vpack.c.b16 %v3626, %v3618
    %v6539 = vpack.c.b16 %v3627, %v3619
    %v6540 = vpack.c.b16 %v3628, %v3620
    %v6541 = vpack.c.b16 %v3629, %v3621
    %v6542 = vpack.c.b16 %v3630, %v3622
    %v6543 = vpack.c.b16 %v3631, %v3623
    %v6544 = vpack.c.b16 %v3632, %v3624
    %v6545 = vpack.c.b16 %v3633, %v3625
    %v6546 = vpack.c.b16 %v3642, %v3634
    %v6547 = vpack.c.b16 %v3643, %v3635
    %v6548 = vpack.c.b16 %v3644, %v3636
    %v6549 = vpack.c.b16 %v3645, %v3637
    %v6550 = vpack.c.b16 %v3646, %v3638
    %v6551 = vpack.c.b16 %v3647, %v3639
    %v6552 = vpack.c.b16 %v3648, %v3640
    %v6553 = vpack.c.b16 %v3649, %v3641
    %v6554 = vpack.c.b16 %v3658, %v3650
    %v6555 = vpack.c.b16 %v3659, %v3651
    %v6556 = vpack.c.b16 %v3660, %v3652
    %v6557 = vpack.c.b16 %v3661, %v3653
    %v6558 = vpack.c.b16 %v3662, %v3654
    %v6559 = vpack.c.b16 %v3663, %v3655
    %v6560 = vpack.c.b16 %v3664, %v3656
    %v6561 = vpack.c.b16 %v3665, %v3657
    %v6562 = vpack.c.b16 %v3674, %v3666
    %v6563 = vpack.c.b16 %v3675, %v3667
    %v6564 = vpack.c.b16 %v3676, %v3668
    %v6565 = vpack.c.b16 %v3677, %v3669
    %v6566 = vpack.c.b16 %v3678, %v3670
    %v6567 = vpack.c.b16 %v3679, %v3671
    %v6568 = vpack.c.b16 %v3680, %v3672
    %v6569 = vpack.c.b16 %v3681, %v3673
    %v6570 = vpack.c.b16 %v3690, %v3682
    %v6571 = vpack.c.b16 %v3691, %v3683
    %v6572 = vpack.c.b16 %v3692, %v3684
    %v6573 = vpack.c.b16 %v3693, %v3685
    %v6574 = vpack.c.b16 %v3694, %v3686
    %v6575 = vpack.c.b16 %v3695, %v3687
    %v6576 = vpack.c.b16 %v3696, %v3688
    %v6577 = vpack.c.b16 %v3697, %v3689
    %v6578 = vpack.c.b16 %v3706, %v3698
    %v6579 = vpack.c.b16 %v3707, %v3699
    %v6580 = vpack.c.b16 %v3708, %v3700
    %v6581 = vpack.c.b16 %v3709, %v3701
    %v6582 = vpack.c.b16 %v3710, %v3702
    %v6583 = vpack.c.b16 %v3711, %v3703
    %v6584 = vpack.c.b16 %v3712, %v3704
    %v6585 = vpack.c.b16 %v3713, %v3705
    %v6586 = vpack.c.b16 %v3722, %v3714
    %v6587 = vpack.c.b16 %v3723, %v3715
    %v6588 = vpack.c.b16 %v3724, %v3716
    %v6589 = vpack.c.b16 %v3725, %v3717
    %v6590 = vpack.c.b16 %v3726, %v3718
    %v6591 = vpack.c.b16 %v3727, %v3719
    %v6592 = vpack.c.b16 %v3728, %v3720
    %v6593 = vpack.c.b16 %v3729, %v3721
    %v6594 = vpack.c.b16 %v3738, %v3730
    %v6595 = vpack.c.b16 %v3739, %v3731
    %v6596 = vpack.c.b16 %v3740, %v3732
    %v6597 = vpack.c.b16 %v3741, %v3733
    %v6598 = vpack.c.b16 %v3742, %v3734
    %v6599 = vpack.c.b16 %v3743, %v3735
    %v6600 = vpack.c.b16 %v3744, %v3736
    %v6601 = vpack.c.b16 %v3745, %v3737
    %v6602 = vpack.c.b16 %v3754, %v3746
    %v6603 = vpack.c.b16 %v3755, %v3747
    %v6604 = vpack.c.b16 %v3756, %v3748
    %v6605 = vpack.c.b16 %v3757, %v3749
    %v6606 = vpack.c.b16 %v3758, %v3750
    %v6607 = vpack.c.b16 %v3759, %v3751
    %v6608 = vpack.c.b16 %v3760, %v3752
    %v6609 = vpack.c.b16 %v3761, %v3753
    %v6610 = vpack.c.b16 %v3770, %v3762
    %v6611 = vpack.c.b16 %v3771, %v3763
    %v6612 = vpack.c.b16 %v3772, %v3764
    %v6613 = vpack.c.b16 %v3773, %v3765
    %v6614 = vpack.c.b16 %v3774, %v3766
    %v6615 = vpack.c.b16 %v3775, %v3767
    %v6616 = vpack.c.b16 %v3776, %v3768
    %v6617 = vpack.c.b16 %v3777, %v3769
    %v6618 = vpack.c.b16 %v3786, %v3778
    %v6619 = vpack.c.b16 %v3787, %v3779
    %v6620 = vpack.c.b16 %v3788, %v3780
    %v6621 = vpack.c.b16 %v3789, %v3781
    %v6622 = vpack.c.b16 %v3790, %v3782
    %v6623 = vpack.c.b16 %v3791, %v3783
    %v6624 = vpack.c.b16 %v3792, %v3784
    %v6625 = vpack.c.b16 %v3793, %v3785
    %v6626 = vpack.c.b16 %v3802, %v3794
    %v6627 = vpack.c.b16 %v3803, %v3795
    %v6628 = vpack.c.b16 %v3804, %v3796
    %v6629 = vpack.c.b16 %v3805, %v3797
    %v6630 = vpack.c.b16 %v3806, %v3798
    %v6631 = vpack.c.b16 %v3807, %v3799
    %v6632 = vpack.c.b16 %v3808, %v3800
    %v6633 = vpack.c.b16 %v3809, %v3801
    %v6634 = vpack.c.b16 %v3818, %v3810
    %v6635 = vpack.c.b16 %v3819, %v3811
    %v6636 = vpack.c.b16 %v3820, %v3812
    %v6637 = vpack.c.b16 %v3821, %v3813
    %v6638 = vpack.c.b16 %v3822, %v3814
    %v6639 = vpack.c.b16 %v3823, %v3815
    %v6640 = vpack.c.b16 %v3824, %v3816
    %v6641 = vpack.c.b16 %v3825, %v3817
    %v6642 = vpack.c.b16 %v3834, %v3826
    %v6643 = vpack.c.b16 %v3835, %v3827
    %v6644 = vpack.c.b16 %v3836, %v3828
    %v6645 = vpack.c.b16 %v3837, %v3829
    %v6646 = vpack.c.b16 %v3838, %v3830
    %v6647 = vpack.c.b16 %v3839, %v3831
    %v6648 = vpack.c.b16 %v3840, %v3832
    %v6649 = vpack.c.b16 %v3841, %v3833
    %v6650 = vpack.c.b16 %v3850, %v3842
    %v6651 = vpack.c.b16 %v3851, %v3843
    %v6652 = vpack.c.b16 %v3852, %v3844
    %v6653 = vpack.c.b16 %v3853, %v3845
    %v6654 = vpack.c.b16 %v3854, %v3846
    %v6655 = vpack.c.b16 %v3855, %v3847
    %v6656 = vpack.c.b16 %v3856, %v3848
    %v6657 = vpack.c.b16 %v3857, %v3849
    %v6658 = vpack.c.b16 %v3866, %v3858
    %v6659 = vpack.c.b16 %v3867, %v3859
    %v6660 = vpack.c.b16 %v3868, %v3860
    %v6661 = vpack.c.b16 %v3869, %v3861
    %v6662 = vpack.c.b16 %v3870, %v3862
    %v6663 = vpack.c.b16 %v3871, %v3863
    %v6664 = vpack.c.b16 %v3872, %v3864
    %v6665 = vpack.c.b16 %v3873, %v3865
    %v6666 = vpack.c.b16 %v3882, %v3874
    %v6667 = vpack.c.b16 %v3883, %v3875
    %v6668 = vpack.c.b16 %v3884, %v3876
    %v6669 = vpack.c.b16 %v3885, %v3877
    %v6670 = vpack.c.b16 %v3886, %v3878
    %v6671 = vpack.c.b16 %v3887, %v3879
    %v6672 = vpack.c.b16 %v3888, %v3880
    %v6673 = vpack.c.b16 %v3889, %v3881
    %v6674 = vpack.c.b16 %v3898, %v3890
    %v6675 = vpack.c.b16 %v3899, %v3891
    %v6676 = vpack.c.b16 %v3900, %v3892
    %v6677 = vpack.c.b16 %v3901, %v3893
    %v6678 = vpack.c.b16 %v3902, %v3894
    %v6679 = vpack.c.b16 %v3903, %v3895
    %v6680 = vpack.c.b16 %v3904, %v3896
    %v6681 = vpack.c.b16 %v3905, %v3897
    %v6682 = vpack.c.b16 %v3914, %v3906
    %v6683 = vpack.c.b16 %v3915, %v3907
    %v6684 = vpack.c.b16 %v3916, %v3908
    %v6685 = vpack.c.b16 %v3917, %v3909
    %v6686 = vpack.c.b16 %v3918, %v3910
    %v6687 = vpack.c.b16 %v3919, %v3911
    %v6688 = vpack.c.b16 %v3920, %v3912
    %v6689 = vpack.c.b16 %v3921, %v3913
    %v6690 = vpack.c.b16 %v3930, %v3922
    %v6691 = vpack.c.b16 %v3931, %v3923
    %v6692 = vpack.c.b16 %v3932, %v3924
    %v6693 = vpack.c.b16 %v3933, %v3925
    %v6694 = vpack.c.b16 %v3934, %v3926
    %v6695 = vpack.c.b16 %v3935, %v3927
    %v6696 = vpack.c.b16 %v3936, %v3928
    %v6697 = vpack.c.b16 %v3937, %v3929
    %v6698 = vpack.c.b16 %v3946, %v3938
    %v6699 = vpack.c.b16 %v3947, %v3939
    %v6700 = vpack.c.b16 %v3948, %v3940
    %v6701 = vpack.c.b16 %v3949, %v3941
    %v6702 = vpack.c.b16 %v3950, %v3942
    %v6703 = vpack.c.b16 %v3951, %v3943
    %v6704 = vpack.c.b16 %v3952, %v3944
    %v6705 = vpack.c.b16 %v3953, %v3945
    %v6706 = vpack.c.b16 %v3962, %v3954
    %v6707 = vpack.c.b16 %v3963, %v3955
    %v6708 = vpack.c.b16 %v3964, %v3956
    %v6709 = vpack.c.b16 %v3965, %v3957
    %v6710 = vpack.c.b16 %v3966, %v3958
    %v6711 = vpack.c.b16 %v3967, %v3959
    %v6712 = vpack.c.b16 %v3968, %v3960
    %v6713 = vpack.c.b16 %v3969, %v3961
    %v6714 = vpack.c.b16 %v3978, %v3970
    %v6715 = vpack.c.b16 %v3979, %v3971
    %v6716 = vpack.c.b16 %v3980, %v3972
    %v6717 = vpack.c.b16 %v3981, %v3973
    %v6718 = vpack.c.b16 %v3982, %v3974
    %v6719 = vpack.c.b16 %v3983, %v3975
    %v6720 = vpack.c.b16 %v3984, %v3976
    %v6721 = vpack.c.b16 %v3985, %v3977
    %v6722 = vpack.c.b16 %v3994, %v3986
    %v6723 = vpack.c.b16 %v3995, %v3987
    %v6724 = vpack.c.b16 %v3996, %v3988
    %v6725 = vpack.c.b16 %v3997, %v3989
    %v6726 = vpack.c.b16 %v3998, %v3990
    %v6727 = vpack.c.b16 %v3999, %v3991
    %v6728 = vpack.c.b16 %v4000, %v3992
    %v6729 = vpack.c.b16 %v4001, %v3993
    %v6730 = vpack.c.b16 %v4010, %v4002
    %v6731 = vpack.c.b16 %v4011, %v4003
    %v6732 = vpack.c.b16 %v4012, %v4004
    %v6733 = vpack.c.b16 %v4013, %v4005
    %v6734 = vpack.c.b16 %v4014, %v4006
    %v6735 = vpack.c.b16 %v4015, %v4007
    %v6736 = vpack.c.b16 %v4016, %v4008
    %v6737 = vpack.c.b16 %v4017, %v4009
    %v6738 = vpack.c.b16 %v4026, %v4018
    %v6739 = vpack.c.b16 %v4027, %v4019
    %v6740 = vpack.c.b16 %v4028, %v4020
    %v6741 = vpack.c.b16 %v4029, %v4021
    %v6742 = vpack.c.b16 %v4030, %v4022
    %v6743 = vpack.c.b16 %v4031, %v4023
    %v6744 = vpack.c.b16 %v4032, %v4024
    %v6745 = vpack.c.b16 %v4033, %v4025
    %v6746 = vpack.c.b16 %v4042, %v4034
    %v6747 = vpack.c.b16 %v4043, %v4035
    %v6748 = vpack.c.b16 %v4044, %v4036
    %v6749 = vpack.c.b16 %v4045, %v4037
    %v6750 = vpack.c.b16 %v4046, %v4038
    %v6751 = vpack.c.b16 %v4047, %v4039
    %v6752 = vpack.c.b16 %v4048, %v4040
    %v6753 = vpack.c.b16 %v4049, %v4041
    %v6754 = vpack.c.b16 %v4058, %v4050
    %v6755 = vpack.c.b16 %v4059, %v4051
    %v6756 = vpack.c.b16 %v4060, %v4052
    %v6757 = vpack.c.b16 %v4061, %v4053
    %v6758 = vpack.c.b16 %v4062, %v4054
    %v6759 = vpack.c.b16 %v4063, %v4055
    %v6760 = vpack.c.b16 %v4064, %v4056
    %v6761 = vpack.c.b16 %v4065, %v4057
    %v6762 = vpack.c.b16 %v4074, %v4066
    %v6763 = vpack.c.b16 %v4075, %v4067
    %v6764 = vpack.c.b16 %v4076, %v4068
    %v6765 = vpack.c.b16 %v4077, %v4069
    %v6766 = vpack.c.b16 %v4078, %v4070
    %v6767 = vpack.c.b16 %v4079, %v4071
    %v6768 = vpack.c.b16 %v4080, %v4072
    %v6769 = vpack.c.b16 %v4081, %v4073
    %v6770 = vpack.c.b16 %v4090, %v4082
    %v6771 = vpack.c.b16 %v4091, %v4083
    %v6772 = vpack.c.b16 %v4092, %v4084
    %v6773 = vpack.c.b16 %v4093, %v4085
    %v6774 = vpack.c.b16 %v4094, %v4086
    %v6775 = vpack.c.b16 %v4095, %v4087
    %v6776 = vpack.c.b16 %v4096, %v4088
    %v6777 = vpack.c.b16 %v4097, %v4089
    %v6778 = vpack.c.b16 %v4106, %v4098
    %v6779 = vpack.c.b16 %v4107, %v4099
    %v6780 = vpack.c.b16 %v4108, %v4100
    %v6781 = vpack.c.b16 %v4109, %v4101
    %v6782 = vpack.c.b16 %v4110, %v4102
    %v6783 = vpack.c.b16 %v4111, %v4103
    %v6784 = vpack.c.b16 %v4112, %v4104
    %v6785 = vpack.c.b16 %v4113, %v4105
    %v6786 = vpack.c.b16 %v4122, %v4114
    %v6787 = vpack.c.b16 %v4123, %v4115
    %v6788 = vpack.c.b16 %v4124, %v4116
    %v6789 = vpack.c.b16 %v4125, %v4117
    %v6790 = vpack.c.b16 %v4126, %v4118
    %v6791 = vpack.c.b16 %v4127, %v4119
    %v6792 = vpack.c.b16 %v4128, %v4120
    %v6793 = vpack.c.b16 %v4129, %v4121
    %v6794 = vpack.c.b16 %v4138, %v4130
    %v6795 = vpack.c.b16 %v4139, %v4131
    %v6796 = vpack.c.b16 %v4140, %v4132
    %v6797 = vpack.c.b16 %v4141, %v4133
    %v6798 = vpack.c.b16 %v4142, %v4134
    %v6799 = vpack.c.b16 %v4143, %v4135
    %v6800 = vpack.c.b16 %v4144, %v4136
    %v6801 = vpack.c.b16 %v4145, %v4137
    %v6802 = vpack.c.b16 %v4154, %v4146
    %v6803 = vpack.c.b16 %v4155, %v4147
    %v6804 = vpack.c.b16 %v4156, %v4148
    %v6805 = vpack.c.b16 %v4157, %v4149
    %v6806 = vpack.c.b16 %v4158, %v4150
    %v6807 = vpack.c.b16 %v4159, %v4151
    %v6808 = vpack.c.b16 %v4160, %v4152
    %v6809 = vpack.c.b16 %v4161, %v4153
    %v6810 = vpack.c.b16 %v4170, %v4162
    %v6811 = vpack.c.b16 %v4171, %v4163
    %v6812 = vpack.c.b16 %v4172, %v4164
    %v6813 = vpack.c.b16 %v4173, %v4165
    %v6814 = vpack.c.b16 %v4174, %v4166
    %v6815 = vpack.c.b16 %v4175, %v4167
    %v6816 = vpack.c.b16 %v4176, %v4168
    %v6817 = vpack.c.b16 %v4177, %v4169
    %v6818 = vpack.c.b16 %v4186, %v4178
    %v6819 = vpack.c.b16 %v4187, %v4179
    %v6820 = vpack.c.b16 %v4188, %v4180
    %v6821 = vpack.c.b16 %v4189, %v4181
    %v6822 = vpack.c.b16 %v4190, %v4182
    %v6823 = vpack.c.b16 %v4191, %v4183
    %v6824 = vpack.c.b16 %v4192, %v4184
    %v6825 = vpack.c.b16 %v4193, %v4185
    %v6826 = vpack.c.b16 %v4202, %v4194
    %v6827 = vpack.c.b16 %v4203, %v4195
    %v6828 = vpack.c.b16 %v4204, %v4196
    %v6829 = vpack.c.b16 %v4205, %v4197
    %v6830 = vpack.c.b16 %v4206, %v4198
    %v6831 = vpack.c.b16 %v4207, %v4199
    %v6832 = vpack.c.b16 %v4208, %v4200
    %v6833 = vpack.c.b16 %v4209, %v4201
    %v6834 = vpack.c.b16 %v4218, %v4210
    %v6835 = vpack.c.b16 %v4219, %v4211
    %v6836 = vpack.c.b16 %v4220, %v4212
    %v6837 = vpack.c.b16 %v4221, %v4213
    %v6838 = vpack.c.b16 %v4222, %v4214
    %v6839 = vpack.c.b16 %v4223, %v4215
    %v6840 = vpack.c.b16 %v4224, %v4216
    %v6841 = vpack.c.b16 %v4225, %v4217
    %v6842 = vpack.c.b16 %v4234, %v4226
    %v6843 = vpack.c.b16 %v4235, %v4227
    %v6844 = vpack.c.b16 %v4236, %v4228
    %v6845 = vpack.c.b16 %v4237, %v4229
    %v6846 = vpack.c.b16 %v4238, %v4230
    %v6847 = vpack.c.b16 %v4239, %v4231
    %v6848 = vpack.c.b16 %v4240, %v4232
    %v6849 = vpack.c.b16 %v4241, %v4233
    %v6850 = vpack.c.b16 %v4250, %v4242
    %v6851 = vpack.c.b16 %v4251, %v4243
    %v6852 = vpack.c.b16 %v4252, %v4244
    %v6853 = vpack.c.b16 %v4253, %v4245
    %v6854 = vpack.c.b16 %v4254, %v4246
    %v6855 = vpack.c.b16 %v4255, %v4247
    %v6856 = vpack.c.b16 %v4256, %v4248
    %v6857 = vpack.c.b16 %v4257, %v4249
    %v6858 = vpack.c.b16 %v4266, %v4258
    %v6859 = vpack.c.b16 %v4267, %v4259
    %v6860 = vpack.c.b16 %v4268, %v4260
    %v6861 = vpack.c.b16 %v4269, %v4261
    %v6862 = vpack.c.b16 %v4270, %v4262
    %v6863 = vpack.c.b16 %v4271, %v4263
    %v6864 = vpack.c.b16 %v4272, %v4264
    %v6865 = vpack.c.b16 %v4273, %v4265
    %v6866 = vpack.c.b16 %v4282, %v4274
    %v6867 = vpack.c.b16 %v4283, %v4275
    %v6868 = vpack.c.b16 %v4284, %v4276
    %v6869 = vpack.c.b16 %v4285, %v4277
    %v6870 = vpack.c.b16 %v4286, %v4278
    %v6871 = vpack.c.b16 %v4287, %v4279
    %v6872 = vpack.c.b16 %v4288, %v4280
    %v6873 = vpack.c.b16 %v4289, %v4281
    %v6874 = vpack.c.b16 %v4298, %v4290
    %v6875 = vpack.c.b16 %v4299, %v4291
    %v6876 = vpack.c.b16 %v4300, %v4292
    %v6877 = vpack.c.b16 %v4301, %v4293
    %v6878 = vpack.c.b16 %v4302, %v4294
    %v6879 = vpack.c.b16 %v4303, %v4295
    %v6880 = vpack.c.b16 %v4304, %v4296
    %v6881 = vpack.c.b16 %v4305, %v4297
    %v6882 = vpack.c.b16 %v4314, %v4306
    %v6883 = vpack.c.b16 %v4315, %v4307
    %v6884 = vpack.c.b16 %v4316, %v4308
    %v6885 = vpack.c.b16 %v4317, %v4309
    %v6886 = vpack.c.b16 %v4318, %v4310
    %v6887 = vpack.c.b16 %v4319, %v4311
    %v6888 = vpack.c.b16 %v4320, %v4312
    %v6889 = vpack.c.b16 %v4321, %v4313
    %v6890 = vpack.c.b16 %v4330, %v4322
    %v6891 = vpack.c.b16 %v4331, %v4323
    %v6892 = vpack.c.b16 %v4332, %v4324
    %v6893 = vpack.c.b16 %v4333, %v4325
    %v6894 = vpack.c.b16 %v4334, %v4326
    %v6895 = vpack.c.b16 %v4335, %v4327
    %v6896 = vpack.c.b16 %v4336, %v4328
    %v6897 = vpack.c.b16 %v4337, %v4329
    %v6898 = vpack.c.b16 %v4346, %v4338
    %v6899 = vpack.c.b16 %v4347, %v4339
    %v6900 = vpack.c.b16 %v4348, %v4340
    %v6901 = vpack.c.b16 %v4349, %v4341
    %v6902 = vpack.c.b16 %v4350, %v4342
    %v6903 = vpack.c.b16 %v4351, %v4343
    %v6904 = vpack.c.b16 %v4352, %v4344
    %v6905 = vpack.c.b16 %v4353, %v4345
    %v6906 = vpack.c.b16 %v4362, %v4354
    %v6907 = vpack.c.b16 %v4363, %v4355
    %v6908 = vpack.c.b16 %v4364, %v4356
    %v6909 = vpack.c.b16 %v4365, %v4357
    %v6910 = vpack.c.b16 %v4366, %v4358
    %v6911 = vpack.c.b16 %v4367, %v4359
    %v6912 = vpack.c.b16 %v4368, %v4360
    %v6913 = vpack.c.b16 %v4369, %v4361
    %v6914 = vpack.c.b16 %v4378, %v4370
    %v6915 = vpack.c.b16 %v4379, %v4371
    %v6916 = vpack.c.b16 %v4380, %v4372
    %v6917 = vpack.c.b16 %v4381, %v4373
    %v6918 = vpack.c.b16 %v4382, %v4374
    %v6919 = vpack.c.b16 %v4383, %v4375
    %v6920 = vpack.c.b16 %v4384, %v4376
    %v6921 = vpack.c.b16 %v4385, %v4377
    %v6922 = vpack.c.b16 %v4394, %v4386
    %v6923 = vpack.c.b16 %v4395, %v4387
    %v6924 = vpack.c.b16 %v4396, %v4388
    %v6925 = vpack.c.b16 %v4397, %v4389
    %v6926 = vpack.c.b16 %v4398, %v4390
    %v6927 = vpack.c.b16 %v4399, %v4391
    %v6928 = vpack.c.b16 %v4400, %v4392
    %v6929 = vpack.c.b16 %v4401, %v4393
    %v6930 = vpack.c.b16 %v4410, %v4402
    %v6931 = vpack.c.b16 %v4411, %v4403
    %v6932 = vpack.c.b16 %v4412, %v4404
    %v6933 = vpack.c.b16 %v4413, %v4405
    %v6934 = vpack.c.b16 %v4414, %v4406
    %v6935 = vpack.c.b16 %v4415, %v4407
    %v6936 = vpack.c.b16 %v4416, %v4408
    %v6937 = vpack.c.b16 %v4417, %v4409
    %v6938 = vpack.c.b16 %v4426, %v4418
    %v6939 = vpack.c.b16 %v4427, %v4419
    %v6940 = vpack.c.b16 %v4428, %v4420
    %v6941 = vpack.c.b16 %v4429, %v4421
    %v6942 = vpack.c.b16 %v4430, %v4422
    %v6943 = vpack.c.b16 %v4431, %v4423
    %v6944 = vpack.c.b16 %v4432, %v4424
    %v6945 = vpack.c.b16 %v4433, %v4425
    %v6946 = vpack.c.b16 %v4442, %v4434
    %v6947 = vpack.c.b16 %v4443, %v4435
    %v6948 = vpack.c.b16 %v4444, %v4436
    %v6949 = vpack.c.b16 %v4445, %v4437
    %v6950 = vpack.c.b16 %v4446, %v4438
    %v6951 = vpack.c.b16 %v4447, %v4439
    %v6952 = vpack.c.b16 %v4448, %v4440
    %v6953 = vpack.c.b16 %v4449, %v4441
    %v6954 = vpack.c.b16 %v4458, %v4450
    %v6955 = vpack.c.b16 %v4459, %v4451
    %v6956 = vpack.c.b16 %v4460, %v4452
    %v6957 = vpack.c.b16 %v4461, %v4453
    %v6958 = vpack.c.b16 %v4462, %v4454
    %v6959 = vpack.c.b16 %v4463, %v4455
    %v6960 = vpack.c.b16 %v4464, %v4456
    %v6961 = vpack.c.b16 %v4465, %v4457
    %v6962 = vpack.c.b16 %v4474, %v4466
    %v6963 = vpack.c.b16 %v4475, %v4467
    %v6964 = vpack.c.b16 %v4476, %v4468
    %v6965 = vpack.c.b16 %v4477, %v4469
    %v6966 = vpack.c.b16 %v4478, %v4470
    %v6967 = vpack.c.b16 %v4479, %v4471
    %v6968 = vpack.c.b16 %v4480, %v4472
    %v6969 = vpack.c.b16 %v4481, %v4473
    %v6970 = vpack.c.b16 %v4490, %v4482
    %v6971 = vpack.c.b16 %v4491, %v4483
    %v6972 = vpack.c.b16 %v4492, %v4484
    %v6973 = vpack.c.b16 %v4493, %v4485
    %v6974 = vpack.c.b16 %v4494, %v4486
    %v6975 = vpack.c.b16 %v4495, %v4487
    %v6976 = vpack.c.b16 %v4496, %v4488
    %v6977 = vpack.c.b16 %v4497, %v4489
    %v6978 = vpack.c.b16 %v4506, %v4498
    %v6979 = vpack.c.b16 %v4507, %v4499
    %v6980 = vpack.c.b16 %v4508, %v4500
    %v6981 = vpack.c.b16 %v4509, %v4501
    %v6982 = vpack.c.b16 %v4510, %v4502
    %v6983 = vpack.c.b16 %v4511, %v4503
    %v6984 = vpack.c.b16 %v4512, %v4504
    %v6985 = vpack.c.b16 %v4513, %v4505
    %v6986 = vpack.c.b16 %v4522, %v4514
    %v6987 = vpack.c.b16 %v4523, %v4515
    %v6988 = vpack.c.b16 %v4524, %v4516
    %v6989 = vpack.c.b16 %v4525, %v4517
    %v6990 = vpack.c.b16 %v4526, %v4518
    %v6991 = vpack.c.b16 %v4527, %v4519
    %v6992 = vpack.c.b16 %v4528, %v4520
    %v6993 = vpack.c.b16 %v4529, %v4521
    %v6994 = vpack.c.b16 %v4538, %v4530
    %v6995 = vpack.c.b16 %v4539, %v4531
    %v6996 = vpack.c.b16 %v4540, %v4532
    %v6997 = vpack.c.b16 %v4541, %v4533
    %v6998 = vpack.c.b16 %v4542, %v4534
    %v6999 = vpack.c.b16 %v4543, %v4535
    %v7000 = vpack.c.b16 %v4544, %v4536
    %v7001 = vpack.c.b16 %v4545, %v4537
    %v7002 = vpack.c.b16 %v4554, %v4546
    %v7003 = vpack.c.b16 %v4555, %v4547
    %v7004 = vpack.c.b16 %v4556, %v4548
    %v7005 = vpack.c.b16 %v4557, %v4549
    %v7006 = vpack.c.b16 %v4558, %v4550
    %v7007 = vpack.c.b16 %v4559, %v4551
    %v7008 = vpack.c.b16 %v4560, %v4552
    %v7009 = vpack.c.b16 %v4561, %v4553
    %v7010 = vpack.c.b16 %v4570, %v4562
    %v7011 = vpack.c.b16 %v4571, %v4563
    %v7012 = vpack.c.b16 %v4572, %v4564
    %v7013 = vpack.c.b16 %v4573, %v4565
    %v7014 = vpack.c.b16 %v4574, %v4566
    %v7015 = vpack.c.b16 %v4575, %v4567
    %v7016 = vpack.c.b16 %v4576, %v4568
    %v7017 = vpack.c.b16 %v4577, %v4569
    %v7018 = vpack.c.b16 %v4586, %v4578
    %v7019 = vpack.c.b16 %v4587, %v4579
    %v7020 = vpack.c.b16 %v4588, %v4580
    %v7021 = vpack.c.b16 %v4589, %v4581
    %v7022 = vpack.c.b16 %v4590, %v4582
    %v7023 = vpack.c.b16 %v4591, %v4583
    %v7024 = vpack.c.b16 %v4592, %v4584
    %v7025 = vpack.c.b16 %v4593, %v4585
    %v7026 = vpack.c.b16 %v4602, %v4594
    %v7027 = vpack.c.b16 %v4603, %v4595
    %v7028 = vpack.c.b16 %v4604, %v4596
    %v7029 = vpack.c.b16 %v4605, %v4597
    %v7030 = vpack.c.b16 %v4606, %v4598
    %v7031 = vpack.c.b16 %v4607, %v4599
    %v7032 = vpack.c.b16 %v4608, %v4600
    %v7033 = vpack.c.b16 %v4609, %v4601
    %v7034 = vpack.c.b16 %v4618, %v4610
    %v7035 = vpack.c.b16 %v4619, %v4611
    %v7036 = vpack.c.b16 %v4620, %v4612
    %v7037 = vpack.c.b16 %v4621, %v4613
    %v7038 = vpack.c.b16 %v4622, %v4614
    %v7039 = vpack.c.b16 %v4623, %v4615
    %v7040 = vpack.c.b16 %v4624, %v4616
    %v7041 = vpack.c.b16 %v4625, %v4617
    %v7042 = vpack.c.b16 %v4634, %v4626
    %v7043 = vpack.c.b16 %v4635, %v4627
    %v7044 = vpack.c.b16 %v4636, %v4628
    %v7045 = vpack.c.b16 %v4637, %v4629
    %v7046 = vpack.c.b16 %v4638, %v4630
    %v7047 = vpack.c.b16 %v4639, %v4631
    %v7048 = vpack.c.b16 %v4640, %v4632
    %v7049 = vpack.c.b16 %v4641, %v4633
    %v7050 = vpack.c.b16 %v4650, %v4642
    %v7051 = vpack.c.b16 %v4651, %v4643
    %v7052 = vpack.c.b16 %v4652, %v4644
    %v7053 = vpack.c.b16 %v4653, %v4645
    %v7054 = vpack.c.b16 %v4654, %v4646
    %v7055 = vpack.c.b16 %v4655, %v4647
    %v7056 = vpack.c.b16 %v4656, %v4648
    %v7057 = vpack.c.b16 %v4657, %v4649
    %v7058 = vpack.c.b16 %v4666, %v4658
    %v7059 = vpack.c.b16 %v4667, %v4659
    %v7060 = vpack.c.b16 %v4668, %v4660
    %v7061 = vpack.c.b16 %v4669, %v4661
    %v7062 = vpack.c.b16 %v4670, %v4662
    %v7063 = vpack.c.b16 %v4671, %v4663
    %v7064 = vpack.c.b16 %v4672, %v4664
    %v7065 = vpack.c.b16 %v4673, %v4665
    %v7066 = vpack.c.b16 %v4682, %v4674
    %v7067 = vpack.c.b16 %v4683, %v4675
    %v7068 = vpack.c.b16 %v4684, %v4676
    %v7069 = vpack.c.b16 %v4685, %v4677
    %v7070 = vpack.c.b16 %v4686, %v4678
    %v7071 = vpack.c.b16 %v4687, %v4679
    %v7072 = vpack.c.b16 %v4688, %v4680
    %v7073 = vpack.c.b16 %v4689, %v4681
    %v7074 = vpack.c.b16 %v4698, %v4690
    %v7075 = vpack.c.b16 %v4699, %v4691
    %v7076 = vpack.c.b16 %v4700, %v4692
    %v7077 = vpack.c.b16 %v4701, %v4693
    %v7078 = vpack.c.b16 %v4702, %v4694
    %v7079 = vpack.c.b16 %v4703, %v4695
    %v7080 = vpack.c.b16 %v4704, %v4696
    %v7081 = vpack.c.b16 %v4705, %v4697
    %v7082 = vpack.c.b16 %v4714, %v4706
    %v7083 = vpack.c.b16 %v4715, %v4707
    %v7084 = vpack.c.b16 %v4716, %v4708
    %v7085 = vpack.c.b16 %v4717, %v4709
    %v7086 = vpack.c.b16 %v4718, %v4710
    %v7087 = vpack.c.b16 %v4719, %v4711
    %v7088 = vpack.c.b16 %v4720, %v4712
    %v7089 = vpack.c.b16 %v4721, %v4713
    %v7090 = vpack.c.b16 %v4730, %v4722
    %v7091 = vpack.c.b16 %v4731, %v4723
    %v7092 = vpack.c.b16 %v4732, %v4724
    %v7093 = vpack.c.b16 %v4733, %v4725
    %v7094 = vpack.c.b16 %v4734, %v4726
    %v7095 = vpack.c.b16 %v4735, %v4727
    %v7096 = vpack.c.b16 %v4736, %v4728
    %v7097 = vpack.c.b16 %v4737, %v4729
    %v7098 = vpack.c.b16 %v4746, %v4738
    %v7099 = vpack.c.b16 %v4747, %v4739
    %v7100 = vpack.c.b16 %v4748, %v4740
    %v7101 = vpack.c.b16 %v4749, %v4741
    %v7102 = vpack.c.b16 %v4750, %v4742
    %v7103 = vpack.c.b16 %v4751, %v4743
    %v7104 = vpack.c.b16 %v4752, %v4744
    %v7105 = vpack.c.b16 %v4753, %v4745
    %v7106 = vpack.c.b16 %v4762, %v4754
    %v7107 = vpack.c.b16 %v4763, %v4755
    %v7108 = vpack.c.b16 %v4764, %v4756
    %v7109 = vpack.c.b16 %v4765, %v4757
    %v7110 = vpack.c.b16 %v4766, %v4758
    %v7111 = vpack.c.b16 %v4767, %v4759
    %v7112 = vpack.c.b16 %v4768, %v4760
    %v7113 = vpack.c.b16 %v4769, %v4761
    %v7114 = vpack.c.b16 %v4778, %v4770
    %v7115 = vpack.c.b16 %v4779, %v4771
    %v7116 = vpack.c.b16 %v4780, %v4772
    %v7117 = vpack.c.b16 %v4781, %v4773
    %v7118 = vpack.c.b16 %v4782, %v4774
    %v7119 = vpack.c.b16 %v4783, %v4775
    %v7120 = vpack.c.b16 %v4784, %v4776
    %v7121 = vpack.c.b16 %v4785, %v4777
    %v7122 = vpack.c.b16 %v4794, %v4786
    %v7123 = vpack.c.b16 %v4795, %v4787
    %v7124 = vpack.c.b16 %v4796, %v4788
    %v7125 = vpack.c.b16 %v4797, %v4789
    %v7126 = vpack.c.b16 %v4798, %v4790
    %v7127 = vpack.c.b16 %v4799, %v4791
    %v7128 = vpack.c.b16 %v4800, %v4792
    %v7129 = vpack.c.b16 %v4801, %v4793
    %v7130 = vpack.c.b16 %v4810, %v4802
    %v7131 = vpack.c.b16 %v4811, %v4803
    %v7132 = vpack.c.b16 %v4812, %v4804
    %v7133 = vpack.c.b16 %v4813, %v4805
    %v7134 = vpack.c.b16 %v4814, %v4806
    %v7135 = vpack.c.b16 %v4815, %v4807
    %v7136 = vpack.c.b16 %v4816, %v4808
    %v7137 = vpack.c.b16 %v4817, %v4809
    %v7138 = vpack.c.b16 %v4826, %v4818
    %v7139 = vpack.c.b16 %v4827, %v4819
    %v7140 = vpack.c.b16 %v4828, %v4820
    %v7141 = vpack.c.b16 %v4829, %v4821
    %v7142 = vpack.c.b16 %v4830, %v4822
    %v7143 = vpack.c.b16 %v4831, %v4823
    %v7144 = vpack.c.b16 %v4832, %v4824
    %v7145 = vpack.c.b16 %v4833, %v4825
    %v7146 = vpack.c.b16 %v4842, %v4834
    %v7147 = vpack.c.b16 %v4843, %v4835
    %v7148 = vpack.c.b16 %v4844, %v4836
    %v7149 = vpack.c.b16 %v4845, %v4837
    %v7150 = vpack.c.b16 %v4846, %v4838
    %v7151 = vpack.c.b16 %v4847, %v4839
    %v7152 = vpack.c.b16 %v4848, %v4840
    %v7153 = vpack.c.b16 %v4849, %v4841
    %v7154 = vpack.c.b16 %v4858, %v4850
    %v7155 = vpack.c.b16 %v4859, %v4851
    %v7156 = vpack.c.b16 %v4860, %v4852
    %v7157 = vpack.c.b16 %v4861, %v4853
    %v7158 = vpack.c.b16 %v4862, %v4854
    %v7159 = vpack.c.b16 %v4863, %v4855
    %v7160 = vpack.c.b16 %v4864, %v4856
    %v7161 = vpack.c.b16 %v4865, %v4857
    %v7162 = vpack.c.b16 %v4874, %v4866
    %v7163 = vpack.c.b16 %v4875, %v4867
    %v7164 = vpack.c.b16 %v4876, %v4868
    %v7165 = vpack.c.b16 %v4877, %v4869
    %v7166 = vpack.c.b16 %v4878, %v4870
    %v7167 = vpack.c.b16 %v4879, %v4871
    %v7168 = vpack.c.b16 %v4880, %v4872
    %v7169 = vpack.c.b16 %v4881, %v4873
    %v7170 = vpack.c.b16 %v4890, %v4882
    %v7171 = vpack.c.b16 %v4891, %v4883
    %v7172 = vpack.c.b16 %v4892, %v4884
    %v7173 = vpack.c.b16 %v4893, %v4885
    %v7174 = vpack.c.b16 %v4894, %v4886
    %v7175 = vpack.c.b16 %v4895, %v4887
    %v7176 = vpack.c.b16 %v4896, %v4888
    %v7177 = vpack.c.b16 %v4897, %v4889
    %v7178 = vpack.c.b16 %v4906, %v4898
    %v7179 = vpack.c.b16 %v4907, %v4899
    %v7180 = vpack.c.b16 %v4908, %v4900
    %v7181 = vpack.c.b16 %v4909, %v4901
    %v7182 = vpack.c.b16 %v4910, %v4902
    %v7183 = vpack.c.b16 %v4911, %v4903
    %v7184 = vpack.c.b16 %v4912, %v4904
    %v7185 = vpack.c.b16 %v4913, %v4905
    %v7186 = vpack.c.b16 %v4922, %v4914
    %v7187 = vpack.c.b16 %v4923, %v4915
    %v7188 = vpack.c.b16 %v4924, %v4916
    %v7189 = vpack.c.b16 %v4925, %v4917
    %v7190 = vpack.c.b16 %v4926, %v4918
    %v7191 = vpack.c.b16 %v4927, %v4919
    %v7192 = vpack.c.b16 %v4928, %v4920
    %v7193 = vpack.c.b16 %v4929, %v4921
    %v7194 = vpack.c.b16 %v4938, %v4930
    %v7195 = vpack.c.b16 %v4939, %v4931
    %v7196 = vpack.c.b16 %v4940, %v4932
    %v7197 = vpack.c.b16 %v4941, %v4933
    %v7198 = vpack.c.b16 %v4942, %v4934
    %v7199 = vpack.c.b16 %v4943, %v4935
    %v7200 = vpack.c.b16 %v4944, %v4936
    %v7201 = vpack.c.b16 %v4945, %v4937
    %v7202 = vpack.c.b16 %v4954, %v4946
    %v7203 = vpack.c.b16 %v4955, %v4947
    %v7204 = vpack.c.b16 %v4956, %v4948
    %v7205 = vpack.c.b16 %v4957, %v4949
    %v7206 = vpack.c.b16 %v4958, %v4950
    %v7207 = vpack.c.b16 %v4959, %v4951
    %v7208 = vpack.c.b16 %v4960, %v4952
    %v7209 = vpack.c.b16 %v4961, %v4953
    %v7210 = vpack.c.b16 %v4970, %v4962
    %v7211 = vpack.c.b16 %v4971, %v4963
    %v7212 = vpack.c.b16 %v4972, %v4964
    %v7213 = vpack.c.b16 %v4973, %v4965
    %v7214 = vpack.c.b16 %v4974, %v4966
    %v7215 = vpack.c.b16 %v4975, %v4967
    %v7216 = vpack.c.b16 %v4976, %v4968
    %v7217 = vpack.c.b16 %v4977, %v4969
    %v7218 = vpack.c.b16 %v4986, %v4978
    %v7219 = vpack.c.b16 %v4987, %v4979
    %v7220 = vpack.c.b16 %v4988, %v4980
    %v7221 = vpack.c.b16 %v4989, %v4981
    %v7222 = vpack.c.b16 %v4990, %v4982
    %v7223 = vpack.c.b16 %v4991, %v4983
    %v7224 = vpack.c.b16 %v4992, %v4984
    %v7225 = vpack.c.b16 %v4993, %v4985
    %v7226 = vpack.c.b16 %v5002, %v4994
    %v7227 = vpack.c.b16 %v5003, %v4995
    %v7228 = vpack.c.b16 %v5004, %v4996
    %v7229 = vpack.c.b16 %v5005, %v4997
    %v7230 = vpack.c.b16 %v5006, %v4998
    %v7231 = vpack.c.b16 %v5007, %v4999
    %v7232 = vpack.c.b16 %v5008, %v5000
    %v7233 = vpack.c.b16 %v5009, %v5001
    %v7234 = vpack.c.b16 %v5018, %v5010
    %v7235 = vpack.c.b16 %v5019, %v5011
    %v7236 = vpack.c.b16 %v5020, %v5012
    %v7237 = vpack.c.b16 %v5021, %v5013
    %v7238 = vpack.c.b16 %v5022, %v5014
    %v7239 = vpack.c.b16 %v5023, %v5015
    %v7240 = vpack.c.b16 %v5024, %v5016
    %v7241 = vpack.c.b16 %v5025, %v5017
    %v7242 = vpack.c.b16 %v5034, %v5026
    %v7243 = vpack.c.b16 %v5035, %v5027
    %v7244 = vpack.c.b16 %v5036, %v5028
    %v7245 = vpack.c.b16 %v5037, %v5029
    %v7246 = vpack.c.b16 %v5038, %v5030
    %v7247 = vpack.c.b16 %v5039, %v5031
    %v7248 = vpack.c.b16 %v5040, %v5032
    %v7249 = vpack.c.b16 %v5041, %v5033
    %v7250 = vpack.c.b16 %v5050, %v5042
    %v7251 = vpack.c.b16 %v5051, %v5043
    %v7252 = vpack.c.b16 %v5052, %v5044
    %v7253 = vpack.c.b16 %v5053, %v5045
    %v7254 = vpack.c.b16 %v5054, %v5046
    %v7255 = vpack.c.b16 %v5055, %v5047
    %v7256 = vpack.c.b16 %v5056, %v5048
    %v7257 = vpack.c.b16 %v5057, %v5049
    %v7258 = vpack.c.b16 %v5066, %v5058
    %v7259 = vpack.c.b16 %v5067, %v5059
    %v7260 = vpack.c.b16 %v5068, %v5060
    %v7261 = vpack.c.b16 %v5069, %v5061
    %v7262 = vpack.c.b16 %v5070, %v5062
    %v7263 = vpack.c.b16 %v5071, %v5063
    %v7264 = vpack.c.b16 %v5072, %v5064
    %v7265 = vpack.c.b16 %v5073, %v5065
    %v7266 = vpack.c.b16 %v5082, %v5074
    %v7267 = vpack.c.b16 %v5083, %v5075
    %v7268 = vpack.c.b16 %v5084, %v5076
    %v7269 = vpack.c.b16 %v5085, %v5077
    %v7270 = vpack.c.b16 %v5086, %v5078
    %v7271 = vpack.c.b16 %v5087, %v5079
    %v7272 = vpack.c.b16 %v5088, %v5080
    %v7273 = vpack.c.b16 %v5089, %v5081
    %v7274 = vpack.c.b16 %v5098, %v5090
    %v7275 = vpack.c.b16 %v5099, %v5091
    %v7276 = vpack.c.b16 %v5100, %v5092
    %v7277 = vpack.c.b16 %v5101, %v5093
    %v7278 = vpack.c.b16 %v5102, %v5094
    %v7279 = vpack.c.b16 %v5103, %v5095
    %v7280 = vpack.c.b16 %v5104, %v5096
    %v7281 = vpack.c.b16 %v5105, %v5097
    %v7282 = vpack.c.b16 %v5114, %v5106
    %v7283 = vpack.c.b16 %v5115, %v5107
    %v7284 = vpack.c.b16 %v5116, %v5108
    %v7285 = vpack.c.b16 %v5117, %v5109
    %v7286 = vpack.c.b16 %v5118, %v5110
    %v7287 = vpack.c.b16 %v5119, %v5111
    %v7288 = vpack.c.b16 %v5120, %v5112
    %v7289 = vpack.c.b16 %v5121, %v5113
    %v7290 = vpack.c.b16 %v5130, %v5122
    %v7291 = vpack.c.b16 %v5131, %v5123
    %v7292 = vpack.c.b16 %v5132, %v5124
    %v7293 = vpack.c.b16 %v5133, %v5125
    %v7294 = vpack.c.b16 %v5134, %v5126
    %v7295 = vpack.c.b16 %v5135, %v5127
    %v7296 = vpack.c.b16 %v5136, %v5128
    %v7297 = vpack.c.b16 %v5137, %v5129
    %v7298 = vpack.c.b16 %v5146, %v5138
    %v7299 = vpack.c.b16 %v5147, %v5139
    %v7300 = vpack.c.b16 %v5148, %v5140
    %v7301 = vpack.c.b16 %v5149, %v5141
    %v7302 = vpack.c.b16 %v5150, %v5142
    %v7303 = vpack.c.b16 %v5151, %v5143
    %v7304 = vpack.c.b16 %v5152, %v5144
    %v7305 = vpack.c.b16 %v5153, %v5145
    %v7306 = vpack.c.b16 %v5162, %v5154
    %v7307 = vpack.c.b16 %v5163, %v5155
    %v7308 = vpack.c.b16 %v5164, %v5156
    %v7309 = vpack.c.b16 %v5165, %v5157
    %v7310 = vpack.c.b16 %v5166, %v5158
    %v7311 = vpack.c.b16 %v5167, %v5159
    %v7312 = vpack.c.b16 %v5168, %v5160
    %v7313 = vpack.c.b16 %v5169, %v5161
    %v7314 = vpack.c.b16 %v5178, %v5170
    %v7315 = vpack.c.b16 %v5179, %v5171
    %v7316 = vpack.c.b16 %v5180, %v5172
    %v7317 = vpack.c.b16 %v5181, %v5173
    %v7318 = vpack.c.b16 %v5182, %v5174
    %v7319 = vpack.c.b16 %v5183, %v5175
    %v7320 = vpack.c.b16 %v5184, %v5176
    %v7321 = vpack.c.b16 %v5185, %v5177
    %v7322 = vpack.c.b16 %v5194, %v5186
    %v7323 = vpack.c.b16 %v5195, %v5187
    %v7324 = vpack.c.b16 %v5196, %v5188
    %v7325 = vpack.c.b16 %v5197, %v5189
    %v7326 = vpack.c.b16 %v5198, %v5190
    %v7327 = vpack.c.b16 %v5199, %v5191
    %v7328 = vpack.c.b16 %v5200, %v5192
    %v7329 = vpack.c.b16 %v5201, %v5193
    %v7330 = vpack.c.b16 %v5210, %v5202
    %v7331 = vpack.c.b16 %v5211, %v5203
    %v7332 = vpack.c.b16 %v5212, %v5204
    %v7333 = vpack.c.b16 %v5213, %v5205
    %v7334 = vpack.c.b16 %v5214, %v5206
    %v7335 = vpack.c.b16 %v5215, %v5207
    %v7336 = vpack.c.b16 %v5216, %v5208
    %v7337 = vpack.c.b16 %v5217, %v5209
    %v7338 = vpack.c.b16 %v5226, %v5218
    %v7339 = vpack.c.b16 %v5227, %v5219
    %v7340 = vpack.c.b16 %v5228, %v5220
    %v7341 = vpack.c.b16 %v5229, %v5221
    %v7342 = vpack.c.b16 %v5230, %v5222
    %v7343 = vpack.c.b16 %v5231, %v5223
    %v7344 = vpack.c.b16 %v5232, %v5224
    %v7345 = vpack.c.b16 %v5233, %v5225
    %v7346 = vpack.c.b16 %v5242, %v5234
    %v7347 = vpack.c.b16 %v5243, %v5235
    %v7348 = vpack.c.b16 %v5244, %v5236
    %v7349 = vpack.c.b16 %v5245, %v5237
    %v7350 = vpack.c.b16 %v5246, %v5238
    %v7351 = vpack.c.b16 %v5247, %v5239
    %v7352 = vpack.c.b16 %v5248, %v5240
    %v7353 = vpack.c.b16 %v5249, %v5241
    %v7354 = vpack.c.b16 %v5258, %v5250
    %v7355 = vpack.c.b16 %v5259, %v5251
    %v7356 = vpack.c.b16 %v5260, %v5252
    %v7357 = vpack.c.b16 %v5261, %v5253
    %v7358 = vpack.c.b16 %v5262, %v5254
    %v7359 = vpack.c.b16 %v5263, %v5255
    %v7360 = vpack.c.b16 %v5264, %v5256
    %v7361 = vpack.c.b16 %v5265, %v5257
    %v7362 = vpack.c.b16 %v5274, %v5266
    %v7363 = vpack.c.b16 %v5275, %v5267
    %v7364 = vpack.c.b16 %v5276, %v5268
    %v7365 = vpack.c.b16 %v5277, %v5269
    %v7366 = vpack.c.b16 %v5278, %v5270
    %v7367 = vpack.c.b16 %v5279, %v5271
    %v7368 = vpack.c.b16 %v5280, %v5272
    %v7369 = vpack.c.b16 %v5281, %v5273
    %v7370 = vpack.c.b16 %v5290, %v5282
    %v7371 = vpack.c.b16 %v5291, %v5283
    %v7372 = vpack.c.b16 %v5292, %v5284
    %v7373 = vpack.c.b16 %v5293, %v5285
    %v7374 = vpack.c.b16 %v5294, %v5286
    %v7375 = vpack.c.b16 %v5295, %v5287
    %v7376 = vpack.c.b16 %v5296, %v5288
    %v7377 = vpack.c.b16 %v5297, %v5289
    %v7378 = vpack.c.b16 %v5306, %v5298
    %v7379 = vpack.c.b16 %v5307, %v5299
    %v7380 = vpack.c.b16 %v5308, %v5300
    %v7381 = vpack.c.b16 %v5309, %v5301
    %v7382 = vpack.c.b16 %v5310, %v5302
    %v7383 = vpack.c.b16 %v5311, %v5303
    %v7384 = vpack.c.b16 %v5312, %v5304
    %v7385 = vpack.c.b16 %v5313, %v5305
    %v7386 = vpack.c.b16 %v5322, %v5314
    %v7387 = vpack.c.b16 %v5323, %v5315
    %v7388 = vpack.c.b16 %v5324, %v5316
    %v7389 = vpack.c.b16 %v5325, %v5317
    %v7390 = vpack.c.b16 %v5326, %v5318
    %v7391 = vpack.c.b16 %v5327, %v5319
    %v7392 = vpack.c.b16 %v5328, %v5320
    %v7393 = vpack.c.b16 %v5329, %v5321
    %v7394 = vpack.c.b16 %v5338, %v5330
    %v7395 = vpack.c.b16 %v5339, %v5331
    %v7396 = vpack.c.b16 %v5340, %v5332
    %v7397 = vpack.c.b16 %v5341, %v5333
    %v7398 = vpack.c.b16 %v5342, %v5334
    %v7399 = vpack.c.b16 %v5343, %v5335
    %v7400 = vpack.c.b16 %v5344, %v5336
    %v7401 = vpack.c.b16 %v5345, %v5337
    %v7402 = vpack.c.b16 %v5354, %v5346
    %v7403 = vpack.c.b16 %v5355, %v5347
    %v7404 = vpack.c.b16 %v5356, %v5348
    %v7405 = vpack.c.b16 %v5357, %v5349
    %v7406 = vpack.c.b16 %v5358, %v5350
    %v7407 = vpack.c.b16 %v5359, %v5351
    %v7408 = vpack.c.b16 %v5360, %v5352
    %v7409 = vpack.c.b16 %v5361, %v5353
    %v7410 = vpack.c.b16 %v5370, %v5362
    %v7411 = vpack.c.b16 %v5371, %v5363
    %v7412 = vpack.c.b16 %v5372, %v5364
    %v7413 = vpack.c.b16 %v5373, %v5365
    %v7414 = vpack.c.b16 %v5374, %v5366
    %v7415 = vpack.c.b16 %v5375, %v5367
    %v7416 = vpack.c.b16 %v5376, %v5368
    %v7417 = vpack.c.b16 %v5377, %v5369
    %v7418 = vpack.c.b16 %v5386, %v5378
    %v7419 = vpack.c.b16 %v5387, %v5379
    %v7420 = vpack.c.b16 %v5388, %v5380
    %v7421 = vpack.c.b16 %v5389, %v5381
    %v7422 = vpack.c.b16 %v5390, %v5382
    %v7423 = vpack.c.b16 %v5391, %v5383
    %v7424 = vpack.c.b16 %v5392, %v5384
    %v7425 = vpack.c.b16 %v5393, %v5385
    %v7426 = vpack.c.b16 %v5402, %v5394
    %v7427 = vpack.c.b16 %v5403, %v5395
    %v7428 = vpack.c.b16 %v5404, %v5396
    %v7429 = vpack.c.b16 %v5405, %v5397
    %v7430 = vpack.c.b16 %v5406, %v5398
    %v7431 = vpack.c.b16 %v5407, %v5399
    %v7432 = vpack.c.b16 %v5408, %v5400
    %v7433 = vpack.c.b16 %v5409, %v5401
    %v7434 = vpack.c.b16 %v5418, %v5410
    %v7435 = vpack.c.b16 %v5419, %v5411
    %v7436 = vpack.c.b16 %v5420, %v5412
    %v7437 = vpack.c.b16 %v5421, %v5413
    %v7438 = vpack.c.b16 %v5422, %v5414
    %v7439 = vpack.c.b16 %v5423, %v5415
    %v7440 = vpack.c.b16 %v5424, %v5416
    %v7441 = vpack.c.b16 %v5425, %v5417
    %v7442 = vpack.c.b16 %v5434, %v5426
    %v7443 = vpack.c.b16 %v5435, %v5427
    %v7444 = vpack.c.b16 %v5436, %v5428
    %v7445 = vpack.c.b16 %v5437, %v5429
    %v7446 = vpack.c.b16 %v5438, %v5430
    %v7447 = vpack.c.b16 %v5439, %v5431
    %v7448 = vpack.c.b16 %v5440, %v5432
    %v7449 = vpack.c.b16 %v5441, %v5433
    %v7450 = vpack.c.b16 %v5450, %v5442
    %v7451 = vpack.c.b16 %v5451, %v5443
    %v7452 = vpack.c.b16 %v5452, %v5444
    %v7453 = vpack.c.b16 %v5453, %v5445
    %v7454 = vpack.c.b16 %v5454, %v5446
    %v7455 = vpack.c.b16 %v5455, %v5447
    %v7456 = vpack.c.b16 %v5456, %v5448
    %v7457 = vpack.c.b16 %v5457, %v5449
    %v7458 = vpack.c.b16 %v5466, %v5458
    %v7459 = vpack.c.b16 %v5467, %v5459
    %v7460 = vpack.c.b16 %v5468, %v5460
    %v7461 = vpack.c.b16 %v5469, %v5461
    %v7462 = vpack.c.b16 %v5470, %v5462
    %v7463 = vpack.c.b16 %v5471, %v5463
    %v7464 = vpack.c.b16 %v5472, %v5464
    %v7465 = vpack.c.b16 %v5473, %v5465
    %v7466 = vpack.c.b16 %v5482, %v5474
    %v7467 = vpack.c.b16 %v5483, %v5475
    %v7468 = vpack.c.b16 %v5484, %v5476
    %v7469 = vpack.c.b16 %v5485, %v5477
    %v7470 = vpack.c.b16 %v5486, %v5478
    %v7471 = vpack.c.b16 %v5487, %v5479
    %v7472 = vpack.c.b16 %v5488, %v5480
    %v7473 = vpack.c.b16 %v5489, %v5481
    %v7474 = vpack.c.b16 %v5498, %v5490
    %v7475 = vpack.c.b16 %v5499, %v5491
    %v7476 = vpack.c.b16 %v5500, %v5492
    %v7477 = vpack.c.b16 %v5501, %v5493
    %v7478 = vpack.c.b16 %v5502, %v5494
    %v7479 = vpack.c.b16 %v5503, %v5495
    %v7480 = vpack.c.b16 %v5504, %v5496
    %v7481 = vpack.c.b16 %v5505, %v5497
    %v7482 = vpack.c.b16 %v5514, %v5506
    %v7483 = vpack.c.b16 %v5515, %v5507
    %v7484 = vpack.c.b16 %v5516, %v5508
    %v7485 = vpack.c.b16 %v5517, %v5509
    %v7486 = vpack.c.b16 %v5518, %v5510
    %v7487 = vpack.c.b16 %v5519, %v5511
    %v7488 = vpack.c.b16 %v5520, %v5512
    %v7489 = vpack.c.b16 %v5521, %v5513
    %v7490 = vpack.c.b16 %v5530, %v5522
    %v7491 = vpack.c.b16 %v5531, %v5523
    %v7492 = vpack.c.b16 %v5532, %v5524
    %v7493 = vpack.c.b16 %v5533, %v5525
    %v7494 = vpack.c.b16 %v5534, %v5526
    %v7495 = vpack.c.b16 %v5535, %v5527
    %v7496 = vpack.c.b16 %v5536, %v5528
    %v7497 = vpack.c.b16 %v5537, %v5529
    %v7498 = vpack.c.b16 %v5546, %v5538
    %v7499 = vpack.c.b16 %v5547, %v5539
    %v7500 = vpack.c.b16 %v5548, %v5540
    %v7501 = vpack.c.b16 %v5549, %v5541
    %v7502 = vpack.c.b16 %v5550, %v5542
    %v7503 = vpack.c.b16 %v5551, %v5543
    %v7504 = vpack.c.b16 %v5552, %v5544
    %v7505 = vpack.c.b16 %v5553, %v5545
    %v7506 = vpack.c.b16 %v5562, %v5554
    %v7507 = vpack.c.b16 %v5563, %v5555
    %v7508 = vpack.c.b16 %v5564, %v5556
    %v7509 = vpack.c.b16 %v5565, %v5557
    %v7510 = vpack.c.b16 %v5566, %v5558
    %v7511 = vpack.c.b16 %v5567, %v5559
    %v7512 = vpack.c.b16 %v5568, %v5560
    %v7513 = vpack.c.b16 %v5569, %v5561
    %v7514 = vpack.c.b16 %v5578, %v5570
    %v7515 = vpack.c.b16 %v5579, %v5571
    %v7516 = vpack.c.b16 %v5580, %v5572
    %v7517 = vpack.c.b16 %v5581, %v5573
    %v7518 = vpack.c.b16 %v5582, %v5574
    %v7519 = vpack.c.b16 %v5583, %v5575
    %v7520 = vpack.c.b16 %v5584, %v5576
    %v7521 = vpack.c.b16 %v5585, %v5577
    %v7522 = vpack.c.b16 %v5594, %v5586
    %v7523 = vpack.c.b16 %v5595, %v5587
    %v7524 = vpack.c.b16 %v5596, %v5588
    %v7525 = vpack.c.b16 %v5597, %v5589
    %v7526 = vpack.c.b16 %v5598, %v5590
    %v7527 = vpack.c.b16 %v5599, %v5591
    %v7528 = vpack.c.b16 %v5600, %v5592
    %v7529 = vpack.c.b16 %v5601, %v5593
    %v7530 = vpack.c.b16 %v5610, %v5602
    %v7531 = vpack.c.b16 %v5611, %v5603
    %v7532 = vpack.c.b16 %v5612, %v5604
    %v7533 = vpack.c.b16 %v5613, %v5605
    %v7534 = vpack.c.b16 %v5614, %v5606
    %v7535 = vpack.c.b16 %v5615, %v5607
    %v7536 = vpack.c.b16 %v5616, %v5608
    %v7537 = vpack.c.b16 %v5617, %v5609
    %v7538 = vpack.c.b16 %v5626, %v5618
    %v7539 = vpack.c.b16 %v5627, %v5619
    %v7540 = vpack.c.b16 %v5628, %v5620
    %v7541 = vpack.c.b16 %v5629, %v5621
    %v7542 = vpack.c.b16 %v5630, %v5622
    %v7543 = vpack.c.b16 %v5631, %v5623
    %v7544 = vpack.c.b16 %v5632, %v5624
    %v7545 = vpack.c.b16 %v5633, %v5625
    %v7546 = vpack.c.b16 %v5642, %v5634
    %v7547 = vpack.c.b16 %v5643, %v5635
    %v7548 = vpack.c.b16 %v5644, %v5636
    %v7549 = vpack.c.b16 %v5645, %v5637
    %v7550 = vpack.c.b16 %v5646, %v5638
    %v7551 = vpack.c.b16 %v5647, %v5639
    %v7552 = vpack.c.b16 %v5648, %v5640
    %v7553 = vpack.c.b16 %v5649, %v5641
    %v7554 = vpack.c.b16 %v5658, %v5650
    %v7555 = vpack.c.b16 %v5659, %v5651
    %v7556 = vpack.c.b16 %v5660, %v5652
    %v7557 = vpack.c.b16 %v5661, %v5653
    %v7558 = vpack.c.b16 %v5662, %v5654
    %v7559 = vpack.c.b16 %v5663, %v5655
    %v7560 = vpack.c.b16 %v5664, %v5656
    %v7561 = vpack.c.b16 %v5665, %v5657
    %v7562 = vpack.c.b16 %v5674, %v5666
    %v7563 = vpack.c.b16 %v5675, %v5667
    %v7564 = vpack.c.b16 %v5676, %v5668
    %v7565 = vpack.c.b16 %v5677, %v5669
    %v7566 = vpack.c.b16 %v5678, %v5670
    %v7567 = vpack.c.b16 %v5679, %v5671
    %v7568 = vpack.c.b16 %v5680, %v5672
    %v7569 = vpack.c.b16 %v5681, %v5673
    %v7570 = vpack.c.b16 %v5690, %v5682
    %v7571 = vpack.c.b16 %v5691, %v5683
    %v7572 = vpack.c.b16 %v5692, %v5684
    %v7573 = vpack.c.b16 %v5693, %v5685
    %v7574 = vpack.c.b16 %v5694, %v5686
    %v7575 = vpack.c.b16 %v5695, %v5687
    %v7576 = vpack.c.b16 %v5696, %v5688
    %v7577 = vpack.c.b16 %v5697, %v5689
    %v7578 = vpack.c.b16 %v5706, %v5698
    %v7579 = vpack.c.b16 %v5707, %v5699
    %v7580 = vpack.c.b16 %v5708, %v5700
    %v7581 = vpack.c.b16 %v5709, %v5701
    %v7582 = vpack.c.b16 %v5710, %v5702
    %v7583 = vpack.c.b16 %v5711, %v5703
    %v7584 = vpack.c.b16 %v5712, %v5704
    %v7585 = vpack.c.b16 %v5713, %v5705
    %v7586 = vpack.c.b16 %v5722, %v5714
    %v7587 = vpack.c.b16 %v5723, %v5715
    %v7588 = vpack.c.b16 %v5724, %v5716
    %v7589 = vpack.c.b16 %v5725, %v5717
    %v7590 = vpack.c.b16 %v5726, %v5718
    %v7591 = vpack.c.b16 %v5727, %v5719
    %v7592 = vpack.c.b16 %v5728, %v5720
    %v7593 = vpack.c.b16 %v5729, %v5721
    %v7594 = vpack.c.b16 %v5738, %v5730
    %v7595 = vpack.c.b16 %v5739, %v5731
    %v7596 = vpack.c.b16 %v5740, %v5732
    %v7597 = vpack.c.b16 %v5741, %v5733
    %v7598 = vpack.c.b16 %v5742, %v5734
    %v7599 = vpack.c.b16 %v5743, %v5735
    %v7600 = vpack.c.b16 %v5744, %v5736
    %v7601 = vpack.c.b16 %v5745, %v5737
    %v7602 = vpack.c.b16 %v5754, %v5746
    %v7603 = vpack.c.b16 %v5755, %v5747
    %v7604 = vpack.c.b16 %v5756, %v5748
    %v7605 = vpack.c.b16 %v5757, %v5749
    %v7606 = vpack.c.b16 %v5758, %v5750
    %v7607 = vpack.c.b16 %v5759, %v5751
    %v7608 = vpack.c.b16 %v5760, %v5752
    %v7609 = vpack.c.b16 %v5761, %v5753
    %v7610 = vpack.c.b16 %v5770, %v5762
    %v7611 = vpack.c.b16 %v5771, %v5763
    %v7612 = vpack.c.b16 %v5772, %v5764
    %v7613 = vpack.c.b16 %v5773, %v5765
    %v7614 = vpack.c.b16 %v5774, %v5766
    %v7615 = vpack.c.b16 %v5775, %v5767
    %v7616 = vpack.c.b16 %v5776, %v5768
    %v7617 = vpack.c.b16 %v5777, %v5769
    %v7618 = vpack.c.b16 %v5786, %v5778
    %v7619 = vpack.c.b16 %v5787, %v5779
    %v7620 = vpack.c.b16 %v5788, %v5780
    %v7621 = vpack.c.b16 %v5789, %v5781
    %v7622 = vpack.c.b16 %v5790, %v5782
    %v7623 = vpack.c.b16 %v5791, %v5783
    %v7624 = vpack.c.b16 %v5792, %v5784
    %v7625 = vpack.c.b16 %v5793, %v5785
    %v7626 = vpack.c.b16 %v5802, %v5794
    %v7627 = vpack.c.b16 %v5803, %v5795
    %v7628 = vpack.c.b16 %v5804, %v5796
    %v7629 = vpack.c.b16 %v5805, %v5797
    %v7630 = vpack.c.b16 %v5806, %v5798
    %v7631 = vpack.c.b16 %v5807, %v5799
    %v7632 = vpack.c.b16 %v5808, %v5800
    %v7633 = vpack.c.b16 %v5809, %v5801
    %v7634 = vpack.c.b16 %v5818, %v5810
    %v7635 = vpack.c.b16 %v5819, %v5811
    %v7636 = vpack.c.b16 %v5820, %v5812
    %v7637 = vpack.c.b16 %v5821, %v5813
    %v7638 = vpack.c.b16 %v5822, %v5814
    %v7639 = vpack.c.b16 %v5823, %v5815
    %v7640 = vpack.c.b16 %v5824, %v5816
    %v7641 = vpack.c.b16 %v5825, %v5817
    %v7642 = vpack.c.b16 %v5834, %v5826
    %v7643 = vpack.c.b16 %v5835, %v5827
    %v7644 = vpack.c.b16 %v5836, %v5828
    %v7645 = vpack.c.b16 %v5837, %v5829
    %v7646 = vpack.c.b16 %v5838, %v5830
    %v7647 = vpack.c.b16 %v5839, %v5831
    %v7648 = vpack.c.b16 %v5840, %v5832
    %v7649 = vpack.c.b16 %v5841, %v5833
    %v7650 = vpack.c.b16 %v5850, %v5842
    %v7651 = vpack.c.b16 %v5851, %v5843
    %v7652 = vpack.c.b16 %v5852, %v5844
    %v7653 = vpack.c.b16 %v5853, %v5845
    %v7654 = vpack.c.b16 %v5854, %v5846
    %v7655 = vpack.c.b16 %v5855, %v5847
    %v7656 = vpack.c.b16 %v5856, %v5848
    %v7657 = vpack.c.b16 %v5857, %v5849
    %v7658 = vpack.c.b16 %v5866, %v5858
    %v7659 = vpack.c.b16 %v5867, %v5859
    %v7660 = vpack.c.b16 %v5868, %v5860
    %v7661 = vpack.c.b16 %v5869, %v5861
    %v7662 = vpack.c.b16 %v5870, %v5862
    %v7663 = vpack.c.b16 %v5871, %v5863
    %v7664 = vpack.c.b16 %v5872, %v5864
    %v7665 = vpack.c.b16 %v5873, %v5865
    %v7666 = vpack.c.b16 %v5882, %v5874
    %v7667 = vpack.c.b16 %v5883, %v5875
    %v7668 = vpack.c.b16 %v5884, %v5876
    %v7669 = vpack.c.b16 %v5885, %v5877
    %v7670 = vpack.c.b16 %v5886, %v5878
    %v7671 = vpack.c.b16 %v5887, %v5879
    %v7672 = vpack.c.b16 %v5888, %v5880
    %v7673 = vpack.c.b16 %v5889, %v5881
    %v7674 = vpack.c.b16 %v5898, %v5890
    %v7675 = vpack.c.b16 %v5899, %v5891
    %v7676 = vpack.c.b16 %v5900, %v5892
    %v7677 = vpack.c.b16 %v5901, %v5893
    %v7678 = vpack.c.b16 %v5902, %v5894
    %v7679 = vpack.c.b16 %v5903, %v5895
    %v7680 = vpack.c.b16 %v5904, %v5896
    %v7681 = vpack.c.b16 %v5905, %v5897
    %v7682 = vpack.c.b16 %v5914, %v5906
    %v7683 = vpack.c.b16 %v5915, %v5907
    %v7684 = vpack.c.b16 %v5916, %v5908
    %v7685 = vpack.c.b16 %v5917, %v5909
    %v7686 = vpack.c.b16 %v5918, %v5910
    %v7687 = vpack.c.b16 %v5919, %v5911
    %v7688 = vpack.c.b16 %v5920, %v5912
    %v7689 = vpack.c.b16 %v5921, %v5913
    %v7690 = vpack.c.b16 %v5930, %v5922
    %v7691 = vpack.c.b16 %v5931, %v5923
    %v7692 = vpack.c.b16 %v5932, %v5924
    %v7693 = vpack.c.b16 %v5933, %v5925
    %v7694 = vpack.c.b16 %v5934, %v5926
    %v7695 = vpack.c.b16 %v5935, %v5927
    %v7696 = vpack.c.b16 %v5936, %v5928
    %v7697 = vpack.c.b16 %v5937, %v5929
    %v7698 = vpack.c.b16 %v5946, %v5938
    %v7699 = vpack.c.b16 %v5947, %v5939
    %v7700 = vpack.c.b16 %v5948, %v5940
    %v7701 = vpack.c.b16 %v5949, %v5941
    %v7702 = vpack.c.b16 %v5950, %v5942
    %v7703 = vpack.c.b16 %v5951, %v5943
    %v7704 = vpack.c.b16 %v5952, %v5944
    %v7705 = vpack.c.b16 %v5953, %v5945
    %v7706 = vpack.c.b16 %v5962, %v5954
    %v7707 = vpack.c.b16 %v5963, %v5955
    %v7708 = vpack.c.b16 %v5964, %v5956
    %v7709 = vpack.c.b16 %v5965, %v5957
    %v7710 = vpack.c.b16 %v5966, %v5958
    %v7711 = vpack.c.b16 %v5967, %v5959
    %v7712 = vpack.c.b16 %v5968, %v5960
    %v7713 = vpack.c.b16 %v5969, %v5961
    %v7714 = vpack.c.b16 %v5978, %v5970
    %v7715 = vpack.c.b16 %v5979, %v5971
    %v7716 = vpack.c.b16 %v5980, %v5972
    %v7717 = vpack.c.b16 %v5981, %v5973
    %v7718 = vpack.c.b16 %v5982, %v5974
    %v7719 = vpack.c.b16 %v5983, %v5975
    %v7720 = vpack.c.b16 %v5984, %v5976
    %v7721 = vpack.c.b16 %v5985, %v5977
    %v7722 = vpack.c.b16 %v5994, %v5986
    %v7723 = vpack.c.b16 %v5995, %v5987
    %v7724 = vpack.c.b16 %v5996, %v5988
    %v7725 = vpack.c.b16 %v5997, %v5989
    %v7726 = vpack.c.b16 %v5998, %v5990
    %v7727 = vpack.c.b16 %v5999, %v5991
    %v7728 = vpack.c.b16 %v6000, %v5992
    %v7729 = vpack.c.b16 %v6001, %v5993
    %v7730 = vpack.c.b16 %v6010, %v6002
    %v7731 = vpack.c.b16 %v6011, %v6003
    %v7732 = vpack.c.b16 %v6012, %v6004
    %v7733 = vpack.c.b16 %v6013, %v6005
    %v7734 = vpack.c.b16 %v6014, %v6006
    %v7735 = vpack.c.b16 %v6015, %v6007
    %v7736 = vpack.c.b16 %v6016, %v6008
    %v7737 = vpack.c.b16 %v6017, %v6009
    %v7738 = vpack.c.b16 %v6026, %v6018
    %v7739 = vpack.c.b16 %v6027, %v6019
    %v7740 = vpack.c.b16 %v6028, %v6020
    %v7741 = vpack.c.b16 %v6029, %v6021
    %v7742 = vpack.c.b16 %v6030, %v6022
    %v7743 = vpack.c.b16 %v6031, %v6023
    %v7744 = vpack.c.b16 %v6032, %v6024
    %v7745 = vpack.c.b16 %v6033, %v6025
    %v7746 = vpack.c.b16 %v6042, %v6034
    %v7747 = vpack.c.b16 %v6043, %v6035
    %v7748 = vpack.c.b16 %v6044, %v6036
    %v7749 = vpack.c.b16 %v6045, %v6037
    %v7750 = vpack.c.b16 %v6046, %v6038
    %v7751 = vpack.c.b16 %v6047, %v6039
    %v7752 = vpack.c.b16 %v6048, %v6040
    %v7753 = vpack.c.b16 %v6049, %v6041
    %v7754 = vpack.c.b16 %v6058, %v6050
    %v7755 = vpack.c.b16 %v6059, %v6051
    %v7756 = vpack.c.b16 %v6060, %v6052
    %v7757 = vpack.c.b16 %v6061, %v6053
    %v7758 = vpack.c.b16 %v6062, %v6054
    %v7759 = vpack.c.b16 %v6063, %v6055
    %v7760 = vpack.c.b16 %v6064, %v6056
    %v7761 = vpack.c.b16 %v6065, %v6057
    %v7762 = vpack.c.b16 %v6074, %v6066
    %v7763 = vpack.c.b16 %v6075, %v6067
    %v7764 = vpack.c.b16 %v6076, %v6068
    %v7765 = vpack.c.b16 %v6077, %v6069
    %v7766 = vpack.c.b16 %v6078, %v6070
    %v7767 = vpack.c.b16 %v6079, %v6071
    %v7768 = vpack.c.b16 %v6080, %v6072
    %v7769 = vpack.c.b16 %v6081, %v6073
    %v7770 = vpack.c.b16 %v6090, %v6082
    %v7771 = vpack.c.b16 %v6091, %v6083
    %v7772 = vpack.c.b16 %v6092, %v6084
    %v7773 = vpack.c.b16 %v6093, %v6085
    %v7774 = vpack.c.b16 %v6094, %v6086
    %v7775 = vpack.c.b16 %v6095, %v6087
    %v7776 = vpack.c.b16 %v6096, %v6088
    %v7777 = vpack.c.b16 %v6097, %v6089
    %v7778 = vpack.c.b16 %v6106, %v6098
    %v7779 = vpack.c.b16 %v6107, %v6099
    %v7780 = vpack.c.b16 %v6108, %v6100
    %v7781 = vpack.c.b16 %v6109, %v6101
    %v7782 = vpack.c.b16 %v6110, %v6102
    %v7783 = vpack.c.b16 %v6111, %v6103
    %v7784 = vpack.c.b16 %v6112, %v6104
    %v7785 = vpack.c.b16 %v6113, %v6105
    %v7786 = vpack.c.b16 %v6122, %v6114
    %v7787 = vpack.c.b16 %v6123, %v6115
    %v7788 = vpack.c.b16 %v6124, %v6116
    %v7789 = vpack.c.b16 %v6125, %v6117
    %v7790 = vpack.c.b16 %v6126, %v6118
    %v7791 = vpack.c.b16 %v6127, %v6119
    %v7792 = vpack.c.b16 %v6128, %v6120
    %v7793 = vpack.c.b16 %v6129, %v6121
    %v7794 = vpack.c.b16 %v6138, %v6130
    %v7795 = vpack.c.b16 %v6139, %v6131
    %v7796 = vpack.c.b16 %v6140, %v6132
    %v7797 = vpack.c.b16 %v6141, %v6133
    %v7798 = vpack.c.b16 %v6142, %v6134
    %v7799 = vpack.c.b16 %v6143, %v6135
    %v7800 = vpack.c.b16 %v6144, %v6136
    %v7801 = vpack.c.b16 %v6145, %v6137
    %v7802 = vpack.c.b16 %v6154, %v6146
    %v7803 = vpack.c.b16 %v6155, %v6147
    %v7804 = vpack.c.b16 %v6156, %v6148
    %v7805 = vpack.c.b16 %v6157, %v6149
    %v7806 = vpack.c.b16 %v6158, %v6150
    %v7807 = vpack.c.b16 %v6159, %v6151
    %v7808 = vpack.c.b16 %v6160, %v6152
    %v7809 = vpack.c.b16 %v6161, %v6153
    %v7810 = vpack.c.b16 %v6170, %v6162
    %v7811 = vpack.c.b16 %v6171, %v6163
    %v7812 = vpack.c.b16 %v6172, %v6164
    %v7813 = vpack.c.b16 %v6173, %v6165
    %v7814 = vpack.c.b16 %v6174, %v6166
    %v7815 = vpack.c.b16 %v6175, %v6167
    %v7816 = vpack.c.b16 %v6176, %v6168
    %v7817 = vpack.c.b16 %v6177, %v6169
    %v7818 = vpack.c.b16 %v6186, %v6178
    %v7819 = vpack.c.b16 %v6187, %v6179
    %v7820 = vpack.c.b16 %v6188, %v6180
    %v7821 = vpack.c.b16 %v6189, %v6181
    %v7822 = vpack.c.b16 %v6190, %v6182
    %v7823 = vpack.c.b16 %v6191, %v6183
    %v7824 = vpack.c.b16 %v6192, %v6184
    %v7825 = vpack.c.b16 %v6193, %v6185
    %v7826 = vpack.c.b16 %v6202, %v6194
    %v7827 = vpack.c.b16 %v6203, %v6195
    %v7828 = vpack.c.b16 %v6204, %v6196
    %v7829 = vpack.c.b16 %v6205, %v6197
    %v7830 = vpack.c.b16 %v6206, %v6198
    %v7831 = vpack.c.b16 %v6207, %v6199
    %v7832 = vpack.c.b16 %v6208, %v6200
    %v7833 = vpack.c.b16 %v6209, %v6201
    %v7834 = vpack.c.b16 %v6218, %v6210
    %v7835 = vpack.c.b16 %v6219, %v6211
    %v7836 = vpack.c.b16 %v6220, %v6212
    %v7837 = vpack.c.b16 %v6221, %v6213
    %v7838 = vpack.c.b16 %v6222, %v6214
    %v7839 = vpack.c.b16 %v6223, %v6215
    %v7840 = vpack.c.b16 %v6224, %v6216
    %v7841 = vpack.c.b16 %v6225, %v6217
    %v7842 = vpack.c.b16 %v6234, %v6226
    %v7843 = vpack.c.b16 %v6235, %v6227
    %v7844 = vpack.c.b16 %v6236, %v6228
    %v7845 = vpack.c.b16 %v6237, %v6229
    %v7846 = vpack.c.b16 %v6238, %v6230
    %v7847 = vpack.c.b16 %v6239, %v6231
    %v7848 = vpack.c.b16 %v6240, %v6232
    %v7849 = vpack.c.b16 %v6241, %v6233
    %v7850 = vpack.c.b16 %v6250, %v6242
    %v7851 = vpack.c.b16 %v6251, %v6243
    %v7852 = vpack.c.b16 %v6252, %v6244
    %v7853 = vpack.c.b16 %v6253, %v6245
    %v7854 = vpack.c.b16 %v6254, %v6246
    %v7855 = vpack.c.b16 %v6255, %v6247
    %v7856 = vpack.c.b16 %v6256, %v6248
    %v7857 = vpack.c.b16 %v6257, %v6249
    %v7858 = vpack.c.b16 %v6266, %v6258
    %v7859 = vpack.c.b16 %v6267, %v6259
    %v7860 = vpack.c.b16 %v6268, %v6260
    %v7861 = vpack.c.b16 %v6269, %v6261
    %v7862 = vpack.c.b16 %v6270, %v6262
    %v7863 = vpack.c.b16 %v6271, %v6263
    %v7864 = vpack.c.b16 %v6272, %v6264
    %v7865 = vpack.c.b16 %v6273, %v6265
    %v7866 = vpack.c.b16 %v6282, %v6274
    %v7867 = vpack.c.b16 %v6283, %v6275
    %v7868 = vpack.c.b16 %v6284, %v6276
    %v7869 = vpack.c.b16 %v6285, %v6277
    %v7870 = vpack.c.b16 %v6286, %v6278
    %v7871 = vpack.c.b16 %v6287, %v6279
    %v7872 = vpack.c.b16 %v6288, %v6280
    %v7873 = vpack.c.b16 %v6289, %v6281
    %v7874 = vpack.c.b16 %v6298, %v6290
    %v7875 = vpack.c.b16 %v6299, %v6291
    %v7876 = vpack.c.b16 %v6300, %v6292
    %v7877 = vpack.c.b16 %v6301, %v6293
    %v7878 = vpack.c.b16 %v6302, %v6294
    %v7879 = vpack.c.b16 %v6303, %v6295
    %v7880 = vpack.c.b16 %v6304, %v6296
    %v7881 = vpack.c.b16 %v6305, %v6297
    %v7882 = vpack.c.b16 %v6314, %v6306
    %v7883 = vpack.c.b16 %v6315, %v6307
    %v7884 = vpack.c.b16 %v6316, %v6308
    %v7885 = vpack.c.b16 %v6317, %v6309
    %v7886 = vpack.c.b16 %v6318, %v6310
    %v7887 = vpack.c.b16 %v6319, %v6311
    %v7888 = vpack.c.b16 %v6320, %v6312
    %v7889 = vpack.c.b16 %v6321, %v6313
    %v7890 = vpack.c.b16 %v6330, %v6322
    %v7891 = vpack.c.b16 %v6331, %v6323
    %v7892 = vpack.c.b16 %v6332, %v6324
    %v7893 = vpack.c.b16 %v6333, %v6325
    %v7894 = vpack.c.b16 %v6334, %v6326
    %v7895 = vpack.c.b16 %v6335, %v6327
    %v7896 = vpack.c.b16 %v6336, %v6328
    %v7897 = vpack.c.b16 %v6337, %v6329
    %v7898 = vpack.c.b16 %v6346, %v6338
    %v7899 = vpack.c.b16 %v6347, %v6339
    %v7900 = vpack.c.b16 %v6348, %v6340
    %v7901 = vpack.c.b16 %v6349, %v6341
    %v7902 = vpack.c.b16 %v6350, %v6342
    %v7903 = vpack.c.b16 %v6351, %v6343
    %v7904 = vpack.c.b16 %v6352, %v6344
    %v7905 = vpack.c.b16 %v6353, %v6345
    %v7906 = vpack.c.b16 %v6362, %v6354
    %v7907 = vpack.c.b16 %v6363, %v6355
    %v7908 = vpack.c.b16 %v6364, %v6356
    %v7909 = vpack.c.b16 %v6365, %v6357
    %v7910 = vpack.c.b16 %v6366, %v6358
    %v7911 = vpack.c.b16 %v6367, %v6359
    %v7912 = vpack.c.b16 %v6368, %v6360
    %v7913 = vpack.c.b16 %v6369, %v6361
    %v7914 = vpack.c.b16 %v6378, %v6370
    %v7915 = vpack.c.b16 %v6379, %v6371
    %v7916 = vpack.c.b16 %v6380, %v6372
    %v7917 = vpack.c.b16 %v6381, %v6373
    %v7918 = vpack.c.b16 %v6382, %v6374
    %v7919 = vpack.c.b16 %v6383, %v6375
    %v7920 = vpack.c.b16 %v6384, %v6376
    %v7921 = vpack.c.b16 %v6385, %v6377
    %9458 = vmatpush.bf16.msra.mxu0 %v6442
    %9459 = vmatpush.bf16.msra.mxu0 %v6434
    %9460 = vmatpush.bf16.msra.mxu0 %v6426
    %9461 = vmatpush.bf16.msra.mxu0 %v6418
    %9462 = vmatpush.bf16.msra.mxu0 %v6410
    %9463 = vmatpush.bf16.msra.mxu0 %v6402
    %9464 = vmatpush.bf16.msra.mxu0 %v6394
    %9465 = vmatpush.bf16.msra.mxu0 %v6386
    %9466 = vmatmul.bf16.gmra.mxu0 %v1730
    %v9467 = vpop.f32.mrf.mxu0
    %v9468 = vadd.f32 %v1678, %v9467
    %v9469 = vpop.f32.mrf.mxu0
    %9470 = vdwg.mxu0
    %9471 = vmatpush.bf16.msra.mxu0 %v6506
    %9472 = vmatpush.bf16.msra.mxu0 %v6498
    %9473 = vmatpush.bf16.msra.mxu0 %v6490
    %9474 = vmatpush.bf16.msra.mxu0 %v6482
    %9475 = vmatpush.bf16.msra.mxu0 %v6474
    %9476 = vmatpush.bf16.msra.mxu0 %v6466
    %9477 = vmatpush.bf16.msra.mxu0 %v6458
    %9478 = vmatpush.bf16.msra.mxu0 %v6450
    %9479 = vmatmul.bf16.gmra.mxu0 %v1731
    %v9480 = vpop.f32.mrf.mxu0
    %v9481 = vadd.f32 %v9468, %v9480
    %v9482 = vpop.f32.mrf.mxu0
    %9483 = vdwg.mxu0
    %9484 = vmatpush.bf16.msra.mxu0 %v6570
    %9485 = vmatpush.bf16.msra.mxu0 %v6562
    %9486 = vmatpush.bf16.msra.mxu0 %v6554
    %9487 = vmatpush.bf16.msra.mxu0 %v6546
    %9488 = vmatpush.bf16.msra.mxu0 %v6538
    %9489 = vmatpush.bf16.msra.mxu0 %v6530
    %9490 = vmatpush.bf16.msra.mxu0 %v6522
    %9491 = vmatpush.bf16.msra.mxu0 %v6514
    %9492 = vmatmul.bf16.gmra.mxu0 %v1732
    %v9493 = vpop.f32.mrf.mxu0
    %v9494 = vadd.f32 %v9481, %v9493
    %v9495 = vpop.f32.mrf.mxu0
    %9496 = vdwg.mxu0
    %9497 = vmatpush.bf16.msra.mxu0 %v6634
    %9498 = vmatpush.bf16.msra.mxu0 %v6626
    %9499 = vmatpush.bf16.msra.mxu0 %v6618
    %9500 = vmatpush.bf16.msra.mxu0 %v6610
    %9501 = vmatpush.bf16.msra.mxu0 %v6602
    %9502 = vmatpush.bf16.msra.mxu0 %v6594
    %9503 = vmatpush.bf16.msra.mxu0 %v6586
    %9504 = vmatpush.bf16.msra.mxu0 %v6578
    %9505 = vmatmul.bf16.gmra.mxu0 %v1733
    %v9506 = vpop.f32.mrf.mxu0
    %v9507 = vadd.f32 %v9494, %v9506
    %v9508 = vpop.f32.mrf.mxu0
    %9509 = vdwg.mxu0
    %9510 = vmatpush.bf16.msra.mxu0 %v6698
    %9511 = vmatpush.bf16.msra.mxu0 %v6690
    %9512 = vmatpush.bf16.msra.mxu0 %v6682
    %9513 = vmatpush.bf16.msra.mxu0 %v6674
    %9514 = vmatpush.bf16.msra.mxu0 %v6666
    %9515 = vmatpush.bf16.msra.mxu0 %v6658
    %9516 = vmatpush.bf16.msra.mxu0 %v6650
    %9517 = vmatpush.bf16.msra.mxu0 %v6642
    %9518 = vmatmul.bf16.gmra.mxu0 %v1734
    %v9519 = vpop.f32.mrf.mxu0
    %v9520 = vadd.f32 %v9507, %v9519
    %v9521 = vpop.f32.mrf.mxu0
    %9522 = vdwg.mxu0
    %9523 = vmatpush.bf16.msra.mxu0 %v6762
    %9524 = vmatpush.bf16.msra.mxu0 %v6754
    %9525 = vmatpush.bf16.msra.mxu0 %v6746
    %9526 = vmatpush.bf16.msra.mxu0 %v6738
    %9527 = vmatpush.bf16.msra.mxu0 %v6730
    %9528 = vmatpush.bf16.msra.mxu0 %v6722
    %9529 = vmatpush.bf16.msra.mxu0 %v6714
    %9530 = vmatpush.bf16.msra.mxu0 %v6706
    %9531 = vmatmul.bf16.gmra.mxu0 %v1735
    %v9532 = vpop.f32.mrf.mxu0
    %v9533 = vadd.f32 %v9520, %v9532
    %v9534 = vpop.f32.mrf.mxu0
    %9535 = vdwg.mxu0
    %9536 = vmatpush.bf16.msra.mxu0 %v6826
    %9537 = vmatpush.bf16.msra.mxu0 %v6818
    %9538 = vmatpush.bf16.msra.mxu0 %v6810
    %9539 = vmatpush.bf16.msra.mxu0 %v6802
    %9540 = vmatpush.bf16.msra.mxu0 %v6794
    %9541 = vmatpush.bf16.msra.mxu0 %v6786
    %9542 = vmatpush.bf16.msra.mxu0 %v6778
    %9543 = vmatpush.bf16.msra.mxu0 %v6770
    %9544 = vmatmul.bf16.gmra.mxu0 %v1736
    %v9545 = vpop.f32.mrf.mxu0
    %v9546 = vadd.f32 %v9533, %v9545
    %v9547 = vpop.f32.mrf.mxu0
    %9548 = vdwg.mxu0
    %9549 = vmatpush.bf16.msra.mxu0 %v6890
    %9550 = vmatpush.bf16.msra.mxu0 %v6882
    %9551 = vmatpush.bf16.msra.mxu0 %v6874
    %9552 = vmatpush.bf16.msra.mxu0 %v6866
    %9553 = vmatpush.bf16.msra.mxu0 %v6858
    %9554 = vmatpush.bf16.msra.mxu0 %v6850
    %9555 = vmatpush.bf16.msra.mxu0 %v6842
    %9556 = vmatpush.bf16.msra.mxu0 %v6834
    %9557 = vmatmul.bf16.gmra.mxu0 %v1737
    %v9558 = vpop.f32.mrf.mxu0
    %v9559 = vadd.f32 %v9546, %v9558
    %v9560 = vpop.f32.mrf.mxu0
    %9561 = vdwg.mxu0
    %9562 = vmatpush.bf16.msra.mxu0 %v6954
    %9563 = vmatpush.bf16.msra.mxu0 %v6946
    %9564 = vmatpush.bf16.msra.mxu0 %v6938
    %9565 = vmatpush.bf16.msra.mxu0 %v6930
    %9566 = vmatpush.bf16.msra.mxu0 %v6922
    %9567 = vmatpush.bf16.msra.mxu0 %v6914
    %9568 = vmatpush.bf16.msra.mxu0 %v6906
    %9569 = vmatpush.bf16.msra.mxu0 %v6898
    %9570 = vmatmul.bf16.gmra.mxu0 %v1738
    %v9571 = vpop.f32.mrf.mxu0
    %v9572 = vadd.f32 %v9559, %v9571
    %v9573 = vpop.f32.mrf.mxu0
    %9574 = vdwg.mxu0
    %9575 = vmatpush.bf16.msra.mxu0 %v7018
    %9576 = vmatpush.bf16.msra.mxu0 %v7010
    %9577 = vmatpush.bf16.msra.mxu0 %v7002
    %9578 = vmatpush.bf16.msra.mxu0 %v6994
    %9579 = vmatpush.bf16.msra.mxu0 %v6986
    %9580 = vmatpush.bf16.msra.mxu0 %v6978
    %9581 = vmatpush.bf16.msra.mxu0 %v6970
    %9582 = vmatpush.bf16.msra.mxu0 %v6962
    %9583 = vmatmul.bf16.gmra.mxu0 %v1739
    %v9584 = vpop.f32.mrf.mxu0
    %v9585 = vadd.f32 %v9572, %v9584
    %v9586 = vpop.f32.mrf.mxu0
    %9587 = vdwg.mxu0
    %9588 = vmatpush.bf16.msra.mxu0 %v7082
    %9589 = vmatpush.bf16.msra.mxu0 %v7074
    %9590 = vmatpush.bf16.msra.mxu0 %v7066
    %9591 = vmatpush.bf16.msra.mxu0 %v7058
    %9592 = vmatpush.bf16.msra.mxu0 %v7050
    %9593 = vmatpush.bf16.msra.mxu0 %v7042
    %9594 = vmatpush.bf16.msra.mxu0 %v7034
    %9595 = vmatpush.bf16.msra.mxu0 %v7026
    %9596 = vmatmul.bf16.gmra.mxu0 %v1740
    %v9597 = vpop.f32.mrf.mxu0
    %v9598 = vadd.f32 %v9585, %v9597
    %v9599 = vpop.f32.mrf.mxu0
    %9600 = vdwg.mxu0
    %9601 = vmatpush.bf16.msra.mxu0 %v7146
    %9602 = vmatpush.bf16.msra.mxu0 %v7138
    %9603 = vmatpush.bf16.msra.mxu0 %v7130
    %9604 = vmatpush.bf16.msra.mxu0 %v7122
    %9605 = vmatpush.bf16.msra.mxu0 %v7114
    %9606 = vmatpush.bf16.msra.mxu0 %v7106
    %9607 = vmatpush.bf16.msra.mxu0 %v7098
    %9608 = vmatpush.bf16.msra.mxu0 %v7090
    %9609 = vmatmul.bf16.gmra.mxu0 %v1741
    %v9610 = vpop.f32.mrf.mxu0
    %v9611 = vadd.f32 %v9598, %v9610
    %v9612 = vpop.f32.mrf.mxu0
    %9613 = vdwg.mxu0
    %9614 = vmatpush.bf16.msra.mxu0 %v7210
    %9615 = vmatpush.bf16.msra.mxu0 %v7202
    %9616 = vmatpush.bf16.msra.mxu0 %v7194
    %9617 = vmatpush.bf16.msra.mxu0 %v7186
    %9618 = vmatpush.bf16.msra.mxu0 %v7178
    %9619 = vmatpush.bf16.msra.mxu0 %v7170
    %9620 = vmatpush.bf16.msra.mxu0 %v7162
    %9621 = vmatpush.bf16.msra.mxu0 %v7154
    %9622 = vmatmul.bf16.gmra.mxu0 %v1742
    %v9623 = vpop.f32.mrf.mxu0
    %v9624 = vadd.f32 %v9611, %v9623
    %v9625 = vpop.f32.mrf.mxu0
    %9626 = vdwg.mxu0
    %9627 = vmatpush.bf16.msra.mxu0 %v7274
    %9628 = vmatpush.bf16.msra.mxu0 %v7266
    %9629 = vmatpush.bf16.msra.mxu0 %v7258
    %9630 = vmatpush.bf16.msra.mxu0 %v7250
    %9631 = vmatpush.bf16.msra.mxu0 %v7242
    %9632 = vmatpush.bf16.msra.mxu0 %v7234
    %9633 = vmatpush.bf16.msra.mxu0 %v7226
    %9634 = vmatpush.bf16.msra.mxu0 %v7218
    %9635 = vmatmul.bf16.gmra.mxu0 %v1743
    %v9636 = vpop.f32.mrf.mxu0
    %v9637 = vadd.f32 %v9624, %v9636
    %v9638 = vpop.f32.mrf.mxu0
    %9639 = vdwg.mxu0
    %9640 = vmatpush.bf16.msra.mxu0 %v7338
    %9641 = vmatpush.bf16.msra.mxu0 %v7330
    %9642 = vmatpush.bf16.msra.mxu0 %v7322
    %9643 = vmatpush.bf16.msra.mxu0 %v7314
    %9644 = vmatpush.bf16.msra.mxu0 %v7306
    %9645 = vmatpush.bf16.msra.mxu0 %v7298
    %9646 = vmatpush.bf16.msra.mxu0 %v7290
    %9647 = vmatpush.bf16.msra.mxu0 %v7282
    %9648 = vmatmul.bf16.gmra.mxu0 %v1744
    %v9649 = vpop.f32.mrf.mxu0
    %v9650 = vadd.f32 %v9637, %v9649
    %v9651 = vpop.f32.mrf.mxu0
    %9652 = vdwg.mxu0
    %9653 = vmatpush.bf16.msra.mxu0 %v7402
    %9654 = vmatpush.bf16.msra.mxu0 %v7394
    %9655 = vmatpush.bf16.msra.mxu0 %v7386
    %9656 = vmatpush.bf16.msra.mxu0 %v7378
    %9657 = vmatpush.bf16.msra.mxu0 %v7370
    %9658 = vmatpush.bf16.msra.mxu0 %v7362
    %9659 = vmatpush.bf16.msra.mxu0 %v7354
    %9660 = vmatpush.bf16.msra.mxu0 %v7346
    %9661 = vmatmul.bf16.gmra.mxu0 %v1745
    %v9662 = vpop.f32.mrf.mxu0
    %v9663 = vadd.f32 %v9650, %v9662
    %v9664 = vpop.f32.mrf.mxu0
    %9665 = vdwg.mxu0
    %9666 = vmatpush.bf16.msra.mxu0 %v7466
    %9667 = vmatpush.bf16.msra.mxu0 %v7458
    %9668 = vmatpush.bf16.msra.mxu0 %v7450
    %9669 = vmatpush.bf16.msra.mxu0 %v7442
    %9670 = vmatpush.bf16.msra.mxu0 %v7434
    %9671 = vmatpush.bf16.msra.mxu0 %v7426
    %9672 = vmatpush.bf16.msra.mxu0 %v7418
    %9673 = vmatpush.bf16.msra.mxu0 %v7410
    %9674 = vmatmul.bf16.gmra.mxu0 %v1746
    %v9675 = vpop.f32.mrf.mxu0
    %v9676 = vadd.f32 %v9663, %v9675
    %v9677 = vpop.f32.mrf.mxu0
    %9678 = vdwg.mxu0
    %9679 = vmatpush.bf16.msra.mxu0 %v7530
    %9680 = vmatpush.bf16.msra.mxu0 %v7522
    %9681 = vmatpush.bf16.msra.mxu0 %v7514
    %9682 = vmatpush.bf16.msra.mxu0 %v7506
    %9683 = vmatpush.bf16.msra.mxu0 %v7498
    %9684 = vmatpush.bf16.msra.mxu0 %v7490
    %9685 = vmatpush.bf16.msra.mxu0 %v7482
    %9686 = vmatpush.bf16.msra.mxu0 %v7474
    %9687 = vmatmul.bf16.gmra.mxu0 %v1747
    %v9688 = vpop.f32.mrf.mxu0
    %v9689 = vadd.f32 %v9676, %v9688
    %v9690 = vpop.f32.mrf.mxu0
    %9691 = vdwg.mxu0
    %9692 = vmatpush.bf16.msra.mxu0 %v7594
    %9693 = vmatpush.bf16.msra.mxu0 %v7586
    %9694 = vmatpush.bf16.msra.mxu0 %v7578
    %9695 = vmatpush.bf16.msra.mxu0 %v7570
    %9696 = vmatpush.bf16.msra.mxu0 %v7562
    %9697 = vmatpush.bf16.msra.mxu0 %v7554
    %9698 = vmatpush.bf16.msra.mxu0 %v7546
    %9699 = vmatpush.bf16.msra.mxu0 %v7538
    %9700 = vmatmul.bf16.gmra.mxu0 %v1748
    %v9701 = vpop.f32.mrf.mxu0
    %v9702 = vadd.f32 %v9689, %v9701
    %v9703 = vpop.f32.mrf.mxu0
    %9704 = vdwg.mxu0
    %9705 = vmatpush.bf16.msra.mxu0 %v7658
    %9706 = vmatpush.bf16.msra.mxu0 %v7650
    %9707 = vmatpush.bf16.msra.mxu0 %v7642
    %9708 = vmatpush.bf16.msra.mxu0 %v7634
    %9709 = vmatpush.bf16.msra.mxu0 %v7626
    %9710 = vmatpush.bf16.msra.mxu0 %v7618
    %9711 = vmatpush.bf16.msra.mxu0 %v7610
    %9712 = vmatpush.bf16.msra.mxu0 %v7602
    %9713 = vmatmul.bf16.gmra.mxu0 %v1749
    %v9714 = vpop.f32.mrf.mxu0
    %v9715 = vadd.f32 %v9702, %v9714
    %v9716 = vpop.f32.mrf.mxu0
    %9717 = vdwg.mxu0
    %9718 = vmatpush.bf16.msra.mxu0 %v7722
    %9719 = vmatpush.bf16.msra.mxu0 %v7714
    %9720 = vmatpush.bf16.msra.mxu0 %v7706
    %9721 = vmatpush.bf16.msra.mxu0 %v7698
    %9722 = vmatpush.bf16.msra.mxu0 %v7690
    %9723 = vmatpush.bf16.msra.mxu0 %v7682
    %9724 = vmatpush.bf16.msra.mxu0 %v7674
    %9725 = vmatpush.bf16.msra.mxu0 %v7666
    %9726 = vmatmul.bf16.gmra.mxu0 %v1750
    %v9727 = vpop.f32.mrf.mxu0
    %v9728 = vadd.f32 %v9715, %v9727
    %v9729 = vpop.f32.mrf.mxu0
    %9730 = vdwg.mxu0
    %9731 = vmatpush.bf16.msra.mxu0 %v7786
    %9732 = vmatpush.bf16.msra.mxu0 %v7778
    %9733 = vmatpush.bf16.msra.mxu0 %v7770
    %9734 = vmatpush.bf16.msra.mxu0 %v7762
    %9735 = vmatpush.bf16.msra.mxu0 %v7754
    %9736 = vmatpush.bf16.msra.mxu0 %v7746
    %9737 = vmatpush.bf16.msra.mxu0 %v7738
    %9738 = vmatpush.bf16.msra.mxu0 %v7730
    %9739 = vmatmul.bf16.gmra.mxu0 %v1751
    %v9740 = vpop.f32.mrf.mxu0
    %v9741 = vadd.f32 %v9728, %v9740
    %v9742 = vpop.f32.mrf.mxu0
    %9743 = vdwg.mxu0
    %9744 = vmatpush.bf16.msra.mxu0 %v7850
    %9745 = vmatpush.bf16.msra.mxu0 %v7842
    %9746 = vmatpush.bf16.msra.mxu0 %v7834
    %9747 = vmatpush.bf16.msra.mxu0 %v7826
    %9748 = vmatpush.bf16.msra.mxu0 %v7818
    %9749 = vmatpush.bf16.msra.mxu0 %v7810
    %9750 = vmatpush.bf16.msra.mxu0 %v7802
    %9751 = vmatpush.bf16.msra.mxu0 %v7794
    %9752 = vmatmul.bf16.gmra.mxu0 %v1752
    %v9753 = vpop.f32.mrf.mxu0
    %v9754 = vadd.f32 %v9741, %v9753
    %v9755 = vpop.f32.mrf.mxu0
    %9756 = vdwg.mxu0
    %9757 = vmatpush.bf16.msra.mxu0 %v7914
    %9758 = vmatpush.bf16.msra.mxu0 %v7906
    %9759 = vmatpush.bf16.msra.mxu0 %v7898
    %9760 = vmatpush.bf16.msra.mxu0 %v7890
    %9761 = vmatpush.bf16.msra.mxu0 %v7882
    %9762 = vmatpush.bf16.msra.mxu0 %v7874
    %9763 = vmatpush.bf16.msra.mxu0 %v7866
    %9764 = vmatpush.bf16.msra.mxu0 %v7858
    %9765 = vmatmul.bf16.gmra.mxu0 %v1753
    %v9766 = vpop.f32.mrf.mxu0
    %v9767 = vadd.f32 %v9754, %v9766
    %v9768 = vpop.f32.mrf.mxu0
    %9769 = vdwg.mxu0
    %9770 = vmatpush.bf16.msra.mxu0 %v6443
    %9771 = vmatpush.bf16.msra.mxu0 %v6435
    %9772 = vmatpush.bf16.msra.mxu0 %v6427
    %9773 = vmatpush.bf16.msra.mxu0 %v6419
    %9774 = vmatpush.bf16.msra.mxu0 %v6411
    %9775 = vmatpush.bf16.msra.mxu0 %v6403
    %9776 = vmatpush.bf16.msra.mxu0 %v6395
    %9777 = vmatpush.bf16.msra.mxu0 %v6387
    %9778 = vmatmul.bf16.gmra.mxu0 %v1730
    %v9779 = vpop.f32.mrf.mxu0
    %v9780 = vadd.f32 %v1679, %v9779
    %v9781 = vpop.f32.mrf.mxu0
    %9782 = vdwg.mxu0
    %9783 = vmatpush.bf16.msra.mxu0 %v6507
    %9784 = vmatpush.bf16.msra.mxu0 %v6499
    %9785 = vmatpush.bf16.msra.mxu0 %v6491
    %9786 = vmatpush.bf16.msra.mxu0 %v6483
    %9787 = vmatpush.bf16.msra.mxu0 %v6475
    %9788 = vmatpush.bf16.msra.mxu0 %v6467
    %9789 = vmatpush.bf16.msra.mxu0 %v6459
    %9790 = vmatpush.bf16.msra.mxu0 %v6451
    %9791 = vmatmul.bf16.gmra.mxu0 %v1731
    %v9792 = vpop.f32.mrf.mxu0
    %v9793 = vadd.f32 %v9780, %v9792
    %v9794 = vpop.f32.mrf.mxu0
    %9795 = vdwg.mxu0
    %9796 = vmatpush.bf16.msra.mxu0 %v6571
    %9797 = vmatpush.bf16.msra.mxu0 %v6563
    %9798 = vmatpush.bf16.msra.mxu0 %v6555
    %9799 = vmatpush.bf16.msra.mxu0 %v6547
    %9800 = vmatpush.bf16.msra.mxu0 %v6539
    %9801 = vmatpush.bf16.msra.mxu0 %v6531
    %9802 = vmatpush.bf16.msra.mxu0 %v6523
    %9803 = vmatpush.bf16.msra.mxu0 %v6515
    %9804 = vmatmul.bf16.gmra.mxu0 %v1732
    %v9805 = vpop.f32.mrf.mxu0
    %v9806 = vadd.f32 %v9793, %v9805
    %v9807 = vpop.f32.mrf.mxu0
    %9808 = vdwg.mxu0
    %9809 = vmatpush.bf16.msra.mxu0 %v6635
    %9810 = vmatpush.bf16.msra.mxu0 %v6627
    %9811 = vmatpush.bf16.msra.mxu0 %v6619
    %9812 = vmatpush.bf16.msra.mxu0 %v6611
    %9813 = vmatpush.bf16.msra.mxu0 %v6603
    %9814 = vmatpush.bf16.msra.mxu0 %v6595
    %9815 = vmatpush.bf16.msra.mxu0 %v6587
    %9816 = vmatpush.bf16.msra.mxu0 %v6579
    %9817 = vmatmul.bf16.gmra.mxu0 %v1733
    %v9818 = vpop.f32.mrf.mxu0
    %v9819 = vadd.f32 %v9806, %v9818
    %v9820 = vpop.f32.mrf.mxu0
    %9821 = vdwg.mxu0
    %9822 = vmatpush.bf16.msra.mxu0 %v6699
    %9823 = vmatpush.bf16.msra.mxu0 %v6691
    %9824 = vmatpush.bf16.msra.mxu0 %v6683
    %9825 = vmatpush.bf16.msra.mxu0 %v6675
    %9826 = vmatpush.bf16.msra.mxu0 %v6667
    %9827 = vmatpush.bf16.msra.mxu0 %v6659
    %9828 = vmatpush.bf16.msra.mxu0 %v6651
    %9829 = vmatpush.bf16.msra.mxu0 %v6643
    %9830 = vmatmul.bf16.gmra.mxu0 %v1734
    %v9831 = vpop.f32.mrf.mxu0
    %v9832 = vadd.f32 %v9819, %v9831
    %v9833 = vpop.f32.mrf.mxu0
    %9834 = vdwg.mxu0
    %9835 = vmatpush.bf16.msra.mxu0 %v6763
    %9836 = vmatpush.bf16.msra.mxu0 %v6755
    %9837 = vmatpush.bf16.msra.mxu0 %v6747
    %9838 = vmatpush.bf16.msra.mxu0 %v6739
    %9839 = vmatpush.bf16.msra.mxu0 %v6731
    %9840 = vmatpush.bf16.msra.mxu0 %v6723
    %9841 = vmatpush.bf16.msra.mxu0 %v6715
    %9842 = vmatpush.bf16.msra.mxu0 %v6707
    %9843 = vmatmul.bf16.gmra.mxu0 %v1735
    %v9844 = vpop.f32.mrf.mxu0
    %v9845 = vadd.f32 %v9832, %v9844
    %v9846 = vpop.f32.mrf.mxu0
    %9847 = vdwg.mxu0
    %9848 = vmatpush.bf16.msra.mxu0 %v6827
    %9849 = vmatpush.bf16.msra.mxu0 %v6819
    %9850 = vmatpush.bf16.msra.mxu0 %v6811
    %9851 = vmatpush.bf16.msra.mxu0 %v6803
    %9852 = vmatpush.bf16.msra.mxu0 %v6795
    %9853 = vmatpush.bf16.msra.mxu0 %v6787
    %9854 = vmatpush.bf16.msra.mxu0 %v6779
    %9855 = vmatpush.bf16.msra.mxu0 %v6771
    %9856 = vmatmul.bf16.gmra.mxu0 %v1736
    %v9857 = vpop.f32.mrf.mxu0
    %v9858 = vadd.f32 %v9845, %v9857
    %v9859 = vpop.f32.mrf.mxu0
    %9860 = vdwg.mxu0
    %9861 = vmatpush.bf16.msra.mxu0 %v6891
    %9862 = vmatpush.bf16.msra.mxu0 %v6883
    %9863 = vmatpush.bf16.msra.mxu0 %v6875
    %9864 = vmatpush.bf16.msra.mxu0 %v6867
    %9865 = vmatpush.bf16.msra.mxu0 %v6859
    %9866 = vmatpush.bf16.msra.mxu0 %v6851
    %9867 = vmatpush.bf16.msra.mxu0 %v6843
    %9868 = vmatpush.bf16.msra.mxu0 %v6835
    %9869 = vmatmul.bf16.gmra.mxu0 %v1737
    %v9870 = vpop.f32.mrf.mxu0
    %v9871 = vadd.f32 %v9858, %v9870
    %v9872 = vpop.f32.mrf.mxu0
    %9873 = vdwg.mxu0
    %9874 = vmatpush.bf16.msra.mxu0 %v6955
    %9875 = vmatpush.bf16.msra.mxu0 %v6947
    %9876 = vmatpush.bf16.msra.mxu0 %v6939
    %9877 = vmatpush.bf16.msra.mxu0 %v6931
    %9878 = vmatpush.bf16.msra.mxu0 %v6923
    %9879 = vmatpush.bf16.msra.mxu0 %v6915
    %9880 = vmatpush.bf16.msra.mxu0 %v6907
    %9881 = vmatpush.bf16.msra.mxu0 %v6899
    %9882 = vmatmul.bf16.gmra.mxu0 %v1738
    %v9883 = vpop.f32.mrf.mxu0
    %v9884 = vadd.f32 %v9871, %v9883
    %v9885 = vpop.f32.mrf.mxu0
    %9886 = vdwg.mxu0
    %9887 = vmatpush.bf16.msra.mxu0 %v7019
    %9888 = vmatpush.bf16.msra.mxu0 %v7011
    %9889 = vmatpush.bf16.msra.mxu0 %v7003
    %9890 = vmatpush.bf16.msra.mxu0 %v6995
    %9891 = vmatpush.bf16.msra.mxu0 %v6987
    %9892 = vmatpush.bf16.msra.mxu0 %v6979
    %9893 = vmatpush.bf16.msra.mxu0 %v6971
    %9894 = vmatpush.bf16.msra.mxu0 %v6963
    %9895 = vmatmul.bf16.gmra.mxu0 %v1739
    %v9896 = vpop.f32.mrf.mxu0
    %v9897 = vadd.f32 %v9884, %v9896
    %v9898 = vpop.f32.mrf.mxu0
    %9899 = vdwg.mxu0
    %9900 = vmatpush.bf16.msra.mxu0 %v7083
    %9901 = vmatpush.bf16.msra.mxu0 %v7075
    %9902 = vmatpush.bf16.msra.mxu0 %v7067
    %9903 = vmatpush.bf16.msra.mxu0 %v7059
    %9904 = vmatpush.bf16.msra.mxu0 %v7051
    %9905 = vmatpush.bf16.msra.mxu0 %v7043
    %9906 = vmatpush.bf16.msra.mxu0 %v7035
    %9907 = vmatpush.bf16.msra.mxu0 %v7027
    %9908 = vmatmul.bf16.gmra.mxu0 %v1740
    %v9909 = vpop.f32.mrf.mxu0
    %v9910 = vadd.f32 %v9897, %v9909
    %v9911 = vpop.f32.mrf.mxu0
    %9912 = vdwg.mxu0
    %9913 = vmatpush.bf16.msra.mxu0 %v7147
    %9914 = vmatpush.bf16.msra.mxu0 %v7139
    %9915 = vmatpush.bf16.msra.mxu0 %v7131
    %9916 = vmatpush.bf16.msra.mxu0 %v7123
    %9917 = vmatpush.bf16.msra.mxu0 %v7115
    %9918 = vmatpush.bf16.msra.mxu0 %v7107
    %9919 = vmatpush.bf16.msra.mxu0 %v7099
    %9920 = vmatpush.bf16.msra.mxu0 %v7091
    %9921 = vmatmul.bf16.gmra.mxu0 %v1741
    %v9922 = vpop.f32.mrf.mxu0
    %v9923 = vadd.f32 %v9910, %v9922
    %v9924 = vpop.f32.mrf.mxu0
    %9925 = vdwg.mxu0
    %9926 = vmatpush.bf16.msra.mxu0 %v7211
    %9927 = vmatpush.bf16.msra.mxu0 %v7203
    %9928 = vmatpush.bf16.msra.mxu0 %v7195
    %9929 = vmatpush.bf16.msra.mxu0 %v7187
    %9930 = vmatpush.bf16.msra.mxu0 %v7179
    %9931 = vmatpush.bf16.msra.mxu0 %v7171
    %9932 = vmatpush.bf16.msra.mxu0 %v7163
    %9933 = vmatpush.bf16.msra.mxu0 %v7155
    %9934 = vmatmul.bf16.gmra.mxu0 %v1742
    %v9935 = vpop.f32.mrf.mxu0
    %v9936 = vadd.f32 %v9923, %v9935
    %v9937 = vpop.f32.mrf.mxu0
    %9938 = vdwg.mxu0
    %9939 = vmatpush.bf16.msra.mxu0 %v7275
    %9940 = vmatpush.bf16.msra.mxu0 %v7267
    %9941 = vmatpush.bf16.msra.mxu0 %v7259
    %9942 = vmatpush.bf16.msra.mxu0 %v7251
    %9943 = vmatpush.bf16.msra.mxu0 %v7243
    %9944 = vmatpush.bf16.msra.mxu0 %v7235
    %9945 = vmatpush.bf16.msra.mxu0 %v7227
    %9946 = vmatpush.bf16.msra.mxu0 %v7219
    %9947 = vmatmul.bf16.gmra.mxu0 %v1743
    %v9948 = vpop.f32.mrf.mxu0
    %v9949 = vadd.f32 %v9936, %v9948
    %v9950 = vpop.f32.mrf.mxu0
    %9951 = vdwg.mxu0
    %9952 = vmatpush.bf16.msra.mxu0 %v7339
    %9953 = vmatpush.bf16.msra.mxu0 %v7331
    %9954 = vmatpush.bf16.msra.mxu0 %v7323
    %9955 = vmatpush.bf16.msra.mxu0 %v7315
    %9956 = vmatpush.bf16.msra.mxu0 %v7307
    %9957 = vmatpush.bf16.msra.mxu0 %v7299
    %9958 = vmatpush.bf16.msra.mxu0 %v7291
    %9959 = vmatpush.bf16.msra.mxu0 %v7283
    %9960 = vmatmul.bf16.gmra.mxu0 %v1744
    %v9961 = vpop.f32.mrf.mxu0
    %v9962 = vadd.f32 %v9949, %v9961
    %v9963 = vpop.f32.mrf.mxu0
    %9964 = vdwg.mxu0
    %9965 = vmatpush.bf16.msra.mxu0 %v7403
    %9966 = vmatpush.bf16.msra.mxu0 %v7395
    %9967 = vmatpush.bf16.msra.mxu0 %v7387
    %9968 = vmatpush.bf16.msra.mxu0 %v7379
    %9969 = vmatpush.bf16.msra.mxu0 %v7371
    %9970 = vmatpush.bf16.msra.mxu0 %v7363
    %9971 = vmatpush.bf16.msra.mxu0 %v7355
    %9972 = vmatpush.bf16.msra.mxu0 %v7347
    %9973 = vmatmul.bf16.gmra.mxu0 %v1745
    %v9974 = vpop.f32.mrf.mxu0
    %v9975 = vadd.f32 %v9962, %v9974
    %v9976 = vpop.f32.mrf.mxu0
    %9977 = vdwg.mxu0
    %9978 = vmatpush.bf16.msra.mxu0 %v7467
    %9979 = vmatpush.bf16.msra.mxu0 %v7459
    %9980 = vmatpush.bf16.msra.mxu0 %v7451
    %9981 = vmatpush.bf16.msra.mxu0 %v7443
    %9982 = vmatpush.bf16.msra.mxu0 %v7435
    %9983 = vmatpush.bf16.msra.mxu0 %v7427
    %9984 = vmatpush.bf16.msra.mxu0 %v7419
    %9985 = vmatpush.bf16.msra.mxu0 %v7411
    %9986 = vmatmul.bf16.gmra.mxu0 %v1746
    %v9987 = vpop.f32.mrf.mxu0
    %v9988 = vadd.f32 %v9975, %v9987
    %v9989 = vpop.f32.mrf.mxu0
    %9990 = vdwg.mxu0
    %9991 = vmatpush.bf16.msra.mxu0 %v7531
    %9992 = vmatpush.bf16.msra.mxu0 %v7523
    %9993 = vmatpush.bf16.msra.mxu0 %v7515
    %9994 = vmatpush.bf16.msra.mxu0 %v7507
    %9995 = vmatpush.bf16.msra.mxu0 %v7499
    %9996 = vmatpush.bf16.msra.mxu0 %v7491
    %9997 = vmatpush.bf16.msra.mxu0 %v7483
    %9998 = vmatpush.bf16.msra.mxu0 %v7475
    %9999 = vmatmul.bf16.gmra.mxu0 %v1747
    %v10000 = vpop.f32.mrf.mxu0
    %v10001 = vadd.f32 %v9988, %v10000
    %v10002 = vpop.f32.mrf.mxu0
    %10003 = vdwg.mxu0
    %10004 = vmatpush.bf16.msra.mxu0 %v7595
    %10005 = vmatpush.bf16.msra.mxu0 %v7587
    %10006 = vmatpush.bf16.msra.mxu0 %v7579
    %10007 = vmatpush.bf16.msra.mxu0 %v7571
    %10008 = vmatpush.bf16.msra.mxu0 %v7563
    %10009 = vmatpush.bf16.msra.mxu0 %v7555
    %10010 = vmatpush.bf16.msra.mxu0 %v7547
    %10011 = vmatpush.bf16.msra.mxu0 %v7539
    %10012 = vmatmul.bf16.gmra.mxu0 %v1748
    %v10013 = vpop.f32.mrf.mxu0
    %v10014 = vadd.f32 %v10001, %v10013
    %v10015 = vpop.f32.mrf.mxu0
    %10016 = vdwg.mxu0
    %10017 = vmatpush.bf16.msra.mxu0 %v7659
    %10018 = vmatpush.bf16.msra.mxu0 %v7651
    %10019 = vmatpush.bf16.msra.mxu0 %v7643
    %10020 = vmatpush.bf16.msra.mxu0 %v7635
    %10021 = vmatpush.bf16.msra.mxu0 %v7627
    %10022 = vmatpush.bf16.msra.mxu0 %v7619
    %10023 = vmatpush.bf16.msra.mxu0 %v7611
    %10024 = vmatpush.bf16.msra.mxu0 %v7603
    %10025 = vmatmul.bf16.gmra.mxu0 %v1749
    %v10026 = vpop.f32.mrf.mxu0
    %v10027 = vadd.f32 %v10014, %v10026
    %v10028 = vpop.f32.mrf.mxu0
    %10029 = vdwg.mxu0
    %10030 = vmatpush.bf16.msra.mxu0 %v7723
    %10031 = vmatpush.bf16.msra.mxu0 %v7715
    %10032 = vmatpush.bf16.msra.mxu0 %v7707
    %10033 = vmatpush.bf16.msra.mxu0 %v7699
    %10034 = vmatpush.bf16.msra.mxu0 %v7691
    %10035 = vmatpush.bf16.msra.mxu0 %v7683
    %10036 = vmatpush.bf16.msra.mxu0 %v7675
    %10037 = vmatpush.bf16.msra.mxu0 %v7667
    %10038 = vmatmul.bf16.gmra.mxu0 %v1750
    %v10039 = vpop.f32.mrf.mxu0
    %v10040 = vadd.f32 %v10027, %v10039
    %v10041 = vpop.f32.mrf.mxu0
    %10042 = vdwg.mxu0
    %10043 = vmatpush.bf16.msra.mxu0 %v7787
    %10044 = vmatpush.bf16.msra.mxu0 %v7779
    %10045 = vmatpush.bf16.msra.mxu0 %v7771
    %10046 = vmatpush.bf16.msra.mxu0 %v7763
    %10047 = vmatpush.bf16.msra.mxu0 %v7755
    %10048 = vmatpush.bf16.msra.mxu0 %v7747
    %10049 = vmatpush.bf16.msra.mxu0 %v7739
    %10050 = vmatpush.bf16.msra.mxu0 %v7731
    %10051 = vmatmul.bf16.gmra.mxu0 %v1751
    %v10052 = vpop.f32.mrf.mxu0
    %v10053 = vadd.f32 %v10040, %v10052
    %v10054 = vpop.f32.mrf.mxu0
    %10055 = vdwg.mxu0
    %10056 = vmatpush.bf16.msra.mxu0 %v7851
    %10057 = vmatpush.bf16.msra.mxu0 %v7843
    %10058 = vmatpush.bf16.msra.mxu0 %v7835
    %10059 = vmatpush.bf16.msra.mxu0 %v7827
    %10060 = vmatpush.bf16.msra.mxu0 %v7819
    %10061 = vmatpush.bf16.msra.mxu0 %v7811
    %10062 = vmatpush.bf16.msra.mxu0 %v7803
    %10063 = vmatpush.bf16.msra.mxu0 %v7795
    %10064 = vmatmul.bf16.gmra.mxu0 %v1752
    %v10065 = vpop.f32.mrf.mxu0
    %v10066 = vadd.f32 %v10053, %v10065
    %v10067 = vpop.f32.mrf.mxu0
    %10068 = vdwg.mxu0
    %10069 = vmatpush.bf16.msra.mxu0 %v7915
    %10070 = vmatpush.bf16.msra.mxu0 %v7907
    %10071 = vmatpush.bf16.msra.mxu0 %v7899
    %10072 = vmatpush.bf16.msra.mxu0 %v7891
    %10073 = vmatpush.bf16.msra.mxu0 %v7883
    %10074 = vmatpush.bf16.msra.mxu0 %v7875
    %10075 = vmatpush.bf16.msra.mxu0 %v7867
    %10076 = vmatpush.bf16.msra.mxu0 %v7859
    %10077 = vmatmul.bf16.gmra.mxu0 %v1753
    %v10078 = vpop.f32.mrf.mxu0
    %v10079 = vadd.f32 %v10066, %v10078
    %v10080 = vpop.f32.mrf.mxu0
    %10081 = vdwg.mxu0
    %10082 = vmatpush.bf16.msra.mxu0 %v6444
    %10083 = vmatpush.bf16.msra.mxu0 %v6436
    %10084 = vmatpush.bf16.msra.mxu0 %v6428
    %10085 = vmatpush.bf16.msra.mxu0 %v6420
    %10086 = vmatpush.bf16.msra.mxu0 %v6412
    %10087 = vmatpush.bf16.msra.mxu0 %v6404
    %10088 = vmatpush.bf16.msra.mxu0 %v6396
    %10089 = vmatpush.bf16.msra.mxu0 %v6388
    %10090 = vmatmul.bf16.gmra.mxu0 %v1730
    %v10091 = vpop.f32.mrf.mxu0
    %v10092 = vadd.f32 %v1680, %v10091
    %v10093 = vpop.f32.mrf.mxu0
    %10094 = vdwg.mxu0
    %10095 = vmatpush.bf16.msra.mxu0 %v6508
    %10096 = vmatpush.bf16.msra.mxu0 %v6500
    %10097 = vmatpush.bf16.msra.mxu0 %v6492
    %10098 = vmatpush.bf16.msra.mxu0 %v6484
    %10099 = vmatpush.bf16.msra.mxu0 %v6476
    %10100 = vmatpush.bf16.msra.mxu0 %v6468
    %10101 = vmatpush.bf16.msra.mxu0 %v6460
    %10102 = vmatpush.bf16.msra.mxu0 %v6452
    %10103 = vmatmul.bf16.gmra.mxu0 %v1731
    %v10104 = vpop.f32.mrf.mxu0
    %v10105 = vadd.f32 %v10092, %v10104
    %v10106 = vpop.f32.mrf.mxu0
    %10107 = vdwg.mxu0
    %10108 = vmatpush.bf16.msra.mxu0 %v6572
    %10109 = vmatpush.bf16.msra.mxu0 %v6564
    %10110 = vmatpush.bf16.msra.mxu0 %v6556
    %10111 = vmatpush.bf16.msra.mxu0 %v6548
    %10112 = vmatpush.bf16.msra.mxu0 %v6540
    %10113 = vmatpush.bf16.msra.mxu0 %v6532
    %10114 = vmatpush.bf16.msra.mxu0 %v6524
    %10115 = vmatpush.bf16.msra.mxu0 %v6516
    %10116 = vmatmul.bf16.gmra.mxu0 %v1732
    %v10117 = vpop.f32.mrf.mxu0
    %v10118 = vadd.f32 %v10105, %v10117
    %v10119 = vpop.f32.mrf.mxu0
    %10120 = vdwg.mxu0
    %10121 = vmatpush.bf16.msra.mxu0 %v6636
    %10122 = vmatpush.bf16.msra.mxu0 %v6628
    %10123 = vmatpush.bf16.msra.mxu0 %v6620
    %10124 = vmatpush.bf16.msra.mxu0 %v6612
    %10125 = vmatpush.bf16.msra.mxu0 %v6604
    %10126 = vmatpush.bf16.msra.mxu0 %v6596
    %10127 = vmatpush.bf16.msra.mxu0 %v6588
    %10128 = vmatpush.bf16.msra.mxu0 %v6580
    %10129 = vmatmul.bf16.gmra.mxu0 %v1733
    %v10130 = vpop.f32.mrf.mxu0
    %v10131 = vadd.f32 %v10118, %v10130
    %v10132 = vpop.f32.mrf.mxu0
    %10133 = vdwg.mxu0
    %10134 = vmatpush.bf16.msra.mxu0 %v6700
    %10135 = vmatpush.bf16.msra.mxu0 %v6692
    %10136 = vmatpush.bf16.msra.mxu0 %v6684
    %10137 = vmatpush.bf16.msra.mxu0 %v6676
    %10138 = vmatpush.bf16.msra.mxu0 %v6668
    %10139 = vmatpush.bf16.msra.mxu0 %v6660
    %10140 = vmatpush.bf16.msra.mxu0 %v6652
    %10141 = vmatpush.bf16.msra.mxu0 %v6644
    %10142 = vmatmul.bf16.gmra.mxu0 %v1734
    %v10143 = vpop.f32.mrf.mxu0
    %v10144 = vadd.f32 %v10131, %v10143
    %v10145 = vpop.f32.mrf.mxu0
    %10146 = vdwg.mxu0
    %10147 = vmatpush.bf16.msra.mxu0 %v6764
    %10148 = vmatpush.bf16.msra.mxu0 %v6756
    %10149 = vmatpush.bf16.msra.mxu0 %v6748
    %10150 = vmatpush.bf16.msra.mxu0 %v6740
    %10151 = vmatpush.bf16.msra.mxu0 %v6732
    %10152 = vmatpush.bf16.msra.mxu0 %v6724
    %10153 = vmatpush.bf16.msra.mxu0 %v6716
    %10154 = vmatpush.bf16.msra.mxu0 %v6708
    %10155 = vmatmul.bf16.gmra.mxu0 %v1735
    %v10156 = vpop.f32.mrf.mxu0
    %v10157 = vadd.f32 %v10144, %v10156
    %v10158 = vpop.f32.mrf.mxu0
    %10159 = vdwg.mxu0
    %10160 = vmatpush.bf16.msra.mxu0 %v6828
    %10161 = vmatpush.bf16.msra.mxu0 %v6820
    %10162 = vmatpush.bf16.msra.mxu0 %v6812
    %10163 = vmatpush.bf16.msra.mxu0 %v6804
    %10164 = vmatpush.bf16.msra.mxu0 %v6796
    %10165 = vmatpush.bf16.msra.mxu0 %v6788
    %10166 = vmatpush.bf16.msra.mxu0 %v6780
    %10167 = vmatpush.bf16.msra.mxu0 %v6772
    %10168 = vmatmul.bf16.gmra.mxu0 %v1736
    %v10169 = vpop.f32.mrf.mxu0
    %v10170 = vadd.f32 %v10157, %v10169
    %v10171 = vpop.f32.mrf.mxu0
    %10172 = vdwg.mxu0
    %10173 = vmatpush.bf16.msra.mxu0 %v6892
    %10174 = vmatpush.bf16.msra.mxu0 %v6884
    %10175 = vmatpush.bf16.msra.mxu0 %v6876
    %10176 = vmatpush.bf16.msra.mxu0 %v6868
    %10177 = vmatpush.bf16.msra.mxu0 %v6860
    %10178 = vmatpush.bf16.msra.mxu0 %v6852
    %10179 = vmatpush.bf16.msra.mxu0 %v6844
    %10180 = vmatpush.bf16.msra.mxu0 %v6836
    %10181 = vmatmul.bf16.gmra.mxu0 %v1737
    %v10182 = vpop.f32.mrf.mxu0
    %v10183 = vadd.f32 %v10170, %v10182
    %v10184 = vpop.f32.mrf.mxu0
    %10185 = vdwg.mxu0
    %10186 = vmatpush.bf16.msra.mxu0 %v6956
    %10187 = vmatpush.bf16.msra.mxu0 %v6948
    %10188 = vmatpush.bf16.msra.mxu0 %v6940
    %10189 = vmatpush.bf16.msra.mxu0 %v6932
    %10190 = vmatpush.bf16.msra.mxu0 %v6924
    %10191 = vmatpush.bf16.msra.mxu0 %v6916
    %10192 = vmatpush.bf16.msra.mxu0 %v6908
    %10193 = vmatpush.bf16.msra.mxu0 %v6900
    %10194 = vmatmul.bf16.gmra.mxu0 %v1738
    %v10195 = vpop.f32.mrf.mxu0
    %v10196 = vadd.f32 %v10183, %v10195
    %v10197 = vpop.f32.mrf.mxu0
    %10198 = vdwg.mxu0
    %10199 = vmatpush.bf16.msra.mxu0 %v7020
    %10200 = vmatpush.bf16.msra.mxu0 %v7012
    %10201 = vmatpush.bf16.msra.mxu0 %v7004
    %10202 = vmatpush.bf16.msra.mxu0 %v6996
    %10203 = vmatpush.bf16.msra.mxu0 %v6988
    %10204 = vmatpush.bf16.msra.mxu0 %v6980
    %10205 = vmatpush.bf16.msra.mxu0 %v6972
    %10206 = vmatpush.bf16.msra.mxu0 %v6964
    %10207 = vmatmul.bf16.gmra.mxu0 %v1739
    %v10208 = vpop.f32.mrf.mxu0
    %v10209 = vadd.f32 %v10196, %v10208
    %v10210 = vpop.f32.mrf.mxu0
    %10211 = vdwg.mxu0
    %10212 = vmatpush.bf16.msra.mxu0 %v7084
    %10213 = vmatpush.bf16.msra.mxu0 %v7076
    %10214 = vmatpush.bf16.msra.mxu0 %v7068
    %10215 = vmatpush.bf16.msra.mxu0 %v7060
    %10216 = vmatpush.bf16.msra.mxu0 %v7052
    %10217 = vmatpush.bf16.msra.mxu0 %v7044
    %10218 = vmatpush.bf16.msra.mxu0 %v7036
    %10219 = vmatpush.bf16.msra.mxu0 %v7028
    %10220 = vmatmul.bf16.gmra.mxu0 %v1740
    %v10221 = vpop.f32.mrf.mxu0
    %v10222 = vadd.f32 %v10209, %v10221
    %v10223 = vpop.f32.mrf.mxu0
    %10224 = vdwg.mxu0
    %10225 = vmatpush.bf16.msra.mxu0 %v7148
    %10226 = vmatpush.bf16.msra.mxu0 %v7140
    %10227 = vmatpush.bf16.msra.mxu0 %v7132
    %10228 = vmatpush.bf16.msra.mxu0 %v7124
    %10229 = vmatpush.bf16.msra.mxu0 %v7116
    %10230 = vmatpush.bf16.msra.mxu0 %v7108
    %10231 = vmatpush.bf16.msra.mxu0 %v7100
    %10232 = vmatpush.bf16.msra.mxu0 %v7092
    %10233 = vmatmul.bf16.gmra.mxu0 %v1741
    %v10234 = vpop.f32.mrf.mxu0
    %v10235 = vadd.f32 %v10222, %v10234
    %v10236 = vpop.f32.mrf.mxu0
    %10237 = vdwg.mxu0
    %10238 = vmatpush.bf16.msra.mxu0 %v7212
    %10239 = vmatpush.bf16.msra.mxu0 %v7204
    %10240 = vmatpush.bf16.msra.mxu0 %v7196
    %10241 = vmatpush.bf16.msra.mxu0 %v7188
    %10242 = vmatpush.bf16.msra.mxu0 %v7180
    %10243 = vmatpush.bf16.msra.mxu0 %v7172
    %10244 = vmatpush.bf16.msra.mxu0 %v7164
    %10245 = vmatpush.bf16.msra.mxu0 %v7156
    %10246 = vmatmul.bf16.gmra.mxu0 %v1742
    %v10247 = vpop.f32.mrf.mxu0
    %v10248 = vadd.f32 %v10235, %v10247
    %v10249 = vpop.f32.mrf.mxu0
    %10250 = vdwg.mxu0
    %10251 = vmatpush.bf16.msra.mxu0 %v7276
    %10252 = vmatpush.bf16.msra.mxu0 %v7268
    %10253 = vmatpush.bf16.msra.mxu0 %v7260
    %10254 = vmatpush.bf16.msra.mxu0 %v7252
    %10255 = vmatpush.bf16.msra.mxu0 %v7244
    %10256 = vmatpush.bf16.msra.mxu0 %v7236
    %10257 = vmatpush.bf16.msra.mxu0 %v7228
    %10258 = vmatpush.bf16.msra.mxu0 %v7220
    %10259 = vmatmul.bf16.gmra.mxu0 %v1743
    %v10260 = vpop.f32.mrf.mxu0
    %v10261 = vadd.f32 %v10248, %v10260
    %v10262 = vpop.f32.mrf.mxu0
    %10263 = vdwg.mxu0
    %10264 = vmatpush.bf16.msra.mxu0 %v7340
    %10265 = vmatpush.bf16.msra.mxu0 %v7332
    %10266 = vmatpush.bf16.msra.mxu0 %v7324
    %10267 = vmatpush.bf16.msra.mxu0 %v7316
    %10268 = vmatpush.bf16.msra.mxu0 %v7308
    %10269 = vmatpush.bf16.msra.mxu0 %v7300
    %10270 = vmatpush.bf16.msra.mxu0 %v7292
    %10271 = vmatpush.bf16.msra.mxu0 %v7284
    %10272 = vmatmul.bf16.gmra.mxu0 %v1744
    %v10273 = vpop.f32.mrf.mxu0
    %v10274 = vadd.f32 %v10261, %v10273
    %v10275 = vpop.f32.mrf.mxu0
    %10276 = vdwg.mxu0
    %10277 = vmatpush.bf16.msra.mxu0 %v7404
    %10278 = vmatpush.bf16.msra.mxu0 %v7396
    %10279 = vmatpush.bf16.msra.mxu0 %v7388
    %10280 = vmatpush.bf16.msra.mxu0 %v7380
    %10281 = vmatpush.bf16.msra.mxu0 %v7372
    %10282 = vmatpush.bf16.msra.mxu0 %v7364
    %10283 = vmatpush.bf16.msra.mxu0 %v7356
    %10284 = vmatpush.bf16.msra.mxu0 %v7348
    %10285 = vmatmul.bf16.gmra.mxu0 %v1745
    %v10286 = vpop.f32.mrf.mxu0
    %v10287 = vadd.f32 %v10274, %v10286
    %v10288 = vpop.f32.mrf.mxu0
    %10289 = vdwg.mxu0
    %10290 = vmatpush.bf16.msra.mxu0 %v7468
    %10291 = vmatpush.bf16.msra.mxu0 %v7460
    %10292 = vmatpush.bf16.msra.mxu0 %v7452
    %10293 = vmatpush.bf16.msra.mxu0 %v7444
    %10294 = vmatpush.bf16.msra.mxu0 %v7436
    %10295 = vmatpush.bf16.msra.mxu0 %v7428
    %10296 = vmatpush.bf16.msra.mxu0 %v7420
    %10297 = vmatpush.bf16.msra.mxu0 %v7412
    %10298 = vmatmul.bf16.gmra.mxu0 %v1746
    %v10299 = vpop.f32.mrf.mxu0
    %v10300 = vadd.f32 %v10287, %v10299
    %v10301 = vpop.f32.mrf.mxu0
    %10302 = vdwg.mxu0
    %10303 = vmatpush.bf16.msra.mxu0 %v7532
    %10304 = vmatpush.bf16.msra.mxu0 %v7524
    %10305 = vmatpush.bf16.msra.mxu0 %v7516
    %10306 = vmatpush.bf16.msra.mxu0 %v7508
    %10307 = vmatpush.bf16.msra.mxu0 %v7500
    %10308 = vmatpush.bf16.msra.mxu0 %v7492
    %10309 = vmatpush.bf16.msra.mxu0 %v7484
    %10310 = vmatpush.bf16.msra.mxu0 %v7476
    %10311 = vmatmul.bf16.gmra.mxu0 %v1747
    %v10312 = vpop.f32.mrf.mxu0
    %v10313 = vadd.f32 %v10300, %v10312
    %v10314 = vpop.f32.mrf.mxu0
    %10315 = vdwg.mxu0
    %10316 = vmatpush.bf16.msra.mxu0 %v7596
    %10317 = vmatpush.bf16.msra.mxu0 %v7588
    %10318 = vmatpush.bf16.msra.mxu0 %v7580
    %10319 = vmatpush.bf16.msra.mxu0 %v7572
    %10320 = vmatpush.bf16.msra.mxu0 %v7564
    %10321 = vmatpush.bf16.msra.mxu0 %v7556
    %10322 = vmatpush.bf16.msra.mxu0 %v7548
    %10323 = vmatpush.bf16.msra.mxu0 %v7540
    %10324 = vmatmul.bf16.gmra.mxu0 %v1748
    %v10325 = vpop.f32.mrf.mxu0
    %v10326 = vadd.f32 %v10313, %v10325
    %v10327 = vpop.f32.mrf.mxu0
    %10328 = vdwg.mxu0
    %10329 = vmatpush.bf16.msra.mxu0 %v7660
    %10330 = vmatpush.bf16.msra.mxu0 %v7652
    %10331 = vmatpush.bf16.msra.mxu0 %v7644
    %10332 = vmatpush.bf16.msra.mxu0 %v7636
    %10333 = vmatpush.bf16.msra.mxu0 %v7628
    %10334 = vmatpush.bf16.msra.mxu0 %v7620
    %10335 = vmatpush.bf16.msra.mxu0 %v7612
    %10336 = vmatpush.bf16.msra.mxu0 %v7604
    %10337 = vmatmul.bf16.gmra.mxu0 %v1749
    %v10338 = vpop.f32.mrf.mxu0
    %v10339 = vadd.f32 %v10326, %v10338
    %v10340 = vpop.f32.mrf.mxu0
    %10341 = vdwg.mxu0
    %10342 = vmatpush.bf16.msra.mxu0 %v7724
    %10343 = vmatpush.bf16.msra.mxu0 %v7716
    %10344 = vmatpush.bf16.msra.mxu0 %v7708
    %10345 = vmatpush.bf16.msra.mxu0 %v7700
    %10346 = vmatpush.bf16.msra.mxu0 %v7692
    %10347 = vmatpush.bf16.msra.mxu0 %v7684
    %10348 = vmatpush.bf16.msra.mxu0 %v7676
    %10349 = vmatpush.bf16.msra.mxu0 %v7668
    %10350 = vmatmul.bf16.gmra.mxu0 %v1750
    %v10351 = vpop.f32.mrf.mxu0
    %v10352 = vadd.f32 %v10339, %v10351
    %v10353 = vpop.f32.mrf.mxu0
    %10354 = vdwg.mxu0
    %10355 = vmatpush.bf16.msra.mxu0 %v7788
    %10356 = vmatpush.bf16.msra.mxu0 %v7780
    %10357 = vmatpush.bf16.msra.mxu0 %v7772
    %10358 = vmatpush.bf16.msra.mxu0 %v7764
    %10359 = vmatpush.bf16.msra.mxu0 %v7756
    %10360 = vmatpush.bf16.msra.mxu0 %v7748
    %10361 = vmatpush.bf16.msra.mxu0 %v7740
    %10362 = vmatpush.bf16.msra.mxu0 %v7732
    %10363 = vmatmul.bf16.gmra.mxu0 %v1751
    %v10364 = vpop.f32.mrf.mxu0
    %v10365 = vadd.f32 %v10352, %v10364
    %v10366 = vpop.f32.mrf.mxu0
    %10367 = vdwg.mxu0
    %10368 = vmatpush.bf16.msra.mxu0 %v7852
    %10369 = vmatpush.bf16.msra.mxu0 %v7844
    %10370 = vmatpush.bf16.msra.mxu0 %v7836
    %10371 = vmatpush.bf16.msra.mxu0 %v7828
    %10372 = vmatpush.bf16.msra.mxu0 %v7820
    %10373 = vmatpush.bf16.msra.mxu0 %v7812
    %10374 = vmatpush.bf16.msra.mxu0 %v7804
    %10375 = vmatpush.bf16.msra.mxu0 %v7796
    %10376 = vmatmul.bf16.gmra.mxu0 %v1752
    %v10377 = vpop.f32.mrf.mxu0
    %v10378 = vadd.f32 %v10365, %v10377
    %v10379 = vpop.f32.mrf.mxu0
    %10380 = vdwg.mxu0
    %10381 = vmatpush.bf16.msra.mxu0 %v7916
    %10382 = vmatpush.bf16.msra.mxu0 %v7908
    %10383 = vmatpush.bf16.msra.mxu0 %v7900
    %10384 = vmatpush.bf16.msra.mxu0 %v7892
    %10385 = vmatpush.bf16.msra.mxu0 %v7884
    %10386 = vmatpush.bf16.msra.mxu0 %v7876
    %10387 = vmatpush.bf16.msra.mxu0 %v7868
    %10388 = vmatpush.bf16.msra.mxu0 %v7860
    %10389 = vmatmul.bf16.gmra.mxu0 %v1753
    %v10390 = vpop.f32.mrf.mxu0
    %v10391 = vadd.f32 %v10378, %v10390
    %v10392 = vpop.f32.mrf.mxu0
    %10393 = vdwg.mxu0
    %10394 = vmatpush.bf16.msra.mxu0 %v6445
    %10395 = vmatpush.bf16.msra.mxu0 %v6437
    %10396 = vmatpush.bf16.msra.mxu0 %v6429
    %10397 = vmatpush.bf16.msra.mxu0 %v6421
    %10398 = vmatpush.bf16.msra.mxu0 %v6413
    %10399 = vmatpush.bf16.msra.mxu0 %v6405
    %10400 = vmatpush.bf16.msra.mxu0 %v6397
    %10401 = vmatpush.bf16.msra.mxu0 %v6389
    %10402 = vmatmul.bf16.gmra.mxu0 %v1730
    %v10403 = vpop.f32.mrf.mxu0
    %v10404 = vadd.f32 %v1681, %v10403
    %v10405 = vpop.f32.mrf.mxu0
    %10406 = vdwg.mxu0
    %10407 = vmatpush.bf16.msra.mxu0 %v6509
    %10408 = vmatpush.bf16.msra.mxu0 %v6501
    %10409 = vmatpush.bf16.msra.mxu0 %v6493
    %10410 = vmatpush.bf16.msra.mxu0 %v6485
    %10411 = vmatpush.bf16.msra.mxu0 %v6477
    %10412 = vmatpush.bf16.msra.mxu0 %v6469
    %10413 = vmatpush.bf16.msra.mxu0 %v6461
    %10414 = vmatpush.bf16.msra.mxu0 %v6453
    %10415 = vmatmul.bf16.gmra.mxu0 %v1731
    %v10416 = vpop.f32.mrf.mxu0
    %v10417 = vadd.f32 %v10404, %v10416
    %v10418 = vpop.f32.mrf.mxu0
    %10419 = vdwg.mxu0
    %10420 = vmatpush.bf16.msra.mxu0 %v6573
    %10421 = vmatpush.bf16.msra.mxu0 %v6565
    %10422 = vmatpush.bf16.msra.mxu0 %v6557
    %10423 = vmatpush.bf16.msra.mxu0 %v6549
    %10424 = vmatpush.bf16.msra.mxu0 %v6541
    %10425 = vmatpush.bf16.msra.mxu0 %v6533
    %10426 = vmatpush.bf16.msra.mxu0 %v6525
    %10427 = vmatpush.bf16.msra.mxu0 %v6517
    %10428 = vmatmul.bf16.gmra.mxu0 %v1732
    %v10429 = vpop.f32.mrf.mxu0
    %v10430 = vadd.f32 %v10417, %v10429
    %v10431 = vpop.f32.mrf.mxu0
    %10432 = vdwg.mxu0
    %10433 = vmatpush.bf16.msra.mxu0 %v6637
    %10434 = vmatpush.bf16.msra.mxu0 %v6629
    %10435 = vmatpush.bf16.msra.mxu0 %v6621
    %10436 = vmatpush.bf16.msra.mxu0 %v6613
    %10437 = vmatpush.bf16.msra.mxu0 %v6605
    %10438 = vmatpush.bf16.msra.mxu0 %v6597
    %10439 = vmatpush.bf16.msra.mxu0 %v6589
    %10440 = vmatpush.bf16.msra.mxu0 %v6581
    %10441 = vmatmul.bf16.gmra.mxu0 %v1733
    %v10442 = vpop.f32.mrf.mxu0
    %v10443 = vadd.f32 %v10430, %v10442
    %v10444 = vpop.f32.mrf.mxu0
    %10445 = vdwg.mxu0
    %10446 = vmatpush.bf16.msra.mxu0 %v6701
    %10447 = vmatpush.bf16.msra.mxu0 %v6693
    %10448 = vmatpush.bf16.msra.mxu0 %v6685
    %10449 = vmatpush.bf16.msra.mxu0 %v6677
    %10450 = vmatpush.bf16.msra.mxu0 %v6669
    %10451 = vmatpush.bf16.msra.mxu0 %v6661
    %10452 = vmatpush.bf16.msra.mxu0 %v6653
    %10453 = vmatpush.bf16.msra.mxu0 %v6645
    %10454 = vmatmul.bf16.gmra.mxu0 %v1734
    %v10455 = vpop.f32.mrf.mxu0
    %v10456 = vadd.f32 %v10443, %v10455
    %v10457 = vpop.f32.mrf.mxu0
    %10458 = vdwg.mxu0
    %10459 = vmatpush.bf16.msra.mxu0 %v6765
    %10460 = vmatpush.bf16.msra.mxu0 %v6757
    %10461 = vmatpush.bf16.msra.mxu0 %v6749
    %10462 = vmatpush.bf16.msra.mxu0 %v6741
    %10463 = vmatpush.bf16.msra.mxu0 %v6733
    %10464 = vmatpush.bf16.msra.mxu0 %v6725
    %10465 = vmatpush.bf16.msra.mxu0 %v6717
    %10466 = vmatpush.bf16.msra.mxu0 %v6709
    %10467 = vmatmul.bf16.gmra.mxu0 %v1735
    %v10468 = vpop.f32.mrf.mxu0
    %v10469 = vadd.f32 %v10456, %v10468
    %v10470 = vpop.f32.mrf.mxu0
    %10471 = vdwg.mxu0
    %10472 = vmatpush.bf16.msra.mxu0 %v6829
    %10473 = vmatpush.bf16.msra.mxu0 %v6821
    %10474 = vmatpush.bf16.msra.mxu0 %v6813
    %10475 = vmatpush.bf16.msra.mxu0 %v6805
    %10476 = vmatpush.bf16.msra.mxu0 %v6797
    %10477 = vmatpush.bf16.msra.mxu0 %v6789
    %10478 = vmatpush.bf16.msra.mxu0 %v6781
    %10479 = vmatpush.bf16.msra.mxu0 %v6773
    %10480 = vmatmul.bf16.gmra.mxu0 %v1736
    %v10481 = vpop.f32.mrf.mxu0
    %v10482 = vadd.f32 %v10469, %v10481
    %v10483 = vpop.f32.mrf.mxu0
    %10484 = vdwg.mxu0
    %10485 = vmatpush.bf16.msra.mxu0 %v6893
    %10486 = vmatpush.bf16.msra.mxu0 %v6885
    %10487 = vmatpush.bf16.msra.mxu0 %v6877
    %10488 = vmatpush.bf16.msra.mxu0 %v6869
    %10489 = vmatpush.bf16.msra.mxu0 %v6861
    %10490 = vmatpush.bf16.msra.mxu0 %v6853
    %10491 = vmatpush.bf16.msra.mxu0 %v6845
    %10492 = vmatpush.bf16.msra.mxu0 %v6837
    %10493 = vmatmul.bf16.gmra.mxu0 %v1737
    %v10494 = vpop.f32.mrf.mxu0
    %v10495 = vadd.f32 %v10482, %v10494
    %v10496 = vpop.f32.mrf.mxu0
    %10497 = vdwg.mxu0
    %10498 = vmatpush.bf16.msra.mxu0 %v6957
    %10499 = vmatpush.bf16.msra.mxu0 %v6949
    %10500 = vmatpush.bf16.msra.mxu0 %v6941
    %10501 = vmatpush.bf16.msra.mxu0 %v6933
    %10502 = vmatpush.bf16.msra.mxu0 %v6925
    %10503 = vmatpush.bf16.msra.mxu0 %v6917
    %10504 = vmatpush.bf16.msra.mxu0 %v6909
    %10505 = vmatpush.bf16.msra.mxu0 %v6901
    %10506 = vmatmul.bf16.gmra.mxu0 %v1738
    %v10507 = vpop.f32.mrf.mxu0
    %v10508 = vadd.f32 %v10495, %v10507
    %v10509 = vpop.f32.mrf.mxu0
    %10510 = vdwg.mxu0
    %10511 = vmatpush.bf16.msra.mxu0 %v7021
    %10512 = vmatpush.bf16.msra.mxu0 %v7013
    %10513 = vmatpush.bf16.msra.mxu0 %v7005
    %10514 = vmatpush.bf16.msra.mxu0 %v6997
    %10515 = vmatpush.bf16.msra.mxu0 %v6989
    %10516 = vmatpush.bf16.msra.mxu0 %v6981
    %10517 = vmatpush.bf16.msra.mxu0 %v6973
    %10518 = vmatpush.bf16.msra.mxu0 %v6965
    %10519 = vmatmul.bf16.gmra.mxu0 %v1739
    %v10520 = vpop.f32.mrf.mxu0
    %v10521 = vadd.f32 %v10508, %v10520
    %v10522 = vpop.f32.mrf.mxu0
    %10523 = vdwg.mxu0
    %10524 = vmatpush.bf16.msra.mxu0 %v7085
    %10525 = vmatpush.bf16.msra.mxu0 %v7077
    %10526 = vmatpush.bf16.msra.mxu0 %v7069
    %10527 = vmatpush.bf16.msra.mxu0 %v7061
    %10528 = vmatpush.bf16.msra.mxu0 %v7053
    %10529 = vmatpush.bf16.msra.mxu0 %v7045
    %10530 = vmatpush.bf16.msra.mxu0 %v7037
    %10531 = vmatpush.bf16.msra.mxu0 %v7029
    %10532 = vmatmul.bf16.gmra.mxu0 %v1740
    %v10533 = vpop.f32.mrf.mxu0
    %v10534 = vadd.f32 %v10521, %v10533
    %v10535 = vpop.f32.mrf.mxu0
    %10536 = vdwg.mxu0
    %10537 = vmatpush.bf16.msra.mxu0 %v7149
    %10538 = vmatpush.bf16.msra.mxu0 %v7141
    %10539 = vmatpush.bf16.msra.mxu0 %v7133
    %10540 = vmatpush.bf16.msra.mxu0 %v7125
    %10541 = vmatpush.bf16.msra.mxu0 %v7117
    %10542 = vmatpush.bf16.msra.mxu0 %v7109
    %10543 = vmatpush.bf16.msra.mxu0 %v7101
    %10544 = vmatpush.bf16.msra.mxu0 %v7093
    %10545 = vmatmul.bf16.gmra.mxu0 %v1741
    %v10546 = vpop.f32.mrf.mxu0
    %v10547 = vadd.f32 %v10534, %v10546
    %v10548 = vpop.f32.mrf.mxu0
    %10549 = vdwg.mxu0
    %10550 = vmatpush.bf16.msra.mxu0 %v7213
    %10551 = vmatpush.bf16.msra.mxu0 %v7205
    %10552 = vmatpush.bf16.msra.mxu0 %v7197
    %10553 = vmatpush.bf16.msra.mxu0 %v7189
    %10554 = vmatpush.bf16.msra.mxu0 %v7181
    %10555 = vmatpush.bf16.msra.mxu0 %v7173
    %10556 = vmatpush.bf16.msra.mxu0 %v7165
    %10557 = vmatpush.bf16.msra.mxu0 %v7157
    %10558 = vmatmul.bf16.gmra.mxu0 %v1742
    %v10559 = vpop.f32.mrf.mxu0
    %v10560 = vadd.f32 %v10547, %v10559
    %v10561 = vpop.f32.mrf.mxu0
    %10562 = vdwg.mxu0
    %10563 = vmatpush.bf16.msra.mxu0 %v7277
    %10564 = vmatpush.bf16.msra.mxu0 %v7269
    %10565 = vmatpush.bf16.msra.mxu0 %v7261
    %10566 = vmatpush.bf16.msra.mxu0 %v7253
    %10567 = vmatpush.bf16.msra.mxu0 %v7245
    %10568 = vmatpush.bf16.msra.mxu0 %v7237
    %10569 = vmatpush.bf16.msra.mxu0 %v7229
    %10570 = vmatpush.bf16.msra.mxu0 %v7221
    %10571 = vmatmul.bf16.gmra.mxu0 %v1743
    %v10572 = vpop.f32.mrf.mxu0
    %v10573 = vadd.f32 %v10560, %v10572
    %v10574 = vpop.f32.mrf.mxu0
    %10575 = vdwg.mxu0
    %10576 = vmatpush.bf16.msra.mxu0 %v7341
    %10577 = vmatpush.bf16.msra.mxu0 %v7333
    %10578 = vmatpush.bf16.msra.mxu0 %v7325
    %10579 = vmatpush.bf16.msra.mxu0 %v7317
    %10580 = vmatpush.bf16.msra.mxu0 %v7309
    %10581 = vmatpush.bf16.msra.mxu0 %v7301
    %10582 = vmatpush.bf16.msra.mxu0 %v7293
    %10583 = vmatpush.bf16.msra.mxu0 %v7285
    %10584 = vmatmul.bf16.gmra.mxu0 %v1744
    %v10585 = vpop.f32.mrf.mxu0
    %v10586 = vadd.f32 %v10573, %v10585
    %v10587 = vpop.f32.mrf.mxu0
    %10588 = vdwg.mxu0
    %10589 = vmatpush.bf16.msra.mxu0 %v7405
    %10590 = vmatpush.bf16.msra.mxu0 %v7397
    %10591 = vmatpush.bf16.msra.mxu0 %v7389
    %10592 = vmatpush.bf16.msra.mxu0 %v7381
    %10593 = vmatpush.bf16.msra.mxu0 %v7373
    %10594 = vmatpush.bf16.msra.mxu0 %v7365
    %10595 = vmatpush.bf16.msra.mxu0 %v7357
    %10596 = vmatpush.bf16.msra.mxu0 %v7349
    %10597 = vmatmul.bf16.gmra.mxu0 %v1745
    %v10598 = vpop.f32.mrf.mxu0
    %v10599 = vadd.f32 %v10586, %v10598
    %v10600 = vpop.f32.mrf.mxu0
    %10601 = vdwg.mxu0
    %10602 = vmatpush.bf16.msra.mxu0 %v7469
    %10603 = vmatpush.bf16.msra.mxu0 %v7461
    %10604 = vmatpush.bf16.msra.mxu0 %v7453
    %10605 = vmatpush.bf16.msra.mxu0 %v7445
    %10606 = vmatpush.bf16.msra.mxu0 %v7437
    %10607 = vmatpush.bf16.msra.mxu0 %v7429
    %10608 = vmatpush.bf16.msra.mxu0 %v7421
    %10609 = vmatpush.bf16.msra.mxu0 %v7413
    %10610 = vmatmul.bf16.gmra.mxu0 %v1746
    %v10611 = vpop.f32.mrf.mxu0
    %v10612 = vadd.f32 %v10599, %v10611
    %v10613 = vpop.f32.mrf.mxu0
    %10614 = vdwg.mxu0
    %10615 = vmatpush.bf16.msra.mxu0 %v7533
    %10616 = vmatpush.bf16.msra.mxu0 %v7525
    %10617 = vmatpush.bf16.msra.mxu0 %v7517
    %10618 = vmatpush.bf16.msra.mxu0 %v7509
    %10619 = vmatpush.bf16.msra.mxu0 %v7501
    %10620 = vmatpush.bf16.msra.mxu0 %v7493
    %10621 = vmatpush.bf16.msra.mxu0 %v7485
    %10622 = vmatpush.bf16.msra.mxu0 %v7477
    %10623 = vmatmul.bf16.gmra.mxu0 %v1747
    %v10624 = vpop.f32.mrf.mxu0
    %v10625 = vadd.f32 %v10612, %v10624
    %v10626 = vpop.f32.mrf.mxu0
    %10627 = vdwg.mxu0
    %10628 = vmatpush.bf16.msra.mxu0 %v7597
    %10629 = vmatpush.bf16.msra.mxu0 %v7589
    %10630 = vmatpush.bf16.msra.mxu0 %v7581
    %10631 = vmatpush.bf16.msra.mxu0 %v7573
    %10632 = vmatpush.bf16.msra.mxu0 %v7565
    %10633 = vmatpush.bf16.msra.mxu0 %v7557
    %10634 = vmatpush.bf16.msra.mxu0 %v7549
    %10635 = vmatpush.bf16.msra.mxu0 %v7541
    %10636 = vmatmul.bf16.gmra.mxu0 %v1748
    %v10637 = vpop.f32.mrf.mxu0
    %v10638 = vadd.f32 %v10625, %v10637
    %v10639 = vpop.f32.mrf.mxu0
    %10640 = vdwg.mxu0
    %10641 = vmatpush.bf16.msra.mxu0 %v7661
    %10642 = vmatpush.bf16.msra.mxu0 %v7653
    %10643 = vmatpush.bf16.msra.mxu0 %v7645
    %10644 = vmatpush.bf16.msra.mxu0 %v7637
    %10645 = vmatpush.bf16.msra.mxu0 %v7629
    %10646 = vmatpush.bf16.msra.mxu0 %v7621
    %10647 = vmatpush.bf16.msra.mxu0 %v7613
    %10648 = vmatpush.bf16.msra.mxu0 %v7605
    %10649 = vmatmul.bf16.gmra.mxu0 %v1749
    %v10650 = vpop.f32.mrf.mxu0
    %v10651 = vadd.f32 %v10638, %v10650
    %v10652 = vpop.f32.mrf.mxu0
    %10653 = vdwg.mxu0
    %10654 = vmatpush.bf16.msra.mxu0 %v7725
    %10655 = vmatpush.bf16.msra.mxu0 %v7717
    %10656 = vmatpush.bf16.msra.mxu0 %v7709
    %10657 = vmatpush.bf16.msra.mxu0 %v7701
    %10658 = vmatpush.bf16.msra.mxu0 %v7693
    %10659 = vmatpush.bf16.msra.mxu0 %v7685
    %10660 = vmatpush.bf16.msra.mxu0 %v7677
    %10661 = vmatpush.bf16.msra.mxu0 %v7669
    %10662 = vmatmul.bf16.gmra.mxu0 %v1750
    %v10663 = vpop.f32.mrf.mxu0
    %v10664 = vadd.f32 %v10651, %v10663
    %v10665 = vpop.f32.mrf.mxu0
    %10666 = vdwg.mxu0
    %10667 = vmatpush.bf16.msra.mxu0 %v7789
    %10668 = vmatpush.bf16.msra.mxu0 %v7781
    %10669 = vmatpush.bf16.msra.mxu0 %v7773
    %10670 = vmatpush.bf16.msra.mxu0 %v7765
    %10671 = vmatpush.bf16.msra.mxu0 %v7757
    %10672 = vmatpush.bf16.msra.mxu0 %v7749
    %10673 = vmatpush.bf16.msra.mxu0 %v7741
    %10674 = vmatpush.bf16.msra.mxu0 %v7733
    %10675 = vmatmul.bf16.gmra.mxu0 %v1751
    %v10676 = vpop.f32.mrf.mxu0
    %v10677 = vadd.f32 %v10664, %v10676
    %v10678 = vpop.f32.mrf.mxu0
    %10679 = vdwg.mxu0
    %10680 = vmatpush.bf16.msra.mxu0 %v7853
    %10681 = vmatpush.bf16.msra.mxu0 %v7845
    %10682 = vmatpush.bf16.msra.mxu0 %v7837
    %10683 = vmatpush.bf16.msra.mxu0 %v7829
    %10684 = vmatpush.bf16.msra.mxu0 %v7821
    %10685 = vmatpush.bf16.msra.mxu0 %v7813
    %10686 = vmatpush.bf16.msra.mxu0 %v7805
    %10687 = vmatpush.bf16.msra.mxu0 %v7797
    %10688 = vmatmul.bf16.gmra.mxu0 %v1752
    %v10689 = vpop.f32.mrf.mxu0
    %v10690 = vadd.f32 %v10677, %v10689
    %v10691 = vpop.f32.mrf.mxu0
    %10692 = vdwg.mxu0
    %10693 = vmatpush.bf16.msra.mxu0 %v7917
    %10694 = vmatpush.bf16.msra.mxu0 %v7909
    %10695 = vmatpush.bf16.msra.mxu0 %v7901
    %10696 = vmatpush.bf16.msra.mxu0 %v7893
    %10697 = vmatpush.bf16.msra.mxu0 %v7885
    %10698 = vmatpush.bf16.msra.mxu0 %v7877
    %10699 = vmatpush.bf16.msra.mxu0 %v7869
    %10700 = vmatpush.bf16.msra.mxu0 %v7861
    %10701 = vmatmul.bf16.gmra.mxu0 %v1753
    %v10702 = vpop.f32.mrf.mxu0
    %v10703 = vadd.f32 %v10690, %v10702
    %v10704 = vpop.f32.mrf.mxu0
    %10705 = vdwg.mxu0
    %10706 = vmatpush.bf16.msra.mxu0 %v6446
    %10707 = vmatpush.bf16.msra.mxu0 %v6438
    %10708 = vmatpush.bf16.msra.mxu0 %v6430
    %10709 = vmatpush.bf16.msra.mxu0 %v6422
    %10710 = vmatpush.bf16.msra.mxu0 %v6414
    %10711 = vmatpush.bf16.msra.mxu0 %v6406
    %10712 = vmatpush.bf16.msra.mxu0 %v6398
    %10713 = vmatpush.bf16.msra.mxu0 %v6390
    %10714 = vmatmul.bf16.gmra.mxu0 %v1730
    %v10715 = vpop.f32.mrf.mxu0
    %v10716 = vadd.f32 %v1682, %v10715
    %v10717 = vpop.f32.mrf.mxu0
    %10718 = vdwg.mxu0
    %10719 = vmatpush.bf16.msra.mxu0 %v6510
    %10720 = vmatpush.bf16.msra.mxu0 %v6502
    %10721 = vmatpush.bf16.msra.mxu0 %v6494
    %10722 = vmatpush.bf16.msra.mxu0 %v6486
    %10723 = vmatpush.bf16.msra.mxu0 %v6478
    %10724 = vmatpush.bf16.msra.mxu0 %v6470
    %10725 = vmatpush.bf16.msra.mxu0 %v6462
    %10726 = vmatpush.bf16.msra.mxu0 %v6454
    %10727 = vmatmul.bf16.gmra.mxu0 %v1731
    %v10728 = vpop.f32.mrf.mxu0
    %v10729 = vadd.f32 %v10716, %v10728
    %v10730 = vpop.f32.mrf.mxu0
    %10731 = vdwg.mxu0
    %10732 = vmatpush.bf16.msra.mxu0 %v6574
    %10733 = vmatpush.bf16.msra.mxu0 %v6566
    %10734 = vmatpush.bf16.msra.mxu0 %v6558
    %10735 = vmatpush.bf16.msra.mxu0 %v6550
    %10736 = vmatpush.bf16.msra.mxu0 %v6542
    %10737 = vmatpush.bf16.msra.mxu0 %v6534
    %10738 = vmatpush.bf16.msra.mxu0 %v6526
    %10739 = vmatpush.bf16.msra.mxu0 %v6518
    %10740 = vmatmul.bf16.gmra.mxu0 %v1732
    %v10741 = vpop.f32.mrf.mxu0
    %v10742 = vadd.f32 %v10729, %v10741
    %v10743 = vpop.f32.mrf.mxu0
    %10744 = vdwg.mxu0
    %10745 = vmatpush.bf16.msra.mxu0 %v6638
    %10746 = vmatpush.bf16.msra.mxu0 %v6630
    %10747 = vmatpush.bf16.msra.mxu0 %v6622
    %10748 = vmatpush.bf16.msra.mxu0 %v6614
    %10749 = vmatpush.bf16.msra.mxu0 %v6606
    %10750 = vmatpush.bf16.msra.mxu0 %v6598
    %10751 = vmatpush.bf16.msra.mxu0 %v6590
    %10752 = vmatpush.bf16.msra.mxu0 %v6582
    %10753 = vmatmul.bf16.gmra.mxu0 %v1733
    %v10754 = vpop.f32.mrf.mxu0
    %v10755 = vadd.f32 %v10742, %v10754
    %v10756 = vpop.f32.mrf.mxu0
    %10757 = vdwg.mxu0
    %10758 = vmatpush.bf16.msra.mxu0 %v6702
    %10759 = vmatpush.bf16.msra.mxu0 %v6694
    %10760 = vmatpush.bf16.msra.mxu0 %v6686
    %10761 = vmatpush.bf16.msra.mxu0 %v6678
    %10762 = vmatpush.bf16.msra.mxu0 %v6670
    %10763 = vmatpush.bf16.msra.mxu0 %v6662
    %10764 = vmatpush.bf16.msra.mxu0 %v6654
    %10765 = vmatpush.bf16.msra.mxu0 %v6646
    %10766 = vmatmul.bf16.gmra.mxu0 %v1734
    %v10767 = vpop.f32.mrf.mxu0
    %v10768 = vadd.f32 %v10755, %v10767
    %v10769 = vpop.f32.mrf.mxu0
    %10770 = vdwg.mxu0
    %10771 = vmatpush.bf16.msra.mxu0 %v6766
    %10772 = vmatpush.bf16.msra.mxu0 %v6758
    %10773 = vmatpush.bf16.msra.mxu0 %v6750
    %10774 = vmatpush.bf16.msra.mxu0 %v6742
    %10775 = vmatpush.bf16.msra.mxu0 %v6734
    %10776 = vmatpush.bf16.msra.mxu0 %v6726
    %10777 = vmatpush.bf16.msra.mxu0 %v6718
    %10778 = vmatpush.bf16.msra.mxu0 %v6710
    %10779 = vmatmul.bf16.gmra.mxu0 %v1735
    %v10780 = vpop.f32.mrf.mxu0
    %v10781 = vadd.f32 %v10768, %v10780
    %v10782 = vpop.f32.mrf.mxu0
    %10783 = vdwg.mxu0
    %10784 = vmatpush.bf16.msra.mxu0 %v6830
    %10785 = vmatpush.bf16.msra.mxu0 %v6822
    %10786 = vmatpush.bf16.msra.mxu0 %v6814
    %10787 = vmatpush.bf16.msra.mxu0 %v6806
    %10788 = vmatpush.bf16.msra.mxu0 %v6798
    %10789 = vmatpush.bf16.msra.mxu0 %v6790
    %10790 = vmatpush.bf16.msra.mxu0 %v6782
    %10791 = vmatpush.bf16.msra.mxu0 %v6774
    %10792 = vmatmul.bf16.gmra.mxu0 %v1736
    %v10793 = vpop.f32.mrf.mxu0
    %v10794 = vadd.f32 %v10781, %v10793
    %v10795 = vpop.f32.mrf.mxu0
    %10796 = vdwg.mxu0
    %10797 = vmatpush.bf16.msra.mxu0 %v6894
    %10798 = vmatpush.bf16.msra.mxu0 %v6886
    %10799 = vmatpush.bf16.msra.mxu0 %v6878
    %10800 = vmatpush.bf16.msra.mxu0 %v6870
    %10801 = vmatpush.bf16.msra.mxu0 %v6862
    %10802 = vmatpush.bf16.msra.mxu0 %v6854
    %10803 = vmatpush.bf16.msra.mxu0 %v6846
    %10804 = vmatpush.bf16.msra.mxu0 %v6838
    %10805 = vmatmul.bf16.gmra.mxu0 %v1737
    %v10806 = vpop.f32.mrf.mxu0
    %v10807 = vadd.f32 %v10794, %v10806
    %v10808 = vpop.f32.mrf.mxu0
    %10809 = vdwg.mxu0
    %10810 = vmatpush.bf16.msra.mxu0 %v6958
    %10811 = vmatpush.bf16.msra.mxu0 %v6950
    %10812 = vmatpush.bf16.msra.mxu0 %v6942
    %10813 = vmatpush.bf16.msra.mxu0 %v6934
    %10814 = vmatpush.bf16.msra.mxu0 %v6926
    %10815 = vmatpush.bf16.msra.mxu0 %v6918
    %10816 = vmatpush.bf16.msra.mxu0 %v6910
    %10817 = vmatpush.bf16.msra.mxu0 %v6902
    %10818 = vmatmul.bf16.gmra.mxu0 %v1738
    %v10819 = vpop.f32.mrf.mxu0
    %v10820 = vadd.f32 %v10807, %v10819
    %v10821 = vpop.f32.mrf.mxu0
    %10822 = vdwg.mxu0
    %10823 = vmatpush.bf16.msra.mxu0 %v7022
    %10824 = vmatpush.bf16.msra.mxu0 %v7014
    %10825 = vmatpush.bf16.msra.mxu0 %v7006
    %10826 = vmatpush.bf16.msra.mxu0 %v6998
    %10827 = vmatpush.bf16.msra.mxu0 %v6990
    %10828 = vmatpush.bf16.msra.mxu0 %v6982
    %10829 = vmatpush.bf16.msra.mxu0 %v6974
    %10830 = vmatpush.bf16.msra.mxu0 %v6966
    %10831 = vmatmul.bf16.gmra.mxu0 %v1739
    %v10832 = vpop.f32.mrf.mxu0
    %v10833 = vadd.f32 %v10820, %v10832
    %v10834 = vpop.f32.mrf.mxu0
    %10835 = vdwg.mxu0
    %10836 = vmatpush.bf16.msra.mxu0 %v7086
    %10837 = vmatpush.bf16.msra.mxu0 %v7078
    %10838 = vmatpush.bf16.msra.mxu0 %v7070
    %10839 = vmatpush.bf16.msra.mxu0 %v7062
    %10840 = vmatpush.bf16.msra.mxu0 %v7054
    %10841 = vmatpush.bf16.msra.mxu0 %v7046
    %10842 = vmatpush.bf16.msra.mxu0 %v7038
    %10843 = vmatpush.bf16.msra.mxu0 %v7030
    %10844 = vmatmul.bf16.gmra.mxu0 %v1740
    %v10845 = vpop.f32.mrf.mxu0
    %v10846 = vadd.f32 %v10833, %v10845
    %v10847 = vpop.f32.mrf.mxu0
    %10848 = vdwg.mxu0
    %10849 = vmatpush.bf16.msra.mxu0 %v7150
    %10850 = vmatpush.bf16.msra.mxu0 %v7142
    %10851 = vmatpush.bf16.msra.mxu0 %v7134
    %10852 = vmatpush.bf16.msra.mxu0 %v7126
    %10853 = vmatpush.bf16.msra.mxu0 %v7118
    %10854 = vmatpush.bf16.msra.mxu0 %v7110
    %10855 = vmatpush.bf16.msra.mxu0 %v7102
    %10856 = vmatpush.bf16.msra.mxu0 %v7094
    %10857 = vmatmul.bf16.gmra.mxu0 %v1741
    %v10858 = vpop.f32.mrf.mxu0
    %v10859 = vadd.f32 %v10846, %v10858
    %v10860 = vpop.f32.mrf.mxu0
    %10861 = vdwg.mxu0
    %10862 = vmatpush.bf16.msra.mxu0 %v7214
    %10863 = vmatpush.bf16.msra.mxu0 %v7206
    %10864 = vmatpush.bf16.msra.mxu0 %v7198
    %10865 = vmatpush.bf16.msra.mxu0 %v7190
    %10866 = vmatpush.bf16.msra.mxu0 %v7182
    %10867 = vmatpush.bf16.msra.mxu0 %v7174
    %10868 = vmatpush.bf16.msra.mxu0 %v7166
    %10869 = vmatpush.bf16.msra.mxu0 %v7158
    %10870 = vmatmul.bf16.gmra.mxu0 %v1742
    %v10871 = vpop.f32.mrf.mxu0
    %v10872 = vadd.f32 %v10859, %v10871
    %v10873 = vpop.f32.mrf.mxu0
    %10874 = vdwg.mxu0
    %10875 = vmatpush.bf16.msra.mxu0 %v7278
    %10876 = vmatpush.bf16.msra.mxu0 %v7270
    %10877 = vmatpush.bf16.msra.mxu0 %v7262
    %10878 = vmatpush.bf16.msra.mxu0 %v7254
    %10879 = vmatpush.bf16.msra.mxu0 %v7246
    %10880 = vmatpush.bf16.msra.mxu0 %v7238
    %10881 = vmatpush.bf16.msra.mxu0 %v7230
    %10882 = vmatpush.bf16.msra.mxu0 %v7222
    %10883 = vmatmul.bf16.gmra.mxu0 %v1743
    %v10884 = vpop.f32.mrf.mxu0
    %v10885 = vadd.f32 %v10872, %v10884
    %v10886 = vpop.f32.mrf.mxu0
    %10887 = vdwg.mxu0
    %10888 = vmatpush.bf16.msra.mxu0 %v7342
    %10889 = vmatpush.bf16.msra.mxu0 %v7334
    %10890 = vmatpush.bf16.msra.mxu0 %v7326
    %10891 = vmatpush.bf16.msra.mxu0 %v7318
    %10892 = vmatpush.bf16.msra.mxu0 %v7310
    %10893 = vmatpush.bf16.msra.mxu0 %v7302
    %10894 = vmatpush.bf16.msra.mxu0 %v7294
    %10895 = vmatpush.bf16.msra.mxu0 %v7286
    %10896 = vmatmul.bf16.gmra.mxu0 %v1744
    %v10897 = vpop.f32.mrf.mxu0
    %v10898 = vadd.f32 %v10885, %v10897
    %v10899 = vpop.f32.mrf.mxu0
    %10900 = vdwg.mxu0
    %10901 = vmatpush.bf16.msra.mxu0 %v7406
    %10902 = vmatpush.bf16.msra.mxu0 %v7398
    %10903 = vmatpush.bf16.msra.mxu0 %v7390
    %10904 = vmatpush.bf16.msra.mxu0 %v7382
    %10905 = vmatpush.bf16.msra.mxu0 %v7374
    %10906 = vmatpush.bf16.msra.mxu0 %v7366
    %10907 = vmatpush.bf16.msra.mxu0 %v7358
    %10908 = vmatpush.bf16.msra.mxu0 %v7350
    %10909 = vmatmul.bf16.gmra.mxu0 %v1745
    %v10910 = vpop.f32.mrf.mxu0
    %v10911 = vadd.f32 %v10898, %v10910
    %v10912 = vpop.f32.mrf.mxu0
    %10913 = vdwg.mxu0
    %10914 = vmatpush.bf16.msra.mxu0 %v7470
    %10915 = vmatpush.bf16.msra.mxu0 %v7462
    %10916 = vmatpush.bf16.msra.mxu0 %v7454
    %10917 = vmatpush.bf16.msra.mxu0 %v7446
    %10918 = vmatpush.bf16.msra.mxu0 %v7438
    %10919 = vmatpush.bf16.msra.mxu0 %v7430
    %10920 = vmatpush.bf16.msra.mxu0 %v7422
    %10921 = vmatpush.bf16.msra.mxu0 %v7414
    %10922 = vmatmul.bf16.gmra.mxu0 %v1746
    %v10923 = vpop.f32.mrf.mxu0
    %v10924 = vadd.f32 %v10911, %v10923
    %v10925 = vpop.f32.mrf.mxu0
    %10926 = vdwg.mxu0
    %10927 = vmatpush.bf16.msra.mxu0 %v7534
    %10928 = vmatpush.bf16.msra.mxu0 %v7526
    %10929 = vmatpush.bf16.msra.mxu0 %v7518
    %10930 = vmatpush.bf16.msra.mxu0 %v7510
    %10931 = vmatpush.bf16.msra.mxu0 %v7502
    %10932 = vmatpush.bf16.msra.mxu0 %v7494
    %10933 = vmatpush.bf16.msra.mxu0 %v7486
    %10934 = vmatpush.bf16.msra.mxu0 %v7478
    %10935 = vmatmul.bf16.gmra.mxu0 %v1747
    %v10936 = vpop.f32.mrf.mxu0
    %v10937 = vadd.f32 %v10924, %v10936
    %v10938 = vpop.f32.mrf.mxu0
    %10939 = vdwg.mxu0
    %10940 = vmatpush.bf16.msra.mxu0 %v7598
    %10941 = vmatpush.bf16.msra.mxu0 %v7590
    %10942 = vmatpush.bf16.msra.mxu0 %v7582
    %10943 = vmatpush.bf16.msra.mxu0 %v7574
    %10944 = vmatpush.bf16.msra.mxu0 %v7566
    %10945 = vmatpush.bf16.msra.mxu0 %v7558
    %10946 = vmatpush.bf16.msra.mxu0 %v7550
    %10947 = vmatpush.bf16.msra.mxu0 %v7542
    %10948 = vmatmul.bf16.gmra.mxu0 %v1748
    %v10949 = vpop.f32.mrf.mxu0
    %v10950 = vadd.f32 %v10937, %v10949
    %v10951 = vpop.f32.mrf.mxu0
    %10952 = vdwg.mxu0
    %10953 = vmatpush.bf16.msra.mxu0 %v7662
    %10954 = vmatpush.bf16.msra.mxu0 %v7654
    %10955 = vmatpush.bf16.msra.mxu0 %v7646
    %10956 = vmatpush.bf16.msra.mxu0 %v7638
    %10957 = vmatpush.bf16.msra.mxu0 %v7630
    %10958 = vmatpush.bf16.msra.mxu0 %v7622
    %10959 = vmatpush.bf16.msra.mxu0 %v7614
    %10960 = vmatpush.bf16.msra.mxu0 %v7606
    %10961 = vmatmul.bf16.gmra.mxu0 %v1749
    %v10962 = vpop.f32.mrf.mxu0
    %v10963 = vadd.f32 %v10950, %v10962
    %v10964 = vpop.f32.mrf.mxu0
    %10965 = vdwg.mxu0
    %10966 = vmatpush.bf16.msra.mxu0 %v7726
    %10967 = vmatpush.bf16.msra.mxu0 %v7718
    %10968 = vmatpush.bf16.msra.mxu0 %v7710
    %10969 = vmatpush.bf16.msra.mxu0 %v7702
    %10970 = vmatpush.bf16.msra.mxu0 %v7694
    %10971 = vmatpush.bf16.msra.mxu0 %v7686
    %10972 = vmatpush.bf16.msra.mxu0 %v7678
    %10973 = vmatpush.bf16.msra.mxu0 %v7670
    %10974 = vmatmul.bf16.gmra.mxu0 %v1750
    %v10975 = vpop.f32.mrf.mxu0
    %v10976 = vadd.f32 %v10963, %v10975
    %v10977 = vpop.f32.mrf.mxu0
    %10978 = vdwg.mxu0
    %10979 = vmatpush.bf16.msra.mxu0 %v7790
    %10980 = vmatpush.bf16.msra.mxu0 %v7782
    %10981 = vmatpush.bf16.msra.mxu0 %v7774
    %10982 = vmatpush.bf16.msra.mxu0 %v7766
    %10983 = vmatpush.bf16.msra.mxu0 %v7758
    %10984 = vmatpush.bf16.msra.mxu0 %v7750
    %10985 = vmatpush.bf16.msra.mxu0 %v7742
    %10986 = vmatpush.bf16.msra.mxu0 %v7734
    %10987 = vmatmul.bf16.gmra.mxu0 %v1751
    %v10988 = vpop.f32.mrf.mxu0
    %v10989 = vadd.f32 %v10976, %v10988
    %v10990 = vpop.f32.mrf.mxu0
    %10991 = vdwg.mxu0
    %10992 = vmatpush.bf16.msra.mxu0 %v7854
    %10993 = vmatpush.bf16.msra.mxu0 %v7846
    %10994 = vmatpush.bf16.msra.mxu0 %v7838
    %10995 = vmatpush.bf16.msra.mxu0 %v7830
    %10996 = vmatpush.bf16.msra.mxu0 %v7822
    %10997 = vmatpush.bf16.msra.mxu0 %v7814
    %10998 = vmatpush.bf16.msra.mxu0 %v7806
    %10999 = vmatpush.bf16.msra.mxu0 %v7798
    %11000 = vmatmul.bf16.gmra.mxu0 %v1752
    %v11001 = vpop.f32.mrf.mxu0
    %v11002 = vadd.f32 %v10989, %v11001
    %v11003 = vpop.f32.mrf.mxu0
    %11004 = vdwg.mxu0
    %11005 = vmatpush.bf16.msra.mxu0 %v7918
    %11006 = vmatpush.bf16.msra.mxu0 %v7910
    %11007 = vmatpush.bf16.msra.mxu0 %v7902
    %11008 = vmatpush.bf16.msra.mxu0 %v7894
    %11009 = vmatpush.bf16.msra.mxu0 %v7886
    %11010 = vmatpush.bf16.msra.mxu0 %v7878
    %11011 = vmatpush.bf16.msra.mxu0 %v7870
    %11012 = vmatpush.bf16.msra.mxu0 %v7862
    %11013 = vmatmul.bf16.gmra.mxu0 %v1753
    %v11014 = vpop.f32.mrf.mxu0
    %v11015 = vadd.f32 %v11002, %v11014
    %v11016 = vpop.f32.mrf.mxu0
    %11017 = vdwg.mxu0
    %11018 = vmatpush.bf16.msra.mxu0 %v6447
    %11019 = vmatpush.bf16.msra.mxu0 %v6439
    %11020 = vmatpush.bf16.msra.mxu0 %v6431
    %11021 = vmatpush.bf16.msra.mxu0 %v6423
    %11022 = vmatpush.bf16.msra.mxu0 %v6415
    %11023 = vmatpush.bf16.msra.mxu0 %v6407
    %11024 = vmatpush.bf16.msra.mxu0 %v6399
    %11025 = vmatpush.bf16.msra.mxu0 %v6391
    %11026 = vmatmul.bf16.gmra.mxu0 %v1730
    %v11027 = vpop.f32.mrf.mxu0
    %v11028 = vadd.f32 %v1683, %v11027
    %v11029 = vpop.f32.mrf.mxu0
    %11030 = vdwg.mxu0
    %11031 = vmatpush.bf16.msra.mxu0 %v6511
    %11032 = vmatpush.bf16.msra.mxu0 %v6503
    %11033 = vmatpush.bf16.msra.mxu0 %v6495
    %11034 = vmatpush.bf16.msra.mxu0 %v6487
    %11035 = vmatpush.bf16.msra.mxu0 %v6479
    %11036 = vmatpush.bf16.msra.mxu0 %v6471
    %11037 = vmatpush.bf16.msra.mxu0 %v6463
    %11038 = vmatpush.bf16.msra.mxu0 %v6455
    %11039 = vmatmul.bf16.gmra.mxu0 %v1731
    %v11040 = vpop.f32.mrf.mxu0
    %v11041 = vadd.f32 %v11028, %v11040
    %v11042 = vpop.f32.mrf.mxu0
    %11043 = vdwg.mxu0
    %11044 = vmatpush.bf16.msra.mxu0 %v6575
    %11045 = vmatpush.bf16.msra.mxu0 %v6567
    %11046 = vmatpush.bf16.msra.mxu0 %v6559
    %11047 = vmatpush.bf16.msra.mxu0 %v6551
    %11048 = vmatpush.bf16.msra.mxu0 %v6543
    %11049 = vmatpush.bf16.msra.mxu0 %v6535
    %11050 = vmatpush.bf16.msra.mxu0 %v6527
    %11051 = vmatpush.bf16.msra.mxu0 %v6519
    %11052 = vmatmul.bf16.gmra.mxu0 %v1732
    %v11053 = vpop.f32.mrf.mxu0
    %v11054 = vadd.f32 %v11041, %v11053
    %v11055 = vpop.f32.mrf.mxu0
    %11056 = vdwg.mxu0
    %11057 = vmatpush.bf16.msra.mxu0 %v6639
    %11058 = vmatpush.bf16.msra.mxu0 %v6631
    %11059 = vmatpush.bf16.msra.mxu0 %v6623
    %11060 = vmatpush.bf16.msra.mxu0 %v6615
    %11061 = vmatpush.bf16.msra.mxu0 %v6607
    %11062 = vmatpush.bf16.msra.mxu0 %v6599
    %11063 = vmatpush.bf16.msra.mxu0 %v6591
    %11064 = vmatpush.bf16.msra.mxu0 %v6583
    %11065 = vmatmul.bf16.gmra.mxu0 %v1733
    %v11066 = vpop.f32.mrf.mxu0
    %v11067 = vadd.f32 %v11054, %v11066
    %v11068 = vpop.f32.mrf.mxu0
    %11069 = vdwg.mxu0
    %11070 = vmatpush.bf16.msra.mxu0 %v6703
    %11071 = vmatpush.bf16.msra.mxu0 %v6695
    %11072 = vmatpush.bf16.msra.mxu0 %v6687
    %11073 = vmatpush.bf16.msra.mxu0 %v6679
    %11074 = vmatpush.bf16.msra.mxu0 %v6671
    %11075 = vmatpush.bf16.msra.mxu0 %v6663
    %11076 = vmatpush.bf16.msra.mxu0 %v6655
    %11077 = vmatpush.bf16.msra.mxu0 %v6647
    %11078 = vmatmul.bf16.gmra.mxu0 %v1734
    %v11079 = vpop.f32.mrf.mxu0
    %v11080 = vadd.f32 %v11067, %v11079
    %v11081 = vpop.f32.mrf.mxu0
    %11082 = vdwg.mxu0
    %11083 = vmatpush.bf16.msra.mxu0 %v6767
    %11084 = vmatpush.bf16.msra.mxu0 %v6759
    %11085 = vmatpush.bf16.msra.mxu0 %v6751
    %11086 = vmatpush.bf16.msra.mxu0 %v6743
    %11087 = vmatpush.bf16.msra.mxu0 %v6735
    %11088 = vmatpush.bf16.msra.mxu0 %v6727
    %11089 = vmatpush.bf16.msra.mxu0 %v6719
    %11090 = vmatpush.bf16.msra.mxu0 %v6711
    %11091 = vmatmul.bf16.gmra.mxu0 %v1735
    %v11092 = vpop.f32.mrf.mxu0
    %v11093 = vadd.f32 %v11080, %v11092
    %v11094 = vpop.f32.mrf.mxu0
    %11095 = vdwg.mxu0
    %11096 = vmatpush.bf16.msra.mxu0 %v6831
    %11097 = vmatpush.bf16.msra.mxu0 %v6823
    %11098 = vmatpush.bf16.msra.mxu0 %v6815
    %11099 = vmatpush.bf16.msra.mxu0 %v6807
    %11100 = vmatpush.bf16.msra.mxu0 %v6799
    %11101 = vmatpush.bf16.msra.mxu0 %v6791
    %11102 = vmatpush.bf16.msra.mxu0 %v6783
    %11103 = vmatpush.bf16.msra.mxu0 %v6775
    %11104 = vmatmul.bf16.gmra.mxu0 %v1736
    %v11105 = vpop.f32.mrf.mxu0
    %v11106 = vadd.f32 %v11093, %v11105
    %v11107 = vpop.f32.mrf.mxu0
    %11108 = vdwg.mxu0
    %11109 = vmatpush.bf16.msra.mxu0 %v6895
    %11110 = vmatpush.bf16.msra.mxu0 %v6887
    %11111 = vmatpush.bf16.msra.mxu0 %v6879
    %11112 = vmatpush.bf16.msra.mxu0 %v6871
    %11113 = vmatpush.bf16.msra.mxu0 %v6863
    %11114 = vmatpush.bf16.msra.mxu0 %v6855
    %11115 = vmatpush.bf16.msra.mxu0 %v6847
    %11116 = vmatpush.bf16.msra.mxu0 %v6839
    %11117 = vmatmul.bf16.gmra.mxu0 %v1737
    %v11118 = vpop.f32.mrf.mxu0
    %v11119 = vadd.f32 %v11106, %v11118
    %v11120 = vpop.f32.mrf.mxu0
    %11121 = vdwg.mxu0
    %11122 = vmatpush.bf16.msra.mxu0 %v6959
    %11123 = vmatpush.bf16.msra.mxu0 %v6951
    %11124 = vmatpush.bf16.msra.mxu0 %v6943
    %11125 = vmatpush.bf16.msra.mxu0 %v6935
    %11126 = vmatpush.bf16.msra.mxu0 %v6927
    %11127 = vmatpush.bf16.msra.mxu0 %v6919
    %11128 = vmatpush.bf16.msra.mxu0 %v6911
    %11129 = vmatpush.bf16.msra.mxu0 %v6903
    %11130 = vmatmul.bf16.gmra.mxu0 %v1738
    %v11131 = vpop.f32.mrf.mxu0
    %v11132 = vadd.f32 %v11119, %v11131
    %v11133 = vpop.f32.mrf.mxu0
    %11134 = vdwg.mxu0
    %11135 = vmatpush.bf16.msra.mxu0 %v7023
    %11136 = vmatpush.bf16.msra.mxu0 %v7015
    %11137 = vmatpush.bf16.msra.mxu0 %v7007
    %11138 = vmatpush.bf16.msra.mxu0 %v6999
    %11139 = vmatpush.bf16.msra.mxu0 %v6991
    %11140 = vmatpush.bf16.msra.mxu0 %v6983
    %11141 = vmatpush.bf16.msra.mxu0 %v6975
    %11142 = vmatpush.bf16.msra.mxu0 %v6967
    %11143 = vmatmul.bf16.gmra.mxu0 %v1739
    %v11144 = vpop.f32.mrf.mxu0
    %v11145 = vadd.f32 %v11132, %v11144
    %v11146 = vpop.f32.mrf.mxu0
    %11147 = vdwg.mxu0
    %11148 = vmatpush.bf16.msra.mxu0 %v7087
    %11149 = vmatpush.bf16.msra.mxu0 %v7079
    %11150 = vmatpush.bf16.msra.mxu0 %v7071
    %11151 = vmatpush.bf16.msra.mxu0 %v7063
    %11152 = vmatpush.bf16.msra.mxu0 %v7055
    %11153 = vmatpush.bf16.msra.mxu0 %v7047
    %11154 = vmatpush.bf16.msra.mxu0 %v7039
    %11155 = vmatpush.bf16.msra.mxu0 %v7031
    %11156 = vmatmul.bf16.gmra.mxu0 %v1740
    %v11157 = vpop.f32.mrf.mxu0
    %v11158 = vadd.f32 %v11145, %v11157
    %v11159 = vpop.f32.mrf.mxu0
    %11160 = vdwg.mxu0
    %11161 = vmatpush.bf16.msra.mxu0 %v7151
    %11162 = vmatpush.bf16.msra.mxu0 %v7143
    %11163 = vmatpush.bf16.msra.mxu0 %v7135
    %11164 = vmatpush.bf16.msra.mxu0 %v7127
    %11165 = vmatpush.bf16.msra.mxu0 %v7119
    %11166 = vmatpush.bf16.msra.mxu0 %v7111
    %11167 = vmatpush.bf16.msra.mxu0 %v7103
    %11168 = vmatpush.bf16.msra.mxu0 %v7095
    %11169 = vmatmul.bf16.gmra.mxu0 %v1741
    %v11170 = vpop.f32.mrf.mxu0
    %v11171 = vadd.f32 %v11158, %v11170
    %v11172 = vpop.f32.mrf.mxu0
    %11173 = vdwg.mxu0
    %11174 = vmatpush.bf16.msra.mxu0 %v7215
    %11175 = vmatpush.bf16.msra.mxu0 %v7207
    %11176 = vmatpush.bf16.msra.mxu0 %v7199
    %11177 = vmatpush.bf16.msra.mxu0 %v7191
    %11178 = vmatpush.bf16.msra.mxu0 %v7183
    %11179 = vmatpush.bf16.msra.mxu0 %v7175
    %11180 = vmatpush.bf16.msra.mxu0 %v7167
    %11181 = vmatpush.bf16.msra.mxu0 %v7159
    %11182 = vmatmul.bf16.gmra.mxu0 %v1742
    %v11183 = vpop.f32.mrf.mxu0
    %v11184 = vadd.f32 %v11171, %v11183
    %v11185 = vpop.f32.mrf.mxu0
    %11186 = vdwg.mxu0
    %11187 = vmatpush.bf16.msra.mxu0 %v7279
    %11188 = vmatpush.bf16.msra.mxu0 %v7271
    %11189 = vmatpush.bf16.msra.mxu0 %v7263
    %11190 = vmatpush.bf16.msra.mxu0 %v7255
    %11191 = vmatpush.bf16.msra.mxu0 %v7247
    %11192 = vmatpush.bf16.msra.mxu0 %v7239
    %11193 = vmatpush.bf16.msra.mxu0 %v7231
    %11194 = vmatpush.bf16.msra.mxu0 %v7223
    %11195 = vmatmul.bf16.gmra.mxu0 %v1743
    %v11196 = vpop.f32.mrf.mxu0
    %v11197 = vadd.f32 %v11184, %v11196
    %v11198 = vpop.f32.mrf.mxu0
    %11199 = vdwg.mxu0
    %11200 = vmatpush.bf16.msra.mxu0 %v7343
    %11201 = vmatpush.bf16.msra.mxu0 %v7335
    %11202 = vmatpush.bf16.msra.mxu0 %v7327
    %11203 = vmatpush.bf16.msra.mxu0 %v7319
    %11204 = vmatpush.bf16.msra.mxu0 %v7311
    %11205 = vmatpush.bf16.msra.mxu0 %v7303
    %11206 = vmatpush.bf16.msra.mxu0 %v7295
    %11207 = vmatpush.bf16.msra.mxu0 %v7287
    %11208 = vmatmul.bf16.gmra.mxu0 %v1744
    %v11209 = vpop.f32.mrf.mxu0
    %v11210 = vadd.f32 %v11197, %v11209
    %v11211 = vpop.f32.mrf.mxu0
    %11212 = vdwg.mxu0
    %11213 = vmatpush.bf16.msra.mxu0 %v7407
    %11214 = vmatpush.bf16.msra.mxu0 %v7399
    %11215 = vmatpush.bf16.msra.mxu0 %v7391
    %11216 = vmatpush.bf16.msra.mxu0 %v7383
    %11217 = vmatpush.bf16.msra.mxu0 %v7375
    %11218 = vmatpush.bf16.msra.mxu0 %v7367
    %11219 = vmatpush.bf16.msra.mxu0 %v7359
    %11220 = vmatpush.bf16.msra.mxu0 %v7351
    %11221 = vmatmul.bf16.gmra.mxu0 %v1745
    %v11222 = vpop.f32.mrf.mxu0
    %v11223 = vadd.f32 %v11210, %v11222
    %v11224 = vpop.f32.mrf.mxu0
    %11225 = vdwg.mxu0
    %11226 = vmatpush.bf16.msra.mxu0 %v7471
    %11227 = vmatpush.bf16.msra.mxu0 %v7463
    %11228 = vmatpush.bf16.msra.mxu0 %v7455
    %11229 = vmatpush.bf16.msra.mxu0 %v7447
    %11230 = vmatpush.bf16.msra.mxu0 %v7439
    %11231 = vmatpush.bf16.msra.mxu0 %v7431
    %11232 = vmatpush.bf16.msra.mxu0 %v7423
    %11233 = vmatpush.bf16.msra.mxu0 %v7415
    %11234 = vmatmul.bf16.gmra.mxu0 %v1746
    %v11235 = vpop.f32.mrf.mxu0
    %v11236 = vadd.f32 %v11223, %v11235
    %v11237 = vpop.f32.mrf.mxu0
    %11238 = vdwg.mxu0
    %11239 = vmatpush.bf16.msra.mxu0 %v7535
    %11240 = vmatpush.bf16.msra.mxu0 %v7527
    %11241 = vmatpush.bf16.msra.mxu0 %v7519
    %11242 = vmatpush.bf16.msra.mxu0 %v7511
    %11243 = vmatpush.bf16.msra.mxu0 %v7503
    %11244 = vmatpush.bf16.msra.mxu0 %v7495
    %11245 = vmatpush.bf16.msra.mxu0 %v7487
    %11246 = vmatpush.bf16.msra.mxu0 %v7479
    %11247 = vmatmul.bf16.gmra.mxu0 %v1747
    %v11248 = vpop.f32.mrf.mxu0
    %v11249 = vadd.f32 %v11236, %v11248
    %v11250 = vpop.f32.mrf.mxu0
    %11251 = vdwg.mxu0
    %11252 = vmatpush.bf16.msra.mxu0 %v7599
    %11253 = vmatpush.bf16.msra.mxu0 %v7591
    %11254 = vmatpush.bf16.msra.mxu0 %v7583
    %11255 = vmatpush.bf16.msra.mxu0 %v7575
    %11256 = vmatpush.bf16.msra.mxu0 %v7567
    %11257 = vmatpush.bf16.msra.mxu0 %v7559
    %11258 = vmatpush.bf16.msra.mxu0 %v7551
    %11259 = vmatpush.bf16.msra.mxu0 %v7543
    %11260 = vmatmul.bf16.gmra.mxu0 %v1748
    %v11261 = vpop.f32.mrf.mxu0
    %v11262 = vadd.f32 %v11249, %v11261
    %v11263 = vpop.f32.mrf.mxu0
    %11264 = vdwg.mxu0
    %11265 = vmatpush.bf16.msra.mxu0 %v7663
    %11266 = vmatpush.bf16.msra.mxu0 %v7655
    %11267 = vmatpush.bf16.msra.mxu0 %v7647
    %11268 = vmatpush.bf16.msra.mxu0 %v7639
    %11269 = vmatpush.bf16.msra.mxu0 %v7631
    %11270 = vmatpush.bf16.msra.mxu0 %v7623
    %11271 = vmatpush.bf16.msra.mxu0 %v7615
    %11272 = vmatpush.bf16.msra.mxu0 %v7607
    %11273 = vmatmul.bf16.gmra.mxu0 %v1749
    %v11274 = vpop.f32.mrf.mxu0
    %v11275 = vadd.f32 %v11262, %v11274
    %v11276 = vpop.f32.mrf.mxu0
    %11277 = vdwg.mxu0
    %11278 = vmatpush.bf16.msra.mxu0 %v7727
    %11279 = vmatpush.bf16.msra.mxu0 %v7719
    %11280 = vmatpush.bf16.msra.mxu0 %v7711
    %11281 = vmatpush.bf16.msra.mxu0 %v7703
    %11282 = vmatpush.bf16.msra.mxu0 %v7695
    %11283 = vmatpush.bf16.msra.mxu0 %v7687
    %11284 = vmatpush.bf16.msra.mxu0 %v7679
    %11285 = vmatpush.bf16.msra.mxu0 %v7671
    %11286 = vmatmul.bf16.gmra.mxu0 %v1750
    %v11287 = vpop.f32.mrf.mxu0
    %v11288 = vadd.f32 %v11275, %v11287
    %v11289 = vpop.f32.mrf.mxu0
    %11290 = vdwg.mxu0
    %11291 = vmatpush.bf16.msra.mxu0 %v7791
    %11292 = vmatpush.bf16.msra.mxu0 %v7783
    %11293 = vmatpush.bf16.msra.mxu0 %v7775
    %11294 = vmatpush.bf16.msra.mxu0 %v7767
    %11295 = vmatpush.bf16.msra.mxu0 %v7759
    %11296 = vmatpush.bf16.msra.mxu0 %v7751
    %11297 = vmatpush.bf16.msra.mxu0 %v7743
    %11298 = vmatpush.bf16.msra.mxu0 %v7735
    %11299 = vmatmul.bf16.gmra.mxu0 %v1751
    %v11300 = vpop.f32.mrf.mxu0
    %v11301 = vadd.f32 %v11288, %v11300
    %v11302 = vpop.f32.mrf.mxu0
    %11303 = vdwg.mxu0
    %11304 = vmatpush.bf16.msra.mxu0 %v7855
    %11305 = vmatpush.bf16.msra.mxu0 %v7847
    %11306 = vmatpush.bf16.msra.mxu0 %v7839
    %11307 = vmatpush.bf16.msra.mxu0 %v7831
    %11308 = vmatpush.bf16.msra.mxu0 %v7823
    %11309 = vmatpush.bf16.msra.mxu0 %v7815
    %11310 = vmatpush.bf16.msra.mxu0 %v7807
    %11311 = vmatpush.bf16.msra.mxu0 %v7799
    %11312 = vmatmul.bf16.gmra.mxu0 %v1752
    %v11313 = vpop.f32.mrf.mxu0
    %v11314 = vadd.f32 %v11301, %v11313
    %v11315 = vpop.f32.mrf.mxu0
    %11316 = vdwg.mxu0
    %11317 = vmatpush.bf16.msra.mxu0 %v7919
    %11318 = vmatpush.bf16.msra.mxu0 %v7911
    %11319 = vmatpush.bf16.msra.mxu0 %v7903
    %11320 = vmatpush.bf16.msra.mxu0 %v7895
    %11321 = vmatpush.bf16.msra.mxu0 %v7887
    %11322 = vmatpush.bf16.msra.mxu0 %v7879
    %11323 = vmatpush.bf16.msra.mxu0 %v7871
    %11324 = vmatpush.bf16.msra.mxu0 %v7863
    %11325 = vmatmul.bf16.gmra.mxu0 %v1753
    %v11326 = vpop.f32.mrf.mxu0
    %v11327 = vadd.f32 %v11314, %v11326
    %v11328 = vpop.f32.mrf.mxu0
    %11329 = vdwg.mxu0
    %11330 = vmatpush.bf16.msra.mxu0 %v6448
    %11331 = vmatpush.bf16.msra.mxu0 %v6440
    %11332 = vmatpush.bf16.msra.mxu0 %v6432
    %11333 = vmatpush.bf16.msra.mxu0 %v6424
    %11334 = vmatpush.bf16.msra.mxu0 %v6416
    %11335 = vmatpush.bf16.msra.mxu0 %v6408
    %11336 = vmatpush.bf16.msra.mxu0 %v6400
    %11337 = vmatpush.bf16.msra.mxu0 %v6392
    %11338 = vmatmul.bf16.gmra.mxu0 %v1730
    %v11339 = vpop.f32.mrf.mxu0
    %v11340 = vadd.f32 %v1684, %v11339
    %v11341 = vpop.f32.mrf.mxu0
    %11342 = vdwg.mxu0
    %11343 = vmatpush.bf16.msra.mxu0 %v6512
    %11344 = vmatpush.bf16.msra.mxu0 %v6504
    %11345 = vmatpush.bf16.msra.mxu0 %v6496
    %11346 = vmatpush.bf16.msra.mxu0 %v6488
    %11347 = vmatpush.bf16.msra.mxu0 %v6480
    %11348 = vmatpush.bf16.msra.mxu0 %v6472
    %11349 = vmatpush.bf16.msra.mxu0 %v6464
    %11350 = vmatpush.bf16.msra.mxu0 %v6456
    %11351 = vmatmul.bf16.gmra.mxu0 %v1731
    %v11352 = vpop.f32.mrf.mxu0
    %v11353 = vadd.f32 %v11340, %v11352
    %v11354 = vpop.f32.mrf.mxu0
    %11355 = vdwg.mxu0
    %11356 = vmatpush.bf16.msra.mxu0 %v6576
    %11357 = vmatpush.bf16.msra.mxu0 %v6568
    %11358 = vmatpush.bf16.msra.mxu0 %v6560
    %11359 = vmatpush.bf16.msra.mxu0 %v6552
    %11360 = vmatpush.bf16.msra.mxu0 %v6544
    %11361 = vmatpush.bf16.msra.mxu0 %v6536
    %11362 = vmatpush.bf16.msra.mxu0 %v6528
    %11363 = vmatpush.bf16.msra.mxu0 %v6520
    %11364 = vmatmul.bf16.gmra.mxu0 %v1732
    %v11365 = vpop.f32.mrf.mxu0
    %v11366 = vadd.f32 %v11353, %v11365
    %v11367 = vpop.f32.mrf.mxu0
    %11368 = vdwg.mxu0
    %11369 = vmatpush.bf16.msra.mxu0 %v6640
    %11370 = vmatpush.bf16.msra.mxu0 %v6632
    %11371 = vmatpush.bf16.msra.mxu0 %v6624
    %11372 = vmatpush.bf16.msra.mxu0 %v6616
    %11373 = vmatpush.bf16.msra.mxu0 %v6608
    %11374 = vmatpush.bf16.msra.mxu0 %v6600
    %11375 = vmatpush.bf16.msra.mxu0 %v6592
    %11376 = vmatpush.bf16.msra.mxu0 %v6584
    %11377 = vmatmul.bf16.gmra.mxu0 %v1733
    %v11378 = vpop.f32.mrf.mxu0
    %v11379 = vadd.f32 %v11366, %v11378
    %v11380 = vpop.f32.mrf.mxu0
    %11381 = vdwg.mxu0
    %11382 = vmatpush.bf16.msra.mxu0 %v6704
    %11383 = vmatpush.bf16.msra.mxu0 %v6696
    %11384 = vmatpush.bf16.msra.mxu0 %v6688
    %11385 = vmatpush.bf16.msra.mxu0 %v6680
    %11386 = vmatpush.bf16.msra.mxu0 %v6672
    %11387 = vmatpush.bf16.msra.mxu0 %v6664
    %11388 = vmatpush.bf16.msra.mxu0 %v6656
    %11389 = vmatpush.bf16.msra.mxu0 %v6648
    %11390 = vmatmul.bf16.gmra.mxu0 %v1734
    %v11391 = vpop.f32.mrf.mxu0
    %v11392 = vadd.f32 %v11379, %v11391
    %v11393 = vpop.f32.mrf.mxu0
    %11394 = vdwg.mxu0
    %11395 = vmatpush.bf16.msra.mxu0 %v6768
    %11396 = vmatpush.bf16.msra.mxu0 %v6760
    %11397 = vmatpush.bf16.msra.mxu0 %v6752
    %11398 = vmatpush.bf16.msra.mxu0 %v6744
    %11399 = vmatpush.bf16.msra.mxu0 %v6736
    %11400 = vmatpush.bf16.msra.mxu0 %v6728
    %11401 = vmatpush.bf16.msra.mxu0 %v6720
    %11402 = vmatpush.bf16.msra.mxu0 %v6712
    %11403 = vmatmul.bf16.gmra.mxu0 %v1735
    %v11404 = vpop.f32.mrf.mxu0
    %v11405 = vadd.f32 %v11392, %v11404
    %v11406 = vpop.f32.mrf.mxu0
    %11407 = vdwg.mxu0
    %11408 = vmatpush.bf16.msra.mxu0 %v6832
    %11409 = vmatpush.bf16.msra.mxu0 %v6824
    %11410 = vmatpush.bf16.msra.mxu0 %v6816
    %11411 = vmatpush.bf16.msra.mxu0 %v6808
    %11412 = vmatpush.bf16.msra.mxu0 %v6800
    %11413 = vmatpush.bf16.msra.mxu0 %v6792
    %11414 = vmatpush.bf16.msra.mxu0 %v6784
    %11415 = vmatpush.bf16.msra.mxu0 %v6776
    %11416 = vmatmul.bf16.gmra.mxu0 %v1736
    %v11417 = vpop.f32.mrf.mxu0
    %v11418 = vadd.f32 %v11405, %v11417
    %v11419 = vpop.f32.mrf.mxu0
    %11420 = vdwg.mxu0
    %11421 = vmatpush.bf16.msra.mxu0 %v6896
    %11422 = vmatpush.bf16.msra.mxu0 %v6888
    %11423 = vmatpush.bf16.msra.mxu0 %v6880
    %11424 = vmatpush.bf16.msra.mxu0 %v6872
    %11425 = vmatpush.bf16.msra.mxu0 %v6864
    %11426 = vmatpush.bf16.msra.mxu0 %v6856
    %11427 = vmatpush.bf16.msra.mxu0 %v6848
    %11428 = vmatpush.bf16.msra.mxu0 %v6840
    %11429 = vmatmul.bf16.gmra.mxu0 %v1737
    %v11430 = vpop.f32.mrf.mxu0
    %v11431 = vadd.f32 %v11418, %v11430
    %v11432 = vpop.f32.mrf.mxu0
    %11433 = vdwg.mxu0
    %11434 = vmatpush.bf16.msra.mxu0 %v6960
    %11435 = vmatpush.bf16.msra.mxu0 %v6952
    %11436 = vmatpush.bf16.msra.mxu0 %v6944
    %11437 = vmatpush.bf16.msra.mxu0 %v6936
    %11438 = vmatpush.bf16.msra.mxu0 %v6928
    %11439 = vmatpush.bf16.msra.mxu0 %v6920
    %11440 = vmatpush.bf16.msra.mxu0 %v6912
    %11441 = vmatpush.bf16.msra.mxu0 %v6904
    %11442 = vmatmul.bf16.gmra.mxu0 %v1738
    %v11443 = vpop.f32.mrf.mxu0
    %v11444 = vadd.f32 %v11431, %v11443
    %v11445 = vpop.f32.mrf.mxu0
    %11446 = vdwg.mxu0
    %11447 = vmatpush.bf16.msra.mxu0 %v7024
    %11448 = vmatpush.bf16.msra.mxu0 %v7016
    %11449 = vmatpush.bf16.msra.mxu0 %v7008
    %11450 = vmatpush.bf16.msra.mxu0 %v7000
    %11451 = vmatpush.bf16.msra.mxu0 %v6992
    %11452 = vmatpush.bf16.msra.mxu0 %v6984
    %11453 = vmatpush.bf16.msra.mxu0 %v6976
    %11454 = vmatpush.bf16.msra.mxu0 %v6968
    %11455 = vmatmul.bf16.gmra.mxu0 %v1739
    %v11456 = vpop.f32.mrf.mxu0
    %v11457 = vadd.f32 %v11444, %v11456
    %v11458 = vpop.f32.mrf.mxu0
    %11459 = vdwg.mxu0
    %11460 = vmatpush.bf16.msra.mxu0 %v7088
    %11461 = vmatpush.bf16.msra.mxu0 %v7080
    %11462 = vmatpush.bf16.msra.mxu0 %v7072
    %11463 = vmatpush.bf16.msra.mxu0 %v7064
    %11464 = vmatpush.bf16.msra.mxu0 %v7056
    %11465 = vmatpush.bf16.msra.mxu0 %v7048
    %11466 = vmatpush.bf16.msra.mxu0 %v7040
    %11467 = vmatpush.bf16.msra.mxu0 %v7032
    %11468 = vmatmul.bf16.gmra.mxu0 %v1740
    %v11469 = vpop.f32.mrf.mxu0
    %v11470 = vadd.f32 %v11457, %v11469
    %v11471 = vpop.f32.mrf.mxu0
    %11472 = vdwg.mxu0
    %11473 = vmatpush.bf16.msra.mxu0 %v7152
    %11474 = vmatpush.bf16.msra.mxu0 %v7144
    %11475 = vmatpush.bf16.msra.mxu0 %v7136
    %11476 = vmatpush.bf16.msra.mxu0 %v7128
    %11477 = vmatpush.bf16.msra.mxu0 %v7120
    %11478 = vmatpush.bf16.msra.mxu0 %v7112
    %11479 = vmatpush.bf16.msra.mxu0 %v7104
    %11480 = vmatpush.bf16.msra.mxu0 %v7096
    %11481 = vmatmul.bf16.gmra.mxu0 %v1741
    %v11482 = vpop.f32.mrf.mxu0
    %v11483 = vadd.f32 %v11470, %v11482
    %v11484 = vpop.f32.mrf.mxu0
    %11485 = vdwg.mxu0
    %11486 = vmatpush.bf16.msra.mxu0 %v7216
    %11487 = vmatpush.bf16.msra.mxu0 %v7208
    %11488 = vmatpush.bf16.msra.mxu0 %v7200
    %11489 = vmatpush.bf16.msra.mxu0 %v7192
    %11490 = vmatpush.bf16.msra.mxu0 %v7184
    %11491 = vmatpush.bf16.msra.mxu0 %v7176
    %11492 = vmatpush.bf16.msra.mxu0 %v7168
    %11493 = vmatpush.bf16.msra.mxu0 %v7160
    %11494 = vmatmul.bf16.gmra.mxu0 %v1742
    %v11495 = vpop.f32.mrf.mxu0
    %v11496 = vadd.f32 %v11483, %v11495
    %v11497 = vpop.f32.mrf.mxu0
    %11498 = vdwg.mxu0
    %11499 = vmatpush.bf16.msra.mxu0 %v7280
    %11500 = vmatpush.bf16.msra.mxu0 %v7272
    %11501 = vmatpush.bf16.msra.mxu0 %v7264
    %11502 = vmatpush.bf16.msra.mxu0 %v7256
    %11503 = vmatpush.bf16.msra.mxu0 %v7248
    %11504 = vmatpush.bf16.msra.mxu0 %v7240
    %11505 = vmatpush.bf16.msra.mxu0 %v7232
    %11506 = vmatpush.bf16.msra.mxu0 %v7224
    %11507 = vmatmul.bf16.gmra.mxu0 %v1743
    %v11508 = vpop.f32.mrf.mxu0
    %v11509 = vadd.f32 %v11496, %v11508
    %v11510 = vpop.f32.mrf.mxu0
    %11511 = vdwg.mxu0
    %11512 = vmatpush.bf16.msra.mxu0 %v7344
    %11513 = vmatpush.bf16.msra.mxu0 %v7336
    %11514 = vmatpush.bf16.msra.mxu0 %v7328
    %11515 = vmatpush.bf16.msra.mxu0 %v7320
    %11516 = vmatpush.bf16.msra.mxu0 %v7312
    %11517 = vmatpush.bf16.msra.mxu0 %v7304
    %11518 = vmatpush.bf16.msra.mxu0 %v7296
    %11519 = vmatpush.bf16.msra.mxu0 %v7288
    %11520 = vmatmul.bf16.gmra.mxu0 %v1744
    %v11521 = vpop.f32.mrf.mxu0
    %v11522 = vadd.f32 %v11509, %v11521
    %v11523 = vpop.f32.mrf.mxu0
    %11524 = vdwg.mxu0
    %11525 = vmatpush.bf16.msra.mxu0 %v7408
    %11526 = vmatpush.bf16.msra.mxu0 %v7400
    %11527 = vmatpush.bf16.msra.mxu0 %v7392
    %11528 = vmatpush.bf16.msra.mxu0 %v7384
    %11529 = vmatpush.bf16.msra.mxu0 %v7376
    %11530 = vmatpush.bf16.msra.mxu0 %v7368
    %11531 = vmatpush.bf16.msra.mxu0 %v7360
    %11532 = vmatpush.bf16.msra.mxu0 %v7352
    %11533 = vmatmul.bf16.gmra.mxu0 %v1745
    %v11534 = vpop.f32.mrf.mxu0
    %v11535 = vadd.f32 %v11522, %v11534
    %v11536 = vpop.f32.mrf.mxu0
    %11537 = vdwg.mxu0
    %11538 = vmatpush.bf16.msra.mxu0 %v7472
    %11539 = vmatpush.bf16.msra.mxu0 %v7464
    %11540 = vmatpush.bf16.msra.mxu0 %v7456
    %11541 = vmatpush.bf16.msra.mxu0 %v7448
    %11542 = vmatpush.bf16.msra.mxu0 %v7440
    %11543 = vmatpush.bf16.msra.mxu0 %v7432
    %11544 = vmatpush.bf16.msra.mxu0 %v7424
    %11545 = vmatpush.bf16.msra.mxu0 %v7416
    %11546 = vmatmul.bf16.gmra.mxu0 %v1746
    %v11547 = vpop.f32.mrf.mxu0
    %v11548 = vadd.f32 %v11535, %v11547
    %v11549 = vpop.f32.mrf.mxu0
    %11550 = vdwg.mxu0
    %11551 = vmatpush.bf16.msra.mxu0 %v7536
    %11552 = vmatpush.bf16.msra.mxu0 %v7528
    %11553 = vmatpush.bf16.msra.mxu0 %v7520
    %11554 = vmatpush.bf16.msra.mxu0 %v7512
    %11555 = vmatpush.bf16.msra.mxu0 %v7504
    %11556 = vmatpush.bf16.msra.mxu0 %v7496
    %11557 = vmatpush.bf16.msra.mxu0 %v7488
    %11558 = vmatpush.bf16.msra.mxu0 %v7480
    %11559 = vmatmul.bf16.gmra.mxu0 %v1747
    %v11560 = vpop.f32.mrf.mxu0
    %v11561 = vadd.f32 %v11548, %v11560
    %v11562 = vpop.f32.mrf.mxu0
    %11563 = vdwg.mxu0
    %11564 = vmatpush.bf16.msra.mxu0 %v7600
    %11565 = vmatpush.bf16.msra.mxu0 %v7592
    %11566 = vmatpush.bf16.msra.mxu0 %v7584
    %11567 = vmatpush.bf16.msra.mxu0 %v7576
    %11568 = vmatpush.bf16.msra.mxu0 %v7568
    %11569 = vmatpush.bf16.msra.mxu0 %v7560
    %11570 = vmatpush.bf16.msra.mxu0 %v7552
    %11571 = vmatpush.bf16.msra.mxu0 %v7544
    %11572 = vmatmul.bf16.gmra.mxu0 %v1748
    %v11573 = vpop.f32.mrf.mxu0
    %v11574 = vadd.f32 %v11561, %v11573
    %v11575 = vpop.f32.mrf.mxu0
    %11576 = vdwg.mxu0
    %11577 = vmatpush.bf16.msra.mxu0 %v7664
    %11578 = vmatpush.bf16.msra.mxu0 %v7656
    %11579 = vmatpush.bf16.msra.mxu0 %v7648
    %11580 = vmatpush.bf16.msra.mxu0 %v7640
    %11581 = vmatpush.bf16.msra.mxu0 %v7632
    %11582 = vmatpush.bf16.msra.mxu0 %v7624
    %11583 = vmatpush.bf16.msra.mxu0 %v7616
    %11584 = vmatpush.bf16.msra.mxu0 %v7608
    %11585 = vmatmul.bf16.gmra.mxu0 %v1749
    %v11586 = vpop.f32.mrf.mxu0
    %v11587 = vadd.f32 %v11574, %v11586
    %v11588 = vpop.f32.mrf.mxu0
    %11589 = vdwg.mxu0
    %11590 = vmatpush.bf16.msra.mxu0 %v7728
    %11591 = vmatpush.bf16.msra.mxu0 %v7720
    %11592 = vmatpush.bf16.msra.mxu0 %v7712
    %11593 = vmatpush.bf16.msra.mxu0 %v7704
    %11594 = vmatpush.bf16.msra.mxu0 %v7696
    %11595 = vmatpush.bf16.msra.mxu0 %v7688
    %11596 = vmatpush.bf16.msra.mxu0 %v7680
    %11597 = vmatpush.bf16.msra.mxu0 %v7672
    %11598 = vmatmul.bf16.gmra.mxu0 %v1750
    %v11599 = vpop.f32.mrf.mxu0
    %v11600 = vadd.f32 %v11587, %v11599
    %v11601 = vpop.f32.mrf.mxu0
    %11602 = vdwg.mxu0
    %11603 = vmatpush.bf16.msra.mxu0 %v7792
    %11604 = vmatpush.bf16.msra.mxu0 %v7784
    %11605 = vmatpush.bf16.msra.mxu0 %v7776
    %11606 = vmatpush.bf16.msra.mxu0 %v7768
    %11607 = vmatpush.bf16.msra.mxu0 %v7760
    %11608 = vmatpush.bf16.msra.mxu0 %v7752
    %11609 = vmatpush.bf16.msra.mxu0 %v7744
    %11610 = vmatpush.bf16.msra.mxu0 %v7736
    %11611 = vmatmul.bf16.gmra.mxu0 %v1751
    %v11612 = vpop.f32.mrf.mxu0
    %v11613 = vadd.f32 %v11600, %v11612
    %v11614 = vpop.f32.mrf.mxu0
    %11615 = vdwg.mxu0
    %11616 = vmatpush.bf16.msra.mxu0 %v7856
    %11617 = vmatpush.bf16.msra.mxu0 %v7848
    %11618 = vmatpush.bf16.msra.mxu0 %v7840
    %11619 = vmatpush.bf16.msra.mxu0 %v7832
    %11620 = vmatpush.bf16.msra.mxu0 %v7824
    %11621 = vmatpush.bf16.msra.mxu0 %v7816
    %11622 = vmatpush.bf16.msra.mxu0 %v7808
    %11623 = vmatpush.bf16.msra.mxu0 %v7800
    %11624 = vmatmul.bf16.gmra.mxu0 %v1752
    %v11625 = vpop.f32.mrf.mxu0
    %v11626 = vadd.f32 %v11613, %v11625
    %v11627 = vpop.f32.mrf.mxu0
    %11628 = vdwg.mxu0
    %11629 = vmatpush.bf16.msra.mxu0 %v7920
    %11630 = vmatpush.bf16.msra.mxu0 %v7912
    %11631 = vmatpush.bf16.msra.mxu0 %v7904
    %11632 = vmatpush.bf16.msra.mxu0 %v7896
    %11633 = vmatpush.bf16.msra.mxu0 %v7888
    %11634 = vmatpush.bf16.msra.mxu0 %v7880
    %11635 = vmatpush.bf16.msra.mxu0 %v7872
    %11636 = vmatpush.bf16.msra.mxu0 %v7864
    %11637 = vmatmul.bf16.gmra.mxu0 %v1753
    %v11638 = vpop.f32.mrf.mxu0
    %v11639 = vadd.f32 %v11626, %v11638
    %v11640 = vpop.f32.mrf.mxu0
    %11641 = vdwg.mxu0
    %11642 = vmatpush.bf16.msra.mxu0 %v6449
    %11643 = vmatpush.bf16.msra.mxu0 %v6441
    %11644 = vmatpush.bf16.msra.mxu0 %v6433
    %11645 = vmatpush.bf16.msra.mxu0 %v6425
    %11646 = vmatpush.bf16.msra.mxu0 %v6417
    %11647 = vmatpush.bf16.msra.mxu0 %v6409
    %11648 = vmatpush.bf16.msra.mxu0 %v6401
    %11649 = vmatpush.bf16.msra.mxu0 %v6393
    %11650 = vmatmul.bf16.gmra.mxu0 %v1730
    %v11651 = vpop.f32.mrf.mxu0
    %v11652 = vadd.f32 %v1685, %v11651
    %v11653 = vpop.f32.mrf.mxu0
    %11654 = vdwg.mxu0
    %11655 = vmatpush.bf16.msra.mxu0 %v6513
    %11656 = vmatpush.bf16.msra.mxu0 %v6505
    %11657 = vmatpush.bf16.msra.mxu0 %v6497
    %11658 = vmatpush.bf16.msra.mxu0 %v6489
    %11659 = vmatpush.bf16.msra.mxu0 %v6481
    %11660 = vmatpush.bf16.msra.mxu0 %v6473
    %11661 = vmatpush.bf16.msra.mxu0 %v6465
    %11662 = vmatpush.bf16.msra.mxu0 %v6457
    %11663 = vmatmul.bf16.gmra.mxu0 %v1731
    %v11664 = vpop.f32.mrf.mxu0
    %v11665 = vadd.f32 %v11652, %v11664
    %v11666 = vpop.f32.mrf.mxu0
    %11667 = vdwg.mxu0
    %11668 = vmatpush.bf16.msra.mxu0 %v6577
    %11669 = vmatpush.bf16.msra.mxu0 %v6569
    %11670 = vmatpush.bf16.msra.mxu0 %v6561
    %11671 = vmatpush.bf16.msra.mxu0 %v6553
    %11672 = vmatpush.bf16.msra.mxu0 %v6545
    %11673 = vmatpush.bf16.msra.mxu0 %v6537
    %11674 = vmatpush.bf16.msra.mxu0 %v6529
    %11675 = vmatpush.bf16.msra.mxu0 %v6521
    %11676 = vmatmul.bf16.gmra.mxu0 %v1732
    %v11677 = vpop.f32.mrf.mxu0
    %v11678 = vadd.f32 %v11665, %v11677
    %v11679 = vpop.f32.mrf.mxu0
    %11680 = vdwg.mxu0
    %11681 = vmatpush.bf16.msra.mxu0 %v6641
    %11682 = vmatpush.bf16.msra.mxu0 %v6633
    %11683 = vmatpush.bf16.msra.mxu0 %v6625
    %11684 = vmatpush.bf16.msra.mxu0 %v6617
    %11685 = vmatpush.bf16.msra.mxu0 %v6609
    %11686 = vmatpush.bf16.msra.mxu0 %v6601
    %11687 = vmatpush.bf16.msra.mxu0 %v6593
    %11688 = vmatpush.bf16.msra.mxu0 %v6585
    %11689 = vmatmul.bf16.gmra.mxu0 %v1733
    %v11690 = vpop.f32.mrf.mxu0
    %v11691 = vadd.f32 %v11678, %v11690
    %v11692 = vpop.f32.mrf.mxu0
    %11693 = vdwg.mxu0
    %11694 = vmatpush.bf16.msra.mxu0 %v6705
    %11695 = vmatpush.bf16.msra.mxu0 %v6697
    %11696 = vmatpush.bf16.msra.mxu0 %v6689
    %11697 = vmatpush.bf16.msra.mxu0 %v6681
    %11698 = vmatpush.bf16.msra.mxu0 %v6673
    %11699 = vmatpush.bf16.msra.mxu0 %v6665
    %11700 = vmatpush.bf16.msra.mxu0 %v6657
    %11701 = vmatpush.bf16.msra.mxu0 %v6649
    %11702 = vmatmul.bf16.gmra.mxu0 %v1734
    %v11703 = vpop.f32.mrf.mxu0
    %v11704 = vadd.f32 %v11691, %v11703
    %v11705 = vpop.f32.mrf.mxu0
    %11706 = vdwg.mxu0
    %11707 = vmatpush.bf16.msra.mxu0 %v6769
    %11708 = vmatpush.bf16.msra.mxu0 %v6761
    %11709 = vmatpush.bf16.msra.mxu0 %v6753
    %11710 = vmatpush.bf16.msra.mxu0 %v6745
    %11711 = vmatpush.bf16.msra.mxu0 %v6737
    %11712 = vmatpush.bf16.msra.mxu0 %v6729
    %11713 = vmatpush.bf16.msra.mxu0 %v6721
    %11714 = vmatpush.bf16.msra.mxu0 %v6713
    %11715 = vmatmul.bf16.gmra.mxu0 %v1735
    %v11716 = vpop.f32.mrf.mxu0
    %v11717 = vadd.f32 %v11704, %v11716
    %v11718 = vpop.f32.mrf.mxu0
    %11719 = vdwg.mxu0
    %11720 = vmatpush.bf16.msra.mxu0 %v6833
    %11721 = vmatpush.bf16.msra.mxu0 %v6825
    %11722 = vmatpush.bf16.msra.mxu0 %v6817
    %11723 = vmatpush.bf16.msra.mxu0 %v6809
    %11724 = vmatpush.bf16.msra.mxu0 %v6801
    %11725 = vmatpush.bf16.msra.mxu0 %v6793
    %11726 = vmatpush.bf16.msra.mxu0 %v6785
    %11727 = vmatpush.bf16.msra.mxu0 %v6777
    %11728 = vmatmul.bf16.gmra.mxu0 %v1736
    %v11729 = vpop.f32.mrf.mxu0
    %v11730 = vadd.f32 %v11717, %v11729
    %v11731 = vpop.f32.mrf.mxu0
    %11732 = vdwg.mxu0
    %11733 = vmatpush.bf16.msra.mxu0 %v6897
    %11734 = vmatpush.bf16.msra.mxu0 %v6889
    %11735 = vmatpush.bf16.msra.mxu0 %v6881
    %11736 = vmatpush.bf16.msra.mxu0 %v6873
    %11737 = vmatpush.bf16.msra.mxu0 %v6865
    %11738 = vmatpush.bf16.msra.mxu0 %v6857
    %11739 = vmatpush.bf16.msra.mxu0 %v6849
    %11740 = vmatpush.bf16.msra.mxu0 %v6841
    %11741 = vmatmul.bf16.gmra.mxu0 %v1737
    %v11742 = vpop.f32.mrf.mxu0
    %v11743 = vadd.f32 %v11730, %v11742
    %v11744 = vpop.f32.mrf.mxu0
    %11745 = vdwg.mxu0
    %11746 = vmatpush.bf16.msra.mxu0 %v6961
    %11747 = vmatpush.bf16.msra.mxu0 %v6953
    %11748 = vmatpush.bf16.msra.mxu0 %v6945
    %11749 = vmatpush.bf16.msra.mxu0 %v6937
    %11750 = vmatpush.bf16.msra.mxu0 %v6929
    %11751 = vmatpush.bf16.msra.mxu0 %v6921
    %11752 = vmatpush.bf16.msra.mxu0 %v6913
    %11753 = vmatpush.bf16.msra.mxu0 %v6905
    %11754 = vmatmul.bf16.gmra.mxu0 %v1738
    %v11755 = vpop.f32.mrf.mxu0
    %v11756 = vadd.f32 %v11743, %v11755
    %v11757 = vpop.f32.mrf.mxu0
    %11758 = vdwg.mxu0
    %11759 = vmatpush.bf16.msra.mxu0 %v7025
    %11760 = vmatpush.bf16.msra.mxu0 %v7017
    %11761 = vmatpush.bf16.msra.mxu0 %v7009
    %11762 = vmatpush.bf16.msra.mxu0 %v7001
    %11763 = vmatpush.bf16.msra.mxu0 %v6993
    %11764 = vmatpush.bf16.msra.mxu0 %v6985
    %11765 = vmatpush.bf16.msra.mxu0 %v6977
    %11766 = vmatpush.bf16.msra.mxu0 %v6969
    %11767 = vmatmul.bf16.gmra.mxu0 %v1739
    %v11768 = vpop.f32.mrf.mxu0
    %v11769 = vadd.f32 %v11756, %v11768
    %v11770 = vpop.f32.mrf.mxu0
    %11771 = vdwg.mxu0
    %11772 = vmatpush.bf16.msra.mxu0 %v7089
    %11773 = vmatpush.bf16.msra.mxu0 %v7081
    %11774 = vmatpush.bf16.msra.mxu0 %v7073
    %11775 = vmatpush.bf16.msra.mxu0 %v7065
    %11776 = vmatpush.bf16.msra.mxu0 %v7057
    %11777 = vmatpush.bf16.msra.mxu0 %v7049
    %11778 = vmatpush.bf16.msra.mxu0 %v7041
    %11779 = vmatpush.bf16.msra.mxu0 %v7033
    %11780 = vmatmul.bf16.gmra.mxu0 %v1740
    %v11781 = vpop.f32.mrf.mxu0
    %v11782 = vadd.f32 %v11769, %v11781
    %v11783 = vpop.f32.mrf.mxu0
    %11784 = vdwg.mxu0
    %11785 = vmatpush.bf16.msra.mxu0 %v7153
    %11786 = vmatpush.bf16.msra.mxu0 %v7145
    %11787 = vmatpush.bf16.msra.mxu0 %v7137
    %11788 = vmatpush.bf16.msra.mxu0 %v7129
    %11789 = vmatpush.bf16.msra.mxu0 %v7121
    %11790 = vmatpush.bf16.msra.mxu0 %v7113
    %11791 = vmatpush.bf16.msra.mxu0 %v7105
    %11792 = vmatpush.bf16.msra.mxu0 %v7097
    %11793 = vmatmul.bf16.gmra.mxu0 %v1741
    %v11794 = vpop.f32.mrf.mxu0
    %v11795 = vadd.f32 %v11782, %v11794
    %v11796 = vpop.f32.mrf.mxu0
    %11797 = vdwg.mxu0
    %11798 = vmatpush.bf16.msra.mxu0 %v7217
    %11799 = vmatpush.bf16.msra.mxu0 %v7209
    %11800 = vmatpush.bf16.msra.mxu0 %v7201
    %11801 = vmatpush.bf16.msra.mxu0 %v7193
    %11802 = vmatpush.bf16.msra.mxu0 %v7185
    %11803 = vmatpush.bf16.msra.mxu0 %v7177
    %11804 = vmatpush.bf16.msra.mxu0 %v7169
    %11805 = vmatpush.bf16.msra.mxu0 %v7161
    %11806 = vmatmul.bf16.gmra.mxu0 %v1742
    %v11807 = vpop.f32.mrf.mxu0
    %v11808 = vadd.f32 %v11795, %v11807
    %v11809 = vpop.f32.mrf.mxu0
    %11810 = vdwg.mxu0
    %11811 = vmatpush.bf16.msra.mxu0 %v7281
    %11812 = vmatpush.bf16.msra.mxu0 %v7273
    %11813 = vmatpush.bf16.msra.mxu0 %v7265
    %11814 = vmatpush.bf16.msra.mxu0 %v7257
    %11815 = vmatpush.bf16.msra.mxu0 %v7249
    %11816 = vmatpush.bf16.msra.mxu0 %v7241
    %11817 = vmatpush.bf16.msra.mxu0 %v7233
    %11818 = vmatpush.bf16.msra.mxu0 %v7225
    %11819 = vmatmul.bf16.gmra.mxu0 %v1743
    %v11820 = vpop.f32.mrf.mxu0
    %v11821 = vadd.f32 %v11808, %v11820
    %v11822 = vpop.f32.mrf.mxu0
    %11823 = vdwg.mxu0
    %11824 = vmatpush.bf16.msra.mxu0 %v7345
    %11825 = vmatpush.bf16.msra.mxu0 %v7337
    %11826 = vmatpush.bf16.msra.mxu0 %v7329
    %11827 = vmatpush.bf16.msra.mxu0 %v7321
    %11828 = vmatpush.bf16.msra.mxu0 %v7313
    %11829 = vmatpush.bf16.msra.mxu0 %v7305
    %11830 = vmatpush.bf16.msra.mxu0 %v7297
    %11831 = vmatpush.bf16.msra.mxu0 %v7289
    %11832 = vmatmul.bf16.gmra.mxu0 %v1744
    %v11833 = vpop.f32.mrf.mxu0
    %v11834 = vadd.f32 %v11821, %v11833
    %v11835 = vpop.f32.mrf.mxu0
    %11836 = vdwg.mxu0
    %11837 = vmatpush.bf16.msra.mxu0 %v7409
    %11838 = vmatpush.bf16.msra.mxu0 %v7401
    %11839 = vmatpush.bf16.msra.mxu0 %v7393
    %11840 = vmatpush.bf16.msra.mxu0 %v7385
    %11841 = vmatpush.bf16.msra.mxu0 %v7377
    %11842 = vmatpush.bf16.msra.mxu0 %v7369
    %11843 = vmatpush.bf16.msra.mxu0 %v7361
    %11844 = vmatpush.bf16.msra.mxu0 %v7353
    %11845 = vmatmul.bf16.gmra.mxu0 %v1745
    %v11846 = vpop.f32.mrf.mxu0
    %v11847 = vadd.f32 %v11834, %v11846
    %v11848 = vpop.f32.mrf.mxu0
    %11849 = vdwg.mxu0
    %11850 = vmatpush.bf16.msra.mxu0 %v7473
    %11851 = vmatpush.bf16.msra.mxu0 %v7465
    %11852 = vmatpush.bf16.msra.mxu0 %v7457
    %11853 = vmatpush.bf16.msra.mxu0 %v7449
    %11854 = vmatpush.bf16.msra.mxu0 %v7441
    %11855 = vmatpush.bf16.msra.mxu0 %v7433
    %11856 = vmatpush.bf16.msra.mxu0 %v7425
    %11857 = vmatpush.bf16.msra.mxu0 %v7417
    %11858 = vmatmul.bf16.gmra.mxu0 %v1746
    %v11859 = vpop.f32.mrf.mxu0
    %v11860 = vadd.f32 %v11847, %v11859
    %v11861 = vpop.f32.mrf.mxu0
    %11862 = vdwg.mxu0
    %11863 = vmatpush.bf16.msra.mxu0 %v7537
    %11864 = vmatpush.bf16.msra.mxu0 %v7529
    %11865 = vmatpush.bf16.msra.mxu0 %v7521
    %11866 = vmatpush.bf16.msra.mxu0 %v7513
    %11867 = vmatpush.bf16.msra.mxu0 %v7505
    %11868 = vmatpush.bf16.msra.mxu0 %v7497
    %11869 = vmatpush.bf16.msra.mxu0 %v7489
    %11870 = vmatpush.bf16.msra.mxu0 %v7481
    %11871 = vmatmul.bf16.gmra.mxu0 %v1747
    %v11872 = vpop.f32.mrf.mxu0
    %v11873 = vadd.f32 %v11860, %v11872
    %v11874 = vpop.f32.mrf.mxu0
    %11875 = vdwg.mxu0
    %11876 = vmatpush.bf16.msra.mxu0 %v7601
    %11877 = vmatpush.bf16.msra.mxu0 %v7593
    %11878 = vmatpush.bf16.msra.mxu0 %v7585
    %11879 = vmatpush.bf16.msra.mxu0 %v7577
    %11880 = vmatpush.bf16.msra.mxu0 %v7569
    %11881 = vmatpush.bf16.msra.mxu0 %v7561
    %11882 = vmatpush.bf16.msra.mxu0 %v7553
    %11883 = vmatpush.bf16.msra.mxu0 %v7545
    %11884 = vmatmul.bf16.gmra.mxu0 %v1748
    %v11885 = vpop.f32.mrf.mxu0
    %v11886 = vadd.f32 %v11873, %v11885
    %v11887 = vpop.f32.mrf.mxu0
    %11888 = vdwg.mxu0
    %11889 = vmatpush.bf16.msra.mxu0 %v7665
    %11890 = vmatpush.bf16.msra.mxu0 %v7657
    %11891 = vmatpush.bf16.msra.mxu0 %v7649
    %11892 = vmatpush.bf16.msra.mxu0 %v7641
    %11893 = vmatpush.bf16.msra.mxu0 %v7633
    %11894 = vmatpush.bf16.msra.mxu0 %v7625
    %11895 = vmatpush.bf16.msra.mxu0 %v7617
    %11896 = vmatpush.bf16.msra.mxu0 %v7609
    %11897 = vmatmul.bf16.gmra.mxu0 %v1749
    %v11898 = vpop.f32.mrf.mxu0
    %v11899 = vadd.f32 %v11886, %v11898
    %v11900 = vpop.f32.mrf.mxu0
    %11901 = vdwg.mxu0
    %11902 = vmatpush.bf16.msra.mxu0 %v7729
    %11903 = vmatpush.bf16.msra.mxu0 %v7721
    %11904 = vmatpush.bf16.msra.mxu0 %v7713
    %11905 = vmatpush.bf16.msra.mxu0 %v7705
    %11906 = vmatpush.bf16.msra.mxu0 %v7697
    %11907 = vmatpush.bf16.msra.mxu0 %v7689
    %11908 = vmatpush.bf16.msra.mxu0 %v7681
    %11909 = vmatpush.bf16.msra.mxu0 %v7673
    %11910 = vmatmul.bf16.gmra.mxu0 %v1750
    %v11911 = vpop.f32.mrf.mxu0
    %v11912 = vadd.f32 %v11899, %v11911
    %v11913 = vpop.f32.mrf.mxu0
    %11914 = vdwg.mxu0
    %11915 = vmatpush.bf16.msra.mxu0 %v7793
    %11916 = vmatpush.bf16.msra.mxu0 %v7785
    %11917 = vmatpush.bf16.msra.mxu0 %v7777
    %11918 = vmatpush.bf16.msra.mxu0 %v7769
    %11919 = vmatpush.bf16.msra.mxu0 %v7761
    %11920 = vmatpush.bf16.msra.mxu0 %v7753
    %11921 = vmatpush.bf16.msra.mxu0 %v7745
    %11922 = vmatpush.bf16.msra.mxu0 %v7737
    %11923 = vmatmul.bf16.gmra.mxu0 %v1751
    %v11924 = vpop.f32.mrf.mxu0
    %v11925 = vadd.f32 %v11912, %v11924
    %v11926 = vpop.f32.mrf.mxu0
    %11927 = vdwg.mxu0
    %11928 = vmatpush.bf16.msra.mxu0 %v7857
    %11929 = vmatpush.bf16.msra.mxu0 %v7849
    %11930 = vmatpush.bf16.msra.mxu0 %v7841
    %11931 = vmatpush.bf16.msra.mxu0 %v7833
    %11932 = vmatpush.bf16.msra.mxu0 %v7825
    %11933 = vmatpush.bf16.msra.mxu0 %v7817
    %11934 = vmatpush.bf16.msra.mxu0 %v7809
    %11935 = vmatpush.bf16.msra.mxu0 %v7801
    %11936 = vmatmul.bf16.gmra.mxu0 %v1752
    %v11937 = vpop.f32.mrf.mxu0
    %v11938 = vadd.f32 %v11925, %v11937
    %v11939 = vpop.f32.mrf.mxu0
    %11940 = vdwg.mxu0
    %11941 = vmatpush.bf16.msra.mxu0 %v7921
    %11942 = vmatpush.bf16.msra.mxu0 %v7913
    %11943 = vmatpush.bf16.msra.mxu0 %v7905
    %11944 = vmatpush.bf16.msra.mxu0 %v7897
    %11945 = vmatpush.bf16.msra.mxu0 %v7889
    %11946 = vmatpush.bf16.msra.mxu0 %v7881
    %11947 = vmatpush.bf16.msra.mxu0 %v7873
    %11948 = vmatpush.bf16.msra.mxu0 %v7865
    %11949 = vmatmul.bf16.gmra.mxu0 %v1753
    %v11950 = vpop.f32.mrf.mxu0
    %v11951 = vadd.f32 %v11938, %v11950
    %v11952 = vpop.f32.mrf.mxu0
    %11953 = vdwg.mxu0
    %vm11954 = vcmp.gt.f32.partialorder %v9767, 0.0
    %vm11955 = vcmp.gt.f32.partialorder %v10079, 0.0
    %vm11956 = vcmp.gt.f32.partialorder %v10391, 0.0
    %vm11957 = vcmp.gt.f32.partialorder %v10703, 0.0
    %vm11958 = vcmp.gt.f32.partialorder %v11015, 0.0
    %vm11959 = vcmp.gt.f32.partialorder %v11327, 0.0
    %vm11960 = vcmp.gt.f32.partialorder %v11639, 0.0
    %vm11961 = vcmp.gt.f32.partialorder %v11951, 0.0
    %v11962 = vmul.f32 %v9767, 0.01
    %v11963 = vmul.f32 %v10079, 0.01
    %v11964 = vmul.f32 %v10391, 0.01
    %v11965 = vmul.f32 %v10703, 0.01
    %v11966 = vmul.f32 %v11015, 0.01
    %v11967 = vmul.f32 %v11327, 0.01
    %v11968 = vmul.f32 %v11639, 0.01
    %v11969 = vmul.f32 %v11951, 0.01
    %v11970 = vsel %vm11954, %v9767, %v11962
    %v11971 = vsel %vm11955, %v10079, %v11963
    %v11972 = vsel %vm11956, %v10391, %v11964
    %v11973 = vsel %vm11957, %v10703, %v11965
    %v11974 = vsel %vm11958, %v11015, %v11966
    %v11975 = vsel %vm11959, %v11327, %v11967
    %v11976 = vsel %vm11960, %v11639, %v11968
    %v11977 = vsel %vm11961, %v11951, %v11969
    %v11978 = vpack.c.bf16 %v11970, %v11970
    %v11979 = vpack.c.bf16 %v11971, %v11971
    %v11980 = vpack.c.bf16 %v11972, %v11972
    %v11981 = vpack.c.bf16 %v11973, %v11973
    %v11982 = vpack.c.bf16 %v11974, %v11974
    %v11983 = vpack.c.bf16 %v11975, %v11975
    %v11984 = vpack.c.bf16 %v11976, %v11976
    %v11985 = vpack.c.bf16 %v11977, %v11977
    %v11986 = vld [vmem:[#allocation8] sm:$0xff]
    %v11987 = vld [vmem:[#allocation8 + $0x8] sm:$0xff]
    %v11988 = vld [vmem:[#allocation8 + $0x10] sm:$0xff]
    %v11989 = vld [vmem:[#allocation8 + $0x18] sm:$0xff]
    %v11990 = vld [vmem:[#allocation8 + $0x20] sm:$0xff]
    %v11991 = vld [vmem:[#allocation8 + $0x28] sm:$0xff]
    %v11992 = vld [vmem:[#allocation8 + $0x30] sm:$0xff]
    %v11993 = vld [vmem:[#allocation8 + $0x38] sm:$0xff]
    %v11994 = vld [vmem:[#allocation8 + $0x40] sm:$0xff]
    %v11995 = vld [vmem:[#allocation8 + $0x48] sm:$0xff]
    %v11996 = vld [vmem:[#allocation8 + $0x50] sm:$0xff]
    %v11997 = vld [vmem:[#allocation8 + $0x58] sm:$0xff]
    %v11998 = vld [vmem:[#allocation8 + $0x60] sm:$0xff]
    %v11999 = vld [vmem:[#allocation8 + $0x68] sm:$0xff]
    %v12000 = vld [vmem:[#allocation8 + $0x70] sm:$0xff]
    %v12001 = vld [vmem:[#allocation8 + $0x78] sm:$0xff]
    %v12002 = vld [vmem:[#allocation8 + $0x80] sm:$0xff]
    %v12003 = vld [vmem:[#allocation8 + $0x88] sm:$0xff]
    %v12004 = vld [vmem:[#allocation8 + $0x90] sm:$0xff]
    %v12005 = vld [vmem:[#allocation8 + $0x98] sm:$0xff]
    %v12006 = vld [vmem:[#allocation8 + $0xa0] sm:$0xff]
    %v12007 = vld [vmem:[#allocation8 + $0xa8] sm:$0xff]
    %v12008 = vld [vmem:[#allocation8 + $0xb0] sm:$0xff]
    %v12009 = vld [vmem:[#allocation8 + $0xb8] sm:$0xff]
    %v12010 = vld [vmem:[#allocation8 + $0xc0] sm:$0xff]
    %v12011 = vld [vmem:[#allocation8 + $0xc8] sm:$0xff]
    %v12012 = vld [vmem:[#allocation8 + $0xd0] sm:$0xff]
    %v12013 = vld [vmem:[#allocation8 + $0xd8] sm:$0xff]
    %v12014 = vld [vmem:[#allocation8 + $0xe0] sm:$0xff]
    %v12015 = vld [vmem:[#allocation8 + $0xe8] sm:$0xff]
    %v12016 = vld [vmem:[#allocation8 + $0xf0] sm:$0xff]
    %v12017 = vld [vmem:[#allocation8 + $0xf8] sm:$0xff]
    %v12018 = vld [vmem:[#allocation8 + $0x100] sm:$0xff]
    %v12019 = vld [vmem:[#allocation8 + $0x108] sm:$0xff]
    %v12020 = vld [vmem:[#allocation8 + $0x110] sm:$0xff]
    %v12021 = vld [vmem:[#allocation8 + $0x118] sm:$0xff]
    %v12022 = vld [vmem:[#allocation8 + $0x120] sm:$0xff]
    %v12023 = vld [vmem:[#allocation8 + $0x128] sm:$0xff]
    %v12024 = vld [vmem:[#allocation8 + $0x130] sm:$0xff]
    %v12025 = vld [vmem:[#allocation8 + $0x138] sm:$0xff]
    %v12026 = vld [vmem:[#allocation8 + $0x140] sm:$0xff]
    %v12027 = vld [vmem:[#allocation8 + $0x148] sm:$0xff]
    %v12028 = vld [vmem:[#allocation8 + $0x150] sm:$0xff]
    %v12029 = vld [vmem:[#allocation8 + $0x158] sm:$0xff]
    %v12030 = vld [vmem:[#allocation8 + $0x160] sm:$0xff]
    %v12031 = vld [vmem:[#allocation8 + $0x168] sm:$0xff]
    %v12032 = vld [vmem:[#allocation8 + $0x170] sm:$0xff]
    %v12033 = vld [vmem:[#allocation8 + $0x178] sm:$0xff]
    %v12034 = vld [vmem:[#allocation8 + $0x180] sm:$0xff]
    %v12035 = vld [vmem:[#allocation8 + $0x188] sm:$0xff]
    %v12036 = vld [vmem:[#allocation8 + $0x190] sm:$0xff]
    %v12037 = vld [vmem:[#allocation8 + $0x198] sm:$0xff]
    %v12038 = vld [vmem:[#allocation8 + $0x1a0] sm:$0xff]
    %v12039 = vld [vmem:[#allocation8 + $0x1a8] sm:$0xff]
    %v12040 = vld [vmem:[#allocation8 + $0x1b0] sm:$0xff]
    %v12041 = vld [vmem:[#allocation8 + $0x1b8] sm:$0xff]
    %v12042 = vld [vmem:[#allocation8 + $0x1c0] sm:$0xff]
    %v12043 = vld [vmem:[#allocation8 + $0x1c8] sm:$0xff]
    %v12044 = vld [vmem:[#allocation8 + $0x1d0] sm:$0xff]
    %v12045 = vld [vmem:[#allocation8 + $0x1d8] sm:$0xff]
    %v12046 = vld [vmem:[#allocation8 + $0x1e0] sm:$0xff]
    %v12047 = vld [vmem:[#allocation8 + $0x1e8] sm:$0xff]
    %v12048 = vld [vmem:[#allocation8 + $0x1f0] sm:$0xff]
    %v12049 = vld [vmem:[#allocation8 + $0x1f8] sm:$0xff]
    %v12050 = vld [vmem:[#allocation8 + $0x200] sm:$0xff]
    %v12051 = vld [vmem:[#allocation8 + $0x208] sm:$0xff]
    %v12052 = vld [vmem:[#allocation8 + $0x210] sm:$0xff]
    %v12053 = vld [vmem:[#allocation8 + $0x218] sm:$0xff]
    %v12054 = vld [vmem:[#allocation8 + $0x220] sm:$0xff]
    %v12055 = vld [vmem:[#allocation8 + $0x228] sm:$0xff]
    %v12056 = vld [vmem:[#allocation8 + $0x230] sm:$0xff]
    %v12057 = vld [vmem:[#allocation8 + $0x238] sm:$0xff]
    %v12058 = vld [vmem:[#allocation8 + $0x240] sm:$0xff]
    %v12059 = vld [vmem:[#allocation8 + $0x248] sm:$0xff]
    %v12060 = vld [vmem:[#allocation8 + $0x250] sm:$0xff]
    %v12061 = vld [vmem:[#allocation8 + $0x258] sm:$0xff]
    %v12062 = vld [vmem:[#allocation8 + $0x260] sm:$0xff]
    %v12063 = vld [vmem:[#allocation8 + $0x268] sm:$0xff]
    %v12064 = vld [vmem:[#allocation8 + $0x270] sm:$0xff]
    %v12065 = vld [vmem:[#allocation8 + $0x278] sm:$0xff]
    %v12066 = vld [vmem:[#allocation8 + $0x280] sm:$0xff]
    %v12067 = vld [vmem:[#allocation8 + $0x288] sm:$0xff]
    %v12068 = vld [vmem:[#allocation8 + $0x290] sm:$0xff]
    %v12069 = vld [vmem:[#allocation8 + $0x298] sm:$0xff]
    %v12070 = vld [vmem:[#allocation8 + $0x2a0] sm:$0xff]
    %v12071 = vld [vmem:[#allocation8 + $0x2a8] sm:$0xff]
    %v12072 = vld [vmem:[#allocation8 + $0x2b0] sm:$0xff]
    %v12073 = vld [vmem:[#allocation8 + $0x2b8] sm:$0xff]
    %v12074 = vld [vmem:[#allocation8 + $0x2c0] sm:$0xff]
    %v12075 = vld [vmem:[#allocation8 + $0x2c8] sm:$0xff]
    %v12076 = vld [vmem:[#allocation8 + $0x2d0] sm:$0xff]
    %v12077 = vld [vmem:[#allocation8 + $0x2d8] sm:$0xff]
    %v12078 = vld [vmem:[#allocation8 + $0x2e0] sm:$0xff]
    %v12079 = vld [vmem:[#allocation8 + $0x2e8] sm:$0xff]
    %v12080 = vld [vmem:[#allocation8 + $0x2f0] sm:$0xff]
    %v12081 = vld [vmem:[#allocation8 + $0x2f8] sm:$0xff]
    %v12082 = vld [vmem:[#allocation8 + $0x300] sm:$0xff]
    %v12083 = vld [vmem:[#allocation8 + $0x308] sm:$0xff]
    %v12084 = vld [vmem:[#allocation8 + $0x310] sm:$0xff]
    %v12085 = vld [vmem:[#allocation8 + $0x318] sm:$0xff]
    %v12086 = vld [vmem:[#allocation8 + $0x320] sm:$0xff]
    %v12087 = vld [vmem:[#allocation8 + $0x328] sm:$0xff]
    %v12088 = vld [vmem:[#allocation8 + $0x330] sm:$0xff]
    %v12089 = vld [vmem:[#allocation8 + $0x338] sm:$0xff]
    %v12090 = vld [vmem:[#allocation8 + $0x340] sm:$0xff]
    %v12091 = vld [vmem:[#allocation8 + $0x348] sm:$0xff]
    %v12092 = vld [vmem:[#allocation8 + $0x350] sm:$0xff]
    %v12093 = vld [vmem:[#allocation8 + $0x358] sm:$0xff]
    %v12094 = vld [vmem:[#allocation8 + $0x360] sm:$0xff]
    %v12095 = vld [vmem:[#allocation8 + $0x368] sm:$0xff]
    %v12096 = vld [vmem:[#allocation8 + $0x370] sm:$0xff]
    %v12097 = vld [vmem:[#allocation8 + $0x378] sm:$0xff]
    %v12098 = vld [vmem:[#allocation8 + $0x380] sm:$0xff]
    %v12099 = vld [vmem:[#allocation8 + $0x388] sm:$0xff]
    %v12100 = vld [vmem:[#allocation8 + $0x390] sm:$0xff]
    %v12101 = vld [vmem:[#allocation8 + $0x398] sm:$0xff]
    %v12102 = vld [vmem:[#allocation8 + $0x3a0] sm:$0xff]
    %v12103 = vld [vmem:[#allocation8 + $0x3a8] sm:$0xff]
    %v12104 = vld [vmem:[#allocation8 + $0x3b0] sm:$0xff]
    %v12105 = vld [vmem:[#allocation8 + $0x3b8] sm:$0xff]
    %v12106 = vld [vmem:[#allocation8 + $0x3c0] sm:$0xff]
    %v12107 = vld [vmem:[#allocation8 + $0x3c8] sm:$0xff]
    %v12108 = vld [vmem:[#allocation8 + $0x3d0] sm:$0xff]
    %v12109 = vld [vmem:[#allocation8 + $0x3d8] sm:$0xff]
    %v12110 = vld [vmem:[#allocation8 + $0x3e0] sm:$0xff]
    %v12111 = vld [vmem:[#allocation8 + $0x3e8] sm:$0xff]
    %v12112 = vld [vmem:[#allocation8 + $0x3f0] sm:$0xff]
    %v12113 = vld [vmem:[#allocation8 + $0x3f8] sm:$0xff]
    %v12114 = vld [vmem:[#allocation8 + $0x400] sm:$0xff]
    %v12115 = vld [vmem:[#allocation8 + $0x408] sm:$0xff]
    %v12116 = vld [vmem:[#allocation8 + $0x410] sm:$0xff]
    %v12117 = vld [vmem:[#allocation8 + $0x418] sm:$0xff]
    %v12118 = vld [vmem:[#allocation8 + $0x420] sm:$0xff]
    %v12119 = vld [vmem:[#allocation8 + $0x428] sm:$0xff]
    %v12120 = vld [vmem:[#allocation8 + $0x430] sm:$0xff]
    %v12121 = vld [vmem:[#allocation8 + $0x438] sm:$0xff]
    %v12122 = vld [vmem:[#allocation8 + $0x440] sm:$0xff]
    %v12123 = vld [vmem:[#allocation8 + $0x448] sm:$0xff]
    %v12124 = vld [vmem:[#allocation8 + $0x450] sm:$0xff]
    %v12125 = vld [vmem:[#allocation8 + $0x458] sm:$0xff]
    %v12126 = vld [vmem:[#allocation8 + $0x460] sm:$0xff]
    %v12127 = vld [vmem:[#allocation8 + $0x468] sm:$0xff]
    %v12128 = vld [vmem:[#allocation8 + $0x470] sm:$0xff]
    %v12129 = vld [vmem:[#allocation8 + $0x478] sm:$0xff]
    %v12130 = vld [vmem:[#allocation8 + $0x480] sm:$0xff]
    %v12131 = vld [vmem:[#allocation8 + $0x488] sm:$0xff]
    %v12132 = vld [vmem:[#allocation8 + $0x490] sm:$0xff]
    %v12133 = vld [vmem:[#allocation8 + $0x498] sm:$0xff]
    %v12134 = vld [vmem:[#allocation8 + $0x4a0] sm:$0xff]
    %v12135 = vld [vmem:[#allocation8 + $0x4a8] sm:$0xff]
    %v12136 = vld [vmem:[#allocation8 + $0x4b0] sm:$0xff]
    %v12137 = vld [vmem:[#allocation8 + $0x4b8] sm:$0xff]
    %v12138 = vld [vmem:[#allocation8 + $0x4c0] sm:$0xff]
    %v12139 = vld [vmem:[#allocation8 + $0x4c8] sm:$0xff]
    %v12140 = vld [vmem:[#allocation8 + $0x4d0] sm:$0xff]
    %v12141 = vld [vmem:[#allocation8 + $0x4d8] sm:$0xff]
    %v12142 = vld [vmem:[#allocation8 + $0x4e0] sm:$0xff]
    %v12143 = vld [vmem:[#allocation8 + $0x4e8] sm:$0xff]
    %v12144 = vld [vmem:[#allocation8 + $0x4f0] sm:$0xff]
    %v12145 = vld [vmem:[#allocation8 + $0x4f8] sm:$0xff]
    %v12146 = vld [vmem:[#allocation8 + $0x500] sm:$0xff]
    %v12147 = vld [vmem:[#allocation8 + $0x508] sm:$0xff]
    %v12148 = vld [vmem:[#allocation8 + $0x510] sm:$0xff]
    %v12149 = vld [vmem:[#allocation8 + $0x518] sm:$0xff]
    %v12150 = vld [vmem:[#allocation8 + $0x520] sm:$0xff]
    %v12151 = vld [vmem:[#allocation8 + $0x528] sm:$0xff]
    %v12152 = vld [vmem:[#allocation8 + $0x530] sm:$0xff]
    %v12153 = vld [vmem:[#allocation8 + $0x538] sm:$0xff]
    %v12154 = vld [vmem:[#allocation8 + $0x540] sm:$0xff]
    %v12155 = vld [vmem:[#allocation8 + $0x548] sm:$0xff]
    %v12156 = vld [vmem:[#allocation8 + $0x550] sm:$0xff]
    %v12157 = vld [vmem:[#allocation8 + $0x558] sm:$0xff]
    %v12158 = vld [vmem:[#allocation8 + $0x560] sm:$0xff]
    %v12159 = vld [vmem:[#allocation8 + $0x568] sm:$0xff]
    %v12160 = vld [vmem:[#allocation8 + $0x570] sm:$0xff]
    %v12161 = vld [vmem:[#allocation8 + $0x578] sm:$0xff]
    %v12162 = vld [vmem:[#allocation8 + $0x580] sm:$0xff]
    %v12163 = vld [vmem:[#allocation8 + $0x588] sm:$0xff]
    %v12164 = vld [vmem:[#allocation8 + $0x590] sm:$0xff]
    %v12165 = vld [vmem:[#allocation8 + $0x598] sm:$0xff]
    %v12166 = vld [vmem:[#allocation8 + $0x5a0] sm:$0xff]
    %v12167 = vld [vmem:[#allocation8 + $0x5a8] sm:$0xff]
    %v12168 = vld [vmem:[#allocation8 + $0x5b0] sm:$0xff]
    %v12169 = vld [vmem:[#allocation8 + $0x5b8] sm:$0xff]
    %v12170 = vld [vmem:[#allocation8 + $0x5c0] sm:$0xff]
    %v12171 = vld [vmem:[#allocation8 + $0x5c8] sm:$0xff]
    %v12172 = vld [vmem:[#allocation8 + $0x5d0] sm:$0xff]
    %v12173 = vld [vmem:[#allocation8 + $0x5d8] sm:$0xff]
    %v12174 = vld [vmem:[#allocation8 + $0x5e0] sm:$0xff]
    %v12175 = vld [vmem:[#allocation8 + $0x5e8] sm:$0xff]
    %v12176 = vld [vmem:[#allocation8 + $0x5f0] sm:$0xff]
    %v12177 = vld [vmem:[#allocation8 + $0x5f8] sm:$0xff]
    %v12178 = vld [vmem:[#allocation8 + $0x600] sm:$0xff]
    %v12179 = vld [vmem:[#allocation8 + $0x608] sm:$0xff]
    %v12180 = vld [vmem:[#allocation8 + $0x610] sm:$0xff]
    %v12181 = vld [vmem:[#allocation8 + $0x618] sm:$0xff]
    %v12182 = vld [vmem:[#allocation8 + $0x620] sm:$0xff]
    %v12183 = vld [vmem:[#allocation8 + $0x628] sm:$0xff]
    %v12184 = vld [vmem:[#allocation8 + $0x630] sm:$0xff]
    %v12185 = vld [vmem:[#allocation8 + $0x638] sm:$0xff]
    %v12186 = vld [vmem:[#allocation8 + $0x640] sm:$0xff]
    %v12187 = vld [vmem:[#allocation8 + $0x648] sm:$0xff]
    %v12188 = vld [vmem:[#allocation8 + $0x650] sm:$0xff]
    %v12189 = vld [vmem:[#allocation8 + $0x658] sm:$0xff]
    %v12190 = vld [vmem:[#allocation8 + $0x660] sm:$0xff]
    %v12191 = vld [vmem:[#allocation8 + $0x668] sm:$0xff]
    %v12192 = vld [vmem:[#allocation8 + $0x670] sm:$0xff]
    %v12193 = vld [vmem:[#allocation8 + $0x678] sm:$0xff]
    %v12194 = vld [vmem:[#allocation8 + $0x680] sm:$0xff]
    %v12195 = vld [vmem:[#allocation8 + $0x688] sm:$0xff]
    %v12196 = vld [vmem:[#allocation8 + $0x690] sm:$0xff]
    %v12197 = vld [vmem:[#allocation8 + $0x698] sm:$0xff]
    %v12198 = vld [vmem:[#allocation8 + $0x6a0] sm:$0xff]
    %v12199 = vld [vmem:[#allocation8 + $0x6a8] sm:$0xff]
    %v12200 = vld [vmem:[#allocation8 + $0x6b0] sm:$0xff]
    %v12201 = vld [vmem:[#allocation8 + $0x6b8] sm:$0xff]
    %v12202 = vld [vmem:[#allocation8 + $0x6c0] sm:$0xff]
    %v12203 = vld [vmem:[#allocation8 + $0x6c8] sm:$0xff]
    %v12204 = vld [vmem:[#allocation8 + $0x6d0] sm:$0xff]
    %v12205 = vld [vmem:[#allocation8 + $0x6d8] sm:$0xff]
    %v12206 = vld [vmem:[#allocation8 + $0x6e0] sm:$0xff]
    %v12207 = vld [vmem:[#allocation8 + $0x6e8] sm:$0xff]
    %v12208 = vld [vmem:[#allocation8 + $0x6f0] sm:$0xff]
    %v12209 = vld [vmem:[#allocation8 + $0x6f8] sm:$0xff]
    %v12210 = vld [vmem:[#allocation8 + $0x700] sm:$0xff]
    %v12211 = vld [vmem:[#allocation8 + $0x708] sm:$0xff]
    %v12212 = vld [vmem:[#allocation8 + $0x710] sm:$0xff]
    %v12213 = vld [vmem:[#allocation8 + $0x718] sm:$0xff]
    %v12214 = vld [vmem:[#allocation8 + $0x720] sm:$0xff]
    %v12215 = vld [vmem:[#allocation8 + $0x728] sm:$0xff]
    %v12216 = vld [vmem:[#allocation8 + $0x730] sm:$0xff]
    %v12217 = vld [vmem:[#allocation8 + $0x738] sm:$0xff]
    %v12218 = vld [vmem:[#allocation8 + $0x740] sm:$0xff]
    %v12219 = vld [vmem:[#allocation8 + $0x748] sm:$0xff]
    %v12220 = vld [vmem:[#allocation8 + $0x750] sm:$0xff]
    %v12221 = vld [vmem:[#allocation8 + $0x758] sm:$0xff]
    %v12222 = vld [vmem:[#allocation8 + $0x760] sm:$0xff]
    %v12223 = vld [vmem:[#allocation8 + $0x768] sm:$0xff]
    %v12224 = vld [vmem:[#allocation8 + $0x770] sm:$0xff]
    %v12225 = vld [vmem:[#allocation8 + $0x778] sm:$0xff]
    %v12226 = vld [vmem:[#allocation8 + $0x780] sm:$0xff]
    %v12227 = vld [vmem:[#allocation8 + $0x788] sm:$0xff]
    %v12228 = vld [vmem:[#allocation8 + $0x790] sm:$0xff]
    %v12229 = vld [vmem:[#allocation8 + $0x798] sm:$0xff]
    %v12230 = vld [vmem:[#allocation8 + $0x7a0] sm:$0xff]
    %v12231 = vld [vmem:[#allocation8 + $0x7a8] sm:$0xff]
    %v12232 = vld [vmem:[#allocation8 + $0x7b0] sm:$0xff]
    %v12233 = vld [vmem:[#allocation8 + $0x7b8] sm:$0xff]
    %v12234 = vld [vmem:[#allocation8 + $0x7c0] sm:$0xff]
    %v12235 = vld [vmem:[#allocation8 + $0x7c8] sm:$0xff]
    %v12236 = vld [vmem:[#allocation8 + $0x7d0] sm:$0xff]
    %v12237 = vld [vmem:[#allocation8 + $0x7d8] sm:$0xff]
    %v12238 = vld [vmem:[#allocation8 + $0x7e0] sm:$0xff]
    %v12239 = vld [vmem:[#allocation8 + $0x7e8] sm:$0xff]
    %v12240 = vld [vmem:[#allocation8 + $0x7f0] sm:$0xff]
    %v12241 = vld [vmem:[#allocation8 + $0x7f8] sm:$0xff]
    %v12242 = vld [vmem:[#allocation10] sm:$0xf]
    %v12244 = vperm.slane %v12242, 0
    %v12245 = vperm.slane %v12242, 1
    %v12246 = vperm.slane %v12242, 2
    %v12247 = vperm.slane %v12242, 3
    %v12508 = vunpack.c.l.b16 %v11986
    %v12509 = vunpack.c.h.b16 %v11986
    %v12510 = vunpack.c.l.b16 %v11987
    %v12511 = vunpack.c.h.b16 %v11987
    %v12512 = vunpack.c.l.b16 %v11988
    %v12513 = vunpack.c.h.b16 %v11988
    %v12514 = vunpack.c.l.b16 %v11989
    %v12515 = vunpack.c.h.b16 %v11989
    %v12516 = vunpack.c.l.b16 %v11990
    %v12517 = vunpack.c.h.b16 %v11990
    %v12518 = vunpack.c.l.b16 %v11991
    %v12519 = vunpack.c.h.b16 %v11991
    %v12520 = vunpack.c.l.b16 %v11992
    %v12521 = vunpack.c.h.b16 %v11992
    %v12522 = vunpack.c.l.b16 %v11993
    %v12523 = vunpack.c.h.b16 %v11993
    %v12524 = vunpack.c.l.b16 %v11994
    %v12525 = vunpack.c.h.b16 %v11994
    %v12526 = vunpack.c.l.b16 %v11995
    %v12527 = vunpack.c.h.b16 %v11995
    %v12528 = vunpack.c.l.b16 %v11996
    %v12529 = vunpack.c.h.b16 %v11996
    %v12530 = vunpack.c.l.b16 %v11997
    %v12531 = vunpack.c.h.b16 %v11997
    %v12532 = vunpack.c.l.b16 %v11998
    %v12533 = vunpack.c.h.b16 %v11998
    %v12534 = vunpack.c.l.b16 %v11999
    %v12535 = vunpack.c.h.b16 %v11999
    %v12536 = vunpack.c.l.b16 %v12000
    %v12537 = vunpack.c.h.b16 %v12000
    %v12538 = vunpack.c.l.b16 %v12001
    %v12539 = vunpack.c.h.b16 %v12001
    %v12540 = vunpack.c.l.b16 %v12002
    %v12541 = vunpack.c.h.b16 %v12002
    %v12542 = vunpack.c.l.b16 %v12003
    %v12543 = vunpack.c.h.b16 %v12003
    %v12544 = vunpack.c.l.b16 %v12004
    %v12545 = vunpack.c.h.b16 %v12004
    %v12546 = vunpack.c.l.b16 %v12005
    %v12547 = vunpack.c.h.b16 %v12005
    %v12548 = vunpack.c.l.b16 %v12006
    %v12549 = vunpack.c.h.b16 %v12006
    %v12550 = vunpack.c.l.b16 %v12007
    %v12551 = vunpack.c.h.b16 %v12007
    %v12552 = vunpack.c.l.b16 %v12008
    %v12553 = vunpack.c.h.b16 %v12008
    %v12554 = vunpack.c.l.b16 %v12009
    %v12555 = vunpack.c.h.b16 %v12009
    %v12556 = vunpack.c.l.b16 %v12010
    %v12557 = vunpack.c.h.b16 %v12010
    %v12558 = vunpack.c.l.b16 %v12011
    %v12559 = vunpack.c.h.b16 %v12011
    %v12560 = vunpack.c.l.b16 %v12012
    %v12561 = vunpack.c.h.b16 %v12012
    %v12562 = vunpack.c.l.b16 %v12013
    %v12563 = vunpack.c.h.b16 %v12013
    %v12564 = vunpack.c.l.b16 %v12014
    %v12565 = vunpack.c.h.b16 %v12014
    %v12566 = vunpack.c.l.b16 %v12015
    %v12567 = vunpack.c.h.b16 %v12015
    %v12568 = vunpack.c.l.b16 %v12016
    %v12569 = vunpack.c.h.b16 %v12016
    %v12570 = vunpack.c.l.b16 %v12017
    %v12571 = vunpack.c.h.b16 %v12017
    %v12572 = vunpack.c.l.b16 %v12018
    %v12573 = vunpack.c.h.b16 %v12018
    %v12574 = vunpack.c.l.b16 %v12019
    %v12575 = vunpack.c.h.b16 %v12019
    %v12576 = vunpack.c.l.b16 %v12020
    %v12577 = vunpack.c.h.b16 %v12020
    %v12578 = vunpack.c.l.b16 %v12021
    %v12579 = vunpack.c.h.b16 %v12021
    %v12580 = vunpack.c.l.b16 %v12022
    %v12581 = vunpack.c.h.b16 %v12022
    %v12582 = vunpack.c.l.b16 %v12023
    %v12583 = vunpack.c.h.b16 %v12023
    %v12584 = vunpack.c.l.b16 %v12024
    %v12585 = vunpack.c.h.b16 %v12024
    %v12586 = vunpack.c.l.b16 %v12025
    %v12587 = vunpack.c.h.b16 %v12025
    %v12588 = vunpack.c.l.b16 %v12026
    %v12589 = vunpack.c.h.b16 %v12026
    %v12590 = vunpack.c.l.b16 %v12027
    %v12591 = vunpack.c.h.b16 %v12027
    %v12592 = vunpack.c.l.b16 %v12028
    %v12593 = vunpack.c.h.b16 %v12028
    %v12594 = vunpack.c.l.b16 %v12029
    %v12595 = vunpack.c.h.b16 %v12029
    %v12596 = vunpack.c.l.b16 %v12030
    %v12597 = vunpack.c.h.b16 %v12030
    %v12598 = vunpack.c.l.b16 %v12031
    %v12599 = vunpack.c.h.b16 %v12031
    %v12600 = vunpack.c.l.b16 %v12032
    %v12601 = vunpack.c.h.b16 %v12032
    %v12602 = vunpack.c.l.b16 %v12033
    %v12603 = vunpack.c.h.b16 %v12033
    %v12604 = vunpack.c.l.b16 %v12034
    %v12605 = vunpack.c.h.b16 %v12034
    %v12606 = vunpack.c.l.b16 %v12035
    %v12607 = vunpack.c.h.b16 %v12035
    %v12608 = vunpack.c.l.b16 %v12036
    %v12609 = vunpack.c.h.b16 %v12036
    %v12610 = vunpack.c.l.b16 %v12037
    %v12611 = vunpack.c.h.b16 %v12037
    %v12612 = vunpack.c.l.b16 %v12038
    %v12613 = vunpack.c.h.b16 %v12038
    %v12614 = vunpack.c.l.b16 %v12039
    %v12615 = vunpack.c.h.b16 %v12039
    %v12616 = vunpack.c.l.b16 %v12040
    %v12617 = vunpack.c.h.b16 %v12040
    %v12618 = vunpack.c.l.b16 %v12041
    %v12619 = vunpack.c.h.b16 %v12041
    %v12620 = vunpack.c.l.b16 %v12042
    %v12621 = vunpack.c.h.b16 %v12042
    %v12622 = vunpack.c.l.b16 %v12043
    %v12623 = vunpack.c.h.b16 %v12043
    %v12624 = vunpack.c.l.b16 %v12044
    %v12625 = vunpack.c.h.b16 %v12044
    %v12626 = vunpack.c.l.b16 %v12045
    %v12627 = vunpack.c.h.b16 %v12045
    %v12628 = vunpack.c.l.b16 %v12046
    %v12629 = vunpack.c.h.b16 %v12046
    %v12630 = vunpack.c.l.b16 %v12047
    %v12631 = vunpack.c.h.b16 %v12047
    %v12632 = vunpack.c.l.b16 %v12048
    %v12633 = vunpack.c.h.b16 %v12048
    %v12634 = vunpack.c.l.b16 %v12049
    %v12635 = vunpack.c.h.b16 %v12049
    %v12636 = vunpack.c.l.b16 %v12050
    %v12637 = vunpack.c.h.b16 %v12050
    %v12638 = vunpack.c.l.b16 %v12051
    %v12639 = vunpack.c.h.b16 %v12051
    %v12640 = vunpack.c.l.b16 %v12052
    %v12641 = vunpack.c.h.b16 %v12052
    %v12642 = vunpack.c.l.b16 %v12053
    %v12643 = vunpack.c.h.b16 %v12053
    %v12644 = vunpack.c.l.b16 %v12054
    %v12645 = vunpack.c.h.b16 %v12054
    %v12646 = vunpack.c.l.b16 %v12055
    %v12647 = vunpack.c.h.b16 %v12055
    %v12648 = vunpack.c.l.b16 %v12056
    %v12649 = vunpack.c.h.b16 %v12056
    %v12650 = vunpack.c.l.b16 %v12057
    %v12651 = vunpack.c.h.b16 %v12057
    %v12652 = vunpack.c.l.b16 %v12058
    %v12653 = vunpack.c.h.b16 %v12058
    %v12654 = vunpack.c.l.b16 %v12059
    %v12655 = vunpack.c.h.b16 %v12059
    %v12656 = vunpack.c.l.b16 %v12060
    %v12657 = vunpack.c.h.b16 %v12060
    %v12658 = vunpack.c.l.b16 %v12061
    %v12659 = vunpack.c.h.b16 %v12061
    %v12660 = vunpack.c.l.b16 %v12062
    %v12661 = vunpack.c.h.b16 %v12062
    %v12662 = vunpack.c.l.b16 %v12063
    %v12663 = vunpack.c.h.b16 %v12063
    %v12664 = vunpack.c.l.b16 %v12064
    %v12665 = vunpack.c.h.b16 %v12064
    %v12666 = vunpack.c.l.b16 %v12065
    %v12667 = vunpack.c.h.b16 %v12065
    %v12668 = vunpack.c.l.b16 %v12066
    %v12669 = vunpack.c.h.b16 %v12066
    %v12670 = vunpack.c.l.b16 %v12067
    %v12671 = vunpack.c.h.b16 %v12067
    %v12672 = vunpack.c.l.b16 %v12068
    %v12673 = vunpack.c.h.b16 %v12068
    %v12674 = vunpack.c.l.b16 %v12069
    %v12675 = vunpack.c.h.b16 %v12069
    %v12676 = vunpack.c.l.b16 %v12070
    %v12677 = vunpack.c.h.b16 %v12070
    %v12678 = vunpack.c.l.b16 %v12071
    %v12679 = vunpack.c.h.b16 %v12071
    %v12680 = vunpack.c.l.b16 %v12072
    %v12681 = vunpack.c.h.b16 %v12072
    %v12682 = vunpack.c.l.b16 %v12073
    %v12683 = vunpack.c.h.b16 %v12073
    %v12684 = vunpack.c.l.b16 %v12074
    %v12685 = vunpack.c.h.b16 %v12074
    %v12686 = vunpack.c.l.b16 %v12075
    %v12687 = vunpack.c.h.b16 %v12075
    %v12688 = vunpack.c.l.b16 %v12076
    %v12689 = vunpack.c.h.b16 %v12076
    %v12690 = vunpack.c.l.b16 %v12077
    %v12691 = vunpack.c.h.b16 %v12077
    %v12692 = vunpack.c.l.b16 %v12078
    %v12693 = vunpack.c.h.b16 %v12078
    %v12694 = vunpack.c.l.b16 %v12079
    %v12695 = vunpack.c.h.b16 %v12079
    %v12696 = vunpack.c.l.b16 %v12080
    %v12697 = vunpack.c.h.b16 %v12080
    %v12698 = vunpack.c.l.b16 %v12081
    %v12699 = vunpack.c.h.b16 %v12081
    %v12700 = vunpack.c.l.b16 %v12082
    %v12701 = vunpack.c.h.b16 %v12082
    %v12702 = vunpack.c.l.b16 %v12083
    %v12703 = vunpack.c.h.b16 %v12083
    %v12704 = vunpack.c.l.b16 %v12084
    %v12705 = vunpack.c.h.b16 %v12084
    %v12706 = vunpack.c.l.b16 %v12085
    %v12707 = vunpack.c.h.b16 %v12085
    %v12708 = vunpack.c.l.b16 %v12086
    %v12709 = vunpack.c.h.b16 %v12086
    %v12710 = vunpack.c.l.b16 %v12087
    %v12711 = vunpack.c.h.b16 %v12087
    %v12712 = vunpack.c.l.b16 %v12088
    %v12713 = vunpack.c.h.b16 %v12088
    %v12714 = vunpack.c.l.b16 %v12089
    %v12715 = vunpack.c.h.b16 %v12089
    %v12716 = vunpack.c.l.b16 %v12090
    %v12717 = vunpack.c.h.b16 %v12090
    %v12718 = vunpack.c.l.b16 %v12091
    %v12719 = vunpack.c.h.b16 %v12091
    %v12720 = vunpack.c.l.b16 %v12092
    %v12721 = vunpack.c.h.b16 %v12092
    %v12722 = vunpack.c.l.b16 %v12093
    %v12723 = vunpack.c.h.b16 %v12093
    %v12724 = vunpack.c.l.b16 %v12094
    %v12725 = vunpack.c.h.b16 %v12094
    %v12726 = vunpack.c.l.b16 %v12095
    %v12727 = vunpack.c.h.b16 %v12095
    %v12728 = vunpack.c.l.b16 %v12096
    %v12729 = vunpack.c.h.b16 %v12096
    %v12730 = vunpack.c.l.b16 %v12097
    %v12731 = vunpack.c.h.b16 %v12097
    %v12732 = vunpack.c.l.b16 %v12098
    %v12733 = vunpack.c.h.b16 %v12098
    %v12734 = vunpack.c.l.b16 %v12099
    %v12735 = vunpack.c.h.b16 %v12099
    %v12736 = vunpack.c.l.b16 %v12100
    %v12737 = vunpack.c.h.b16 %v12100
    %v12738 = vunpack.c.l.b16 %v12101
    %v12739 = vunpack.c.h.b16 %v12101
    %v12740 = vunpack.c.l.b16 %v12102
    %v12741 = vunpack.c.h.b16 %v12102
    %v12742 = vunpack.c.l.b16 %v12103
    %v12743 = vunpack.c.h.b16 %v12103
    %v12744 = vunpack.c.l.b16 %v12104
    %v12745 = vunpack.c.h.b16 %v12104
    %v12746 = vunpack.c.l.b16 %v12105
    %v12747 = vunpack.c.h.b16 %v12105
    %v12748 = vunpack.c.l.b16 %v12106
    %v12749 = vunpack.c.h.b16 %v12106
    %v12750 = vunpack.c.l.b16 %v12107
    %v12751 = vunpack.c.h.b16 %v12107
    %v12752 = vunpack.c.l.b16 %v12108
    %v12753 = vunpack.c.h.b16 %v12108
    %v12754 = vunpack.c.l.b16 %v12109
    %v12755 = vunpack.c.h.b16 %v12109
    %v12756 = vunpack.c.l.b16 %v12110
    %v12757 = vunpack.c.h.b16 %v12110
    %v12758 = vunpack.c.l.b16 %v12111
    %v12759 = vunpack.c.h.b16 %v12111
    %v12760 = vunpack.c.l.b16 %v12112
    %v12761 = vunpack.c.h.b16 %v12112
    %v12762 = vunpack.c.l.b16 %v12113
    %v12763 = vunpack.c.h.b16 %v12113
    %v12764 = vunpack.c.l.b16 %v12114
    %v12765 = vunpack.c.h.b16 %v12114
    %v12766 = vunpack.c.l.b16 %v12115
    %v12767 = vunpack.c.h.b16 %v12115
    %v12768 = vunpack.c.l.b16 %v12116
    %v12769 = vunpack.c.h.b16 %v12116
    %v12770 = vunpack.c.l.b16 %v12117
    %v12771 = vunpack.c.h.b16 %v12117
    %v12772 = vunpack.c.l.b16 %v12118
    %v12773 = vunpack.c.h.b16 %v12118
    %v12774 = vunpack.c.l.b16 %v12119
    %v12775 = vunpack.c.h.b16 %v12119
    %v12776 = vunpack.c.l.b16 %v12120
    %v12777 = vunpack.c.h.b16 %v12120
    %v12778 = vunpack.c.l.b16 %v12121
    %v12779 = vunpack.c.h.b16 %v12121
    %v12780 = vunpack.c.l.b16 %v12122
    %v12781 = vunpack.c.h.b16 %v12122
    %v12782 = vunpack.c.l.b16 %v12123
    %v12783 = vunpack.c.h.b16 %v12123
    %v12784 = vunpack.c.l.b16 %v12124
    %v12785 = vunpack.c.h.b16 %v12124
    %v12786 = vunpack.c.l.b16 %v12125
    %v12787 = vunpack.c.h.b16 %v12125
    %v12788 = vunpack.c.l.b16 %v12126
    %v12789 = vunpack.c.h.b16 %v12126
    %v12790 = vunpack.c.l.b16 %v12127
    %v12791 = vunpack.c.h.b16 %v12127
    %v12792 = vunpack.c.l.b16 %v12128
    %v12793 = vunpack.c.h.b16 %v12128
    %v12794 = vunpack.c.l.b16 %v12129
    %v12795 = vunpack.c.h.b16 %v12129
    %v12796 = vunpack.c.l.b16 %v12130
    %v12797 = vunpack.c.h.b16 %v12130
    %v12798 = vunpack.c.l.b16 %v12131
    %v12799 = vunpack.c.h.b16 %v12131
    %v12800 = vunpack.c.l.b16 %v12132
    %v12801 = vunpack.c.h.b16 %v12132
    %v12802 = vunpack.c.l.b16 %v12133
    %v12803 = vunpack.c.h.b16 %v12133
    %v12804 = vunpack.c.l.b16 %v12134
    %v12805 = vunpack.c.h.b16 %v12134
    %v12806 = vunpack.c.l.b16 %v12135
    %v12807 = vunpack.c.h.b16 %v12135
    %v12808 = vunpack.c.l.b16 %v12136
    %v12809 = vunpack.c.h.b16 %v12136
    %v12810 = vunpack.c.l.b16 %v12137
    %v12811 = vunpack.c.h.b16 %v12137
    %v12812 = vunpack.c.l.b16 %v12138
    %v12813 = vunpack.c.h.b16 %v12138
    %v12814 = vunpack.c.l.b16 %v12139
    %v12815 = vunpack.c.h.b16 %v12139
    %v12816 = vunpack.c.l.b16 %v12140
    %v12817 = vunpack.c.h.b16 %v12140
    %v12818 = vunpack.c.l.b16 %v12141
    %v12819 = vunpack.c.h.b16 %v12141
    %v12820 = vunpack.c.l.b16 %v12142
    %v12821 = vunpack.c.h.b16 %v12142
    %v12822 = vunpack.c.l.b16 %v12143
    %v12823 = vunpack.c.h.b16 %v12143
    %v12824 = vunpack.c.l.b16 %v12144
    %v12825 = vunpack.c.h.b16 %v12144
    %v12826 = vunpack.c.l.b16 %v12145
    %v12827 = vunpack.c.h.b16 %v12145
    %v12828 = vunpack.c.l.b16 %v12146
    %v12829 = vunpack.c.h.b16 %v12146
    %v12830 = vunpack.c.l.b16 %v12147
    %v12831 = vunpack.c.h.b16 %v12147
    %v12832 = vunpack.c.l.b16 %v12148
    %v12833 = vunpack.c.h.b16 %v12148
    %v12834 = vunpack.c.l.b16 %v12149
    %v12835 = vunpack.c.h.b16 %v12149
    %v12836 = vunpack.c.l.b16 %v12150
    %v12837 = vunpack.c.h.b16 %v12150
    %v12838 = vunpack.c.l.b16 %v12151
    %v12839 = vunpack.c.h.b16 %v12151
    %v12840 = vunpack.c.l.b16 %v12152
    %v12841 = vunpack.c.h.b16 %v12152
    %v12842 = vunpack.c.l.b16 %v12153
    %v12843 = vunpack.c.h.b16 %v12153
    %v12844 = vunpack.c.l.b16 %v12154
    %v12845 = vunpack.c.h.b16 %v12154
    %v12846 = vunpack.c.l.b16 %v12155
    %v12847 = vunpack.c.h.b16 %v12155
    %v12848 = vunpack.c.l.b16 %v12156
    %v12849 = vunpack.c.h.b16 %v12156
    %v12850 = vunpack.c.l.b16 %v12157
    %v12851 = vunpack.c.h.b16 %v12157
    %v12852 = vunpack.c.l.b16 %v12158
    %v12853 = vunpack.c.h.b16 %v12158
    %v12854 = vunpack.c.l.b16 %v12159
    %v12855 = vunpack.c.h.b16 %v12159
    %v12856 = vunpack.c.l.b16 %v12160
    %v12857 = vunpack.c.h.b16 %v12160
    %v12858 = vunpack.c.l.b16 %v12161
    %v12859 = vunpack.c.h.b16 %v12161
    %v12860 = vunpack.c.l.b16 %v12162
    %v12861 = vunpack.c.h.b16 %v12162
    %v12862 = vunpack.c.l.b16 %v12163
    %v12863 = vunpack.c.h.b16 %v12163
    %v12864 = vunpack.c.l.b16 %v12164
    %v12865 = vunpack.c.h.b16 %v12164
    %v12866 = vunpack.c.l.b16 %v12165
    %v12867 = vunpack.c.h.b16 %v12165
    %v12868 = vunpack.c.l.b16 %v12166
    %v12869 = vunpack.c.h.b16 %v12166
    %v12870 = vunpack.c.l.b16 %v12167
    %v12871 = vunpack.c.h.b16 %v12167
    %v12872 = vunpack.c.l.b16 %v12168
    %v12873 = vunpack.c.h.b16 %v12168
    %v12874 = vunpack.c.l.b16 %v12169
    %v12875 = vunpack.c.h.b16 %v12169
    %v12876 = vunpack.c.l.b16 %v12170
    %v12877 = vunpack.c.h.b16 %v12170
    %v12878 = vunpack.c.l.b16 %v12171
    %v12879 = vunpack.c.h.b16 %v12171
    %v12880 = vunpack.c.l.b16 %v12172
    %v12881 = vunpack.c.h.b16 %v12172
    %v12882 = vunpack.c.l.b16 %v12173
    %v12883 = vunpack.c.h.b16 %v12173
    %v12884 = vunpack.c.l.b16 %v12174
    %v12885 = vunpack.c.h.b16 %v12174
    %v12886 = vunpack.c.l.b16 %v12175
    %v12887 = vunpack.c.h.b16 %v12175
    %v12888 = vunpack.c.l.b16 %v12176
    %v12889 = vunpack.c.h.b16 %v12176
    %v12890 = vunpack.c.l.b16 %v12177
    %v12891 = vunpack.c.h.b16 %v12177
    %v12892 = vunpack.c.l.b16 %v12178
    %v12893 = vunpack.c.h.b16 %v12178
    %v12894 = vunpack.c.l.b16 %v12179
    %v12895 = vunpack.c.h.b16 %v12179
    %v12896 = vunpack.c.l.b16 %v12180
    %v12897 = vunpack.c.h.b16 %v12180
    %v12898 = vunpack.c.l.b16 %v12181
    %v12899 = vunpack.c.h.b16 %v12181
    %v12900 = vunpack.c.l.b16 %v12182
    %v12901 = vunpack.c.h.b16 %v12182
    %v12902 = vunpack.c.l.b16 %v12183
    %v12903 = vunpack.c.h.b16 %v12183
    %v12904 = vunpack.c.l.b16 %v12184
    %v12905 = vunpack.c.h.b16 %v12184
    %v12906 = vunpack.c.l.b16 %v12185
    %v12907 = vunpack.c.h.b16 %v12185
    %v12908 = vunpack.c.l.b16 %v12186
    %v12909 = vunpack.c.h.b16 %v12186
    %v12910 = vunpack.c.l.b16 %v12187
    %v12911 = vunpack.c.h.b16 %v12187
    %v12912 = vunpack.c.l.b16 %v12188
    %v12913 = vunpack.c.h.b16 %v12188
    %v12914 = vunpack.c.l.b16 %v12189
    %v12915 = vunpack.c.h.b16 %v12189
    %v12916 = vunpack.c.l.b16 %v12190
    %v12917 = vunpack.c.h.b16 %v12190
    %v12918 = vunpack.c.l.b16 %v12191
    %v12919 = vunpack.c.h.b16 %v12191
    %v12920 = vunpack.c.l.b16 %v12192
    %v12921 = vunpack.c.h.b16 %v12192
    %v12922 = vunpack.c.l.b16 %v12193
    %v12923 = vunpack.c.h.b16 %v12193
    %v12924 = vunpack.c.l.b16 %v12194
    %v12925 = vunpack.c.h.b16 %v12194
    %v12926 = vunpack.c.l.b16 %v12195
    %v12927 = vunpack.c.h.b16 %v12195
    %v12928 = vunpack.c.l.b16 %v12196
    %v12929 = vunpack.c.h.b16 %v12196
    %v12930 = vunpack.c.l.b16 %v12197
    %v12931 = vunpack.c.h.b16 %v12197
    %v12932 = vunpack.c.l.b16 %v12198
    %v12933 = vunpack.c.h.b16 %v12198
    %v12934 = vunpack.c.l.b16 %v12199
    %v12935 = vunpack.c.h.b16 %v12199
    %v12936 = vunpack.c.l.b16 %v12200
    %v12937 = vunpack.c.h.b16 %v12200
    %v12938 = vunpack.c.l.b16 %v12201
    %v12939 = vunpack.c.h.b16 %v12201
    %v12940 = vunpack.c.l.b16 %v12202
    %v12941 = vunpack.c.h.b16 %v12202
    %v12942 = vunpack.c.l.b16 %v12203
    %v12943 = vunpack.c.h.b16 %v12203
    %v12944 = vunpack.c.l.b16 %v12204
    %v12945 = vunpack.c.h.b16 %v12204
    %v12946 = vunpack.c.l.b16 %v12205
    %v12947 = vunpack.c.h.b16 %v12205
    %v12948 = vunpack.c.l.b16 %v12206
    %v12949 = vunpack.c.h.b16 %v12206
    %v12950 = vunpack.c.l.b16 %v12207
    %v12951 = vunpack.c.h.b16 %v12207
    %v12952 = vunpack.c.l.b16 %v12208
    %v12953 = vunpack.c.h.b16 %v12208
    %v12954 = vunpack.c.l.b16 %v12209
    %v12955 = vunpack.c.h.b16 %v12209
    %v12956 = vunpack.c.l.b16 %v12210
    %v12957 = vunpack.c.h.b16 %v12210
    %v12958 = vunpack.c.l.b16 %v12211
    %v12959 = vunpack.c.h.b16 %v12211
    %v12960 = vunpack.c.l.b16 %v12212
    %v12961 = vunpack.c.h.b16 %v12212
    %v12962 = vunpack.c.l.b16 %v12213
    %v12963 = vunpack.c.h.b16 %v12213
    %v12964 = vunpack.c.l.b16 %v12214
    %v12965 = vunpack.c.h.b16 %v12214
    %v12966 = vunpack.c.l.b16 %v12215
    %v12967 = vunpack.c.h.b16 %v12215
    %v12968 = vunpack.c.l.b16 %v12216
    %v12969 = vunpack.c.h.b16 %v12216
    %v12970 = vunpack.c.l.b16 %v12217
    %v12971 = vunpack.c.h.b16 %v12217
    %v12972 = vunpack.c.l.b16 %v12218
    %v12973 = vunpack.c.h.b16 %v12218
    %v12974 = vunpack.c.l.b16 %v12219
    %v12975 = vunpack.c.h.b16 %v12219
    %v12976 = vunpack.c.l.b16 %v12220
    %v12977 = vunpack.c.h.b16 %v12220
    %v12978 = vunpack.c.l.b16 %v12221
    %v12979 = vunpack.c.h.b16 %v12221
    %v12980 = vunpack.c.l.b16 %v12222
    %v12981 = vunpack.c.h.b16 %v12222
    %v12982 = vunpack.c.l.b16 %v12223
    %v12983 = vunpack.c.h.b16 %v12223
    %v12984 = vunpack.c.l.b16 %v12224
    %v12985 = vunpack.c.h.b16 %v12224
    %v12986 = vunpack.c.l.b16 %v12225
    %v12987 = vunpack.c.h.b16 %v12225
    %v12988 = vunpack.c.l.b16 %v12226
    %v12989 = vunpack.c.h.b16 %v12226
    %v12990 = vunpack.c.l.b16 %v12227
    %v12991 = vunpack.c.h.b16 %v12227
    %v12992 = vunpack.c.l.b16 %v12228
    %v12993 = vunpack.c.h.b16 %v12228
    %v12994 = vunpack.c.l.b16 %v12229
    %v12995 = vunpack.c.h.b16 %v12229
    %v12996 = vunpack.c.l.b16 %v12230
    %v12997 = vunpack.c.h.b16 %v12230
    %v12998 = vunpack.c.l.b16 %v12231
    %v12999 = vunpack.c.h.b16 %v12231
    %v13000 = vunpack.c.l.b16 %v12232
    %v13001 = vunpack.c.h.b16 %v12232
    %v13002 = vunpack.c.l.b16 %v12233
    %v13003 = vunpack.c.h.b16 %v12233
    %v13004 = vunpack.c.l.b16 %v12234
    %v13005 = vunpack.c.h.b16 %v12234
    %v13006 = vunpack.c.l.b16 %v12235
    %v13007 = vunpack.c.h.b16 %v12235
    %v13008 = vunpack.c.l.b16 %v12236
    %v13009 = vunpack.c.h.b16 %v12236
    %v13010 = vunpack.c.l.b16 %v12237
    %v13011 = vunpack.c.h.b16 %v12237
    %v13012 = vunpack.c.l.b16 %v12238
    %v13013 = vunpack.c.h.b16 %v12238
    %v13014 = vunpack.c.l.b16 %v12239
    %v13015 = vunpack.c.h.b16 %v12239
    %v13016 = vunpack.c.l.b16 %v12240
    %v13017 = vunpack.c.h.b16 %v12240
    %v13018 = vunpack.c.l.b16 %v12241
    %v13019 = vunpack.c.h.b16 %v12241
    %v13020 = vpack.c.b16 %v12512, %v12508
    %v13021 = vpack.c.b16 %v12513, %v12509
    %v13022 = vpack.c.b16 %v12514, %v12510
    %v13023 = vpack.c.b16 %v12515, %v12511
    %v13024 = vpack.c.b16 %v12520, %v12516
    %v13025 = vpack.c.b16 %v12521, %v12517
    %v13026 = vpack.c.b16 %v12522, %v12518
    %v13027 = vpack.c.b16 %v12523, %v12519
    %v13028 = vpack.c.b16 %v12528, %v12524
    %v13029 = vpack.c.b16 %v12529, %v12525
    %v13030 = vpack.c.b16 %v12530, %v12526
    %v13031 = vpack.c.b16 %v12531, %v12527
    %v13032 = vpack.c.b16 %v12536, %v12532
    %v13033 = vpack.c.b16 %v12537, %v12533
    %v13034 = vpack.c.b16 %v12538, %v12534
    %v13035 = vpack.c.b16 %v12539, %v12535
    %v13036 = vpack.c.b16 %v12544, %v12540
    %v13037 = vpack.c.b16 %v12545, %v12541
    %v13038 = vpack.c.b16 %v12546, %v12542
    %v13039 = vpack.c.b16 %v12547, %v12543
    %v13040 = vpack.c.b16 %v12552, %v12548
    %v13041 = vpack.c.b16 %v12553, %v12549
    %v13042 = vpack.c.b16 %v12554, %v12550
    %v13043 = vpack.c.b16 %v12555, %v12551
    %v13044 = vpack.c.b16 %v12560, %v12556
    %v13045 = vpack.c.b16 %v12561, %v12557
    %v13046 = vpack.c.b16 %v12562, %v12558
    %v13047 = vpack.c.b16 %v12563, %v12559
    %v13048 = vpack.c.b16 %v12568, %v12564
    %v13049 = vpack.c.b16 %v12569, %v12565
    %v13050 = vpack.c.b16 %v12570, %v12566
    %v13051 = vpack.c.b16 %v12571, %v12567
    %v13052 = vpack.c.b16 %v12576, %v12572
    %v13053 = vpack.c.b16 %v12577, %v12573
    %v13054 = vpack.c.b16 %v12578, %v12574
    %v13055 = vpack.c.b16 %v12579, %v12575
    %v13056 = vpack.c.b16 %v12584, %v12580
    %v13057 = vpack.c.b16 %v12585, %v12581
    %v13058 = vpack.c.b16 %v12586, %v12582
    %v13059 = vpack.c.b16 %v12587, %v12583
    %v13060 = vpack.c.b16 %v12592, %v12588
    %v13061 = vpack.c.b16 %v12593, %v12589
    %v13062 = vpack.c.b16 %v12594, %v12590
    %v13063 = vpack.c.b16 %v12595, %v12591
    %v13064 = vpack.c.b16 %v12600, %v12596
    %v13065 = vpack.c.b16 %v12601, %v12597
    %v13066 = vpack.c.b16 %v12602, %v12598
    %v13067 = vpack.c.b16 %v12603, %v12599
    %v13068 = vpack.c.b16 %v12608, %v12604
    %v13069 = vpack.c.b16 %v12609, %v12605
    %v13070 = vpack.c.b16 %v12610, %v12606
    %v13071 = vpack.c.b16 %v12611, %v12607
    %v13072 = vpack.c.b16 %v12616, %v12612
    %v13073 = vpack.c.b16 %v12617, %v12613
    %v13074 = vpack.c.b16 %v12618, %v12614
    %v13075 = vpack.c.b16 %v12619, %v12615
    %v13076 = vpack.c.b16 %v12624, %v12620
    %v13077 = vpack.c.b16 %v12625, %v12621
    %v13078 = vpack.c.b16 %v12626, %v12622
    %v13079 = vpack.c.b16 %v12627, %v12623
    %v13080 = vpack.c.b16 %v12632, %v12628
    %v13081 = vpack.c.b16 %v12633, %v12629
    %v13082 = vpack.c.b16 %v12634, %v12630
    %v13083 = vpack.c.b16 %v12635, %v12631
    %v13084 = vpack.c.b16 %v12640, %v12636
    %v13085 = vpack.c.b16 %v12641, %v12637
    %v13086 = vpack.c.b16 %v12642, %v12638
    %v13087 = vpack.c.b16 %v12643, %v12639
    %v13088 = vpack.c.b16 %v12648, %v12644
    %v13089 = vpack.c.b16 %v12649, %v12645
    %v13090 = vpack.c.b16 %v12650, %v12646
    %v13091 = vpack.c.b16 %v12651, %v12647
    %v13092 = vpack.c.b16 %v12656, %v12652
    %v13093 = vpack.c.b16 %v12657, %v12653
    %v13094 = vpack.c.b16 %v12658, %v12654
    %v13095 = vpack.c.b16 %v12659, %v12655
    %v13096 = vpack.c.b16 %v12664, %v12660
    %v13097 = vpack.c.b16 %v12665, %v12661
    %v13098 = vpack.c.b16 %v12666, %v12662
    %v13099 = vpack.c.b16 %v12667, %v12663
    %v13100 = vpack.c.b16 %v12672, %v12668
    %v13101 = vpack.c.b16 %v12673, %v12669
    %v13102 = vpack.c.b16 %v12674, %v12670
    %v13103 = vpack.c.b16 %v12675, %v12671
    %v13104 = vpack.c.b16 %v12680, %v12676
    %v13105 = vpack.c.b16 %v12681, %v12677
    %v13106 = vpack.c.b16 %v12682, %v12678
    %v13107 = vpack.c.b16 %v12683, %v12679
    %v13108 = vpack.c.b16 %v12688, %v12684
    %v13109 = vpack.c.b16 %v12689, %v12685
    %v13110 = vpack.c.b16 %v12690, %v12686
    %v13111 = vpack.c.b16 %v12691, %v12687
    %v13112 = vpack.c.b16 %v12696, %v12692
    %v13113 = vpack.c.b16 %v12697, %v12693
    %v13114 = vpack.c.b16 %v12698, %v12694
    %v13115 = vpack.c.b16 %v12699, %v12695
    %v13116 = vpack.c.b16 %v12704, %v12700
    %v13117 = vpack.c.b16 %v12705, %v12701
    %v13118 = vpack.c.b16 %v12706, %v12702
    %v13119 = vpack.c.b16 %v12707, %v12703
    %v13120 = vpack.c.b16 %v12712, %v12708
    %v13121 = vpack.c.b16 %v12713, %v12709
    %v13122 = vpack.c.b16 %v12714, %v12710
    %v13123 = vpack.c.b16 %v12715, %v12711
    %v13124 = vpack.c.b16 %v12720, %v12716
    %v13125 = vpack.c.b16 %v12721, %v12717
    %v13126 = vpack.c.b16 %v12722, %v12718
    %v13127 = vpack.c.b16 %v12723, %v12719
    %v13128 = vpack.c.b16 %v12728, %v12724
    %v13129 = vpack.c.b16 %v12729, %v12725
    %v13130 = vpack.c.b16 %v12730, %v12726
    %v13131 = vpack.c.b16 %v12731, %v12727
    %v13132 = vpack.c.b16 %v12736, %v12732
    %v13133 = vpack.c.b16 %v12737, %v12733
    %v13134 = vpack.c.b16 %v12738, %v12734
    %v13135 = vpack.c.b16 %v12739, %v12735
    %v13136 = vpack.c.b16 %v12744, %v12740
    %v13137 = vpack.c.b16 %v12745, %v12741
    %v13138 = vpack.c.b16 %v12746, %v12742
    %v13139 = vpack.c.b16 %v12747, %v12743
    %v13140 = vpack.c.b16 %v12752, %v12748
    %v13141 = vpack.c.b16 %v12753, %v12749
    %v13142 = vpack.c.b16 %v12754, %v12750
    %v13143 = vpack.c.b16 %v12755, %v12751
    %v13144 = vpack.c.b16 %v12760, %v12756
    %v13145 = vpack.c.b16 %v12761, %v12757
    %v13146 = vpack.c.b16 %v12762, %v12758
    %v13147 = vpack.c.b16 %v12763, %v12759
    %v13148 = vpack.c.b16 %v12768, %v12764
    %v13149 = vpack.c.b16 %v12769, %v12765
    %v13150 = vpack.c.b16 %v12770, %v12766
    %v13151 = vpack.c.b16 %v12771, %v12767
    %v13152 = vpack.c.b16 %v12776, %v12772
    %v13153 = vpack.c.b16 %v12777, %v12773
    %v13154 = vpack.c.b16 %v12778, %v12774
    %v13155 = vpack.c.b16 %v12779, %v12775
    %v13156 = vpack.c.b16 %v12784, %v12780
    %v13157 = vpack.c.b16 %v12785, %v12781
    %v13158 = vpack.c.b16 %v12786, %v12782
    %v13159 = vpack.c.b16 %v12787, %v12783
    %v13160 = vpack.c.b16 %v12792, %v12788
    %v13161 = vpack.c.b16 %v12793, %v12789
    %v13162 = vpack.c.b16 %v12794, %v12790
    %v13163 = vpack.c.b16 %v12795, %v12791
    %v13164 = vpack.c.b16 %v12800, %v12796
    %v13165 = vpack.c.b16 %v12801, %v12797
    %v13166 = vpack.c.b16 %v12802, %v12798
    %v13167 = vpack.c.b16 %v12803, %v12799
    %v13168 = vpack.c.b16 %v12808, %v12804
    %v13169 = vpack.c.b16 %v12809, %v12805
    %v13170 = vpack.c.b16 %v12810, %v12806
    %v13171 = vpack.c.b16 %v12811, %v12807
    %v13172 = vpack.c.b16 %v12816, %v12812
    %v13173 = vpack.c.b16 %v12817, %v12813
    %v13174 = vpack.c.b16 %v12818, %v12814
    %v13175 = vpack.c.b16 %v12819, %v12815
    %v13176 = vpack.c.b16 %v12824, %v12820
    %v13177 = vpack.c.b16 %v12825, %v12821
    %v13178 = vpack.c.b16 %v12826, %v12822
    %v13179 = vpack.c.b16 %v12827, %v12823
    %v13180 = vpack.c.b16 %v12832, %v12828
    %v13181 = vpack.c.b16 %v12833, %v12829
    %v13182 = vpack.c.b16 %v12834, %v12830
    %v13183 = vpack.c.b16 %v12835, %v12831
    %v13184 = vpack.c.b16 %v12840, %v12836
    %v13185 = vpack.c.b16 %v12841, %v12837
    %v13186 = vpack.c.b16 %v12842, %v12838
    %v13187 = vpack.c.b16 %v12843, %v12839
    %v13188 = vpack.c.b16 %v12848, %v12844
    %v13189 = vpack.c.b16 %v12849, %v12845
    %v13190 = vpack.c.b16 %v12850, %v12846
    %v13191 = vpack.c.b16 %v12851, %v12847
    %v13192 = vpack.c.b16 %v12856, %v12852
    %v13193 = vpack.c.b16 %v12857, %v12853
    %v13194 = vpack.c.b16 %v12858, %v12854
    %v13195 = vpack.c.b16 %v12859, %v12855
    %v13196 = vpack.c.b16 %v12864, %v12860
    %v13197 = vpack.c.b16 %v12865, %v12861
    %v13198 = vpack.c.b16 %v12866, %v12862
    %v13199 = vpack.c.b16 %v12867, %v12863
    %v13200 = vpack.c.b16 %v12872, %v12868
    %v13201 = vpack.c.b16 %v12873, %v12869
    %v13202 = vpack.c.b16 %v12874, %v12870
    %v13203 = vpack.c.b16 %v12875, %v12871
    %v13204 = vpack.c.b16 %v12880, %v12876
    %v13205 = vpack.c.b16 %v12881, %v12877
    %v13206 = vpack.c.b16 %v12882, %v12878
    %v13207 = vpack.c.b16 %v12883, %v12879
    %v13208 = vpack.c.b16 %v12888, %v12884
    %v13209 = vpack.c.b16 %v12889, %v12885
    %v13210 = vpack.c.b16 %v12890, %v12886
    %v13211 = vpack.c.b16 %v12891, %v12887
    %v13212 = vpack.c.b16 %v12896, %v12892
    %v13213 = vpack.c.b16 %v12897, %v12893
    %v13214 = vpack.c.b16 %v12898, %v12894
    %v13215 = vpack.c.b16 %v12899, %v12895
    %v13216 = vpack.c.b16 %v12904, %v12900
    %v13217 = vpack.c.b16 %v12905, %v12901
    %v13218 = vpack.c.b16 %v12906, %v12902
    %v13219 = vpack.c.b16 %v12907, %v12903
    %v13220 = vpack.c.b16 %v12912, %v12908
    %v13221 = vpack.c.b16 %v12913, %v12909
    %v13222 = vpack.c.b16 %v12914, %v12910
    %v13223 = vpack.c.b16 %v12915, %v12911
    %v13224 = vpack.c.b16 %v12920, %v12916
    %v13225 = vpack.c.b16 %v12921, %v12917
    %v13226 = vpack.c.b16 %v12922, %v12918
    %v13227 = vpack.c.b16 %v12923, %v12919
    %v13228 = vpack.c.b16 %v12928, %v12924
    %v13229 = vpack.c.b16 %v12929, %v12925
    %v13230 = vpack.c.b16 %v12930, %v12926
    %v13231 = vpack.c.b16 %v12931, %v12927
    %v13232 = vpack.c.b16 %v12936, %v12932
    %v13233 = vpack.c.b16 %v12937, %v12933
    %v13234 = vpack.c.b16 %v12938, %v12934
    %v13235 = vpack.c.b16 %v12939, %v12935
    %v13236 = vpack.c.b16 %v12944, %v12940
    %v13237 = vpack.c.b16 %v12945, %v12941
    %v13238 = vpack.c.b16 %v12946, %v12942
    %v13239 = vpack.c.b16 %v12947, %v12943
    %v13240 = vpack.c.b16 %v12952, %v12948
    %v13241 = vpack.c.b16 %v12953, %v12949
    %v13242 = vpack.c.b16 %v12954, %v12950
    %v13243 = vpack.c.b16 %v12955, %v12951
    %v13244 = vpack.c.b16 %v12960, %v12956
    %v13245 = vpack.c.b16 %v12961, %v12957
    %v13246 = vpack.c.b16 %v12962, %v12958
    %v13247 = vpack.c.b16 %v12963, %v12959
    %v13248 = vpack.c.b16 %v12968, %v12964
    %v13249 = vpack.c.b16 %v12969, %v12965
    %v13250 = vpack.c.b16 %v12970, %v12966
    %v13251 = vpack.c.b16 %v12971, %v12967
    %v13252 = vpack.c.b16 %v12976, %v12972
    %v13253 = vpack.c.b16 %v12977, %v12973
    %v13254 = vpack.c.b16 %v12978, %v12974
    %v13255 = vpack.c.b16 %v12979, %v12975
    %v13256 = vpack.c.b16 %v12984, %v12980
    %v13257 = vpack.c.b16 %v12985, %v12981
    %v13258 = vpack.c.b16 %v12986, %v12982
    %v13259 = vpack.c.b16 %v12987, %v12983
    %v13260 = vpack.c.b16 %v12992, %v12988
    %v13261 = vpack.c.b16 %v12993, %v12989
    %v13262 = vpack.c.b16 %v12994, %v12990
    %v13263 = vpack.c.b16 %v12995, %v12991
    %v13264 = vpack.c.b16 %v13000, %v12996
    %v13265 = vpack.c.b16 %v13001, %v12997
    %v13266 = vpack.c.b16 %v13002, %v12998
    %v13267 = vpack.c.b16 %v13003, %v12999
    %v13268 = vpack.c.b16 %v13008, %v13004
    %v13269 = vpack.c.b16 %v13009, %v13005
    %v13270 = vpack.c.b16 %v13010, %v13006
    %v13271 = vpack.c.b16 %v13011, %v13007
    %v13272 = vpack.c.b16 %v13016, %v13012
    %v13273 = vpack.c.b16 %v13017, %v13013
    %v13274 = vpack.c.b16 %v13018, %v13014
    %v13275 = vpack.c.b16 %v13019, %v13015
    %13532 = vmatpush.bf16.msra.mxu0 %v13048
    %13533 = vmatpush.bf16.msra.mxu0 %v13044
    %13534 = vmatpush.bf16.msra.mxu0 %v13040
    %13535 = vmatpush.bf16.msra.mxu0 %v13036
    %13536 = vmatpush.bf16.msra.mxu0 %v13032
    %13537 = vmatpush.bf16.msra.mxu0 %v13028
    %13538 = vmatpush.bf16.msra.mxu0 %v13024
    %13539 = vmatpush.bf16.msra.mxu0 %v13020
    %13540 = vmatmul.bf16.gmra.mxu0 %v11978
    %v13541 = vpop.f32.mrf.mxu0
    %v13542 = vadd.f32 %v12244, %v13541
    %v13543 = vpop.f32.mrf.mxu0
    %13544 = vdwg.mxu0
    %13545 = vmatpush.bf16.msra.mxu0 %v13080
    %13546 = vmatpush.bf16.msra.mxu0 %v13076
    %13547 = vmatpush.bf16.msra.mxu0 %v13072
    %13548 = vmatpush.bf16.msra.mxu0 %v13068
    %13549 = vmatpush.bf16.msra.mxu0 %v13064
    %13550 = vmatpush.bf16.msra.mxu0 %v13060
    %13551 = vmatpush.bf16.msra.mxu0 %v13056
    %13552 = vmatpush.bf16.msra.mxu0 %v13052
    %13553 = vmatmul.bf16.gmra.mxu0 %v11979
    %v13554 = vpop.f32.mrf.mxu0
    %v13555 = vadd.f32 %v13542, %v13554
    %v13556 = vpop.f32.mrf.mxu0
    %13557 = vdwg.mxu0
    %13558 = vmatpush.bf16.msra.mxu0 %v13112
    %13559 = vmatpush.bf16.msra.mxu0 %v13108
    %13560 = vmatpush.bf16.msra.mxu0 %v13104
    %13561 = vmatpush.bf16.msra.mxu0 %v13100
    %13562 = vmatpush.bf16.msra.mxu0 %v13096
    %13563 = vmatpush.bf16.msra.mxu0 %v13092
    %13564 = vmatpush.bf16.msra.mxu0 %v13088
    %13565 = vmatpush.bf16.msra.mxu0 %v13084
    %13566 = vmatmul.bf16.gmra.mxu0 %v11980
    %v13567 = vpop.f32.mrf.mxu0
    %v13568 = vadd.f32 %v13555, %v13567
    %v13569 = vpop.f32.mrf.mxu0
    %13570 = vdwg.mxu0
    %13571 = vmatpush.bf16.msra.mxu0 %v13144
    %13572 = vmatpush.bf16.msra.mxu0 %v13140
    %13573 = vmatpush.bf16.msra.mxu0 %v13136
    %13574 = vmatpush.bf16.msra.mxu0 %v13132
    %13575 = vmatpush.bf16.msra.mxu0 %v13128
    %13576 = vmatpush.bf16.msra.mxu0 %v13124
    %13577 = vmatpush.bf16.msra.mxu0 %v13120
    %13578 = vmatpush.bf16.msra.mxu0 %v13116
    %13579 = vmatmul.bf16.gmra.mxu0 %v11981
    %v13580 = vpop.f32.mrf.mxu0
    %v13581 = vadd.f32 %v13568, %v13580
    %v13582 = vpop.f32.mrf.mxu0
    %13583 = vdwg.mxu0
    %13584 = vmatpush.bf16.msra.mxu0 %v13176
    %13585 = vmatpush.bf16.msra.mxu0 %v13172
    %13586 = vmatpush.bf16.msra.mxu0 %v13168
    %13587 = vmatpush.bf16.msra.mxu0 %v13164
    %13588 = vmatpush.bf16.msra.mxu0 %v13160
    %13589 = vmatpush.bf16.msra.mxu0 %v13156
    %13590 = vmatpush.bf16.msra.mxu0 %v13152
    %13591 = vmatpush.bf16.msra.mxu0 %v13148
    %13592 = vmatmul.bf16.gmra.mxu0 %v11982
    %v13593 = vpop.f32.mrf.mxu0
    %v13594 = vadd.f32 %v13581, %v13593
    %v13595 = vpop.f32.mrf.mxu0
    %13596 = vdwg.mxu0
    %13597 = vmatpush.bf16.msra.mxu0 %v13208
    %13598 = vmatpush.bf16.msra.mxu0 %v13204
    %13599 = vmatpush.bf16.msra.mxu0 %v13200
    %13600 = vmatpush.bf16.msra.mxu0 %v13196
    %13601 = vmatpush.bf16.msra.mxu0 %v13192
    %13602 = vmatpush.bf16.msra.mxu0 %v13188
    %13603 = vmatpush.bf16.msra.mxu0 %v13184
    %13604 = vmatpush.bf16.msra.mxu0 %v13180
    %13605 = vmatmul.bf16.gmra.mxu0 %v11983
    %v13606 = vpop.f32.mrf.mxu0
    %v13607 = vadd.f32 %v13594, %v13606
    %v13608 = vpop.f32.mrf.mxu0
    %13609 = vdwg.mxu0
    %13610 = vmatpush.bf16.msra.mxu0 %v13240
    %13611 = vmatpush.bf16.msra.mxu0 %v13236
    %13612 = vmatpush.bf16.msra.mxu0 %v13232
    %13613 = vmatpush.bf16.msra.mxu0 %v13228
    %13614 = vmatpush.bf16.msra.mxu0 %v13224
    %13615 = vmatpush.bf16.msra.mxu0 %v13220
    %13616 = vmatpush.bf16.msra.mxu0 %v13216
    %13617 = vmatpush.bf16.msra.mxu0 %v13212
    %13618 = vmatmul.bf16.gmra.mxu0 %v11984
    %v13619 = vpop.f32.mrf.mxu0
    %v13620 = vadd.f32 %v13607, %v13619
    %v13621 = vpop.f32.mrf.mxu0
    %13622 = vdwg.mxu0
    %13623 = vmatpush.bf16.msra.mxu0 %v13272
    %13624 = vmatpush.bf16.msra.mxu0 %v13268
    %13625 = vmatpush.bf16.msra.mxu0 %v13264
    %13626 = vmatpush.bf16.msra.mxu0 %v13260
    %13627 = vmatpush.bf16.msra.mxu0 %v13256
    %13628 = vmatpush.bf16.msra.mxu0 %v13252
    %13629 = vmatpush.bf16.msra.mxu0 %v13248
    %13630 = vmatpush.bf16.msra.mxu0 %v13244
    %13631 = vmatmul.bf16.gmra.mxu0 %v11985
    %v13632 = vpop.f32.mrf.mxu0
    %v13633 = vadd.f32 %v13620, %v13632
    %v13634 = vpop.f32.mrf.mxu0
    %13635 = vdwg.mxu0
    %13636 = vmatpush.bf16.msra.mxu0 %v13049
    %13637 = vmatpush.bf16.msra.mxu0 %v13045
    %13638 = vmatpush.bf16.msra.mxu0 %v13041
    %13639 = vmatpush.bf16.msra.mxu0 %v13037
    %13640 = vmatpush.bf16.msra.mxu0 %v13033
    %13641 = vmatpush.bf16.msra.mxu0 %v13029
    %13642 = vmatpush.bf16.msra.mxu0 %v13025
    %13643 = vmatpush.bf16.msra.mxu0 %v13021
    %13644 = vmatmul.bf16.gmra.mxu0 %v11978
    %v13645 = vpop.f32.mrf.mxu0
    %v13646 = vadd.f32 %v12245, %v13645
    %v13647 = vpop.f32.mrf.mxu0
    %13648 = vdwg.mxu0
    %13649 = vmatpush.bf16.msra.mxu0 %v13081
    %13650 = vmatpush.bf16.msra.mxu0 %v13077
    %13651 = vmatpush.bf16.msra.mxu0 %v13073
    %13652 = vmatpush.bf16.msra.mxu0 %v13069
    %13653 = vmatpush.bf16.msra.mxu0 %v13065
    %13654 = vmatpush.bf16.msra.mxu0 %v13061
    %13655 = vmatpush.bf16.msra.mxu0 %v13057
    %13656 = vmatpush.bf16.msra.mxu0 %v13053
    %13657 = vmatmul.bf16.gmra.mxu0 %v11979
    %v13658 = vpop.f32.mrf.mxu0
    %v13659 = vadd.f32 %v13646, %v13658
    %v13660 = vpop.f32.mrf.mxu0
    %13661 = vdwg.mxu0
    %13662 = vmatpush.bf16.msra.mxu0 %v13113
    %13663 = vmatpush.bf16.msra.mxu0 %v13109
    %13664 = vmatpush.bf16.msra.mxu0 %v13105
    %13665 = vmatpush.bf16.msra.mxu0 %v13101
    %13666 = vmatpush.bf16.msra.mxu0 %v13097
    %13667 = vmatpush.bf16.msra.mxu0 %v13093
    %13668 = vmatpush.bf16.msra.mxu0 %v13089
    %13669 = vmatpush.bf16.msra.mxu0 %v13085
    %13670 = vmatmul.bf16.gmra.mxu0 %v11980
    %v13671 = vpop.f32.mrf.mxu0
    %v13672 = vadd.f32 %v13659, %v13671
    %v13673 = vpop.f32.mrf.mxu0
    %13674 = vdwg.mxu0
    %13675 = vmatpush.bf16.msra.mxu0 %v13145
    %13676 = vmatpush.bf16.msra.mxu0 %v13141
    %13677 = vmatpush.bf16.msra.mxu0 %v13137
    %13678 = vmatpush.bf16.msra.mxu0 %v13133
    %13679 = vmatpush.bf16.msra.mxu0 %v13129
    %13680 = vmatpush.bf16.msra.mxu0 %v13125
    %13681 = vmatpush.bf16.msra.mxu0 %v13121
    %13682 = vmatpush.bf16.msra.mxu0 %v13117
    %13683 = vmatmul.bf16.gmra.mxu0 %v11981
    %v13684 = vpop.f32.mrf.mxu0
    %v13685 = vadd.f32 %v13672, %v13684
    %v13686 = vpop.f32.mrf.mxu0
    %13687 = vdwg.mxu0
    %13688 = vmatpush.bf16.msra.mxu0 %v13177
    %13689 = vmatpush.bf16.msra.mxu0 %v13173
    %13690 = vmatpush.bf16.msra.mxu0 %v13169
    %13691 = vmatpush.bf16.msra.mxu0 %v13165
    %13692 = vmatpush.bf16.msra.mxu0 %v13161
    %13693 = vmatpush.bf16.msra.mxu0 %v13157
    %13694 = vmatpush.bf16.msra.mxu0 %v13153
    %13695 = vmatpush.bf16.msra.mxu0 %v13149
    %13696 = vmatmul.bf16.gmra.mxu0 %v11982
    %v13697 = vpop.f32.mrf.mxu0
    %v13698 = vadd.f32 %v13685, %v13697
    %v13699 = vpop.f32.mrf.mxu0
    %13700 = vdwg.mxu0
    %13701 = vmatpush.bf16.msra.mxu0 %v13209
    %13702 = vmatpush.bf16.msra.mxu0 %v13205
    %13703 = vmatpush.bf16.msra.mxu0 %v13201
    %13704 = vmatpush.bf16.msra.mxu0 %v13197
    %13705 = vmatpush.bf16.msra.mxu0 %v13193
    %13706 = vmatpush.bf16.msra.mxu0 %v13189
    %13707 = vmatpush.bf16.msra.mxu0 %v13185
    %13708 = vmatpush.bf16.msra.mxu0 %v13181
    %13709 = vmatmul.bf16.gmra.mxu0 %v11983
    %v13710 = vpop.f32.mrf.mxu0
    %v13711 = vadd.f32 %v13698, %v13710
    %v13712 = vpop.f32.mrf.mxu0
    %13713 = vdwg.mxu0
    %13714 = vmatpush.bf16.msra.mxu0 %v13241
    %13715 = vmatpush.bf16.msra.mxu0 %v13237
    %13716 = vmatpush.bf16.msra.mxu0 %v13233
    %13717 = vmatpush.bf16.msra.mxu0 %v13229
    %13718 = vmatpush.bf16.msra.mxu0 %v13225
    %13719 = vmatpush.bf16.msra.mxu0 %v13221
    %13720 = vmatpush.bf16.msra.mxu0 %v13217
    %13721 = vmatpush.bf16.msra.mxu0 %v13213
    %13722 = vmatmul.bf16.gmra.mxu0 %v11984
    %v13723 = vpop.f32.mrf.mxu0
    %v13724 = vadd.f32 %v13711, %v13723
    %v13725 = vpop.f32.mrf.mxu0
    %13726 = vdwg.mxu0
    %13727 = vmatpush.bf16.msra.mxu0 %v13273
    %13728 = vmatpush.bf16.msra.mxu0 %v13269
    %13729 = vmatpush.bf16.msra.mxu0 %v13265
    %13730 = vmatpush.bf16.msra.mxu0 %v13261
    %13731 = vmatpush.bf16.msra.mxu0 %v13257
    %13732 = vmatpush.bf16.msra.mxu0 %v13253
    %13733 = vmatpush.bf16.msra.mxu0 %v13249
    %13734 = vmatpush.bf16.msra.mxu0 %v13245
    %13735 = vmatmul.bf16.gmra.mxu0 %v11985
    %v13736 = vpop.f32.mrf.mxu0
    %v13737 = vadd.f32 %v13724, %v13736
    %v13738 = vpop.f32.mrf.mxu0
    %13739 = vdwg.mxu0
    %13740 = vmatpush.bf16.msra.mxu0 %v13050
    %13741 = vmatpush.bf16.msra.mxu0 %v13046
    %13742 = vmatpush.bf16.msra.mxu0 %v13042
    %13743 = vmatpush.bf16.msra.mxu0 %v13038
    %13744 = vmatpush.bf16.msra.mxu0 %v13034
    %13745 = vmatpush.bf16.msra.mxu0 %v13030
    %13746 = vmatpush.bf16.msra.mxu0 %v13026
    %13747 = vmatpush.bf16.msra.mxu0 %v13022
    %13748 = vmatmul.bf16.gmra.mxu0 %v11978
    %v13749 = vpop.f32.mrf.mxu0
    %v13750 = vadd.f32 %v12246, %v13749
    %v13751 = vpop.f32.mrf.mxu0
    %13752 = vdwg.mxu0
    %13753 = vmatpush.bf16.msra.mxu0 %v13082
    %13754 = vmatpush.bf16.msra.mxu0 %v13078
    %13755 = vmatpush.bf16.msra.mxu0 %v13074
    %13756 = vmatpush.bf16.msra.mxu0 %v13070
    %13757 = vmatpush.bf16.msra.mxu0 %v13066
    %13758 = vmatpush.bf16.msra.mxu0 %v13062
    %13759 = vmatpush.bf16.msra.mxu0 %v13058
    %13760 = vmatpush.bf16.msra.mxu0 %v13054
    %13761 = vmatmul.bf16.gmra.mxu0 %v11979
    %v13762 = vpop.f32.mrf.mxu0
    %v13763 = vadd.f32 %v13750, %v13762
    %v13764 = vpop.f32.mrf.mxu0
    %13765 = vdwg.mxu0
    %13766 = vmatpush.bf16.msra.mxu0 %v13114
    %13767 = vmatpush.bf16.msra.mxu0 %v13110
    %13768 = vmatpush.bf16.msra.mxu0 %v13106
    %13769 = vmatpush.bf16.msra.mxu0 %v13102
    %13770 = vmatpush.bf16.msra.mxu0 %v13098
    %13771 = vmatpush.bf16.msra.mxu0 %v13094
    %13772 = vmatpush.bf16.msra.mxu0 %v13090
    %13773 = vmatpush.bf16.msra.mxu0 %v13086
    %13774 = vmatmul.bf16.gmra.mxu0 %v11980
    %v13775 = vpop.f32.mrf.mxu0
    %v13776 = vadd.f32 %v13763, %v13775
    %v13777 = vpop.f32.mrf.mxu0
    %13778 = vdwg.mxu0
    %13779 = vmatpush.bf16.msra.mxu0 %v13146
    %13780 = vmatpush.bf16.msra.mxu0 %v13142
    %13781 = vmatpush.bf16.msra.mxu0 %v13138
    %13782 = vmatpush.bf16.msra.mxu0 %v13134
    %13783 = vmatpush.bf16.msra.mxu0 %v13130
    %13784 = vmatpush.bf16.msra.mxu0 %v13126
    %13785 = vmatpush.bf16.msra.mxu0 %v13122
    %13786 = vmatpush.bf16.msra.mxu0 %v13118
    %13787 = vmatmul.bf16.gmra.mxu0 %v11981
    %v13788 = vpop.f32.mrf.mxu0
    %v13789 = vadd.f32 %v13776, %v13788
    %v13790 = vpop.f32.mrf.mxu0
    %13791 = vdwg.mxu0
    %13792 = vmatpush.bf16.msra.mxu0 %v13178
    %13793 = vmatpush.bf16.msra.mxu0 %v13174
    %13794 = vmatpush.bf16.msra.mxu0 %v13170
    %13795 = vmatpush.bf16.msra.mxu0 %v13166
    %13796 = vmatpush.bf16.msra.mxu0 %v13162
    %13797 = vmatpush.bf16.msra.mxu0 %v13158
    %13798 = vmatpush.bf16.msra.mxu0 %v13154
    %13799 = vmatpush.bf16.msra.mxu0 %v13150
    %13800 = vmatmul.bf16.gmra.mxu0 %v11982
    %v13801 = vpop.f32.mrf.mxu0
    %v13802 = vadd.f32 %v13789, %v13801
    %v13803 = vpop.f32.mrf.mxu0
    %13804 = vdwg.mxu0
    %13805 = vmatpush.bf16.msra.mxu0 %v13210
    %13806 = vmatpush.bf16.msra.mxu0 %v13206
    %13807 = vmatpush.bf16.msra.mxu0 %v13202
    %13808 = vmatpush.bf16.msra.mxu0 %v13198
    %13809 = vmatpush.bf16.msra.mxu0 %v13194
    %13810 = vmatpush.bf16.msra.mxu0 %v13190
    %13811 = vmatpush.bf16.msra.mxu0 %v13186
    %13812 = vmatpush.bf16.msra.mxu0 %v13182
    %13813 = vmatmul.bf16.gmra.mxu0 %v11983
    %v13814 = vpop.f32.mrf.mxu0
    %v13815 = vadd.f32 %v13802, %v13814
    %v13816 = vpop.f32.mrf.mxu0
    %13817 = vdwg.mxu0
    %13818 = vmatpush.bf16.msra.mxu0 %v13242
    %13819 = vmatpush.bf16.msra.mxu0 %v13238
    %13820 = vmatpush.bf16.msra.mxu0 %v13234
    %13821 = vmatpush.bf16.msra.mxu0 %v13230
    %13822 = vmatpush.bf16.msra.mxu0 %v13226
    %13823 = vmatpush.bf16.msra.mxu0 %v13222
    %13824 = vmatpush.bf16.msra.mxu0 %v13218
    %13825 = vmatpush.bf16.msra.mxu0 %v13214
    %13826 = vmatmul.bf16.gmra.mxu0 %v11984
    %v13827 = vpop.f32.mrf.mxu0
    %v13828 = vadd.f32 %v13815, %v13827
    %v13829 = vpop.f32.mrf.mxu0
    %13830 = vdwg.mxu0
    %13831 = vmatpush.bf16.msra.mxu0 %v13274
    %13832 = vmatpush.bf16.msra.mxu0 %v13270
    %13833 = vmatpush.bf16.msra.mxu0 %v13266
    %13834 = vmatpush.bf16.msra.mxu0 %v13262
    %13835 = vmatpush.bf16.msra.mxu0 %v13258
    %13836 = vmatpush.bf16.msra.mxu0 %v13254
    %13837 = vmatpush.bf16.msra.mxu0 %v13250
    %13838 = vmatpush.bf16.msra.mxu0 %v13246
    %13839 = vmatmul.bf16.gmra.mxu0 %v11985
    %v13840 = vpop.f32.mrf.mxu0
    %v13841 = vadd.f32 %v13828, %v13840
    %v13842 = vpop.f32.mrf.mxu0
    %13843 = vdwg.mxu0
    %13844 = vmatpush.bf16.msra.mxu0 %v13051
    %13845 = vmatpush.bf16.msra.mxu0 %v13047
    %13846 = vmatpush.bf16.msra.mxu0 %v13043
    %13847 = vmatpush.bf16.msra.mxu0 %v13039
    %13848 = vmatpush.bf16.msra.mxu0 %v13035
    %13849 = vmatpush.bf16.msra.mxu0 %v13031
    %13850 = vmatpush.bf16.msra.mxu0 %v13027
    %13851 = vmatpush.bf16.msra.mxu0 %v13023
    %13852 = vmatmul.bf16.gmra.mxu0 %v11978
    %v13853 = vpop.f32.mrf.mxu0
    %v13854 = vadd.f32 %v12247, %v13853
    %v13855 = vpop.f32.mrf.mxu0
    %13856 = vdwg.mxu0
    %13857 = vmatpush.bf16.msra.mxu0 %v13083
    %13858 = vmatpush.bf16.msra.mxu0 %v13079
    %13859 = vmatpush.bf16.msra.mxu0 %v13075
    %13860 = vmatpush.bf16.msra.mxu0 %v13071
    %13861 = vmatpush.bf16.msra.mxu0 %v13067
    %13862 = vmatpush.bf16.msra.mxu0 %v13063
    %13863 = vmatpush.bf16.msra.mxu0 %v13059
    %13864 = vmatpush.bf16.msra.mxu0 %v13055
    %13865 = vmatmul.bf16.gmra.mxu0 %v11979
    %v13866 = vpop.f32.mrf.mxu0
    %v13867 = vadd.f32 %v13854, %v13866
    %v13868 = vpop.f32.mrf.mxu0
    %13869 = vdwg.mxu0
    %13870 = vmatpush.bf16.msra.mxu0 %v13115
    %13871 = vmatpush.bf16.msra.mxu0 %v13111
    %13872 = vmatpush.bf16.msra.mxu0 %v13107
    %13873 = vmatpush.bf16.msra.mxu0 %v13103
    %13874 = vmatpush.bf16.msra.mxu0 %v13099
    %13875 = vmatpush.bf16.msra.mxu0 %v13095
    %13876 = vmatpush.bf16.msra.mxu0 %v13091
    %13877 = vmatpush.bf16.msra.mxu0 %v13087
    %13878 = vmatmul.bf16.gmra.mxu0 %v11980
    %v13879 = vpop.f32.mrf.mxu0
    %v13880 = vadd.f32 %v13867, %v13879
    %v13881 = vpop.f32.mrf.mxu0
    %13882 = vdwg.mxu0
    %13883 = vmatpush.bf16.msra.mxu0 %v13147
    %13884 = vmatpush.bf16.msra.mxu0 %v13143
    %13885 = vmatpush.bf16.msra.mxu0 %v13139
    %13886 = vmatpush.bf16.msra.mxu0 %v13135
    %13887 = vmatpush.bf16.msra.mxu0 %v13131
    %13888 = vmatpush.bf16.msra.mxu0 %v13127
    %13889 = vmatpush.bf16.msra.mxu0 %v13123
    %13890 = vmatpush.bf16.msra.mxu0 %v13119
    %13891 = vmatmul.bf16.gmra.mxu0 %v11981
    %v13892 = vpop.f32.mrf.mxu0
    %v13893 = vadd.f32 %v13880, %v13892
    %v13894 = vpop.f32.mrf.mxu0
    %13895 = vdwg.mxu0
    %13896 = vmatpush.bf16.msra.mxu0 %v13179
    %13897 = vmatpush.bf16.msra.mxu0 %v13175
    %13898 = vmatpush.bf16.msra.mxu0 %v13171
    %13899 = vmatpush.bf16.msra.mxu0 %v13167
    %13900 = vmatpush.bf16.msra.mxu0 %v13163
    %13901 = vmatpush.bf16.msra.mxu0 %v13159
    %13902 = vmatpush.bf16.msra.mxu0 %v13155
    %13903 = vmatpush.bf16.msra.mxu0 %v13151
    %13904 = vmatmul.bf16.gmra.mxu0 %v11982
    %v13905 = vpop.f32.mrf.mxu0
    %v13906 = vadd.f32 %v13893, %v13905
    %v13907 = vpop.f32.mrf.mxu0
    %13908 = vdwg.mxu0
    %13909 = vmatpush.bf16.msra.mxu0 %v13211
    %13910 = vmatpush.bf16.msra.mxu0 %v13207
    %13911 = vmatpush.bf16.msra.mxu0 %v13203
    %13912 = vmatpush.bf16.msra.mxu0 %v13199
    %13913 = vmatpush.bf16.msra.mxu0 %v13195
    %13914 = vmatpush.bf16.msra.mxu0 %v13191
    %13915 = vmatpush.bf16.msra.mxu0 %v13187
    %13916 = vmatpush.bf16.msra.mxu0 %v13183
    %13917 = vmatmul.bf16.gmra.mxu0 %v11983
    %v13918 = vpop.f32.mrf.mxu0
    %v13919 = vadd.f32 %v13906, %v13918
    %v13920 = vpop.f32.mrf.mxu0
    %13921 = vdwg.mxu0
    %13922 = vmatpush.bf16.msra.mxu0 %v13243
    %13923 = vmatpush.bf16.msra.mxu0 %v13239
    %13924 = vmatpush.bf16.msra.mxu0 %v13235
    %13925 = vmatpush.bf16.msra.mxu0 %v13231
    %13926 = vmatpush.bf16.msra.mxu0 %v13227
    %13927 = vmatpush.bf16.msra.mxu0 %v13223
    %13928 = vmatpush.bf16.msra.mxu0 %v13219
    %13929 = vmatpush.bf16.msra.mxu0 %v13215
    %13930 = vmatmul.bf16.gmra.mxu0 %v11984
    %v13931 = vpop.f32.mrf.mxu0
    %v13932 = vadd.f32 %v13919, %v13931
    %v13933 = vpop.f32.mrf.mxu0
    %13934 = vdwg.mxu0
    %13935 = vmatpush.bf16.msra.mxu0 %v13275
    %13936 = vmatpush.bf16.msra.mxu0 %v13271
    %13937 = vmatpush.bf16.msra.mxu0 %v13267
    %13938 = vmatpush.bf16.msra.mxu0 %v13263
    %13939 = vmatpush.bf16.msra.mxu0 %v13259
    %13940 = vmatpush.bf16.msra.mxu0 %v13255
    %13941 = vmatpush.bf16.msra.mxu0 %v13251
    %13942 = vmatpush.bf16.msra.mxu0 %v13247
    %13943 = vmatmul.bf16.gmra.mxu0 %v11985
    %v13944 = vpop.f32.mrf.mxu0
    %v13945 = vadd.f32 %v13932, %v13944
    %v13946 = vpop.f32.mrf.mxu0
    %13947 = vdwg.mxu0
    %vm13948 = vcmp.gt.f32.partialorder %v13633, 0.0
    %vm13949 = vcmp.gt.f32.partialorder %v13737, 0.0
    %vm13950 = vcmp.gt.f32.partialorder %v13841, 0.0
    %vm13951 = vcmp.gt.f32.partialorder %v13945, 0.0
    %v13952 = vmul.f32 %v13633, 0.01
    %v13953 = vmul.f32 %v13737, 0.01
    %v13954 = vmul.f32 %v13841, 0.01
    %v13955 = vmul.f32 %v13945, 0.01
    %v13956 = vsel %vm13948, %v13633, %v13952
    %v13957 = vsel %vm13949, %v13737, %v13953
    %v13958 = vsel %vm13950, %v13841, %v13954
    %v13959 = vsel %vm13951, %v13945, %v13955
    %v13960 = vpack.c.bf16 %v13956, %v13956
    %v13961 = vpack.c.bf16 %v13957, %v13957
    %v13962 = vpack.c.bf16 %v13958, %v13958
    %v13963 = vpack.c.bf16 %v13959, %v13959
    %v13964 = vld [vmem:[#allocation11] sm:$0xf]
    %v13965 = vld [vmem:[#allocation11 + $0x4] sm:$0xf]
    %v13966 = vld [vmem:[#allocation11 + $0x8] sm:$0xf]
    %v13967 = vld [vmem:[#allocation11 + $0xc] sm:$0xf]
    %v13968 = vld [vmem:[#allocation11 + $0x10] sm:$0xf]
    %v13969 = vld [vmem:[#allocation11 + $0x14] sm:$0xf]
    %v13970 = vld [vmem:[#allocation11 + $0x18] sm:$0xf]
    %v13971 = vld [vmem:[#allocation11 + $0x1c] sm:$0xf]
    %v13972 = vld [vmem:[#allocation11 + $0x20] sm:$0xf]
    %v13973 = vld [vmem:[#allocation11 + $0x24] sm:$0xf]
    %v13974 = vld [vmem:[#allocation11 + $0x28] sm:$0xf]
    %v13975 = vld [vmem:[#allocation11 + $0x2c] sm:$0xf]
    %v13976 = vld [vmem:[#allocation11 + $0x30] sm:$0xf]
    %v13977 = vld [vmem:[#allocation11 + $0x34] sm:$0xf]
    %v13978 = vld [vmem:[#allocation11 + $0x38] sm:$0xf]
    %v13979 = vld [vmem:[#allocation11 + $0x3c] sm:$0xf]
    %v13980 = vld [vmem:[#allocation11 + $0x40] sm:$0xf]
    %v13981 = vld [vmem:[#allocation11 + $0x44] sm:$0xf]
    %v13982 = vld [vmem:[#allocation11 + $0x48] sm:$0xf]
    %v13983 = vld [vmem:[#allocation11 + $0x4c] sm:$0xf]
    %v13984 = vld [vmem:[#allocation11 + $0x50] sm:$0xf]
    %v13985 = vld [vmem:[#allocation11 + $0x54] sm:$0xf]
    %v13986 = vld [vmem:[#allocation11 + $0x58] sm:$0xf]
    %v13987 = vld [vmem:[#allocation11 + $0x5c] sm:$0xf]
    %v13988 = vld [vmem:[#allocation11 + $0x60] sm:$0xf]
    %v13989 = vld [vmem:[#allocation11 + $0x64] sm:$0xf]
    %v13990 = vld [vmem:[#allocation11 + $0x68] sm:$0xf]
    %v13991 = vld [vmem:[#allocation11 + $0x6c] sm:$0xf]
    %v13992 = vld [vmem:[#allocation11 + $0x70] sm:$0xf]
    %v13993 = vld [vmem:[#allocation11 + $0x74] sm:$0xf]
    %v13994 = vld [vmem:[#allocation11 + $0x78] sm:$0xf]
    %v13995 = vld [vmem:[#allocation11 + $0x7c] sm:$0xf]
    %v13996 = vld [vmem:[#allocation11 + $0x80] sm:$0xf]
    %v13997 = vld [vmem:[#allocation11 + $0x84] sm:$0xf]
    %v13998 = vld [vmem:[#allocation11 + $0x88] sm:$0xf]
    %v13999 = vld [vmem:[#allocation11 + $0x8c] sm:$0xf]
    %v14000 = vld [vmem:[#allocation11 + $0x90] sm:$0xf]
    %v14001 = vld [vmem:[#allocation11 + $0x94] sm:$0xf]
    %v14002 = vld [vmem:[#allocation11 + $0x98] sm:$0xf]
    %v14003 = vld [vmem:[#allocation11 + $0x9c] sm:$0xf]
    %v14004 = vld [vmem:[#allocation11 + $0xa0] sm:$0xf]
    %v14005 = vld [vmem:[#allocation11 + $0xa4] sm:$0xf]
    %v14006 = vld [vmem:[#allocation11 + $0xa8] sm:$0xf]
    %v14007 = vld [vmem:[#allocation11 + $0xac] sm:$0xf]
    %v14008 = vld [vmem:[#allocation11 + $0xb0] sm:$0xf]
    %v14009 = vld [vmem:[#allocation11 + $0xb4] sm:$0xf]
    %v14010 = vld [vmem:[#allocation11 + $0xb8] sm:$0xf]
    %v14011 = vld [vmem:[#allocation11 + $0xbc] sm:$0xf]
    %v14012 = vld [vmem:[#allocation11 + $0xc0] sm:$0xf]
    %v14013 = vld [vmem:[#allocation11 + $0xc4] sm:$0xf]
    %v14014 = vld [vmem:[#allocation11 + $0xc8] sm:$0xf]
    %v14015 = vld [vmem:[#allocation11 + $0xcc] sm:$0xf]
    %v14016 = vld [vmem:[#allocation11 + $0xd0] sm:$0xf]
    %v14017 = vld [vmem:[#allocation11 + $0xd4] sm:$0xf]
    %v14018 = vld [vmem:[#allocation11 + $0xd8] sm:$0xf]
    %v14019 = vld [vmem:[#allocation11 + $0xdc] sm:$0xf]
    %v14020 = vld [vmem:[#allocation11 + $0xe0] sm:$0xf]
    %v14021 = vld [vmem:[#allocation11 + $0xe4] sm:$0xf]
    %v14022 = vld [vmem:[#allocation11 + $0xe8] sm:$0xf]
    %v14023 = vld [vmem:[#allocation11 + $0xec] sm:$0xf]
    %v14024 = vld [vmem:[#allocation11 + $0xf0] sm:$0xf]
    %v14025 = vld [vmem:[#allocation11 + $0xf4] sm:$0xf]
    %v14026 = vld [vmem:[#allocation11 + $0xf8] sm:$0xf]
    %v14027 = vld [vmem:[#allocation11 + $0xfc] sm:$0xf]
    %v14028 = vld [vmem:[#allocation13] sm:$0x1]
    %v14030 = vperm.slane %v14028, 0
    %v14096 = vunpack.c.l.b16 %v13964
    %v14097 = vunpack.c.l.b16 %v13965
    %v14098 = vunpack.c.l.b16 %v13966
    %v14099 = vunpack.c.l.b16 %v13967
    %v14100 = vunpack.c.l.b16 %v13968
    %v14101 = vunpack.c.l.b16 %v13969
    %v14102 = vunpack.c.l.b16 %v13970
    %v14103 = vunpack.c.l.b16 %v13971
    %v14104 = vunpack.c.l.b16 %v13972
    %v14105 = vunpack.c.l.b16 %v13973
    %v14106 = vunpack.c.l.b16 %v13974
    %v14107 = vunpack.c.l.b16 %v13975
    %v14108 = vunpack.c.l.b16 %v13976
    %v14109 = vunpack.c.l.b16 %v13977
    %v14110 = vunpack.c.l.b16 %v13978
    %v14111 = vunpack.c.l.b16 %v13979
    %v14112 = vunpack.c.l.b16 %v13980
    %v14113 = vunpack.c.l.b16 %v13981
    %v14114 = vunpack.c.l.b16 %v13982
    %v14115 = vunpack.c.l.b16 %v13983
    %v14116 = vunpack.c.l.b16 %v13984
    %v14117 = vunpack.c.l.b16 %v13985
    %v14118 = vunpack.c.l.b16 %v13986
    %v14119 = vunpack.c.l.b16 %v13987
    %v14120 = vunpack.c.l.b16 %v13988
    %v14121 = vunpack.c.l.b16 %v13989
    %v14122 = vunpack.c.l.b16 %v13990
    %v14123 = vunpack.c.l.b16 %v13991
    %v14124 = vunpack.c.l.b16 %v13992
    %v14125 = vunpack.c.l.b16 %v13993
    %v14126 = vunpack.c.l.b16 %v13994
    %v14127 = vunpack.c.l.b16 %v13995
    %v14128 = vunpack.c.l.b16 %v13996
    %v14129 = vunpack.c.l.b16 %v13997
    %v14130 = vunpack.c.l.b16 %v13998
    %v14131 = vunpack.c.l.b16 %v13999
    %v14132 = vunpack.c.l.b16 %v14000
    %v14133 = vunpack.c.l.b16 %v14001
    %v14134 = vunpack.c.l.b16 %v14002
    %v14135 = vunpack.c.l.b16 %v14003
    %v14136 = vunpack.c.l.b16 %v14004
    %v14137 = vunpack.c.l.b16 %v14005
    %v14138 = vunpack.c.l.b16 %v14006
    %v14139 = vunpack.c.l.b16 %v14007
    %v14140 = vunpack.c.l.b16 %v14008
    %v14141 = vunpack.c.l.b16 %v14009
    %v14142 = vunpack.c.l.b16 %v14010
    %v14143 = vunpack.c.l.b16 %v14011
    %v14144 = vunpack.c.l.b16 %v14012
    %v14145 = vunpack.c.l.b16 %v14013
    %v14146 = vunpack.c.l.b16 %v14014
    %v14147 = vunpack.c.l.b16 %v14015
    %v14148 = vunpack.c.l.b16 %v14016
    %v14149 = vunpack.c.l.b16 %v14017
    %v14150 = vunpack.c.l.b16 %v14018
    %v14151 = vunpack.c.l.b16 %v14019
    %v14152 = vunpack.c.l.b16 %v14020
    %v14153 = vunpack.c.l.b16 %v14021
    %v14154 = vunpack.c.l.b16 %v14022
    %v14155 = vunpack.c.l.b16 %v14023
    %v14156 = vunpack.c.l.b16 %v14024
    %v14157 = vunpack.c.l.b16 %v14025
    %v14158 = vunpack.c.l.b16 %v14026
    %v14159 = vunpack.c.l.b16 %v14027
    %v14160 = vpack.c.b16 %v14097, %v14096
    %v14161 = vpack.c.b16 %v14099, %v14098
    %v14162 = vpack.c.b16 %v14101, %v14100
    %v14163 = vpack.c.b16 %v14103, %v14102
    %v14164 = vpack.c.b16 %v14105, %v14104
    %v14165 = vpack.c.b16 %v14107, %v14106
    %v14166 = vpack.c.b16 %v14109, %v14108
    %v14167 = vpack.c.b16 %v14111, %v14110
    %v14168 = vpack.c.b16 %v14113, %v14112
    %v14169 = vpack.c.b16 %v14115, %v14114
    %v14170 = vpack.c.b16 %v14117, %v14116
    %v14171 = vpack.c.b16 %v14119, %v14118
    %v14172 = vpack.c.b16 %v14121, %v14120
    %v14173 = vpack.c.b16 %v14123, %v14122
    %v14174 = vpack.c.b16 %v14125, %v14124
    %v14175 = vpack.c.b16 %v14127, %v14126
    %v14176 = vpack.c.b16 %v14129, %v14128
    %v14177 = vpack.c.b16 %v14131, %v14130
    %v14178 = vpack.c.b16 %v14133, %v14132
    %v14179 = vpack.c.b16 %v14135, %v14134
    %v14180 = vpack.c.b16 %v14137, %v14136
    %v14181 = vpack.c.b16 %v14139, %v14138
    %v14182 = vpack.c.b16 %v14141, %v14140
    %v14183 = vpack.c.b16 %v14143, %v14142
    %v14184 = vpack.c.b16 %v14145, %v14144
    %v14185 = vpack.c.b16 %v14147, %v14146
    %v14186 = vpack.c.b16 %v14149, %v14148
    %v14187 = vpack.c.b16 %v14151, %v14150
    %v14188 = vpack.c.b16 %v14153, %v14152
    %v14189 = vpack.c.b16 %v14155, %v14154
    %v14190 = vpack.c.b16 %v14157, %v14156
    %v14191 = vpack.c.b16 %v14159, %v14158
    %14224 = vmatpush.bf16.msra.mxu0 %v14167
    %14225 = vmatpush.bf16.msra.mxu0 %v14166
    %14226 = vmatpush.bf16.msra.mxu0 %v14165
    %14227 = vmatpush.bf16.msra.mxu0 %v14164
    %14228 = vmatpush.bf16.msra.mxu0 %v14163
    %14229 = vmatpush.bf16.msra.mxu0 %v14162
    %14230 = vmatpush.bf16.msra.mxu0 %v14161
    %14231 = vmatpush.bf16.msra.mxu0 %v14160
    %14232 = vmatmul.bf16.gmra.mxu0 %v13960
    %v14233 = vpop.f32.mrf.mxu0
    %v14234 = vadd.f32 %v14030, %v14233
    %v14235 = vpop.f32.mrf.mxu0
    %14236 = vdwg.mxu0
    %14237 = vmatpush.bf16.msra.mxu0 %v14175
    %14238 = vmatpush.bf16.msra.mxu0 %v14174
    %14239 = vmatpush.bf16.msra.mxu0 %v14173
    %14240 = vmatpush.bf16.msra.mxu0 %v14172
    %14241 = vmatpush.bf16.msra.mxu0 %v14171
    %14242 = vmatpush.bf16.msra.mxu0 %v14170
    %14243 = vmatpush.bf16.msra.mxu0 %v14169
    %14244 = vmatpush.bf16.msra.mxu0 %v14168
    %14245 = vmatmul.bf16.gmra.mxu0 %v13961
    %v14246 = vpop.f32.mrf.mxu0
    %v14247 = vadd.f32 %v14234, %v14246
    %v14248 = vpop.f32.mrf.mxu0
    %14249 = vdwg.mxu0
    %14250 = vmatpush.bf16.msra.mxu0 %v14183
    %14251 = vmatpush.bf16.msra.mxu0 %v14182
    %14252 = vmatpush.bf16.msra.mxu0 %v14181
    %14253 = vmatpush.bf16.msra.mxu0 %v14180
    %14254 = vmatpush.bf16.msra.mxu0 %v14179
    %14255 = vmatpush.bf16.msra.mxu0 %v14178
    %14256 = vmatpush.bf16.msra.mxu0 %v14177
    %14257 = vmatpush.bf16.msra.mxu0 %v14176
    %14258 = vmatmul.bf16.gmra.mxu0 %v13962
    %v14259 = vpop.f32.mrf.mxu0
    %v14260 = vadd.f32 %v14247, %v14259
    %v14261 = vpop.f32.mrf.mxu0
    %14262 = vdwg.mxu0
    %14263 = vmatpush.bf16.msra.mxu0 %v14191
    %14264 = vmatpush.bf16.msra.mxu0 %v14190
    %14265 = vmatpush.bf16.msra.mxu0 %v14189
    %14266 = vmatpush.bf16.msra.mxu0 %v14188
    %14267 = vmatpush.bf16.msra.mxu0 %v14187
    %14268 = vmatpush.bf16.msra.mxu0 %v14186
    %14269 = vmatpush.bf16.msra.mxu0 %v14185
    %14270 = vmatpush.bf16.msra.mxu0 %v14184
    %14271 = vmatmul.bf16.gmra.mxu0 %v13963
    %v14272 = vpop.f32.mrf.mxu0
    %v14273 = vadd.f32 %v14260, %v14272
    %v14274 = vpop.f32.mrf.mxu0
    %14275 = vdwg.mxu0
    %14276 = vst [vmem:[#allocation14] sm:$0xff] %v14273
    // Predicated region
    $region58: #{tpu_custom_call.1} parent=1 // pred_check
      _
    $region59: #{tpu_custom_call.1} parent=1 // pred_check_branch
      %14278 = sbr.rel (0) target = $region61
    $region60: #{tpu_custom_call.1} parent=1 // pred_region
      %14280 = vsyncadd [#allocation4], 0
      %s14282 = sshll.u32 [#allocation14], 4
      %s14283 = int_to_ptr.vmem [resolvable:$true] %s14282
      %s14284 = sshll.u32 %s7, 4
      %s14285 = int_to_ptr.hbm [resolvable:$true] %s14284
      %14287 = dma.vmem_to_hbm [thread:$0]  %s14283, 128, %s14285, [#allocation4]
    $region61: #{tpu_custom_call.1} parent=1 // pred_fallthru
      _
    // Predicated region
    $region62: #{tpu_custom_call.1} parent=1 // pred_check
      _
    $region63: #{tpu_custom_call.1} parent=1 // pred_check_branch
      %14289 = sbr.rel (0) target = $region65
    $region64: #{tpu_custom_call.1} parent=1 // pred_region
      %14291 = dma.done [#allocation4], 128
    $region65: #{tpu_custom_call.1} parent=1 // pred_fallthru
      _
    %14292 = vsyncpa [#allocation3], 1
    %14293 = vsyncpa [#allocation6], 1
    %14294 = vsyncpa [#allocation9], 1
    %14295 = vsyncpa [#allocation12], 1
    %14296 = vsyncpa [#allocation4], 1

</llo_original>
